<compile_context>
chip_gen: v5e
topology: v5e:2x2
jax: 0.10.0
libtpu: 0.0.40
codegen_flags: <defaults>
</compile_context>

<pallas_src>
import math

import jax
import jax.numpy as jnp
import numpy as np
from jax.experimental import pallas as pl
from jax.experimental.pallas import tpu as pltpu


# ----------------------------------------------------------------------------- kernel
def _fca_kernel(we_ref, xp1_ref, x_ref, w_ref, b_ref, o_ref, m_scratch):
    # we_ref   : (1, 3)             ECA conv1d(k=3) weights
    # xp1_ref  : (1, H+6, W+6, C1)  spatially zero-padded conv channels (pad=3)
    # x_ref    : (1, H, W, C)       original input (this batch element)
    # w_ref    : (49, C1)           combined 7x7 depthwise weights (flattened taps)
    # b_ref    : (1, C1)            summed depthwise biases
    # o_ref    : (1, H, W, C)       output
    # m_scratch: (1, C+2) VMEM      zero-padded pooled-channel vector (ECA conv pad)
    _, H, W, C = x_ref.shape
    C1 = xp1_ref.shape[-1]
    x = x_ref[0].astype(jnp.float32)                     # (H, W, C)
    wfull = w_ref[...]                                   # (49, C1)

    # ---- combined depthwise 7x7 conv (Conv1..Conv6 summed), pad = 3, C1 channels ---
    acc = None
    for a in range(7):
        for b in range(7):
            tap = xp1_ref[0, a:a + H, b:b + W, :].astype(jnp.float32)
            term = tap * wfull[a * 7 + b:a * 7 + b + 1, :]
            acc = term if acc is None else acc + term

    # ---- fixed-filter depthwise 3x3 convs (pad=1 -> offset +2 inside pad-3 buffer) --
    def fixed_conv(filt):
        r = None
        for a in range(3):
            for b in range(3):
                cval = float(filt[a][b])
                if cval == 0.0:
                    continue
                tap = xp1_ref[0, a + 2:a + 2 + H, b + 2:b + 2 + W, :].astype(jnp.float32)
                term = tap if cval == 1.0 else cval * tap
                r = term if r is None else r + term
        return r

    SOB  = ((1., 0., -1.), (2., 0., -2.), (1., 0., -1.))
    SOBT = ((1., 2., 1.), (0., 0., 0.), (-1., -2., -1.))
    LAP  = ((0., 1., 0.), (1., -4., 1.), (0., 1., 0.))   # symmetric: |L| + |L^T| = 2|L|
    edge = (jnp.abs(fixed_conv(SOB)) + jnp.abs(fixed_conv(SOBT))
            + 2.0 * jnp.abs(fixed_conv(LAP)))

    # ---- conv-channel branch: LeakyReLU(sum of 8 branches) + residual, channel mean -
    x1 = xp1_ref[0, 3:3 + H, 3:3 + W, :].astype(jnp.float32)     # interior = x1
    pre1 = acc + edge + b_ref[...]
    end1 = jnp.where(pre1 >= 0.0, pre1, 0.01 * pre1) + x1
    m1 = jnp.mean(jnp.mean(end1, axis=0), axis=0, keepdims=True)          # (1, C1)

    # ---- untouched channels: each of the 8 concatenations contributes x2 once ------
    pre2 = 8.0 * x
    end2 = jnp.where(pre2 >= 0.0, pre2, 0.01 * pre2) + x
    m2 = jnp.mean(jnp.mean(end2, axis=0), axis=0, keepdims=True)          # (1, C)

    # ---- ECA: assemble pooled vector (first C1 entries from the conv branch) into a
    #      zero-padded scratch, 3-tap channel conv via shifted reads, sigmoid --------
    m_scratch[...] = jnp.zeros_like(m_scratch)
    m_scratch[:, 1:C + 1] = m2
    m_scratch[:, 1:C1 + 1] = m1
    we = we_ref[...]                                                      # (1, 3)
    att_pre = (we[:, 0:1] * m_scratch[:, 0:C] +
               we[:, 1:2] * m_scratch[:, 1:C + 1] +
               we[:, 2:3] * m_scratch[:, 2:C + 2])
    att = jax.nn.sigmoid(att_pre)                                         # (1, C)

    o_ref[0] = (x * att).astype(o_ref.dtype)


# ----------------------------------------------------------------------- param setup
def init_params(key, C):
    """Deterministic parameter init matching the shapes in the PyTorch module."""
    C1 = C // 4
    ks = jax.random.split(key, 13)

    def u(k, shape, fan_in):
        bound = 1.0 / math.sqrt(fan_in)
        return jax.random.uniform(k, shape, jnp.float32, -bound, bound)

    p = {}
    p["w1"] = u(ks[0], (C1, 1, 1), 1);   p["b1"] = u(ks[1], (C1,), 1)
    p["w2"] = u(ks[2], (C1, 3, 3), 9);   p["b2"] = u(ks[3], (C1,), 9)
    p["w3"] = u(ks[4], (C1, 5, 5), 25);  p["b3"] = u(ks[5], (C1,), 25)
    p["w4"] = u(ks[6], (C1, 7, 7), 49);  p["b4"] = u(ks[7], (C1,), 49)
    p["w5"] = u(ks[8], (C1, 1, 3), 3);   p["b5"] = u(ks[9], (C1,), 3)
    p["w6"] = u(ks[10], (C1, 3, 1), 3);  p["b6"] = u(ks[11], (C1,), 3)
    p["w_eca"] = u(ks[12], (3,), 3)
    return p
    # NOTE: FMRB.partial_conv3 is defined in the PyTorch module but never used in
    # forward(), so it is intentionally omitted.


def build_kernel_inputs(p, C):
    """Combine Conv1..Conv6 into one centered 7x7 depthwise kernel (C1 channels),
    sum the biases, and reshape the ECA weights."""
    C1 = C // 4
    wc = jnp.zeros((C1, 7, 7), jnp.float32)
    wc = wc.at[:, 3, 3].add(p["w1"][:, 0, 0])
    wc = wc.at[:, 2:5, 2:5].add(p["w2"])
    wc = wc.at[:, 1:6, 1:6].add(p["w3"])
    wc = wc + p["w4"]
    wc = wc.at[:, 3, 2:5].add(p["w5"][:, 0, :])
    wc = wc.at[:, 2:5, 3].add(p["w6"][:, :, 0])
    wcomb = jnp.transpose(wc, (1, 2, 0)).reshape(49, C1)

    bsum = (p["b1"] + p["b2"] + p["b3"] + p["b4"] + p["b5"] + p["b6"]).reshape(1, C1)
    we = p["w_eca"].reshape(1, 3).astype(jnp.float32)
    return wcomb, bsum, we


# ------------------------------------------------------------------------- wrapper
@jax.jit
def fast_conv_attention(x_nchw, params):
    B, C, H, W = x_nchw.shape
    C1 = C // 4
    x = jnp.transpose(x_nchw, (0, 2, 3, 1)).astype(jnp.float32)         # (B, H, W, C)
    x1p = jnp.pad(x[..., :C1], ((0, 0), (3, 3), (3, 3), (0, 0)))        # (B, H+6, W+6, C1)
    wcomb, bias, we = build_kernel_inputs(params, C)

    out_nhwc = pl.pallas_call(
        _fca_kernel,
        out_shape=jax.ShapeDtypeStruct((B, H, W, C), jnp.float32),
        grid_spec=pltpu.PrefetchScalarGridSpec(
            num_scalar_prefetch=0,
            grid=(B,),
            in_specs=[
                pl.BlockSpec((1, 3), lambda b: (0, 0)),                          # ECA w
                pl.BlockSpec((1, H + 6, W + 6, C1), lambda b: (b, 0, 0, 0)),     # xp1
                pl.BlockSpec((1, H, W, C), lambda b: (b, 0, 0, 0)),              # x
                pl.BlockSpec((49, C1), lambda b: (0, 0)),                        # weights
                pl.BlockSpec((1, C1), lambda b: (0, 0)),                         # bias
            ],
            out_specs=pl.BlockSpec((1, H, W, C), lambda b: (b, 0, 0, 0)),
            scratch_shapes=[pltpu.VMEM((1, C + 2), jnp.float32)],
        ),
        compiler_params=pltpu.CompilerParams(
            dimension_semantics=("parallel",),
            vmem_limit_bytes=64 * 1024 * 1024,
        ),
    )(we, x1p, x, wcomb, bias)

    return jnp.transpose(out_nhwc, (0, 3, 1, 2))                        # back to NCHW


# ------------------------------------------------------------------ pure-JAX reference
def _depthwise_ref(x, w, ph, pw, bias=None):
    # x: (B, Cc, H, W), w: (Cc, kh, kw) — cross-correlation, like torch Conv2d(groups=Cc)
    B, Cc, H, W = x.shape
    kh, kw = w.shape[1], w.shape[2]
    xpad = jnp.pad(x, ((0, 0), (0, 0), (ph, ph), (pw, pw)))
    out = jnp.zeros((B, Cc, H, W), jnp.float32)
    for a in range(kh):
        for b in range(kw):
            out = out + xpad[:, :, a:a + H, b:b + W] * w[:, a, b][None, :, None, None]
    if bias is not None:
        out = out + bias[None, :, None, None]
    return out


def ref_forward(x, p):
    B, C, H, W = x.shape
    C1 = C // 4
    x1, x2 = x[:, :C1], x[:, C1:]
    c1 = _depthwise_ref(x1, p["w1"], 0, 0, p["b1"])
    c2 = _depthwise_ref(x1, p["w2"], 1, 1, p["b2"])
    c3 = _depthwise_ref(x1, p["w3"], 2, 2, p["b3"])
    c4 = _depthwise_ref(x1, p["w4"], 3, 3, p["b4"])
    c5 = _depthwise_ref(x1, p["w5"], 0, 1, p["b5"])
    c6 = _depthwise_ref(x1, p["w6"], 1, 0, p["b6"])
    sob = jnp.array([[1., 0., -1.], [2., 0., -2.], [1., 0., -1.]], jnp.float32)
    lap = jnp.array([[0., 1., 0.], [1., -4., 1.], [0., 1., 0.]], jnp.float32)

    def fixed(f):
        return _depthwise_ref(x1, jnp.broadcast_to(f, (C1, 3, 3)), 1, 1)

    sobel = jnp.abs(fixed(sob)) + jnp.abs(fixed(sob.T))
    lapla = jnp.abs(fixed(lap)) + jnp.abs(fixed(lap.T))
    sum_x1 = c1 + c2 + c3 + c4 + c5 + c6 + sobel + lapla
    pre = jnp.concatenate([sum_x1, 8.0 * x2], axis=1)
    end = jnp.where(pre >= 0.0, pre, 0.01 * pre) + x
    # ECA
    m = jnp.mean(end, axis=(2, 3))                       # (B, C)
    mp = jnp.pad(m, ((0, 0), (1, 1)))
    we = p["w_eca"]
    att_pre = we[0] * mp[:, 0:C] + we[1] * mp[:, 1:C + 1] + we[2] * mp[:, 2:C + 2]
    att = jax.nn.sigmoid(att_pre)
    return x * att[:, :, None, None]


# ---------------------------------------------------------------------------- main
if __name__ == "__main__":
    B, C, H, W = 2, 8, 16, 16            # in_feature = 8 -> dim_conv3 = 2
    key = jax.random.PRNGKey(0)
    kx, kp = jax.random.split(key)
    x = jax.random.normal(kx, (B, C, H, W), dtype=jnp.float32)
    params = init_params(kp, C)

    out = fast_conv_attention(x, params)
    out = jax.block_until_ready(out)

    ref = ref_forward(x, params)
    assert out.shape == x.shape
    np.testing.assert_allclose(np.asarray(out), np.asarray(ref), rtol=1e-3, atol=1e-3)
    print("KERNEL_OK")
</pallas_src>

<mosaic_0001>
module attributes {stable_mosaic.version = 11 : i64} {
  func.func @_fca_kernel(%arg0: i32, %arg1: memref<1x3xf32, #tpu.memory_space<vmem>>, %arg2: memref<1x22x22x2xf32, #tpu.memory_space<vmem>>, %arg3: memref<1x16x16x8xf32, #tpu.memory_space<vmem>>, %arg4: memref<49x2xf32, #tpu.memory_space<vmem>>, %arg5: memref<1x2xf32, #tpu.memory_space<vmem>>, %arg6: memref<1x16x16x8xf32, #tpu.memory_space<vmem>>, %arg7: memref<1x10xf32, #tpu.memory_space<vmem>>) attributes {dimension_semantics = [#tpu.dimension_semantics<parallel>], iteration_bounds = array<i64: 2>, scalar_prefetch = 0 : i64, scratch_operands = 1 : i64, tpu.core_type = #tpu.core_type<tc>, window_params = [{pipeline_mode = #tpu.pipeline_mode<synchronous>, transform_indices = @transform_0, window_bounds = array<i64: 1, 3>}, {transform_indices = @transform_1, window_bounds = array<i64: 1, 22, 22, 2>}, {transform_indices = @transform_2, window_bounds = array<i64: 1, 16, 16, 8>}, {pipeline_mode = #tpu.pipeline_mode<synchronous>, transform_indices = @transform_3, window_bounds = array<i64: 49, 2>}, {pipeline_mode = #tpu.pipeline_mode<synchronous>, transform_indices = @transform_4, window_bounds = array<i64: 1, 2>}, {transform_indices = @transform_5, window_bounds = array<i64: 1, 16, 16, 8>}]} {
    %c0 = arith.constant 0 : index
    %c0_0 = arith.constant 0 : index
    %c0_1 = arith.constant 0 : index
    %c0_2 = arith.constant 0 : index
    %0 = vector.load %arg3[%c0, %c0_0, %c0_1, %c0_2] : memref<1x16x16x8xf32, #tpu.memory_space<vmem>>, vector<1x16x16x8xf32>
    %1 = vector.shape_cast %0 : vector<1x16x16x8xf32> to vector<16x16x8xf32>
    %c0_3 = arith.constant 0 : index
    %c0_4 = arith.constant 0 : index
    %2 = vector.load %arg4[%c0_3, %c0_4] : memref<49x2xf32, #tpu.memory_space<vmem>>, vector<49x2xf32>
    %c0_5 = arith.constant 0 : index
    %c0_6 = arith.constant 0 : index
    %c0_7 = arith.constant 0 : index
    %c0_8 = arith.constant 0 : index
    %3 = vector.load %arg2[%c0_5, %c0_6, %c0_7, %c0_8] : memref<1x22x22x2xf32, #tpu.memory_space<vmem>>, vector<1x16x16x2xf32>
    %4 = vector.shape_cast %3 : vector<1x16x16x2xf32> to vector<16x16x2xf32>
    %5 = vector.extract_strided_slice %2 {offsets = [0, 0], sizes = [1, 2], strides = [1, 1]} : vector<49x2xf32> to vector<1x2xf32>
    %6 = vector.shape_cast %5 : vector<1x2xf32> to vector<1x1x2xf32>
    %7 = vector.broadcast %6 : vector<1x1x2xf32> to vector<16x16x2xf32>
    %8 = arith.mulf %4, %7 : vector<16x16x2xf32>
    %c0_9 = arith.constant 0 : index
    %c0_10 = arith.constant 0 : index
    %c1 = arith.constant 1 : index
    %c0_11 = arith.constant 0 : index
    %9 = vector.load %arg2[%c0_9, %c0_10, %c1, %c0_11] : memref<1x22x22x2xf32, #tpu.memory_space<vmem>>, vector<1x16x16x2xf32>
    %10 = vector.shape_cast %9 : vector<1x16x16x2xf32> to vector<16x16x2xf32>
    %11 = vector.extract_strided_slice %2 {offsets = [1, 0], sizes = [1, 2], strides = [1, 1]} : vector<49x2xf32> to vector<1x2xf32>
    %12 = vector.shape_cast %11 : vector<1x2xf32> to vector<1x1x2xf32>
    %13 = vector.broadcast %12 : vector<1x1x2xf32> to vector<16x16x2xf32>
    %14 = arith.mulf %10, %13 : vector<16x16x2xf32>
    %15 = arith.addf %8, %14 : vector<16x16x2xf32>
    %c0_12 = arith.constant 0 : index
    %c0_13 = arith.constant 0 : index
    %c2 = arith.constant 2 : index
    %c0_14 = arith.constant 0 : index
    %16 = vector.load %arg2[%c0_12, %c0_13, %c2, %c0_14] : memref<1x22x22x2xf32, #tpu.memory_space<vmem>>, vector<1x16x16x2xf32>
    %17 = vector.shape_cast %16 : vector<1x16x16x2xf32> to vector<16x16x2xf32>
    %18 = vector.extract_strided_slice %2 {offsets = [2, 0], sizes = [1, 2], strides = [1, 1]} : vector<49x2xf32> to vector<1x2xf32>
    %19 = vector.shape_cast %18 : vector<1x2xf32> to vector<1x1x2xf32>
    %20 = vector.broadcast %19 : vector<1x1x2xf32> to vector<16x16x2xf32>
    %21 = arith.mulf %17, %20 : vector<16x16x2xf32>
    %22 = arith.addf %15, %21 : vector<16x16x2xf32>
    %c0_15 = arith.constant 0 : index
    %c0_16 = arith.constant 0 : index
    %c3 = arith.constant 3 : index
    %c0_17 = arith.constant 0 : index
    %23 = vector.load %arg2[%c0_15, %c0_16, %c3, %c0_17] : memref<1x22x22x2xf32, #tpu.memory_space<vmem>>, vector<1x16x16x2xf32>
    %24 = vector.shape_cast %23 : vector<1x16x16x2xf32> to vector<16x16x2xf32>
    %25 = vector.extract_strided_slice %2 {offsets = [3, 0], sizes = [1, 2], strides = [1, 1]} : vector<49x2xf32> to vector<1x2xf32>
    %26 = vector.shape_cast %25 : vector<1x2xf32> to vector<1x1x2xf32>
    %27 = vector.broadcast %26 : vector<1x1x2xf32> to vector<16x16x2xf32>
    %28 = arith.mulf %24, %27 : vector<16x16x2xf32>
    %29 = arith.addf %22, %28 : vector<16x16x2xf32>
    %c0_18 = arith.constant 0 : index
    %c0_19 = arith.constant 0 : index
    %c4 = arith.constant 4 : index
    %c0_20 = arith.constant 0 : index
    %30 = vector.load %arg2[%c0_18, %c0_19, %c4, %c0_20] : memref<1x22x22x2xf32, #tpu.memory_space<vmem>>, vector<1x16x16x2xf32>
    %31 = vector.shape_cast %30 : vector<1x16x16x2xf32> to vector<16x16x2xf32>
    %32 = vector.extract_strided_slice %2 {offsets = [4, 0], sizes = [1, 2], strides = [1, 1]} : vector<49x2xf32> to vector<1x2xf32>
    %33 = vector.shape_cast %32 : vector<1x2xf32> to vector<1x1x2xf32>
    %34 = vector.broadcast %33 : vector<1x1x2xf32> to vector<16x16x2xf32>
    %35 = arith.mulf %31, %34 : vector<16x16x2xf32>
    %36 = arith.addf %29, %35 : vector<16x16x2xf32>
    %c0_21 = arith.constant 0 : index
    %c0_22 = arith.constant 0 : index
    %c5 = arith.constant 5 : index
    %c0_23 = arith.constant 0 : index
    %37 = vector.load %arg2[%c0_21, %c0_22, %c5, %c0_23] : memref<1x22x22x2xf32, #tpu.memory_space<vmem>>, vector<1x16x16x2xf32>
    %38 = vector.shape_cast %37 : vector<1x16x16x2xf32> to vector<16x16x2xf32>
    %39 = vector.extract_strided_slice %2 {offsets = [5, 0], sizes = [1, 2], strides = [1, 1]} : vector<49x2xf32> to vector<1x2xf32>
    %40 = vector.shape_cast %39 : vector<1x2xf32> to vector<1x1x2xf32>
    %41 = vector.broadcast %40 : vector<1x1x2xf32> to vector<16x16x2xf32>
    %42 = arith.mulf %38, %41 : vector<16x16x2xf32>
    %43 = arith.addf %36, %42 : vector<16x16x2xf32>
    %c0_24 = arith.constant 0 : index
    %c0_25 = arith.constant 0 : index
    %c6 = arith.constant 6 : index
    %c0_26 = arith.constant 0 : index
    %44 = vector.load %arg2[%c0_24, %c0_25, %c6, %c0_26] : memref<1x22x22x2xf32, #tpu.memory_space<vmem>>, vector<1x16x16x2xf32>
    %45 = vector.shape_cast %44 : vector<1x16x16x2xf32> to vector<16x16x2xf32>
    %46 = vector.extract_strided_slice %2 {offsets = [6, 0], sizes = [1, 2], strides = [1, 1]} : vector<49x2xf32> to vector<1x2xf32>
    %47 = vector.shape_cast %46 : vector<1x2xf32> to vector<1x1x2xf32>
    %48 = vector.broadcast %47 : vector<1x1x2xf32> to vector<16x16x2xf32>
    %49 = arith.mulf %45, %48 : vector<16x16x2xf32>
    %50 = arith.addf %43, %49 : vector<16x16x2xf32>
    %c0_27 = arith.constant 0 : index
    %c1_28 = arith.constant 1 : index
    %c0_29 = arith.constant 0 : index
    %c0_30 = arith.constant 0 : index
    %51 = vector.load %arg2[%c0_27, %c1_28, %c0_29, %c0_30] : memref<1x22x22x2xf32, #tpu.memory_space<vmem>>, vector<1x16x16x2xf32>
    %52 = vector.shape_cast %51 : vector<1x16x16x2xf32> to vector<16x16x2xf32>
    %53 = vector.extract_strided_slice %2 {offsets = [7, 0], sizes = [1, 2], strides = [1, 1]} : vector<49x2xf32> to vector<1x2xf32>
    %54 = vector.shape_cast %53 : vector<1x2xf32> to vector<1x1x2xf32>
    %55 = vector.broadcast %54 : vector<1x1x2xf32> to vector<16x16x2xf32>
    %56 = arith.mulf %52, %55 : vector<16x16x2xf32>
    %57 = arith.addf %50, %56 : vector<16x16x2xf32>
    %c0_31 = arith.constant 0 : index
    %c1_32 = arith.constant 1 : index
    %c1_33 = arith.constant 1 : index
    %c0_34 = arith.constant 0 : index
    %58 = vector.load %arg2[%c0_31, %c1_32, %c1_33, %c0_34] : memref<1x22x22x2xf32, #tpu.memory_space<vmem>>, vector<1x16x16x2xf32>
    %59 = vector.shape_cast %58 : vector<1x16x16x2xf32> to vector<16x16x2xf32>
    %60 = vector.extract_strided_slice %2 {offsets = [8, 0], sizes = [1, 2], strides = [1, 1]} : vector<49x2xf32> to vector<1x2xf32>
    %61 = vector.shape_cast %60 : vector<1x2xf32> to vector<1x1x2xf32>
    %62 = vector.broadcast %61 : vector<1x1x2xf32> to vector<16x16x2xf32>
    %63 = arith.mulf %59, %62 : vector<16x16x2xf32>
    %64 = arith.addf %57, %63 : vector<16x16x2xf32>
    %c0_35 = arith.constant 0 : index
    %c1_36 = arith.constant 1 : index
    %c2_37 = arith.constant 2 : index
    %c0_38 = arith.constant 0 : index
    %65 = vector.load %arg2[%c0_35, %c1_36, %c2_37, %c0_38] : memref<1x22x22x2xf32, #tpu.memory_space<vmem>>, vector<1x16x16x2xf32>
    %66 = vector.shape_cast %65 : vector<1x16x16x2xf32> to vector<16x16x2xf32>
    %67 = vector.extract_strided_slice %2 {offsets = [9, 0], sizes = [1, 2], strides = [1, 1]} : vector<49x2xf32> to vector<1x2xf32>
    %68 = vector.shape_cast %67 : vector<1x2xf32> to vector<1x1x2xf32>
    %69 = vector.broadcast %68 : vector<1x1x2xf32> to vector<16x16x2xf32>
    %70 = arith.mulf %66, %69 : vector<16x16x2xf32>
    %71 = arith.addf %64, %70 : vector<16x16x2xf32>
    %c0_39 = arith.constant 0 : index
    %c1_40 = arith.constant 1 : index
    %c3_41 = arith.constant 3 : index
    %c0_42 = arith.constant 0 : index
    %72 = vector.load %arg2[%c0_39, %c1_40, %c3_41, %c0_42] : memref<1x22x22x2xf32, #tpu.memory_space<vmem>>, vector<1x16x16x2xf32>
    %73 = vector.shape_cast %72 : vector<1x16x16x2xf32> to vector<16x16x2xf32>
    %74 = vector.extract_strided_slice %2 {offsets = [10, 0], sizes = [1, 2], strides = [1, 1]} : vector<49x2xf32> to vector<1x2xf32>
    %75 = vector.shape_cast %74 : vector<1x2xf32> to vector<1x1x2xf32>
    %76 = vector.broadcast %75 : vector<1x1x2xf32> to vector<16x16x2xf32>
    %77 = arith.mulf %73, %76 : vector<16x16x2xf32>
    %78 = arith.addf %71, %77 : vector<16x16x2xf32>
    %c0_43 = arith.constant 0 : index
    %c1_44 = arith.constant 1 : index
    %c4_45 = arith.constant 4 : index
    %c0_46 = arith.constant 0 : index
    %79 = vector.load %arg2[%c0_43, %c1_44, %c4_45, %c0_46] : memref<1x22x22x2xf32, #tpu.memory_space<vmem>>, vector<1x16x16x2xf32>
    %80 = vector.shape_cast %79 : vector<1x16x16x2xf32> to vector<16x16x2xf32>
    %81 = vector.extract_strided_slice %2 {offsets = [11, 0], sizes = [1, 2], strides = [1, 1]} : vector<49x2xf32> to vector<1x2xf32>
    %82 = vector.shape_cast %81 : vector<1x2xf32> to vector<1x1x2xf32>
    %83 = vector.broadcast %82 : vector<1x1x2xf32> to vector<16x16x2xf32>
    %84 = arith.mulf %80, %83 : vector<16x16x2xf32>
    %85 = arith.addf %78, %84 : vector<16x16x2xf32>
    %c0_47 = arith.constant 0 : index
    %c1_48 = arith.constant 1 : index
    %c5_49 = arith.constant 5 : index
    %c0_50 = arith.constant 0 : index
    %86 = vector.load %arg2[%c0_47, %c1_48, %c5_49, %c0_50] : memref<1x22x22x2xf32, #tpu.memory_space<vmem>>, vector<1x16x16x2xf32>
    %87 = vector.shape_cast %86 : vector<1x16x16x2xf32> to vector<16x16x2xf32>
    %88 = vector.extract_strided_slice %2 {offsets = [12, 0], sizes = [1, 2], strides = [1, 1]} : vector<49x2xf32> to vector<1x2xf32>
    %89 = vector.shape_cast %88 : vector<1x2xf32> to vector<1x1x2xf32>
    %90 = vector.broadcast %89 : vector<1x1x2xf32> to vector<16x16x2xf32>
    %91 = arith.mulf %87, %90 : vector<16x16x2xf32>
    %92 = arith.addf %85, %91 : vector<16x16x2xf32>
    %c0_51 = arith.constant 0 : index
    %c1_52 = arith.constant 1 : index
    %c6_53 = arith.constant 6 : index
    %c0_54 = arith.constant 0 : index
    %93 = vector.load %arg2[%c0_51, %c1_52, %c6_53, %c0_54] : memref<1x22x22x2xf32, #tpu.memory_space<vmem>>, vector<1x16x16x2xf32>
    %94 = vector.shape_cast %93 : vector<1x16x16x2xf32> to vector<16x16x2xf32>
    %95 = vector.extract_strided_slice %2 {offsets = [13, 0], sizes = [1, 2], strides = [1, 1]} : vector<49x2xf32> to vector<1x2xf32>
    %96 = vector.shape_cast %95 : vector<1x2xf32> to vector<1x1x2xf32>
    %97 = vector.broadcast %96 : vector<1x1x2xf32> to vector<16x16x2xf32>
    %98 = arith.mulf %94, %97 : vector<16x16x2xf32>
    %99 = arith.addf %92, %98 : vector<16x16x2xf32>
    %c0_55 = arith.constant 0 : index
    %c2_56 = arith.constant 2 : index
    %c0_57 = arith.constant 0 : index
    %c0_58 = arith.constant 0 : index
    %100 = vector.load %arg2[%c0_55, %c2_56, %c0_57, %c0_58] : memref<1x22x22x2xf32, #tpu.memory_space<vmem>>, vector<1x16x16x2xf32>
    %101 = vector.shape_cast %100 : vector<1x16x16x2xf32> to vector<16x16x2xf32>
    %102 = vector.extract_strided_slice %2 {offsets = [14, 0], sizes = [1, 2], strides = [1, 1]} : vector<49x2xf32> to vector<1x2xf32>
    %103 = vector.shape_cast %102 : vector<1x2xf32> to vector<1x1x2xf32>
    %104 = vector.broadcast %103 : vector<1x1x2xf32> to vector<16x16x2xf32>
    %105 = arith.mulf %101, %104 : vector<16x16x2xf32>
    %106 = arith.addf %99, %105 : vector<16x16x2xf32>
    %c0_59 = arith.constant 0 : index
    %c2_60 = arith.constant 2 : index
    %c1_61 = arith.constant 1 : index
    %c0_62 = arith.constant 0 : index
    %107 = vector.load %arg2[%c0_59, %c2_60, %c1_61, %c0_62] : memref<1x22x22x2xf32, #tpu.memory_space<vmem>>, vector<1x16x16x2xf32>
    %108 = vector.shape_cast %107 : vector<1x16x16x2xf32> to vector<16x16x2xf32>
    %109 = vector.extract_strided_slice %2 {offsets = [15, 0], sizes = [1, 2], strides = [1, 1]} : vector<49x2xf32> to vector<1x2xf32>
    %110 = vector.shape_cast %109 : vector<1x2xf32> to vector<1x1x2xf32>
    %111 = vector.broadcast %110 : vector<1x1x2xf32> to vector<16x16x2xf32>
    %112 = arith.mulf %108, %111 : vector<16x16x2xf32>
    %113 = arith.addf %106, %112 : vector<16x16x2xf32>
    %c0_63 = arith.constant 0 : index
    %c2_64 = arith.constant 2 : index
    %c2_65 = arith.constant 2 : index
    %c0_66 = arith.constant 0 : index
    %114 = vector.load %arg2[%c0_63, %c2_64, %c2_65, %c0_66] : memref<1x22x22x2xf32, #tpu.memory_space<vmem>>, vector<1x16x16x2xf32>
    %115 = vector.shape_cast %114 : vector<1x16x16x2xf32> to vector<16x16x2xf32>
    %116 = vector.extract_strided_slice %2 {offsets = [16, 0], sizes = [1, 2], strides = [1, 1]} : vector<49x2xf32> to vector<1x2xf32>
    %117 = vector.shape_cast %116 : vector<1x2xf32> to vector<1x1x2xf32>
    %118 = vector.broadcast %117 : vector<1x1x2xf32> to vector<16x16x2xf32>
    %119 = arith.mulf %115, %118 : vector<16x16x2xf32>
    %120 = arith.addf %113, %119 : vector<16x16x2xf32>
    %c0_67 = arith.constant 0 : index
    %c2_68 = arith.constant 2 : index
    %c3_69 = arith.constant 3 : index
    %c0_70 = arith.constant 0 : index
    %121 = vector.load %arg2[%c0_67, %c2_68, %c3_69, %c0_70] : memref<1x22x22x2xf32, #tpu.memory_space<vmem>>, vector<1x16x16x2xf32>
    %122 = vector.shape_cast %121 : vector<1x16x16x2xf32> to vector<16x16x2xf32>
    %123 = vector.extract_strided_slice %2 {offsets = [17, 0], sizes = [1, 2], strides = [1, 1]} : vector<49x2xf32> to vector<1x2xf32>
    %124 = vector.shape_cast %123 : vector<1x2xf32> to vector<1x1x2xf32>
    %125 = vector.broadcast %124 : vector<1x1x2xf32> to vector<16x16x2xf32>
    %126 = arith.mulf %122, %125 : vector<16x16x2xf32>
    %127 = arith.addf %120, %126 : vector<16x16x2xf32>
    %c0_71 = arith.constant 0 : index
    %c2_72 = arith.constant 2 : index
    %c4_73 = arith.constant 4 : index
    %c0_74 = arith.constant 0 : index
    %128 = vector.load %arg2[%c0_71, %c2_72, %c4_73, %c0_74] : memref<1x22x22x2xf32, #tpu.memory_space<vmem>>, vector<1x16x16x2xf32>
    %129 = vector.shape_cast %128 : vector<1x16x16x2xf32> to vector<16x16x2xf32>
    %130 = vector.extract_strided_slice %2 {offsets = [18, 0], sizes = [1, 2], strides = [1, 1]} : vector<49x2xf32> to vector<1x2xf32>
    %131 = vector.shape_cast %130 : vector<1x2xf32> to vector<1x1x2xf32>
    %132 = vector.broadcast %131 : vector<1x1x2xf32> to vector<16x16x2xf32>
    %133 = arith.mulf %129, %132 : vector<16x16x2xf32>
    %134 = arith.addf %127, %133 : vector<16x16x2xf32>
    %c0_75 = arith.constant 0 : index
    %c2_76 = arith.constant 2 : index
    %c5_77 = arith.constant 5 : index
    %c0_78 = arith.constant 0 : index
    %135 = vector.load %arg2[%c0_75, %c2_76, %c5_77, %c0_78] : memref<1x22x22x2xf32, #tpu.memory_space<vmem>>, vector<1x16x16x2xf32>
    %136 = vector.shape_cast %135 : vector<1x16x16x2xf32> to vector<16x16x2xf32>
    %137 = vector.extract_strided_slice %2 {offsets = [19, 0], sizes = [1, 2], strides = [1, 1]} : vector<49x2xf32> to vector<1x2xf32>
    %138 = vector.shape_cast %137 : vector<1x2xf32> to vector<1x1x2xf32>
    %139 = vector.broadcast %138 : vector<1x1x2xf32> to vector<16x16x2xf32>
    %140 = arith.mulf %136, %139 : vector<16x16x2xf32>
    %141 = arith.addf %134, %140 : vector<16x16x2xf32>
    %c0_79 = arith.constant 0 : index
    %c2_80 = arith.constant 2 : index
    %c6_81 = arith.constant 6 : index
    %c0_82 = arith.constant 0 : index
    %142 = vector.load %arg2[%c0_79, %c2_80, %c6_81, %c0_82] : memref<1x22x22x2xf32, #tpu.memory_space<vmem>>, vector<1x16x16x2xf32>
    %143 = vector.shape_cast %142 : vector<1x16x16x2xf32> to vector<16x16x2xf32>
    %144 = vector.extract_strided_slice %2 {offsets = [20, 0], sizes = [1, 2], strides = [1, 1]} : vector<49x2xf32> to vector<1x2xf32>
    %145 = vector.shape_cast %144 : vector<1x2xf32> to vector<1x1x2xf32>
    %146 = vector.broadcast %145 : vector<1x1x2xf32> to vector<16x16x2xf32>
    %147 = arith.mulf %143, %146 : vector<16x16x2xf32>
    %148 = arith.addf %141, %147 : vector<16x16x2xf32>
    %c0_83 = arith.constant 0 : index
    %c3_84 = arith.constant 3 : index
    %c0_85 = arith.constant 0 : index
    %c0_86 = arith.constant 0 : index
    %149 = vector.load %arg2[%c0_83, %c3_84, %c0_85, %c0_86] : memref<1x22x22x2xf32, #tpu.memory_space<vmem>>, vector<1x16x16x2xf32>
    %150 = vector.shape_cast %149 : vector<1x16x16x2xf32> to vector<16x16x2xf32>
    %151 = vector.extract_strided_slice %2 {offsets = [21, 0], sizes = [1, 2], strides = [1, 1]} : vector<49x2xf32> to vector<1x2xf32>
    %152 = vector.shape_cast %151 : vector<1x2xf32> to vector<1x1x2xf32>
    %153 = vector.broadcast %152 : vector<1x1x2xf32> to vector<16x16x2xf32>
    %154 = arith.mulf %150, %153 : vector<16x16x2xf32>
    %155 = arith.addf %148, %154 : vector<16x16x2xf32>
    %c0_87 = arith.constant 0 : index
    %c3_88 = arith.constant 3 : index
    %c1_89 = arith.constant 1 : index
    %c0_90 = arith.constant 0 : index
    %156 = vector.load %arg2[%c0_87, %c3_88, %c1_89, %c0_90] : memref<1x22x22x2xf32, #tpu.memory_space<vmem>>, vector<1x16x16x2xf32>
    %157 = vector.shape_cast %156 : vector<1x16x16x2xf32> to vector<16x16x2xf32>
    %158 = vector.extract_strided_slice %2 {offsets = [22, 0], sizes = [1, 2], strides = [1, 1]} : vector<49x2xf32> to vector<1x2xf32>
    %159 = vector.shape_cast %158 : vector<1x2xf32> to vector<1x1x2xf32>
    %160 = vector.broadcast %159 : vector<1x1x2xf32> to vector<16x16x2xf32>
    %161 = arith.mulf %157, %160 : vector<16x16x2xf32>
    %162 = arith.addf %155, %161 : vector<16x16x2xf32>
    %c0_91 = arith.constant 0 : index
    %c3_92 = arith.constant 3 : index
    %c2_93 = arith.constant 2 : index
    %c0_94 = arith.constant 0 : index
    %163 = vector.load %arg2[%c0_91, %c3_92, %c2_93, %c0_94] : memref<1x22x22x2xf32, #tpu.memory_space<vmem>>, vector<1x16x16x2xf32>
    %164 = vector.shape_cast %163 : vector<1x16x16x2xf32> to vector<16x16x2xf32>
    %165 = vector.extract_strided_slice %2 {offsets = [23, 0], sizes = [1, 2], strides = [1, 1]} : vector<49x2xf32> to vector<1x2xf32>
    %166 = vector.shape_cast %165 : vector<1x2xf32> to vector<1x1x2xf32>
    %167 = vector.broadcast %166 : vector<1x1x2xf32> to vector<16x16x2xf32>
    %168 = arith.mulf %164, %167 : vector<16x16x2xf32>
    %169 = arith.addf %162, %168 : vector<16x16x2xf32>
    %c0_95 = arith.constant 0 : index
    %c3_96 = arith.constant 3 : index
    %c3_97 = arith.constant 3 : index
    %c0_98 = arith.constant 0 : index
    %170 = vector.load %arg2[%c0_95, %c3_96, %c3_97, %c0_98] : memref<1x22x22x2xf32, #tpu.memory_space<vmem>>, vector<1x16x16x2xf32>
    %171 = vector.shape_cast %170 : vector<1x16x16x2xf32> to vector<16x16x2xf32>
    %172 = vector.extract_strided_slice %2 {offsets = [24, 0], sizes = [1, 2], strides = [1, 1]} : vector<49x2xf32> to vector<1x2xf32>
    %173 = vector.shape_cast %172 : vector<1x2xf32> to vector<1x1x2xf32>
    %174 = vector.broadcast %173 : vector<1x1x2xf32> to vector<16x16x2xf32>
    %175 = arith.mulf %171, %174 : vector<16x16x2xf32>
    %176 = arith.addf %169, %175 : vector<16x16x2xf32>
    %c0_99 = arith.constant 0 : index
    %c3_100 = arith.constant 3 : index
    %c4_101 = arith.constant 4 : index
    %c0_102 = arith.constant 0 : index
    %177 = vector.load %arg2[%c0_99, %c3_100, %c4_101, %c0_102] : memref<1x22x22x2xf32, #tpu.memory_space<vmem>>, vector<1x16x16x2xf32>
    %178 = vector.shape_cast %177 : vector<1x16x16x2xf32> to vector<16x16x2xf32>
    %179 = vector.extract_strided_slice %2 {offsets = [25, 0], sizes = [1, 2], strides = [1, 1]} : vector<49x2xf32> to vector<1x2xf32>
    %180 = vector.shape_cast %179 : vector<1x2xf32> to vector<1x1x2xf32>
    %181 = vector.broadcast %180 : vector<1x1x2xf32> to vector<16x16x2xf32>
    %182 = arith.mulf %178, %181 : vector<16x16x2xf32>
    %183 = arith.addf %176, %182 : vector<16x16x2xf32>
    %c0_103 = arith.constant 0 : index
    %c3_104 = arith.constant 3 : index
    %c5_105 = arith.constant 5 : index
    %c0_106 = arith.constant 0 : index
    %184 = vector.load %arg2[%c0_103, %c3_104, %c5_105, %c0_106] : memref<1x22x22x2xf32, #tpu.memory_space<vmem>>, vector<1x16x16x2xf32>
    %185 = vector.shape_cast %184 : vector<1x16x16x2xf32> to vector<16x16x2xf32>
    %186 = vector.extract_strided_slice %2 {offsets = [26, 0], sizes = [1, 2], strides = [1, 1]} : vector<49x2xf32> to vector<1x2xf32>
    %187 = vector.shape_cast %186 : vector<1x2xf32> to vector<1x1x2xf32>
    %188 = vector.broadcast %187 : vector<1x1x2xf32> to vector<16x16x2xf32>
    %189 = arith.mulf %185, %188 : vector<16x16x2xf32>
    %190 = arith.addf %183, %189 : vector<16x16x2xf32>
    %c0_107 = arith.constant 0 : index
    %c3_108 = arith.constant 3 : index
    %c6_109 = arith.constant 6 : index
    %c0_110 = arith.constant 0 : index
    %191 = vector.load %arg2[%c0_107, %c3_108, %c6_109, %c0_110] : memref<1x22x22x2xf32, #tpu.memory_space<vmem>>, vector<1x16x16x2xf32>
    %192 = vector.shape_cast %191 : vector<1x16x16x2xf32> to vector<16x16x2xf32>
    %193 = vector.extract_strided_slice %2 {offsets = [27, 0], sizes = [1, 2], strides = [1, 1]} : vector<49x2xf32> to vector<1x2xf32>
    %194 = vector.shape_cast %193 : vector<1x2xf32> to vector<1x1x2xf32>
    %195 = vector.broadcast %194 : vector<1x1x2xf32> to vector<16x16x2xf32>
    %196 = arith.mulf %192, %195 : vector<16x16x2xf32>
    %197 = arith.addf %190, %196 : vector<16x16x2xf32>
    %c0_111 = arith.constant 0 : index
    %c4_112 = arith.constant 4 : index
    %c0_113 = arith.constant 0 : index
    %c0_114 = arith.constant 0 : index
    %198 = vector.load %arg2[%c0_111, %c4_112, %c0_113, %c0_114] : memref<1x22x22x2xf32, #tpu.memory_space<vmem>>, vector<1x16x16x2xf32>
    %199 = vector.shape_cast %198 : vector<1x16x16x2xf32> to vector<16x16x2xf32>
    %200 = vector.extract_strided_slice %2 {offsets = [28, 0], sizes = [1, 2], strides = [1, 1]} : vector<49x2xf32> to vector<1x2xf32>
    %201 = vector.shape_cast %200 : vector<1x2xf32> to vector<1x1x2xf32>
    %202 = vector.broadcast %201 : vector<1x1x2xf32> to vector<16x16x2xf32>
    %203 = arith.mulf %199, %202 : vector<16x16x2xf32>
    %204 = arith.addf %197, %203 : vector<16x16x2xf32>
    %c0_115 = arith.constant 0 : index
    %c4_116 = arith.constant 4 : index
    %c1_117 = arith.constant 1 : index
    %c0_118 = arith.constant 0 : index
    %205 = vector.load %arg2[%c0_115, %c4_116, %c1_117, %c0_118] : memref<1x22x22x2xf32, #tpu.memory_space<vmem>>, vector<1x16x16x2xf32>
    %206 = vector.shape_cast %205 : vector<1x16x16x2xf32> to vector<16x16x2xf32>
    %207 = vector.extract_strided_slice %2 {offsets = [29, 0], sizes = [1, 2], strides = [1, 1]} : vector<49x2xf32> to vector<1x2xf32>
    %208 = vector.shape_cast %207 : vector<1x2xf32> to vector<1x1x2xf32>
    %209 = vector.broadcast %208 : vector<1x1x2xf32> to vector<16x16x2xf32>
    %210 = arith.mulf %206, %209 : vector<16x16x2xf32>
    %211 = arith.addf %204, %210 : vector<16x16x2xf32>
    %c0_119 = arith.constant 0 : index
    %c4_120 = arith.constant 4 : index
    %c2_121 = arith.constant 2 : index
    %c0_122 = arith.constant 0 : index
    %212 = vector.load %arg2[%c0_119, %c4_120, %c2_121, %c0_122] : memref<1x22x22x2xf32, #tpu.memory_space<vmem>>, vector<1x16x16x2xf32>
    %213 = vector.shape_cast %212 : vector<1x16x16x2xf32> to vector<16x16x2xf32>
    %214 = vector.extract_strided_slice %2 {offsets = [30, 0], sizes = [1, 2], strides = [1, 1]} : vector<49x2xf32> to vector<1x2xf32>
    %215 = vector.shape_cast %214 : vector<1x2xf32> to vector<1x1x2xf32>
    %216 = vector.broadcast %215 : vector<1x1x2xf32> to vector<16x16x2xf32>
    %217 = arith.mulf %213, %216 : vector<16x16x2xf32>
    %218 = arith.addf %211, %217 : vector<16x16x2xf32>
    %c0_123 = arith.constant 0 : index
    %c4_124 = arith.constant 4 : index
    %c3_125 = arith.constant 3 : index
    %c0_126 = arith.constant 0 : index
    %219 = vector.load %arg2[%c0_123, %c4_124, %c3_125, %c0_126] : memref<1x22x22x2xf32, #tpu.memory_space<vmem>>, vector<1x16x16x2xf32>
    %220 = vector.shape_cast %219 : vector<1x16x16x2xf32> to vector<16x16x2xf32>
    %221 = vector.extract_strided_slice %2 {offsets = [31, 0], sizes = [1, 2], strides = [1, 1]} : vector<49x2xf32> to vector<1x2xf32>
    %222 = vector.shape_cast %221 : vector<1x2xf32> to vector<1x1x2xf32>
    %223 = vector.broadcast %222 : vector<1x1x2xf32> to vector<16x16x2xf32>
    %224 = arith.mulf %220, %223 : vector<16x16x2xf32>
    %225 = arith.addf %218, %224 : vector<16x16x2xf32>
    %c0_127 = arith.constant 0 : index
    %c4_128 = arith.constant 4 : index
    %c4_129 = arith.constant 4 : index
    %c0_130 = arith.constant 0 : index
    %226 = vector.load %arg2[%c0_127, %c4_128, %c4_129, %c0_130] : memref<1x22x22x2xf32, #tpu.memory_space<vmem>>, vector<1x16x16x2xf32>
    %227 = vector.shape_cast %226 : vector<1x16x16x2xf32> to vector<16x16x2xf32>
    %228 = vector.extract_strided_slice %2 {offsets = [32, 0], sizes = [1, 2], strides = [1, 1]} : vector<49x2xf32> to vector<1x2xf32>
    %229 = vector.shape_cast %228 : vector<1x2xf32> to vector<1x1x2xf32>
    %230 = vector.broadcast %229 : vector<1x1x2xf32> to vector<16x16x2xf32>
    %231 = arith.mulf %227, %230 : vector<16x16x2xf32>
    %232 = arith.addf %225, %231 : vector<16x16x2xf32>
    %c0_131 = arith.constant 0 : index
    %c4_132 = arith.constant 4 : index
    %c5_133 = arith.constant 5 : index
    %c0_134 = arith.constant 0 : index
    %233 = vector.load %arg2[%c0_131, %c4_132, %c5_133, %c0_134] : memref<1x22x22x2xf32, #tpu.memory_space<vmem>>, vector<1x16x16x2xf32>
    %234 = vector.shape_cast %233 : vector<1x16x16x2xf32> to vector<16x16x2xf32>
    %235 = vector.extract_strided_slice %2 {offsets = [33, 0], sizes = [1, 2], strides = [1, 1]} : vector<49x2xf32> to vector<1x2xf32>
    %236 = vector.shape_cast %235 : vector<1x2xf32> to vector<1x1x2xf32>
    %237 = vector.broadcast %236 : vector<1x1x2xf32> to vector<16x16x2xf32>
    %238 = arith.mulf %234, %237 : vector<16x16x2xf32>
    %239 = arith.addf %232, %238 : vector<16x16x2xf32>
    %c0_135 = arith.constant 0 : index
    %c4_136 = arith.constant 4 : index
    %c6_137 = arith.constant 6 : index
    %c0_138 = arith.constant 0 : index
    %240 = vector.load %arg2[%c0_135, %c4_136, %c6_137, %c0_138] : memref<1x22x22x2xf32, #tpu.memory_space<vmem>>, vector<1x16x16x2xf32>
    %241 = vector.shape_cast %240 : vector<1x16x16x2xf32> to vector<16x16x2xf32>
    %242 = vector.extract_strided_slice %2 {offsets = [34, 0], sizes = [1, 2], strides = [1, 1]} : vector<49x2xf32> to vector<1x2xf32>
    %243 = vector.shape_cast %242 : vector<1x2xf32> to vector<1x1x2xf32>
    %244 = vector.broadcast %243 : vector<1x1x2xf32> to vector<16x16x2xf32>
    %245 = arith.mulf %241, %244 : vector<16x16x2xf32>
    %246 = arith.addf %239, %245 : vector<16x16x2xf32>
    %c0_139 = arith.constant 0 : index
    %c5_140 = arith.constant 5 : index
    %c0_141 = arith.constant 0 : index
    %c0_142 = arith.constant 0 : index
    %247 = vector.load %arg2[%c0_139, %c5_140, %c0_141, %c0_142] : memref<1x22x22x2xf32, #tpu.memory_space<vmem>>, vector<1x16x16x2xf32>
    %248 = vector.shape_cast %247 : vector<1x16x16x2xf32> to vector<16x16x2xf32>
    %249 = vector.extract_strided_slice %2 {offsets = [35, 0], sizes = [1, 2], strides = [1, 1]} : vector<49x2xf32> to vector<1x2xf32>
    %250 = vector.shape_cast %249 : vector<1x2xf32> to vector<1x1x2xf32>
    %251 = vector.broadcast %250 : vector<1x1x2xf32> to vector<16x16x2xf32>
    %252 = arith.mulf %248, %251 : vector<16x16x2xf32>
    %253 = arith.addf %246, %252 : vector<16x16x2xf32>
    %c0_143 = arith.constant 0 : index
    %c5_144 = arith.constant 5 : index
    %c1_145 = arith.constant 1 : index
    %c0_146 = arith.constant 0 : index
    %254 = vector.load %arg2[%c0_143, %c5_144, %c1_145, %c0_146] : memref<1x22x22x2xf32, #tpu.memory_space<vmem>>, vector<1x16x16x2xf32>
    %255 = vector.shape_cast %254 : vector<1x16x16x2xf32> to vector<16x16x2xf32>
    %256 = vector.extract_strided_slice %2 {offsets = [36, 0], sizes = [1, 2], strides = [1, 1]} : vector<49x2xf32> to vector<1x2xf32>
    %257 = vector.shape_cast %256 : vector<1x2xf32> to vector<1x1x2xf32>
    %258 = vector.broadcast %257 : vector<1x1x2xf32> to vector<16x16x2xf32>
    %259 = arith.mulf %255, %258 : vector<16x16x2xf32>
    %260 = arith.addf %253, %259 : vector<16x16x2xf32>
    %c0_147 = arith.constant 0 : index
    %c5_148 = arith.constant 5 : index
    %c2_149 = arith.constant 2 : index
    %c0_150 = arith.constant 0 : index
    %261 = vector.load %arg2[%c0_147, %c5_148, %c2_149, %c0_150] : memref<1x22x22x2xf32, #tpu.memory_space<vmem>>, vector<1x16x16x2xf32>
    %262 = vector.shape_cast %261 : vector<1x16x16x2xf32> to vector<16x16x2xf32>
    %263 = vector.extract_strided_slice %2 {offsets = [37, 0], sizes = [1, 2], strides = [1, 1]} : vector<49x2xf32> to vector<1x2xf32>
    %264 = vector.shape_cast %263 : vector<1x2xf32> to vector<1x1x2xf32>
    %265 = vector.broadcast %264 : vector<1x1x2xf32> to vector<16x16x2xf32>
    %266 = arith.mulf %262, %265 : vector<16x16x2xf32>
    %267 = arith.addf %260, %266 : vector<16x16x2xf32>
    %c0_151 = arith.constant 0 : index
    %c5_152 = arith.constant 5 : index
    %c3_153 = arith.constant 3 : index
    %c0_154 = arith.constant 0 : index
    %268 = vector.load %arg2[%c0_151, %c5_152, %c3_153, %c0_154] : memref<1x22x22x2xf32, #tpu.memory_space<vmem>>, vector<1x16x16x2xf32>
    %269 = vector.shape_cast %268 : vector<1x16x16x2xf32> to vector<16x16x2xf32>
    %270 = vector.extract_strided_slice %2 {offsets = [38, 0], sizes = [1, 2], strides = [1, 1]} : vector<49x2xf32> to vector<1x2xf32>
    %271 = vector.shape_cast %270 : vector<1x2xf32> to vector<1x1x2xf32>
    %272 = vector.broadcast %271 : vector<1x1x2xf32> to vector<16x16x2xf32>
    %273 = arith.mulf %269, %272 : vector<16x16x2xf32>
    %274 = arith.addf %267, %273 : vector<16x16x2xf32>
    %c0_155 = arith.constant 0 : index
    %c5_156 = arith.constant 5 : index
    %c4_157 = arith.constant 4 : index
    %c0_158 = arith.constant 0 : index
    %275 = vector.load %arg2[%c0_155, %c5_156, %c4_157, %c0_158] : memref<1x22x22x2xf32, #tpu.memory_space<vmem>>, vector<1x16x16x2xf32>
    %276 = vector.shape_cast %275 : vector<1x16x16x2xf32> to vector<16x16x2xf32>
    %277 = vector.extract_strided_slice %2 {offsets = [39, 0], sizes = [1, 2], strides = [1, 1]} : vector<49x2xf32> to vector<1x2xf32>
    %278 = vector.shape_cast %277 : vector<1x2xf32> to vector<1x1x2xf32>
    %279 = vector.broadcast %278 : vector<1x1x2xf32> to vector<16x16x2xf32>
    %280 = arith.mulf %276, %279 : vector<16x16x2xf32>
    %281 = arith.addf %274, %280 : vector<16x16x2xf32>
    %c0_159 = arith.constant 0 : index
    %c5_160 = arith.constant 5 : index
    %c5_161 = arith.constant 5 : index
    %c0_162 = arith.constant 0 : index
    %282 = vector.load %arg2[%c0_159, %c5_160, %c5_161, %c0_162] : memref<1x22x22x2xf32, #tpu.memory_space<vmem>>, vector<1x16x16x2xf32>
    %283 = vector.shape_cast %282 : vector<1x16x16x2xf32> to vector<16x16x2xf32>
    %284 = vector.extract_strided_slice %2 {offsets = [40, 0], sizes = [1, 2], strides = [1, 1]} : vector<49x2xf32> to vector<1x2xf32>
    %285 = vector.shape_cast %284 : vector<1x2xf32> to vector<1x1x2xf32>
    %286 = vector.broadcast %285 : vector<1x1x2xf32> to vector<16x16x2xf32>
    %287 = arith.mulf %283, %286 : vector<16x16x2xf32>
    %288 = arith.addf %281, %287 : vector<16x16x2xf32>
    %c0_163 = arith.constant 0 : index
    %c5_164 = arith.constant 5 : index
    %c6_165 = arith.constant 6 : index
    %c0_166 = arith.constant 0 : index
    %289 = vector.load %arg2[%c0_163, %c5_164, %c6_165, %c0_166] : memref<1x22x22x2xf32, #tpu.memory_space<vmem>>, vector<1x16x16x2xf32>
    %290 = vector.shape_cast %289 : vector<1x16x16x2xf32> to vector<16x16x2xf32>
    %291 = vector.extract_strided_slice %2 {offsets = [41, 0], sizes = [1, 2], strides = [1, 1]} : vector<49x2xf32> to vector<1x2xf32>
    %292 = vector.shape_cast %291 : vector<1x2xf32> to vector<1x1x2xf32>
    %293 = vector.broadcast %292 : vector<1x1x2xf32> to vector<16x16x2xf32>
    %294 = arith.mulf %290, %293 : vector<16x16x2xf32>
    %295 = arith.addf %288, %294 : vector<16x16x2xf32>
    %c0_167 = arith.constant 0 : index
    %c6_168 = arith.constant 6 : index
    %c0_169 = arith.constant 0 : index
    %c0_170 = arith.constant 0 : index
    %296 = vector.load %arg2[%c0_167, %c6_168, %c0_169, %c0_170] : memref<1x22x22x2xf32, #tpu.memory_space<vmem>>, vector<1x16x16x2xf32>
    %297 = vector.shape_cast %296 : vector<1x16x16x2xf32> to vector<16x16x2xf32>
    %298 = vector.extract_strided_slice %2 {offsets = [42, 0], sizes = [1, 2], strides = [1, 1]} : vector<49x2xf32> to vector<1x2xf32>
    %299 = vector.shape_cast %298 : vector<1x2xf32> to vector<1x1x2xf32>
    %300 = vector.broadcast %299 : vector<1x1x2xf32> to vector<16x16x2xf32>
    %301 = arith.mulf %297, %300 : vector<16x16x2xf32>
    %302 = arith.addf %295, %301 : vector<16x16x2xf32>
    %c0_171 = arith.constant 0 : index
    %c6_172 = arith.constant 6 : index
    %c1_173 = arith.constant 1 : index
    %c0_174 = arith.constant 0 : index
    %303 = vector.load %arg2[%c0_171, %c6_172, %c1_173, %c0_174] : memref<1x22x22x2xf32, #tpu.memory_space<vmem>>, vector<1x16x16x2xf32>
    %304 = vector.shape_cast %303 : vector<1x16x16x2xf32> to vector<16x16x2xf32>
    %305 = vector.extract_strided_slice %2 {offsets = [43, 0], sizes = [1, 2], strides = [1, 1]} : vector<49x2xf32> to vector<1x2xf32>
    %306 = vector.shape_cast %305 : vector<1x2xf32> to vector<1x1x2xf32>
    %307 = vector.broadcast %306 : vector<1x1x2xf32> to vector<16x16x2xf32>
    %308 = arith.mulf %304, %307 : vector<16x16x2xf32>
    %309 = arith.addf %302, %308 : vector<16x16x2xf32>
    %c0_175 = arith.constant 0 : index
    %c6_176 = arith.constant 6 : index
    %c2_177 = arith.constant 2 : index
    %c0_178 = arith.constant 0 : index
    %310 = vector.load %arg2[%c0_175, %c6_176, %c2_177, %c0_178] : memref<1x22x22x2xf32, #tpu.memory_space<vmem>>, vector<1x16x16x2xf32>
    %311 = vector.shape_cast %310 : vector<1x16x16x2xf32> to vector<16x16x2xf32>
    %312 = vector.extract_strided_slice %2 {offsets = [44, 0], sizes = [1, 2], strides = [1, 1]} : vector<49x2xf32> to vector<1x2xf32>
    %313 = vector.shape_cast %312 : vector<1x2xf32> to vector<1x1x2xf32>
    %314 = vector.broadcast %313 : vector<1x1x2xf32> to vector<16x16x2xf32>
    %315 = arith.mulf %311, %314 : vector<16x16x2xf32>
    %316 = arith.addf %309, %315 : vector<16x16x2xf32>
    %c0_179 = arith.constant 0 : index
    %c6_180 = arith.constant 6 : index
    %c3_181 = arith.constant 3 : index
    %c0_182 = arith.constant 0 : index
    %317 = vector.load %arg2[%c0_179, %c6_180, %c3_181, %c0_182] : memref<1x22x22x2xf32, #tpu.memory_space<vmem>>, vector<1x16x16x2xf32>
    %318 = vector.shape_cast %317 : vector<1x16x16x2xf32> to vector<16x16x2xf32>
    %319 = vector.extract_strided_slice %2 {offsets = [45, 0], sizes = [1, 2], strides = [1, 1]} : vector<49x2xf32> to vector<1x2xf32>
    %320 = vector.shape_cast %319 : vector<1x2xf32> to vector<1x1x2xf32>
    %321 = vector.broadcast %320 : vector<1x1x2xf32> to vector<16x16x2xf32>
    %322 = arith.mulf %318, %321 : vector<16x16x2xf32>
    %323 = arith.addf %316, %322 : vector<16x16x2xf32>
    %c0_183 = arith.constant 0 : index
    %c6_184 = arith.constant 6 : index
    %c4_185 = arith.constant 4 : index
    %c0_186 = arith.constant 0 : index
    %324 = vector.load %arg2[%c0_183, %c6_184, %c4_185, %c0_186] : memref<1x22x22x2xf32, #tpu.memory_space<vmem>>, vector<1x16x16x2xf32>
    %325 = vector.shape_cast %324 : vector<1x16x16x2xf32> to vector<16x16x2xf32>
    %326 = vector.extract_strided_slice %2 {offsets = [46, 0], sizes = [1, 2], strides = [1, 1]} : vector<49x2xf32> to vector<1x2xf32>
    %327 = vector.shape_cast %326 : vector<1x2xf32> to vector<1x1x2xf32>
    %328 = vector.broadcast %327 : vector<1x1x2xf32> to vector<16x16x2xf32>
    %329 = arith.mulf %325, %328 : vector<16x16x2xf32>
    %330 = arith.addf %323, %329 : vector<16x16x2xf32>
    %c0_187 = arith.constant 0 : index
    %c6_188 = arith.constant 6 : index
    %c5_189 = arith.constant 5 : index
    %c0_190 = arith.constant 0 : index
    %331 = vector.load %arg2[%c0_187, %c6_188, %c5_189, %c0_190] : memref<1x22x22x2xf32, #tpu.memory_space<vmem>>, vector<1x16x16x2xf32>
    %332 = vector.shape_cast %331 : vector<1x16x16x2xf32> to vector<16x16x2xf32>
    %333 = vector.extract_strided_slice %2 {offsets = [47, 0], sizes = [1, 2], strides = [1, 1]} : vector<49x2xf32> to vector<1x2xf32>
    %334 = vector.shape_cast %333 : vector<1x2xf32> to vector<1x1x2xf32>
    %335 = vector.broadcast %334 : vector<1x1x2xf32> to vector<16x16x2xf32>
    %336 = arith.mulf %332, %335 : vector<16x16x2xf32>
    %337 = arith.addf %330, %336 : vector<16x16x2xf32>
    %c0_191 = arith.constant 0 : index
    %c6_192 = arith.constant 6 : index
    %c6_193 = arith.constant 6 : index
    %c0_194 = arith.constant 0 : index
    %338 = vector.load %arg2[%c0_191, %c6_192, %c6_193, %c0_194] : memref<1x22x22x2xf32, #tpu.memory_space<vmem>>, vector<1x16x16x2xf32>
    %339 = vector.shape_cast %338 : vector<1x16x16x2xf32> to vector<16x16x2xf32>
    %340 = vector.extract_strided_slice %2 {offsets = [48, 0], sizes = [1, 2], strides = [1, 1]} : vector<49x2xf32> to vector<1x2xf32>
    %341 = vector.shape_cast %340 : vector<1x2xf32> to vector<1x1x2xf32>
    %342 = vector.broadcast %341 : vector<1x1x2xf32> to vector<16x16x2xf32>
    %343 = arith.mulf %339, %342 : vector<16x16x2xf32>
    %344 = arith.addf %337, %343 : vector<16x16x2xf32>
    %c0_195 = arith.constant 0 : index
    %c2_196 = arith.constant 2 : index
    %c2_197 = arith.constant 2 : index
    %c0_198 = arith.constant 0 : index
    %345 = vector.load %arg2[%c0_195, %c2_196, %c2_197, %c0_198] : memref<1x22x22x2xf32, #tpu.memory_space<vmem>>, vector<1x16x16x2xf32>
    %346 = vector.shape_cast %345 : vector<1x16x16x2xf32> to vector<16x16x2xf32>
    %c0_199 = arith.constant 0 : index
    %c2_200 = arith.constant 2 : index
    %c4_201 = arith.constant 4 : index
    %c0_202 = arith.constant 0 : index
    %347 = vector.load %arg2[%c0_199, %c2_200, %c4_201, %c0_202] : memref<1x22x22x2xf32, #tpu.memory_space<vmem>>, vector<1x16x16x2xf32>
    %348 = vector.shape_cast %347 : vector<1x16x16x2xf32> to vector<16x16x2xf32>
    %cst = arith.constant -1.000000e+00 : f32
    %349 = vector.broadcast %cst : f32 to vector<16x16x2xf32>
    %350 = arith.mulf %349, %348 : vector<16x16x2xf32>
    %351 = arith.addf %346, %350 : vector<16x16x2xf32>
    %c0_203 = arith.constant 0 : index
    %c3_204 = arith.constant 3 : index
    %c2_205 = arith.constant 2 : index
    %c0_206 = arith.constant 0 : index
    %352 = vector.load %arg2[%c0_203, %c3_204, %c2_205, %c0_206] : memref<1x22x22x2xf32, #tpu.memory_space<vmem>>, vector<1x16x16x2xf32>
    %353 = vector.shape_cast %352 : vector<1x16x16x2xf32> to vector<16x16x2xf32>
    %cst_207 = arith.constant 2.000000e+00 : f32
    %354 = vector.broadcast %cst_207 : f32 to vector<16x16x2xf32>
    %355 = arith.mulf %354, %353 : vector<16x16x2xf32>
    %356 = arith.addf %351, %355 : vector<16x16x2xf32>
    %c0_208 = arith.constant 0 : index
    %c3_209 = arith.constant 3 : index
    %c4_210 = arith.constant 4 : index
    %c0_211 = arith.constant 0 : index
    %357 = vector.load %arg2[%c0_208, %c3_209, %c4_210, %c0_211] : memref<1x22x22x2xf32, #tpu.memory_space<vmem>>, vector<1x16x16x2xf32>
    %358 = vector.shape_cast %357 : vector<1x16x16x2xf32> to vector<16x16x2xf32>
    %cst_212 = arith.constant -2.000000e+00 : f32
    %359 = vector.broadcast %cst_212 : f32 to vector<16x16x2xf32>
    %360 = arith.mulf %359, %358 : vector<16x16x2xf32>
    %361 = arith.addf %356, %360 : vector<16x16x2xf32>
    %c0_213 = arith.constant 0 : index
    %c4_214 = arith.constant 4 : index
    %c2_215 = arith.constant 2 : index
    %c0_216 = arith.constant 0 : index
    %362 = vector.load %arg2[%c0_213, %c4_214, %c2_215, %c0_216] : memref<1x22x22x2xf32, #tpu.memory_space<vmem>>, vector<1x16x16x2xf32>
    %363 = vector.shape_cast %362 : vector<1x16x16x2xf32> to vector<16x16x2xf32>
    %364 = arith.addf %361, %363 : vector<16x16x2xf32>
    %c0_217 = arith.constant 0 : index
    %c4_218 = arith.constant 4 : index
    %c4_219 = arith.constant 4 : index
    %c0_220 = arith.constant 0 : index
    %365 = vector.load %arg2[%c0_217, %c4_218, %c4_219, %c0_220] : memref<1x22x22x2xf32, #tpu.memory_space<vmem>>, vector<1x16x16x2xf32>
    %366 = vector.shape_cast %365 : vector<1x16x16x2xf32> to vector<16x16x2xf32>
    %cst_221 = arith.constant -1.000000e+00 : f32
    %367 = vector.broadcast %cst_221 : f32 to vector<16x16x2xf32>
    %368 = arith.mulf %367, %366 : vector<16x16x2xf32>
    %369 = arith.addf %364, %368 : vector<16x16x2xf32>
    %370 = math.absf %369 : vector<16x16x2xf32>
    %c0_222 = arith.constant 0 : index
    %c2_223 = arith.constant 2 : index
    %c2_224 = arith.constant 2 : index
    %c0_225 = arith.constant 0 : index
    %371 = vector.load %arg2[%c0_222, %c2_223, %c2_224, %c0_225] : memref<1x22x22x2xf32, #tpu.memory_space<vmem>>, vector<1x16x16x2xf32>
    %372 = vector.shape_cast %371 : vector<1x16x16x2xf32> to vector<16x16x2xf32>
    %c0_226 = arith.constant 0 : index
    %c2_227 = arith.constant 2 : index
    %c3_228 = arith.constant 3 : index
    %c0_229 = arith.constant 0 : index
    %373 = vector.load %arg2[%c0_226, %c2_227, %c3_228, %c0_229] : memref<1x22x22x2xf32, #tpu.memory_space<vmem>>, vector<1x16x16x2xf32>
    %374 = vector.shape_cast %373 : vector<1x16x16x2xf32> to vector<16x16x2xf32>
    %cst_230 = arith.constant 2.000000e+00 : f32
    %375 = vector.broadcast %cst_230 : f32 to vector<16x16x2xf32>
    %376 = arith.mulf %375, %374 : vector<16x16x2xf32>
    %377 = arith.addf %372, %376 : vector<16x16x2xf32>
    %c0_231 = arith.constant 0 : index
    %c2_232 = arith.constant 2 : index
    %c4_233 = arith.constant 4 : index
    %c0_234 = arith.constant 0 : index
    %378 = vector.load %arg2[%c0_231, %c2_232, %c4_233, %c0_234] : memref<1x22x22x2xf32, #tpu.memory_space<vmem>>, vector<1x16x16x2xf32>
    %379 = vector.shape_cast %378 : vector<1x16x16x2xf32> to vector<16x16x2xf32>
    %380 = arith.addf %377, %379 : vector<16x16x2xf32>
    %c0_235 = arith.constant 0 : index
    %c4_236 = arith.constant 4 : index
    %c2_237 = arith.constant 2 : index
    %c0_238 = arith.constant 0 : index
    %381 = vector.load %arg2[%c0_235, %c4_236, %c2_237, %c0_238] : memref<1x22x22x2xf32, #tpu.memory_space<vmem>>, vector<1x16x16x2xf32>
    %382 = vector.shape_cast %381 : vector<1x16x16x2xf32> to vector<16x16x2xf32>
    %cst_239 = arith.constant -1.000000e+00 : f32
    %383 = vector.broadcast %cst_239 : f32 to vector<16x16x2xf32>
    %384 = arith.mulf %383, %382 : vector<16x16x2xf32>
    %385 = arith.addf %380, %384 : vector<16x16x2xf32>
    %c0_240 = arith.constant 0 : index
    %c4_241 = arith.constant 4 : index
    %c3_242 = arith.constant 3 : index
    %c0_243 = arith.constant 0 : index
    %386 = vector.load %arg2[%c0_240, %c4_241, %c3_242, %c0_243] : memref<1x22x22x2xf32, #tpu.memory_space<vmem>>, vector<1x16x16x2xf32>
    %387 = vector.shape_cast %386 : vector<1x16x16x2xf32> to vector<16x16x2xf32>
    %cst_244 = arith.constant -2.000000e+00 : f32
    %388 = vector.broadcast %cst_244 : f32 to vector<16x16x2xf32>
    %389 = arith.mulf %388, %387 : vector<16x16x2xf32>
    %390 = arith.addf %385, %389 : vector<16x16x2xf32>
    %c0_245 = arith.constant 0 : index
    %c4_246 = arith.constant 4 : index
    %c4_247 = arith.constant 4 : index
    %c0_248 = arith.constant 0 : index
    %391 = vector.load %arg2[%c0_245, %c4_246, %c4_247, %c0_248] : memref<1x22x22x2xf32, #tpu.memory_space<vmem>>, vector<1x16x16x2xf32>
    %392 = vector.shape_cast %391 : vector<1x16x16x2xf32> to vector<16x16x2xf32>
    %cst_249 = arith.constant -1.000000e+00 : f32
    %393 = vector.broadcast %cst_249 : f32 to vector<16x16x2xf32>
    %394 = arith.mulf %393, %392 : vector<16x16x2xf32>
    %395 = arith.addf %390, %394 : vector<16x16x2xf32>
    %396 = math.absf %395 : vector<16x16x2xf32>
    %397 = arith.addf %370, %396 : vector<16x16x2xf32>
    %c0_250 = arith.constant 0 : index
    %c2_251 = arith.constant 2 : index
    %c3_252 = arith.constant 3 : index
    %c0_253 = arith.constant 0 : index
    %398 = vector.load %arg2[%c0_250, %c2_251, %c3_252, %c0_253] : memref<1x22x22x2xf32, #tpu.memory_space<vmem>>, vector<1x16x16x2xf32>
    %399 = vector.shape_cast %398 : vector<1x16x16x2xf32> to vector<16x16x2xf32>
    %c0_254 = arith.constant 0 : index
    %c3_255 = arith.constant 3 : index
    %c2_256 = arith.constant 2 : index
    %c0_257 = arith.constant 0 : index
    %400 = vector.load %arg2[%c0_254, %c3_255, %c2_256, %c0_257] : memref<1x22x22x2xf32, #tpu.memory_space<vmem>>, vector<1x16x16x2xf32>
    %401 = vector.shape_cast %400 : vector<1x16x16x2xf32> to vector<16x16x2xf32>
    %402 = arith.addf %399, %401 : vector<16x16x2xf32>
    %c0_258 = arith.constant 0 : index
    %c3_259 = arith.constant 3 : index
    %c3_260 = arith.constant 3 : index
    %c0_261 = arith.constant 0 : index
    %403 = vector.load %arg2[%c0_258, %c3_259, %c3_260, %c0_261] : memref<1x22x22x2xf32, #tpu.memory_space<vmem>>, vector<1x16x16x2xf32>
    %404 = vector.shape_cast %403 : vector<1x16x16x2xf32> to vector<16x16x2xf32>
    %cst_262 = arith.constant -4.000000e+00 : f32
    %405 = vector.broadcast %cst_262 : f32 to vector<16x16x2xf32>
    %406 = arith.mulf %405, %404 : vector<16x16x2xf32>
    %407 = arith.addf %402, %406 : vector<16x16x2xf32>
    %c0_263 = arith.constant 0 : index
    %c3_264 = arith.constant 3 : index
    %c4_265 = arith.constant 4 : index
    %c0_266 = arith.constant 0 : index
    %408 = vector.load %arg2[%c0_263, %c3_264, %c4_265, %c0_266] : memref<1x22x22x2xf32, #tpu.memory_space<vmem>>, vector<1x16x16x2xf32>
    %409 = vector.shape_cast %408 : vector<1x16x16x2xf32> to vector<16x16x2xf32>
    %410 = arith.addf %407, %409 : vector<16x16x2xf32>
    %c0_267 = arith.constant 0 : index
    %c4_268 = arith.constant 4 : index
    %c3_269 = arith.constant 3 : index
    %c0_270 = arith.constant 0 : index
    %411 = vector.load %arg2[%c0_267, %c4_268, %c3_269, %c0_270] : memref<1x22x22x2xf32, #tpu.memory_space<vmem>>, vector<1x16x16x2xf32>
    %412 = vector.shape_cast %411 : vector<1x16x16x2xf32> to vector<16x16x2xf32>
    %413 = arith.addf %410, %412 : vector<16x16x2xf32>
    %414 = math.absf %413 : vector<16x16x2xf32>
    %cst_271 = arith.constant 2.000000e+00 : f32
    %415 = vector.broadcast %cst_271 : f32 to vector<16x16x2xf32>
    %416 = arith.mulf %415, %414 : vector<16x16x2xf32>
    %417 = arith.addf %397, %416 : vector<16x16x2xf32>
    %c0_272 = arith.constant 0 : index
    %c3_273 = arith.constant 3 : index
    %c3_274 = arith.constant 3 : index
    %c0_275 = arith.constant 0 : index
    %418 = vector.load %arg2[%c0_272, %c3_273, %c3_274, %c0_275] : memref<1x22x22x2xf32, #tpu.memory_space<vmem>>, vector<1x16x16x2xf32>
    %419 = vector.shape_cast %418 : vector<1x16x16x2xf32> to vector<16x16x2xf32>
    %420 = arith.addf %344, %417 : vector<16x16x2xf32>
    %c0_276 = arith.constant 0 : index
    %c0_277 = arith.constant 0 : index
    %421 = vector.load %arg5[%c0_276, %c0_277] : memref<1x2xf32, #tpu.memory_space<vmem>>, vector<1x2xf32>
    %422 = vector.shape_cast %421 : vector<1x2xf32> to vector<1x1x2xf32>
    %423 = vector.broadcast %422 : vector<1x1x2xf32> to vector<16x16x2xf32>
    %424 = arith.addf %420, %423 : vector<16x16x2xf32>
    %cst_278 = arith.constant 0.000000e+00 : f32
    %425 = vector.broadcast %cst_278 : f32 to vector<16x16x2xf32>
    %426 = arith.cmpf oge, %424, %425 : vector<16x16x2xf32>
    %cst_279 = arith.constant 0.00999999977 : f32
    %427 = vector.broadcast %cst_279 : f32 to vector<16x16x2xf32>
    %428 = arith.mulf %427, %424 : vector<16x16x2xf32>
    %429 = arith.select %426, %424, %428 : vector<16x16x2xi1>, vector<16x16x2xf32>
    %430 = arith.addf %429, %419 : vector<16x16x2xf32>
    %cst_280 = arith.constant dense<0.000000e+00> : vector<16x2xf32>
    %431 = vector.multi_reduction <add>, %430, %cst_280 [0] : vector<16x16x2xf32> to vector<16x2xf32>
    %cst_281 = arith.constant 1.600000e+01 : f32
    %432 = vector.broadcast %cst_281 : f32 to vector<16x2xf32>
    %433 = arith.divf %431, %432 : vector<16x2xf32>
    %cst_282 = arith.constant dense<0.000000e+00> : vector<2xf32>
    %434 = vector.multi_reduction <add>, %433, %cst_282 [0] : vector<16x2xf32> to vector<2xf32>
    %435 = vector.shape_cast %434 : vector<2xf32> to vector<1x2xf32>
    %cst_283 = arith.constant 1.600000e+01 : f32
    %436 = vector.broadcast %cst_283 : f32 to vector<1x2xf32>
    %437 = arith.divf %435, %436 : vector<1x2xf32>
    %cst_284 = arith.constant 8.000000e+00 : f32
    %438 = vector.broadcast %cst_284 : f32 to vector<16x16x8xf32>
    %439 = arith.mulf %438, %1 : vector<16x16x8xf32>
    %cst_285 = arith.constant 0.000000e+00 : f32
    %440 = vector.broadcast %cst_285 : f32 to vector<16x16x8xf32>
    %441 = arith.cmpf oge, %439, %440 : vector<16x16x8xf32>
    %cst_286 = arith.constant 0.00999999977 : f32
    %442 = vector.broadcast %cst_286 : f32 to vector<16x16x8xf32>
    %443 = arith.mulf %442, %439 : vector<16x16x8xf32>
    %444 = arith.select %441, %439, %443 : vector<16x16x8xi1>, vector<16x16x8xf32>
    %445 = arith.addf %444, %1 : vector<16x16x8xf32>
    %cst_287 = arith.constant dense<0.000000e+00> : vector<16x8xf32>
    %446 = vector.multi_reduction <add>, %445, %cst_287 [0] : vector<16x16x8xf32> to vector<16x8xf32>
    %cst_288 = arith.constant 1.600000e+01 : f32
    %447 = vector.broadcast %cst_288 : f32 to vector<16x8xf32>
    %448 = arith.divf %446, %447 : vector<16x8xf32>
    %cst_289 = arith.constant dense<0.000000e+00> : vector<8xf32>
    %449 = vector.multi_reduction <add>, %448, %cst_289 [0] : vector<16x8xf32> to vector<8xf32>
    %450 = vector.shape_cast %449 : vector<8xf32> to vector<1x8xf32>
    %cst_290 = arith.constant 1.600000e+01 : f32
    %451 = vector.broadcast %cst_290 : f32 to vector<1x8xf32>
    %452 = arith.divf %450, %451 : vector<1x8xf32>
    %cst_291 = arith.constant 0.000000e+00 : f32
    %453 = vector.broadcast %cst_291 : f32 to vector<1x10xf32>
    %c0_292 = arith.constant 0 : index
    %c0_293 = arith.constant 0 : index
    %454 = vector.load %arg7[%c0_292, %c0_293] : memref<1x10xf32, #tpu.memory_space<vmem>>, vector<1x10xf32>
    tpu.vector_store %arg7[%c0_292, %c0_293], %453 {strides = array<i32>} : memref<1x10xf32, #tpu.memory_space<vmem>>, vector<1x10xf32>,
    %c0_294 = arith.constant 0 : index
    %c1_295 = arith.constant 1 : index
    %455 = vector.load %arg7[%c0_294, %c1_295] : memref<1x10xf32, #tpu.memory_space<vmem>>, vector<1x8xf32>
    tpu.vector_store %arg7[%c0_294, %c1_295], %452 {strides = array<i32>} : memref<1x10xf32, #tpu.memory_space<vmem>>, vector<1x8xf32>,
    %c0_296 = arith.constant 0 : index
    %c1_297 = arith.constant 1 : index
    %456 = vector.load %arg7[%c0_296, %c1_297] : memref<1x10xf32, #tpu.memory_space<vmem>>, vector<1x2xf32>
    tpu.vector_store %arg7[%c0_296, %c1_297], %437 {strides = array<i32>} : memref<1x10xf32, #tpu.memory_space<vmem>>, vector<1x2xf32>,
    %c0_298 = arith.constant 0 : index
    %c0_299 = arith.constant 0 : index
    %457 = vector.load %arg1[%c0_298, %c0_299] : memref<1x3xf32, #tpu.memory_space<vmem>>, vector<1x3xf32>
    %458 = vector.extract_strided_slice %457 {offsets = [0, 0], sizes = [1, 1], strides = [1, 1]} : vector<1x3xf32> to vector<1x1xf32>
    %c0_300 = arith.constant 0 : index
    %c0_301 = arith.constant 0 : index
    %459 = vector.load %arg7[%c0_300, %c0_301] : memref<1x10xf32, #tpu.memory_space<vmem>>, vector<1x8xf32>
    %460 = vector.broadcast %458 : vector<1x1xf32> to vector<1x8xf32>
    %461 = arith.mulf %460, %459 : vector<1x8xf32>
    %462 = vector.extract_strided_slice %457 {offsets = [0, 1], sizes = [1, 1], strides = [1, 1]} : vector<1x3xf32> to vector<1x1xf32>
    %c0_302 = arith.constant 0 : index
    %c1_303 = arith.constant 1 : index
    %463 = vector.load %arg7[%c0_302, %c1_303] : memref<1x10xf32, #tpu.memory_space<vmem>>, vector<1x8xf32>
    %464 = vector.broadcast %462 : vector<1x1xf32> to vector<1x8xf32>
    %465 = arith.mulf %464, %463 : vector<1x8xf32>
    %466 = arith.addf %461, %465 : vector<1x8xf32>
    %467 = vector.extract_strided_slice %457 {offsets = [0, 2], sizes = [1, 1], strides = [1, 1]} : vector<1x3xf32> to vector<1x1xf32>
    %c0_304 = arith.constant 0 : index
    %c2_305 = arith.constant 2 : index
    %468 = vector.load %arg7[%c0_304, %c2_305] : memref<1x10xf32, #tpu.memory_space<vmem>>, vector<1x8xf32>
    %469 = vector.broadcast %467 : vector<1x1xf32> to vector<1x8xf32>
    %470 = arith.mulf %469, %468 : vector<1x8xf32>
    %471 = arith.addf %466, %470 : vector<1x8xf32>
    %472 = arith.negf %471 : vector<1x8xf32>
    %473 = math.exp %472 : vector<1x8xf32>
    %cst_306 = arith.constant 1.000000e+00 : f32
    %474 = vector.broadcast %cst_306 : f32 to vector<1x8xf32>
    %475 = arith.addf %474, %473 : vector<1x8xf32>
    %476 = arith.divf %474, %475 : vector<1x8xf32>
    %477 = vector.shape_cast %476 : vector<1x8xf32> to vector<1x1x8xf32>
    %478 = vector.broadcast %477 : vector<1x1x8xf32> to vector<16x16x8xf32>
    %479 = arith.mulf %1, %478 : vector<16x16x8xf32>
    %c0_307 = arith.constant 0 : index
    %c0_308 = arith.constant 0 : index
    %c0_309 = arith.constant 0 : index
    %c0_310 = arith.constant 0 : index
    %480 = vector.load %arg6[%c0_307, %c0_308, %c0_309, %c0_310] : memref<1x16x16x8xf32, #tpu.memory_space<vmem>>, vector<1x16x16x8xf32>
    %481 = vector.shape_cast %480 : vector<1x16x16x8xf32> to vector<16x16x8xf32>
    %482 = vector.shape_cast %479 : vector<16x16x8xf32> to vector<1x16x16x8xf32>
    tpu.vector_store %arg6[%c0_307, %c0_308, %c0_309, %c0_310], %482 {strides = array<i32>} : memref<1x16x16x8xf32, #tpu.memory_space<vmem>>, vector<1x16x16x8xf32>,
    return
  }
  func.func @transform_0(%arg0: i32) -> (i32, i32) {
    %c0_i32 = arith.constant 0 : i32
    %c0_i32_0 = arith.constant 0 : i32
    %c0_i32_1 = arith.constant 0 : i32
    return %c0_i32, %c0_i32_0 : i32, i32
  }
  func.func @transform_1(%arg0: i32) -> (i32, i32, i32, i32) {
    %c0_i32 = arith.constant 0 : i32
    %c0_i32_0 = arith.constant 0 : i32
    %c0_i32_1 = arith.constant 0 : i32
    %c0_i32_2 = arith.constant 0 : i32
    return %arg0, %c0_i32, %c0_i32_0, %c0_i32_1 : i32, i32, i32, i32
  }
  func.func @transform_2(%arg0: i32) -> (i32, i32, i32, i32) {
    %c0_i32 = arith.constant 0 : i32
    %c0_i32_0 = arith.constant 0 : i32
    %c0_i32_1 = arith.constant 0 : i32
    %c0_i32_2 = arith.constant 0 : i32
    return %arg0, %c0_i32, %c0_i32_0, %c0_i32_1 : i32, i32, i32, i32
  }
  func.func @transform_3(%arg0: i32) -> (i32, i32) {
    %c0_i32 = arith.constant 0 : i32
    %c0_i32_0 = arith.constant 0 : i32
    %c0_i32_1 = arith.constant 0 : i32
    return %c0_i32, %c0_i32_0 : i32, i32
  }
  func.func @transform_4(%arg0: i32) -> (i32, i32) {
    %c0_i32 = arith.constant 0 : i32
    %c0_i32_0 = arith.constant 0 : i32
    %c0_i32_1 = arith.constant 0 : i32
    return %c0_i32, %c0_i32_0 : i32, i32
  }
  func.func @transform_5(%arg0: i32) -> (i32, i32, i32, i32) {
    %c0_i32 = arith.constant 0 : i32
    %c0_i32_0 = arith.constant 0 : i32
    %c0_i32_1 = arith.constant 0 : i32
    %c0_i32_2 = arith.constant 0 : i32
    return %arg0, %c0_i32, %c0_i32_0, %c0_i32_1 : i32, i32, i32, i32
  }
}

</mosaic_0001>

<llo_original>
// kernel: fast_conv_attention.1
$region0: #{fast_conv_attention.1}
  #allocation0 [shape = 'u32[]', space=smem, size = 0x4, offset = 0x4, fixed_abs, tag = 'smem constant byte address 0x4 - core index']
  #allocation1 [shape = 'u32[72,128]{1,0:T(1,128)}', space=vmem, size = 0x9000, scoped, tag = 'internal scratch']
  #allocation2 [shape = 'f32[1,10]{1,0:T(1,128)}', space=vmem, size = 0x200, scoped, tag = 'scratch operand']
  %s0 = inlined_call_operand.vmem [shape: f32[1,3], index: 0, kind: input, shape index: {}]
  %s1 = inlined_call_operand.vmem [shape: f32[2,22,22,2], index: 1, kind: input, shape index: {}]
  %s2 = inlined_call_operand.vmem [shape: f32[2,16,16,8], index: 2, kind: input, shape index: {}]
  %s3 = inlined_call_operand.vmem [shape: f32[49,2], index: 3, kind: input, shape index: {}]
  %s4 = inlined_call_operand.vmem [shape: f32[1,2], index: 4, kind: input, shape index: {}]
  %s5 = inlined_call_operand.vmem [shape: f32[2,16,16,8], index: 5, kind: output, shape index: {}]
  %s6 = sld [smem:[#allocation0]]
  $region53: #{fast_conv_attention.1} parent=0
    _
  %s8 = ssub.s32 1, %s6
  %s9 = scalar_select 0, %s8, %s6
  loop: start=0, step=1, limit=4
  $region2: #{fast_conv_attention.1} parent=0 // loop_pre_header
    _
  $region3: #{fast_conv_attention.1} parent=0 // loop_header
    %s11 = sphi 0, %s15
    %p12 = scmp.ge.s32.totalorder %s11, 4
    %s19 = sphi 0, %s19
    %s21 = sphi 0, %s19
    %s22 = sphi 0, %s21
    %s36 = sphi 0, %s22
    %s42 = sphi 0, %s44
    %s45 = sphi 0, %s42
    %s46 = sphi 0, %s45
    %s62 = sphi 0, %s46
    %s68 = sphi 0, %s70
    %s71 = sphi 0, %s68
    %s72 = sphi 0, %s71
    %s88 = sphi 0, %s72
    %s92 = sphi 0, %s92
    %s94 = sphi 0, %s92
    %s95 = sphi 0, %s94
    %s109 = sphi 0, %s95
    %s113 = sphi 0, %s113
    %s115 = sphi 0, %s113
    %s116 = sphi 0, %s115
    %s130 = sphi 0, %s116
    %s136 = sphi 0, %s138
    %s139 = sphi 0, %s136
    %s140 = sphi 0, %s139
    %s156 = sphi 0, %s140
  $region4: #{fast_conv_attention.1} parent=0 // loop_header_branch
    %14 = sbr.rel (%p12) target = $region8
  $region5: #{fast_conv_attention.1} parent=0 // loop_body
    %s16 = ssub.s32 %s11, 1
    %s17 = ssub.s32 %s11, 2
    %s18 = sadd.s32 %s11, 1
    %s20 = sadd.s32 %s19, 1
    %p23 = scmp.eq.s32.totalorder %s11, 1
    %p24 = scmp.ne.s32.totalorder %s19, %s21
    %p25 = scmp.eq.s32.totalorder %s11, 0
    %p26 = por %p24, %p25
    %p27 = scmp.ne.s32.totalorder %s19, %s21
    %p28 = scmp.eq.s32.totalorder %s16, 1
    %p29 = por %p27, %p28
    %p30 = scmp.ne.s32.totalorder %s21, %s22
    %p31 = scmp.eq.s32.totalorder %s16, 0
    %p32 = por %p30, %p31
    %p33 = scmp.ne.s32.totalorder %s21, %s22
    %p34 = scmp.eq.s32.totalorder %s17, 1
    %p35 = por %p33, %p34
    %p37 = scmp.ne.s32.totalorder %s22, %s36
    %p38 = scmp.eq.s32.totalorder %s17, 0
    %p39 = por %p37, %p38
    %s40 = ssub.s32 %s11, %s18
    %p41 = scmp.eq.s32.totalorder %s40, 0
    %s43 = sadd.s32 %s42, 1
    %s44 = scalar_select %p41, %s42, %s43
    %p47 = pneg %p41
    %p48 = scmp.eq.s32.totalorder %s11, 1
    %p49 = por %p47, %p48
    %p50 = scmp.ne.s32.totalorder %s42, %s45
    %p51 = scmp.eq.s32.totalorder %s11, 0
    %p52 = por %p50, %p51
    %p53 = scmp.ne.s32.totalorder %s42, %s45
    %p54 = scmp.eq.s32.totalorder %s16, 1
    %p55 = por %p53, %p54
    %p56 = scmp.ne.s32.totalorder %s45, %s46
    %p57 = scmp.eq.s32.totalorder %s16, 0
    %p58 = por %p56, %p57
    %p59 = scmp.ne.s32.totalorder %s45, %s46
    %p60 = scmp.eq.s32.totalorder %s17, 1
    %p61 = por %p59, %p60
    %p63 = scmp.ne.s32.totalorder %s46, %s62
    %p64 = scmp.eq.s32.totalorder %s17, 0
    %p65 = por %p63, %p64
    %s66 = ssub.s32 %s11, %s18
    %p67 = scmp.eq.s32.totalorder %s66, 0
    %s69 = sadd.s32 %s68, 1
    %s70 = scalar_select %p67, %s68, %s69
    %p73 = pneg %p67
    %p74 = scmp.eq.s32.totalorder %s11, 1
    %p75 = por %p73, %p74
    %p76 = scmp.ne.s32.totalorder %s68, %s71
    %p77 = scmp.eq.s32.totalorder %s11, 0
    %p78 = por %p76, %p77
    %p79 = scmp.ne.s32.totalorder %s68, %s71
    %p80 = scmp.eq.s32.totalorder %s16, 1
    %p81 = por %p79, %p80
    %p82 = scmp.ne.s32.totalorder %s71, %s72
    %p83 = scmp.eq.s32.totalorder %s16, 0
    %p84 = por %p82, %p83
    %p85 = scmp.ne.s32.totalorder %s71, %s72
    %p86 = scmp.eq.s32.totalorder %s17, 1
    %p87 = por %p85, %p86
    %p89 = scmp.ne.s32.totalorder %s72, %s88
    %p90 = scmp.eq.s32.totalorder %s17, 0
    %p91 = por %p89, %p90
    %s93 = sadd.s32 %s92, 1
    %p96 = scmp.eq.s32.totalorder %s11, 1
    %p97 = scmp.ne.s32.totalorder %s92, %s94
    %p98 = scmp.eq.s32.totalorder %s11, 0
    %p99 = por %p97, %p98
    %p100 = scmp.ne.s32.totalorder %s92, %s94
    %p101 = scmp.eq.s32.totalorder %s16, 1
    %p102 = por %p100, %p101
    %p103 = scmp.ne.s32.totalorder %s94, %s95
    %p104 = scmp.eq.s32.totalorder %s16, 0
    %p105 = por %p103, %p104
    %p106 = scmp.ne.s32.totalorder %s94, %s95
    %p107 = scmp.eq.s32.totalorder %s17, 1
    %p108 = por %p106, %p107
    %p110 = scmp.ne.s32.totalorder %s95, %s109
    %p111 = scmp.eq.s32.totalorder %s17, 0
    %p112 = por %p110, %p111
    %s114 = sadd.s32 %s113, 1
    %p117 = scmp.eq.s32.totalorder %s11, 1
    %p118 = scmp.ne.s32.totalorder %s113, %s115
    %p119 = scmp.eq.s32.totalorder %s11, 0
    %p120 = por %p118, %p119
    %p121 = scmp.ne.s32.totalorder %s113, %s115
    %p122 = scmp.eq.s32.totalorder %s16, 1
    %p123 = por %p121, %p122
    %p124 = scmp.ne.s32.totalorder %s115, %s116
    %p125 = scmp.eq.s32.totalorder %s16, 0
    %p126 = por %p124, %p125
    %p127 = scmp.ne.s32.totalorder %s115, %s116
    %p128 = scmp.eq.s32.totalorder %s17, 1
    %p129 = por %p127, %p128
    %p131 = scmp.ne.s32.totalorder %s116, %s130
    %p132 = scmp.eq.s32.totalorder %s17, 0
    %p133 = por %p131, %p132
    %s134 = ssub.s32 %s11, %s18
    %p135 = scmp.eq.s32.totalorder %s134, 0
    %s137 = sadd.s32 %s136, 1
    %s138 = scalar_select %p135, %s136, %s137
    %p141 = pneg %p135
    %p142 = scmp.eq.s32.totalorder %s11, 1
    %p143 = por %p141, %p142
    %p144 = scmp.ne.s32.totalorder %s136, %s139
    %p145 = scmp.eq.s32.totalorder %s11, 0
    %p146 = por %p144, %p145
    %p147 = scmp.ne.s32.totalorder %s136, %s139
    %p148 = scmp.eq.s32.totalorder %s16, 1
    %p149 = por %p147, %p148
    %p150 = scmp.ne.s32.totalorder %s139, %s140
    %p151 = scmp.eq.s32.totalorder %s16, 0
    %p152 = por %p150, %p151
    %p153 = scmp.ne.s32.totalorder %s139, %s140
    %p154 = scmp.eq.s32.totalorder %s17, 1
    %p155 = por %p153, %p154
    %p157 = scmp.ne.s32.totalorder %s140, %s156
    %p158 = scmp.eq.s32.totalorder %s17, 0
    %p159 = por %p157, %p158
    %p160 = scmp.le.s32.totalorder 1, %s11
    %p161 = scmp.lt.s32.totalorder %s11, 3
    %p162 = pnand %p160, %p161
    %p163 = pneg %p162
    // Predicated region
    $region9: #{fast_conv_attention.1} parent=5 // pred_check
      _
    $region10: #{fast_conv_attention.1} parent=5 // pred_check_branch
      %165 = sbr.rel (%p162) target = $region12
    $region11: #{fast_conv_attention.1} parent=5 // pred_region
      %s166 = ssub.s32 %s11, 1
      // Predicated region
      $region13: #{fast_conv_attention.1} parent=11 // pred_check
        %p167 = pneg %p32
      $region14: #{fast_conv_attention.1} parent=11 // pred_check_branch
        %169 = sbr.rel (%p167) target = $region16
      $region15: #{fast_conv_attention.1} parent=11 // pred_region
        _
      $region16: #{fast_conv_attention.1} parent=11 // pred_fallthru
        _
      // Predicated region
      $region17: #{fast_conv_attention.1} parent=11 // pred_check
        %p170 = pneg %p105
      $region18: #{fast_conv_attention.1} parent=11 // pred_check_branch
        %172 = sbr.rel (%p170) target = $region20
      $region19: #{fast_conv_attention.1} parent=11 // pred_region
        _
      $region20: #{fast_conv_attention.1} parent=11 // pred_fallthru
        _
      // Predicated region
      $region21: #{fast_conv_attention.1} parent=11 // pred_check
        %p173 = pneg %p126
      $region22: #{fast_conv_attention.1} parent=11 // pred_check_branch
        %175 = sbr.rel (%p173) target = $region24
      $region23: #{fast_conv_attention.1} parent=11 // pred_region
        _
      $region24: #{fast_conv_attention.1} parent=11 // pred_fallthru
        _
    $region12: #{fast_conv_attention.1} parent=5 // pred_fallthru
      _
    %p176 = scmp.lt.s32.totalorder %s11, 2
    // Predicated region
    $region25: #{fast_conv_attention.1} parent=5 // pred_check
      %p177 = pneg %p176
    $region26: #{fast_conv_attention.1} parent=5 // pred_check_branch
      %179 = sbr.rel (%p177) target = $region28
    $region27: #{fast_conv_attention.1} parent=5 // pred_region
      // Predicated region
      $region29: #{fast_conv_attention.1} parent=27 // pred_check
        %p180 = pneg %p52
      $region30: #{fast_conv_attention.1} parent=27 // pred_check_branch
        %182 = sbr.rel (%p180) target = $region32
      $region31: #{fast_conv_attention.1} parent=27 // pred_region
        %p183 = scmp.lt.s32.totalorder %s11, 1
        %s184 = scalar_select %p183, %s11, 1
        %s185 = smul.addr %s184, 66
        %s186 = smul.addr %s185, 8
        %s187 = scalar_lea.vmem %s1, %s186
      $region32: #{fast_conv_attention.1} parent=27 // pred_fallthru
        _
      // Predicated region
      $region33: #{fast_conv_attention.1} parent=27 // pred_check
        %p188 = pneg %p78
      $region34: #{fast_conv_attention.1} parent=27 // pred_check_branch
        %190 = sbr.rel (%p188) target = $region36
      $region35: #{fast_conv_attention.1} parent=27 // pred_region
        %p191 = scmp.lt.s32.totalorder %s11, 1
        %s192 = scalar_select %p191, %s11, 1
        %s193 = smul.addr %s192, 32
        %s194 = smul.addr %s193, 8
        %s195 = scalar_lea.vmem %s2, %s194
      $region36: #{fast_conv_attention.1} parent=27 // pred_fallthru
        _
    $region28: #{fast_conv_attention.1} parent=5 // pred_fallthru
      _
    %p196 = scmp.le.s32.totalorder 1, %s11
    %p197 = scmp.lt.s32.totalorder %s11, 3
    %p198 = pnand %p196, %p197
    %p199 = pneg %p198
    // Predicated region
    $region37: #{fast_conv_attention.1} parent=5 // pred_check
      _
    $region38: #{fast_conv_attention.1} parent=5 // pred_check_branch
      %201 = sbr.rel (%p198) target = $region40
    $region39: #{fast_conv_attention.1} parent=5 // pred_region
      %s202 = ssub.s32 %s11, 1
      %p203 = pneg %p32
      %p204 = pneg %p29
      %p205 = scmp.lt.s32.totalorder %s16, 1
      %s206 = scalar_select %p205, %s16, 1
      %s207 = smul.addr %s206, 66
      %s208 = smul.addr %s207, 8
      %s209 = scalar_lea.vmem %s1, %s208
      %p210 = pneg %p58
      %p211 = pneg %p55
      %p212 = scmp.lt.s32.totalorder %s16, 1
      %s213 = scalar_select %p212, %s16, 1
      %s214 = smul.addr %s213, 32
      %s215 = smul.addr %s214, 8
      %s216 = scalar_lea.vmem %s2, %s215
      %p217 = pneg %p84
      %p218 = pneg %p81
      %p219 = pneg %p105
      %p220 = pneg %p102
      %p221 = pneg %p126
      %p222 = pneg %p123
      %p223 = pneg %p152
      %p224 = pneg %p149
      %p225 = scmp.lt.s32.totalorder %s16, 1
      %s226 = scalar_select %p225, %s16, 1
      %s227 = smul.addr %s226, 32
      %s228 = smul.addr %s227, 8
      %s229 = scalar_lea.vmem %s5, %s228
      %p230 = scmp.lt.s32.totalorder %s16, 1
      %s231 = scalar_select %p230, %s16, 1
      %s232 = smul.addr %s231, 66
      %s233 = smul.addr %s232, 8
      %s234 = scalar_lea.vmem %s1, %s233
      %p235 = scmp.lt.s32.totalorder %s16, 1
      %s236 = scalar_select %p235, %s16, 1
      %s237 = smul.addr %s236, 32
      %s238 = smul.addr %s237, 8
      %s239 = scalar_lea.vmem %s2, %s238
      %p240 = scmp.lt.s32.totalorder %s16, 1
      %s241 = scalar_select %p240, %s16, 1
      %s242 = smul.addr %s241, 32
      %s243 = smul.addr %s242, 8
      %s244 = scalar_lea.vmem %s5, %s243
      %v245 = vld [vmem:[%s239] sm:$0xff]
      %v246 = vld [vmem:[%s239 + $0x8] sm:$0xff]
      %v247 = vld [vmem:[%s239 + $0x10] sm:$0xff]
      %v248 = vld [vmem:[%s239 + $0x18] sm:$0xff]
      %v249 = vld [vmem:[%s239 + $0x20] sm:$0xff]
      %v250 = vld [vmem:[%s239 + $0x28] sm:$0xff]
      %v251 = vld [vmem:[%s239 + $0x30] sm:$0xff]
      %v252 = vld [vmem:[%s239 + $0x38] sm:$0xff]
      %v253 = vld [vmem:[%s239 + $0x40] sm:$0xff]
      %v254 = vld [vmem:[%s239 + $0x48] sm:$0xff]
      %v255 = vld [vmem:[%s239 + $0x50] sm:$0xff]
      %v256 = vld [vmem:[%s239 + $0x58] sm:$0xff]
      %v257 = vld [vmem:[%s239 + $0x60] sm:$0xff]
      %v258 = vld [vmem:[%s239 + $0x68] sm:$0xff]
      %v259 = vld [vmem:[%s239 + $0x70] sm:$0xff]
      %v260 = vld [vmem:[%s239 + $0x78] sm:$0xff]
      %v261 = vld [vmem:[%s239 + $0x80] sm:$0xff]
      %v262 = vld [vmem:[%s239 + $0x88] sm:$0xff]
      %v263 = vld [vmem:[%s239 + $0x90] sm:$0xff]
      %v264 = vld [vmem:[%s239 + $0x98] sm:$0xff]
      %v265 = vld [vmem:[%s239 + $0xa0] sm:$0xff]
      %v266 = vld [vmem:[%s239 + $0xa8] sm:$0xff]
      %v267 = vld [vmem:[%s239 + $0xb0] sm:$0xff]
      %v268 = vld [vmem:[%s239 + $0xb8] sm:$0xff]
      %v269 = vld [vmem:[%s239 + $0xc0] sm:$0xff]
      %v270 = vld [vmem:[%s239 + $0xc8] sm:$0xff]
      %v271 = vld [vmem:[%s239 + $0xd0] sm:$0xff]
      %v272 = vld [vmem:[%s239 + $0xd8] sm:$0xff]
      %v273 = vld [vmem:[%s239 + $0xe0] sm:$0xff]
      %v274 = vld [vmem:[%s239 + $0xe8] sm:$0xff]
      %v275 = vld [vmem:[%s239 + $0xf0] sm:$0xff]
      %v276 = vld [vmem:[%s239 + $0xf8] sm:$0xff]
      %v277 = vld [vmem:[%s3] sm:$0xff]
      %v278 = vld [vmem:[%s3 + $0x8] sm:$0xff]
      %v279 = vld [vmem:[%s3 + $0x10] sm:$0xff]
      %v280 = vld [vmem:[%s3 + $0x18] sm:$0xff]
      %v281 = vld [vmem:[%s3 + $0x20] sm:$0xff]
      %v282 = vld [vmem:[%s3 + $0x28] sm:$0xff]
      %v283 = vld [vmem:[%s3 + $0x30] sm:$0x1]
      %v284 = vld [vmem:[%s234] sm:$0xff]
      %v285 = vld [vmem:[%s234 + $0x8] sm:$0xff]
      %v286 = vld [vmem:[%s234 + $0x18] sm:$0xff]
      %v287 = vld [vmem:[%s234 + $0x20] sm:$0xff]
      %v288 = vld [vmem:[%s234 + $0x30] sm:$0xff]
      %v289 = vld [vmem:[%s234 + $0x38] sm:$0xff]
      %v290 = vld [vmem:[%s234 + $0x48] sm:$0xff]
      %v291 = vld [vmem:[%s234 + $0x50] sm:$0xff]
      %v292 = vld [vmem:[%s234 + $0x60] sm:$0xff]
      %v293 = vld [vmem:[%s234 + $0x68] sm:$0xff]
      %v294 = vld [vmem:[%s234 + $0x78] sm:$0xff]
      %v295 = vld [vmem:[%s234 + $0x80] sm:$0xff]
      %v296 = vld [vmem:[%s234 + $0x90] sm:$0xff]
      %v297 = vld [vmem:[%s234 + $0x98] sm:$0xff]
      %v298 = vld [vmem:[%s234 + $0xa8] sm:$0xff]
      %v299 = vld [vmem:[%s234 + $0xb0] sm:$0xff]
      %v300 = vld [vmem:[%s234 + $0xc0] sm:$0xff]
      %v301 = vld [vmem:[%s234 + $0xc8] sm:$0xff]
      %v302 = vld [vmem:[%s234 + $0xd8] sm:$0xff]
      %v303 = vld [vmem:[%s234 + $0xe0] sm:$0xff]
      %v304 = vld [vmem:[%s234 + $0xf0] sm:$0xff]
      %v305 = vld [vmem:[%s234 + $0xf8] sm:$0xff]
      %v306 = vld [vmem:[%s234 + $0x108] sm:$0xff]
      %v307 = vld [vmem:[%s234 + $0x110] sm:$0xff]
      %v308 = vld [vmem:[%s234 + $0x120] sm:$0xff]
      %v309 = vld [vmem:[%s234 + $0x128] sm:$0xff]
      %v310 = vld [vmem:[%s234 + $0x138] sm:$0xff]
      %v311 = vld [vmem:[%s234 + $0x140] sm:$0xff]
      %v312 = vld [vmem:[%s234 + $0x150] sm:$0xff]
      %v313 = vld [vmem:[%s234 + $0x158] sm:$0xff]
      %v314 = vld [vmem:[%s234 + $0x168] sm:$0xff]
      %v315 = vld [vmem:[%s234 + $0x170] sm:$0xff]
      %v316 = vperm.slane %v277, 0
      %v317 = vmul.f32 %v284, %v316
      %v318 = vmul.f32 %v285, %v316
      %v319 = vmul.f32 %v286, %v316
      %v320 = vmul.f32 %v287, %v316
      %v321 = vmul.f32 %v288, %v316
      %v322 = vmul.f32 %v289, %v316
      %v323 = vmul.f32 %v290, %v316
      %v324 = vmul.f32 %v291, %v316
      %v325 = vmul.f32 %v292, %v316
      %v326 = vmul.f32 %v293, %v316
      %v327 = vmul.f32 %v294, %v316
      %v328 = vmul.f32 %v295, %v316
      %v329 = vmul.f32 %v296, %v316
      %v330 = vmul.f32 %v297, %v316
      %v331 = vmul.f32 %v298, %v316
      %v332 = vmul.f32 %v299, %v316
      %v333 = vmul.f32 %v300, %v316
      %v334 = vmul.f32 %v301, %v316
      %v335 = vmul.f32 %v302, %v316
      %v336 = vmul.f32 %v303, %v316
      %v337 = vmul.f32 %v304, %v316
      %v338 = vmul.f32 %v305, %v316
      %v339 = vmul.f32 %v306, %v316
      %v340 = vmul.f32 %v307, %v316
      %v341 = vmul.f32 %v308, %v316
      %v342 = vmul.f32 %v309, %v316
      %v343 = vmul.f32 %v310, %v316
      %v344 = vmul.f32 %v311, %v316
      %v345 = vmul.f32 %v312, %v316
      %v346 = vmul.f32 %v313, %v316
      %v347 = vmul.f32 %v314, %v316
      %v348 = vmul.f32 %v315, %v316
      %v349 = vld [vmem:[%s234 + $0x1] sm:$0xff]
      %v350 = vld [vmem:[%s234 + $0x9] sm:$0xff]
      %v351 = vld [vmem:[%s234 + $0x19] sm:$0xff]
      %v352 = vld [vmem:[%s234 + $0x21] sm:$0xff]
      %v353 = vld [vmem:[%s234 + $0x31] sm:$0xff]
      %v354 = vld [vmem:[%s234 + $0x39] sm:$0xff]
      %v355 = vld [vmem:[%s234 + $0x49] sm:$0xff]
      %v356 = vld [vmem:[%s234 + $0x51] sm:$0xff]
      %v357 = vld [vmem:[%s234 + $0x61] sm:$0xff]
      %v358 = vld [vmem:[%s234 + $0x69] sm:$0xff]
      %v359 = vld [vmem:[%s234 + $0x79] sm:$0xff]
      %v360 = vld [vmem:[%s234 + $0x81] sm:$0xff]
      %v361 = vld [vmem:[%s234 + $0x91] sm:$0xff]
      %v362 = vld [vmem:[%s234 + $0x99] sm:$0xff]
      %v363 = vld [vmem:[%s234 + $0xa9] sm:$0xff]
      %v364 = vld [vmem:[%s234 + $0xb1] sm:$0xff]
      %v365 = vld [vmem:[%s234 + $0xc1] sm:$0xff]
      %v366 = vld [vmem:[%s234 + $0xc9] sm:$0xff]
      %v367 = vld [vmem:[%s234 + $0xd9] sm:$0xff]
      %v368 = vld [vmem:[%s234 + $0xe1] sm:$0xff]
      %v369 = vld [vmem:[%s234 + $0xf1] sm:$0xff]
      %v370 = vld [vmem:[%s234 + $0xf9] sm:$0xff]
      %v371 = vld [vmem:[%s234 + $0x109] sm:$0xff]
      %v372 = vld [vmem:[%s234 + $0x111] sm:$0xff]
      %v373 = vld [vmem:[%s234 + $0x121] sm:$0xff]
      %v374 = vld [vmem:[%s234 + $0x129] sm:$0xff]
      %v375 = vld [vmem:[%s234 + $0x139] sm:$0xff]
      %v376 = vld [vmem:[%s234 + $0x141] sm:$0xff]
      %v377 = vld [vmem:[%s234 + $0x151] sm:$0xff]
      %v378 = vld [vmem:[%s234 + $0x159] sm:$0xff]
      %v379 = vld [vmem:[%s234 + $0x169] sm:$0xff]
      %v380 = vld [vmem:[%s234 + $0x171] sm:$0xff]
      %v381 = vperm.slane %v277, 1
      %v382 = vmul.f32 %v349, %v381
      %v383 = vmul.f32 %v350, %v381
      %v384 = vmul.f32 %v351, %v381
      %v385 = vmul.f32 %v352, %v381
      %v386 = vmul.f32 %v353, %v381
      %v387 = vmul.f32 %v354, %v381
      %v388 = vmul.f32 %v355, %v381
      %v389 = vmul.f32 %v356, %v381
      %v390 = vmul.f32 %v357, %v381
      %v391 = vmul.f32 %v358, %v381
      %v392 = vmul.f32 %v359, %v381
      %v393 = vmul.f32 %v360, %v381
      %v394 = vmul.f32 %v361, %v381
      %v395 = vmul.f32 %v362, %v381
      %v396 = vmul.f32 %v363, %v381
      %v397 = vmul.f32 %v364, %v381
      %v398 = vmul.f32 %v365, %v381
      %v399 = vmul.f32 %v366, %v381
      %v400 = vmul.f32 %v367, %v381
      %v401 = vmul.f32 %v368, %v381
      %v402 = vmul.f32 %v369, %v381
      %v403 = vmul.f32 %v370, %v381
      %v404 = vmul.f32 %v371, %v381
      %v405 = vmul.f32 %v372, %v381
      %v406 = vmul.f32 %v373, %v381
      %v407 = vmul.f32 %v374, %v381
      %v408 = vmul.f32 %v375, %v381
      %v409 = vmul.f32 %v376, %v381
      %v410 = vmul.f32 %v377, %v381
      %v411 = vmul.f32 %v378, %v381
      %v412 = vmul.f32 %v379, %v381
      %v413 = vmul.f32 %v380, %v381
      %v414 = vadd.f32 %v317, %v382
      %v415 = vadd.f32 %v318, %v383
      %v416 = vadd.f32 %v319, %v384
      %v417 = vadd.f32 %v320, %v385
      %v418 = vadd.f32 %v321, %v386
      %v419 = vadd.f32 %v322, %v387
      %v420 = vadd.f32 %v323, %v388
      %v421 = vadd.f32 %v324, %v389
      %v422 = vadd.f32 %v325, %v390
      %v423 = vadd.f32 %v326, %v391
      %v424 = vadd.f32 %v327, %v392
      %v425 = vadd.f32 %v328, %v393
      %v426 = vadd.f32 %v329, %v394
      %v427 = vadd.f32 %v330, %v395
      %v428 = vadd.f32 %v331, %v396
      %v429 = vadd.f32 %v332, %v397
      %v430 = vadd.f32 %v333, %v398
      %v431 = vadd.f32 %v334, %v399
      %v432 = vadd.f32 %v335, %v400
      %v433 = vadd.f32 %v336, %v401
      %v434 = vadd.f32 %v337, %v402
      %v435 = vadd.f32 %v338, %v403
      %v436 = vadd.f32 %v339, %v404
      %v437 = vadd.f32 %v340, %v405
      %v438 = vadd.f32 %v341, %v406
      %v439 = vadd.f32 %v342, %v407
      %v440 = vadd.f32 %v343, %v408
      %v441 = vadd.f32 %v344, %v409
      %v442 = vadd.f32 %v345, %v410
      %v443 = vadd.f32 %v346, %v411
      %v444 = vadd.f32 %v347, %v412
      %v445 = vadd.f32 %v348, %v413
      %v446 = vld [vmem:[%s234 + $0x2] sm:$0xff]
      %v447 = vld [vmem:[%s234 + $0xa] sm:$0xff]
      %v448 = vld [vmem:[%s234 + $0x1a] sm:$0xff]
      %v449 = vld [vmem:[%s234 + $0x22] sm:$0xff]
      %v450 = vld [vmem:[%s234 + $0x32] sm:$0xff]
      %v451 = vld [vmem:[%s234 + $0x3a] sm:$0xff]
      %v452 = vld [vmem:[%s234 + $0x4a] sm:$0xff]
      %v453 = vld [vmem:[%s234 + $0x52] sm:$0xff]
      %v454 = vld [vmem:[%s234 + $0x62] sm:$0xff]
      %v455 = vld [vmem:[%s234 + $0x6a] sm:$0xff]
      %v456 = vld [vmem:[%s234 + $0x7a] sm:$0xff]
      %v457 = vld [vmem:[%s234 + $0x82] sm:$0xff]
      %v458 = vld [vmem:[%s234 + $0x92] sm:$0xff]
      %v459 = vld [vmem:[%s234 + $0x9a] sm:$0xff]
      %v460 = vld [vmem:[%s234 + $0xaa] sm:$0xff]
      %v461 = vld [vmem:[%s234 + $0xb2] sm:$0xff]
      %v462 = vld [vmem:[%s234 + $0xc2] sm:$0xff]
      %v463 = vld [vmem:[%s234 + $0xca] sm:$0xff]
      %v464 = vld [vmem:[%s234 + $0xda] sm:$0xff]
      %v465 = vld [vmem:[%s234 + $0xe2] sm:$0xff]
      %v466 = vld [vmem:[%s234 + $0xf2] sm:$0xff]
      %v467 = vld [vmem:[%s234 + $0xfa] sm:$0xff]
      %v468 = vld [vmem:[%s234 + $0x10a] sm:$0xff]
      %v469 = vld [vmem:[%s234 + $0x112] sm:$0xff]
      %v470 = vld [vmem:[%s234 + $0x122] sm:$0xff]
      %v471 = vld [vmem:[%s234 + $0x12a] sm:$0xff]
      %v472 = vld [vmem:[%s234 + $0x13a] sm:$0xff]
      %v473 = vld [vmem:[%s234 + $0x142] sm:$0xff]
      %v474 = vld [vmem:[%s234 + $0x152] sm:$0xff]
      %v475 = vld [vmem:[%s234 + $0x15a] sm:$0xff]
      %v476 = vld [vmem:[%s234 + $0x16a] sm:$0xff]
      %v477 = vld [vmem:[%s234 + $0x172] sm:$0xff]
      %v478 = vperm.slane %v277, 2
      %v479 = vmul.f32 %v446, %v478
      %v480 = vmul.f32 %v447, %v478
      %v481 = vmul.f32 %v448, %v478
      %v482 = vmul.f32 %v449, %v478
      %v483 = vmul.f32 %v450, %v478
      %v484 = vmul.f32 %v451, %v478
      %v485 = vmul.f32 %v452, %v478
      %v486 = vmul.f32 %v453, %v478
      %v487 = vmul.f32 %v454, %v478
      %v488 = vmul.f32 %v455, %v478
      %v489 = vmul.f32 %v456, %v478
      %v490 = vmul.f32 %v457, %v478
      %v491 = vmul.f32 %v458, %v478
      %v492 = vmul.f32 %v459, %v478
      %v493 = vmul.f32 %v460, %v478
      %v494 = vmul.f32 %v461, %v478
      %v495 = vmul.f32 %v462, %v478
      %v496 = vmul.f32 %v463, %v478
      %v497 = vmul.f32 %v464, %v478
      %v498 = vmul.f32 %v465, %v478
      %v499 = vmul.f32 %v466, %v478
      %v500 = vmul.f32 %v467, %v478
      %v501 = vmul.f32 %v468, %v478
      %v502 = vmul.f32 %v469, %v478
      %v503 = vmul.f32 %v470, %v478
      %v504 = vmul.f32 %v471, %v478
      %v505 = vmul.f32 %v472, %v478
      %v506 = vmul.f32 %v473, %v478
      %v507 = vmul.f32 %v474, %v478
      %v508 = vmul.f32 %v475, %v478
      %v509 = vmul.f32 %v476, %v478
      %v510 = vmul.f32 %v477, %v478
      %v511 = vadd.f32 %v414, %v479
      %v512 = vadd.f32 %v415, %v480
      %v513 = vadd.f32 %v416, %v481
      %v514 = vadd.f32 %v417, %v482
      %v515 = vadd.f32 %v418, %v483
      %v516 = vadd.f32 %v419, %v484
      %v517 = vadd.f32 %v420, %v485
      %v518 = vadd.f32 %v421, %v486
      %v519 = vadd.f32 %v422, %v487
      %v520 = vadd.f32 %v423, %v488
      %v521 = vadd.f32 %v424, %v489
      %v522 = vadd.f32 %v425, %v490
      %v523 = vadd.f32 %v426, %v491
      %v524 = vadd.f32 %v427, %v492
      %v525 = vadd.f32 %v428, %v493
      %v526 = vadd.f32 %v429, %v494
      %v527 = vadd.f32 %v430, %v495
      %v528 = vadd.f32 %v431, %v496
      %v529 = vadd.f32 %v432, %v497
      %v530 = vadd.f32 %v433, %v498
      %v531 = vadd.f32 %v434, %v499
      %v532 = vadd.f32 %v435, %v500
      %v533 = vadd.f32 %v436, %v501
      %v534 = vadd.f32 %v437, %v502
      %v535 = vadd.f32 %v438, %v503
      %v536 = vadd.f32 %v439, %v504
      %v537 = vadd.f32 %v440, %v505
      %v538 = vadd.f32 %v441, %v506
      %v539 = vadd.f32 %v442, %v507
      %v540 = vadd.f32 %v443, %v508
      %v541 = vadd.f32 %v444, %v509
      %v542 = vadd.f32 %v445, %v510
      %v543 = vld [vmem:[%s234 + $0x3] sm:$0xff]
      %v544 = vld [vmem:[%s234 + $0xb] sm:$0xff]
      %v545 = vld [vmem:[%s234 + $0x1b] sm:$0xff]
      %v546 = vld [vmem:[%s234 + $0x23] sm:$0xff]
      %v547 = vld [vmem:[%s234 + $0x33] sm:$0xff]
      %v548 = vld [vmem:[%s234 + $0x3b] sm:$0xff]
      %v549 = vld [vmem:[%s234 + $0x4b] sm:$0xff]
      %v550 = vld [vmem:[%s234 + $0x53] sm:$0xff]
      %v551 = vld [vmem:[%s234 + $0x63] sm:$0xff]
      %v552 = vld [vmem:[%s234 + $0x6b] sm:$0xff]
      %v553 = vld [vmem:[%s234 + $0x7b] sm:$0xff]
      %v554 = vld [vmem:[%s234 + $0x83] sm:$0xff]
      %v555 = vld [vmem:[%s234 + $0x93] sm:$0xff]
      %v556 = vld [vmem:[%s234 + $0x9b] sm:$0xff]
      %v557 = vld [vmem:[%s234 + $0xab] sm:$0xff]
      %v558 = vld [vmem:[%s234 + $0xb3] sm:$0xff]
      %v559 = vld [vmem:[%s234 + $0xc3] sm:$0xff]
      %v560 = vld [vmem:[%s234 + $0xcb] sm:$0xff]
      %v561 = vld [vmem:[%s234 + $0xdb] sm:$0xff]
      %v562 = vld [vmem:[%s234 + $0xe3] sm:$0xff]
      %v563 = vld [vmem:[%s234 + $0xf3] sm:$0xff]
      %v564 = vld [vmem:[%s234 + $0xfb] sm:$0xff]
      %v565 = vld [vmem:[%s234 + $0x10b] sm:$0xff]
      %v566 = vld [vmem:[%s234 + $0x113] sm:$0xff]
      %v567 = vld [vmem:[%s234 + $0x123] sm:$0xff]
      %v568 = vld [vmem:[%s234 + $0x12b] sm:$0xff]
      %v569 = vld [vmem:[%s234 + $0x13b] sm:$0xff]
      %v570 = vld [vmem:[%s234 + $0x143] sm:$0xff]
      %v571 = vld [vmem:[%s234 + $0x153] sm:$0xff]
      %v572 = vld [vmem:[%s234 + $0x15b] sm:$0xff]
      %v573 = vld [vmem:[%s234 + $0x16b] sm:$0xff]
      %v574 = vld [vmem:[%s234 + $0x173] sm:$0xff]
      %v575 = vperm.slane %v277, 3
      %v576 = vmul.f32 %v543, %v575
      %v577 = vmul.f32 %v544, %v575
      %v578 = vmul.f32 %v545, %v575
      %v579 = vmul.f32 %v546, %v575
      %v580 = vmul.f32 %v547, %v575
      %v581 = vmul.f32 %v548, %v575
      %v582 = vmul.f32 %v549, %v575
      %v583 = vmul.f32 %v550, %v575
      %v584 = vmul.f32 %v551, %v575
      %v585 = vmul.f32 %v552, %v575
      %v586 = vmul.f32 %v553, %v575
      %v587 = vmul.f32 %v554, %v575
      %v588 = vmul.f32 %v555, %v575
      %v589 = vmul.f32 %v556, %v575
      %v590 = vmul.f32 %v557, %v575
      %v591 = vmul.f32 %v558, %v575
      %v592 = vmul.f32 %v559, %v575
      %v593 = vmul.f32 %v560, %v575
      %v594 = vmul.f32 %v561, %v575
      %v595 = vmul.f32 %v562, %v575
      %v596 = vmul.f32 %v563, %v575
      %v597 = vmul.f32 %v564, %v575
      %v598 = vmul.f32 %v565, %v575
      %v599 = vmul.f32 %v566, %v575
      %v600 = vmul.f32 %v567, %v575
      %v601 = vmul.f32 %v568, %v575
      %v602 = vmul.f32 %v569, %v575
      %v603 = vmul.f32 %v570, %v575
      %v604 = vmul.f32 %v571, %v575
      %v605 = vmul.f32 %v572, %v575
      %v606 = vmul.f32 %v573, %v575
      %v607 = vmul.f32 %v574, %v575
      %v608 = vadd.f32 %v511, %v576
      %v609 = vadd.f32 %v512, %v577
      %v610 = vadd.f32 %v513, %v578
      %v611 = vadd.f32 %v514, %v579
      %v612 = vadd.f32 %v515, %v580
      %v613 = vadd.f32 %v516, %v581
      %v614 = vadd.f32 %v517, %v582
      %v615 = vadd.f32 %v518, %v583
      %v616 = vadd.f32 %v519, %v584
      %v617 = vadd.f32 %v520, %v585
      %v618 = vadd.f32 %v521, %v586
      %v619 = vadd.f32 %v522, %v587
      %v620 = vadd.f32 %v523, %v588
      %v621 = vadd.f32 %v524, %v589
      %v622 = vadd.f32 %v525, %v590
      %v623 = vadd.f32 %v526, %v591
      %v624 = vadd.f32 %v527, %v592
      %v625 = vadd.f32 %v528, %v593
      %v626 = vadd.f32 %v529, %v594
      %v627 = vadd.f32 %v530, %v595
      %v628 = vadd.f32 %v531, %v596
      %v629 = vadd.f32 %v532, %v597
      %v630 = vadd.f32 %v533, %v598
      %v631 = vadd.f32 %v534, %v599
      %v632 = vadd.f32 %v535, %v600
      %v633 = vadd.f32 %v536, %v601
      %v634 = vadd.f32 %v537, %v602
      %v635 = vadd.f32 %v538, %v603
      %v636 = vadd.f32 %v539, %v604
      %v637 = vadd.f32 %v540, %v605
      %v638 = vadd.f32 %v541, %v606
      %v639 = vadd.f32 %v542, %v607
      %v640 = vld [vmem:[%s234 + $0x4] sm:$0xff]
      %v641 = vld [vmem:[%s234 + $0xc] sm:$0xff]
      %v642 = vld [vmem:[%s234 + $0x1c] sm:$0xff]
      %v643 = vld [vmem:[%s234 + $0x24] sm:$0xff]
      %v644 = vld [vmem:[%s234 + $0x34] sm:$0xff]
      %v645 = vld [vmem:[%s234 + $0x3c] sm:$0xff]
      %v646 = vld [vmem:[%s234 + $0x4c] sm:$0xff]
      %v647 = vld [vmem:[%s234 + $0x54] sm:$0xff]
      %v648 = vld [vmem:[%s234 + $0x64] sm:$0xff]
      %v649 = vld [vmem:[%s234 + $0x6c] sm:$0xff]
      %v650 = vld [vmem:[%s234 + $0x7c] sm:$0xff]
      %v651 = vld [vmem:[%s234 + $0x84] sm:$0xff]
      %v652 = vld [vmem:[%s234 + $0x94] sm:$0xff]
      %v653 = vld [vmem:[%s234 + $0x9c] sm:$0xff]
      %v654 = vld [vmem:[%s234 + $0xac] sm:$0xff]
      %v655 = vld [vmem:[%s234 + $0xb4] sm:$0xff]
      %v656 = vld [vmem:[%s234 + $0xc4] sm:$0xff]
      %v657 = vld [vmem:[%s234 + $0xcc] sm:$0xff]
      %v658 = vld [vmem:[%s234 + $0xdc] sm:$0xff]
      %v659 = vld [vmem:[%s234 + $0xe4] sm:$0xff]
      %v660 = vld [vmem:[%s234 + $0xf4] sm:$0xff]
      %v661 = vld [vmem:[%s234 + $0xfc] sm:$0xff]
      %v662 = vld [vmem:[%s234 + $0x10c] sm:$0xff]
      %v663 = vld [vmem:[%s234 + $0x114] sm:$0xff]
      %v664 = vld [vmem:[%s234 + $0x124] sm:$0xff]
      %v665 = vld [vmem:[%s234 + $0x12c] sm:$0xff]
      %v666 = vld [vmem:[%s234 + $0x13c] sm:$0xff]
      %v667 = vld [vmem:[%s234 + $0x144] sm:$0xff]
      %v668 = vld [vmem:[%s234 + $0x154] sm:$0xff]
      %v669 = vld [vmem:[%s234 + $0x15c] sm:$0xff]
      %v670 = vld [vmem:[%s234 + $0x16c] sm:$0xff]
      %v671 = vld [vmem:[%s234 + $0x174] sm:$0xff]
      %v672 = vperm.slane %v277, 4
      %v673 = vmul.f32 %v640, %v672
      %v674 = vmul.f32 %v641, %v672
      %v675 = vmul.f32 %v642, %v672
      %v676 = vmul.f32 %v643, %v672
      %v677 = vmul.f32 %v644, %v672
      %v678 = vmul.f32 %v645, %v672
      %v679 = vmul.f32 %v646, %v672
      %v680 = vmul.f32 %v647, %v672
      %v681 = vmul.f32 %v648, %v672
      %v682 = vmul.f32 %v649, %v672
      %v683 = vmul.f32 %v650, %v672
      %v684 = vmul.f32 %v651, %v672
      %v685 = vmul.f32 %v652, %v672
      %v686 = vmul.f32 %v653, %v672
      %v687 = vmul.f32 %v654, %v672
      %v688 = vmul.f32 %v655, %v672
      %v689 = vmul.f32 %v656, %v672
      %v690 = vmul.f32 %v657, %v672
      %v691 = vmul.f32 %v658, %v672
      %v692 = vmul.f32 %v659, %v672
      %v693 = vmul.f32 %v660, %v672
      %v694 = vmul.f32 %v661, %v672
      %v695 = vmul.f32 %v662, %v672
      %v696 = vmul.f32 %v663, %v672
      %v697 = vmul.f32 %v664, %v672
      %v698 = vmul.f32 %v665, %v672
      %v699 = vmul.f32 %v666, %v672
      %v700 = vmul.f32 %v667, %v672
      %v701 = vmul.f32 %v668, %v672
      %v702 = vmul.f32 %v669, %v672
      %v703 = vmul.f32 %v670, %v672
      %v704 = vmul.f32 %v671, %v672
      %v705 = vadd.f32 %v608, %v673
      %v706 = vadd.f32 %v609, %v674
      %v707 = vadd.f32 %v610, %v675
      %v708 = vadd.f32 %v611, %v676
      %v709 = vadd.f32 %v612, %v677
      %v710 = vadd.f32 %v613, %v678
      %v711 = vadd.f32 %v614, %v679
      %v712 = vadd.f32 %v615, %v680
      %v713 = vadd.f32 %v616, %v681
      %v714 = vadd.f32 %v617, %v682
      %v715 = vadd.f32 %v618, %v683
      %v716 = vadd.f32 %v619, %v684
      %v717 = vadd.f32 %v620, %v685
      %v718 = vadd.f32 %v621, %v686
      %v719 = vadd.f32 %v622, %v687
      %v720 = vadd.f32 %v623, %v688
      %v721 = vadd.f32 %v624, %v689
      %v722 = vadd.f32 %v625, %v690
      %v723 = vadd.f32 %v626, %v691
      %v724 = vadd.f32 %v627, %v692
      %v725 = vadd.f32 %v628, %v693
      %v726 = vadd.f32 %v629, %v694
      %v727 = vadd.f32 %v630, %v695
      %v728 = vadd.f32 %v631, %v696
      %v729 = vadd.f32 %v632, %v697
      %v730 = vadd.f32 %v633, %v698
      %v731 = vadd.f32 %v634, %v699
      %v732 = vadd.f32 %v635, %v700
      %v733 = vadd.f32 %v636, %v701
      %v734 = vadd.f32 %v637, %v702
      %v735 = vadd.f32 %v638, %v703
      %v736 = vadd.f32 %v639, %v704
      %v737 = vld [vmem:[%s234 + $0x5] sm:$0xff]
      %v738 = vld [vmem:[%s234 + $0xd] sm:$0xff]
      %v739 = vld [vmem:[%s234 + $0x1d] sm:$0xff]
      %v740 = vld [vmem:[%s234 + $0x25] sm:$0xff]
      %v741 = vld [vmem:[%s234 + $0x35] sm:$0xff]
      %v742 = vld [vmem:[%s234 + $0x3d] sm:$0xff]
      %v743 = vld [vmem:[%s234 + $0x4d] sm:$0xff]
      %v744 = vld [vmem:[%s234 + $0x55] sm:$0xff]
      %v745 = vld [vmem:[%s234 + $0x65] sm:$0xff]
      %v746 = vld [vmem:[%s234 + $0x6d] sm:$0xff]
      %v747 = vld [vmem:[%s234 + $0x7d] sm:$0xff]
      %v748 = vld [vmem:[%s234 + $0x85] sm:$0xff]
      %v749 = vld [vmem:[%s234 + $0x95] sm:$0xff]
      %v750 = vld [vmem:[%s234 + $0x9d] sm:$0xff]
      %v751 = vld [vmem:[%s234 + $0xad] sm:$0xff]
      %v752 = vld [vmem:[%s234 + $0xb5] sm:$0xff]
      %v753 = vld [vmem:[%s234 + $0xc5] sm:$0xff]
      %v754 = vld [vmem:[%s234 + $0xcd] sm:$0xff]
      %v755 = vld [vmem:[%s234 + $0xdd] sm:$0xff]
      %v756 = vld [vmem:[%s234 + $0xe5] sm:$0xff]
      %v757 = vld [vmem:[%s234 + $0xf5] sm:$0xff]
      %v758 = vld [vmem:[%s234 + $0xfd] sm:$0xff]
      %v759 = vld [vmem:[%s234 + $0x10d] sm:$0xff]
      %v760 = vld [vmem:[%s234 + $0x115] sm:$0xff]
      %v761 = vld [vmem:[%s234 + $0x125] sm:$0xff]
      %v762 = vld [vmem:[%s234 + $0x12d] sm:$0xff]
      %v763 = vld [vmem:[%s234 + $0x13d] sm:$0xff]
      %v764 = vld [vmem:[%s234 + $0x145] sm:$0xff]
      %v765 = vld [vmem:[%s234 + $0x155] sm:$0xff]
      %v766 = vld [vmem:[%s234 + $0x15d] sm:$0xff]
      %v767 = vld [vmem:[%s234 + $0x16d] sm:$0xff]
      %v768 = vld [vmem:[%s234 + $0x175] sm:$0xff]
      %v769 = vperm.slane %v277, 5
      %v770 = vmul.f32 %v737, %v769
      %v771 = vmul.f32 %v738, %v769
      %v772 = vmul.f32 %v739, %v769
      %v773 = vmul.f32 %v740, %v769
      %v774 = vmul.f32 %v741, %v769
      %v775 = vmul.f32 %v742, %v769
      %v776 = vmul.f32 %v743, %v769
      %v777 = vmul.f32 %v744, %v769
      %v778 = vmul.f32 %v745, %v769
      %v779 = vmul.f32 %v746, %v769
      %v780 = vmul.f32 %v747, %v769
      %v781 = vmul.f32 %v748, %v769
      %v782 = vmul.f32 %v749, %v769
      %v783 = vmul.f32 %v750, %v769
      %v784 = vmul.f32 %v751, %v769
      %v785 = vmul.f32 %v752, %v769
      %v786 = vmul.f32 %v753, %v769
      %v787 = vmul.f32 %v754, %v769
      %v788 = vmul.f32 %v755, %v769
      %v789 = vmul.f32 %v756, %v769
      %v790 = vmul.f32 %v757, %v769
      %v791 = vmul.f32 %v758, %v769
      %v792 = vmul.f32 %v759, %v769
      %v793 = vmul.f32 %v760, %v769
      %v794 = vmul.f32 %v761, %v769
      %v795 = vmul.f32 %v762, %v769
      %v796 = vmul.f32 %v763, %v769
      %v797 = vmul.f32 %v764, %v769
      %v798 = vmul.f32 %v765, %v769
      %v799 = vmul.f32 %v766, %v769
      %v800 = vmul.f32 %v767, %v769
      %v801 = vmul.f32 %v768, %v769
      %v802 = vadd.f32 %v705, %v770
      %v803 = vadd.f32 %v706, %v771
      %v804 = vadd.f32 %v707, %v772
      %v805 = vadd.f32 %v708, %v773
      %v806 = vadd.f32 %v709, %v774
      %v807 = vadd.f32 %v710, %v775
      %v808 = vadd.f32 %v711, %v776
      %v809 = vadd.f32 %v712, %v777
      %v810 = vadd.f32 %v713, %v778
      %v811 = vadd.f32 %v714, %v779
      %v812 = vadd.f32 %v715, %v780
      %v813 = vadd.f32 %v716, %v781
      %v814 = vadd.f32 %v717, %v782
      %v815 = vadd.f32 %v718, %v783
      %v816 = vadd.f32 %v719, %v784
      %v817 = vadd.f32 %v720, %v785
      %v818 = vadd.f32 %v721, %v786
      %v819 = vadd.f32 %v722, %v787
      %v820 = vadd.f32 %v723, %v788
      %v821 = vadd.f32 %v724, %v789
      %v822 = vadd.f32 %v725, %v790
      %v823 = vadd.f32 %v726, %v791
      %v824 = vadd.f32 %v727, %v792
      %v825 = vadd.f32 %v728, %v793
      %v826 = vadd.f32 %v729, %v794
      %v827 = vadd.f32 %v730, %v795
      %v828 = vadd.f32 %v731, %v796
      %v829 = vadd.f32 %v732, %v797
      %v830 = vadd.f32 %v733, %v798
      %v831 = vadd.f32 %v734, %v799
      %v832 = vadd.f32 %v735, %v800
      %v833 = vadd.f32 %v736, %v801
      %v834 = vld [vmem:[%s234 + $0x6] sm:$0xff]
      %v835 = vld [vmem:[%s234 + $0xe] sm:$0xff]
      %v836 = vld [vmem:[%s234 + $0x1e] sm:$0xff]
      %v837 = vld [vmem:[%s234 + $0x26] sm:$0xff]
      %v838 = vld [vmem:[%s234 + $0x36] sm:$0xff]
      %v839 = vld [vmem:[%s234 + $0x3e] sm:$0xff]
      %v840 = vld [vmem:[%s234 + $0x4e] sm:$0xff]
      %v841 = vld [vmem:[%s234 + $0x56] sm:$0xff]
      %v842 = vld [vmem:[%s234 + $0x66] sm:$0xff]
      %v843 = vld [vmem:[%s234 + $0x6e] sm:$0xff]
      %v844 = vld [vmem:[%s234 + $0x7e] sm:$0xff]
      %v845 = vld [vmem:[%s234 + $0x86] sm:$0xff]
      %v846 = vld [vmem:[%s234 + $0x96] sm:$0xff]
      %v847 = vld [vmem:[%s234 + $0x9e] sm:$0xff]
      %v848 = vld [vmem:[%s234 + $0xae] sm:$0xff]
      %v849 = vld [vmem:[%s234 + $0xb6] sm:$0xff]
      %v850 = vld [vmem:[%s234 + $0xc6] sm:$0xff]
      %v851 = vld [vmem:[%s234 + $0xce] sm:$0xff]
      %v852 = vld [vmem:[%s234 + $0xde] sm:$0xff]
      %v853 = vld [vmem:[%s234 + $0xe6] sm:$0xff]
      %v854 = vld [vmem:[%s234 + $0xf6] sm:$0xff]
      %v855 = vld [vmem:[%s234 + $0xfe] sm:$0xff]
      %v856 = vld [vmem:[%s234 + $0x10e] sm:$0xff]
      %v857 = vld [vmem:[%s234 + $0x116] sm:$0xff]
      %v858 = vld [vmem:[%s234 + $0x126] sm:$0xff]
      %v859 = vld [vmem:[%s234 + $0x12e] sm:$0xff]
      %v860 = vld [vmem:[%s234 + $0x13e] sm:$0xff]
      %v861 = vld [vmem:[%s234 + $0x146] sm:$0xff]
      %v862 = vld [vmem:[%s234 + $0x156] sm:$0xff]
      %v863 = vld [vmem:[%s234 + $0x15e] sm:$0xff]
      %v864 = vld [vmem:[%s234 + $0x16e] sm:$0xff]
      %v865 = vld [vmem:[%s234 + $0x176] sm:$0xff]
      %v866 = vperm.slane %v277, 6
      %v867 = vmul.f32 %v834, %v866
      %v868 = vmul.f32 %v835, %v866
      %v869 = vmul.f32 %v836, %v866
      %v870 = vmul.f32 %v837, %v866
      %v871 = vmul.f32 %v838, %v866
      %v872 = vmul.f32 %v839, %v866
      %v873 = vmul.f32 %v840, %v866
      %v874 = vmul.f32 %v841, %v866
      %v875 = vmul.f32 %v842, %v866
      %v876 = vmul.f32 %v843, %v866
      %v877 = vmul.f32 %v844, %v866
      %v878 = vmul.f32 %v845, %v866
      %v879 = vmul.f32 %v846, %v866
      %v880 = vmul.f32 %v847, %v866
      %v881 = vmul.f32 %v848, %v866
      %v882 = vmul.f32 %v849, %v866
      %v883 = vmul.f32 %v850, %v866
      %v884 = vmul.f32 %v851, %v866
      %v885 = vmul.f32 %v852, %v866
      %v886 = vmul.f32 %v853, %v866
      %v887 = vmul.f32 %v854, %v866
      %v888 = vmul.f32 %v855, %v866
      %v889 = vmul.f32 %v856, %v866
      %v890 = vmul.f32 %v857, %v866
      %v891 = vmul.f32 %v858, %v866
      %v892 = vmul.f32 %v859, %v866
      %v893 = vmul.f32 %v860, %v866
      %v894 = vmul.f32 %v861, %v866
      %v895 = vmul.f32 %v862, %v866
      %v896 = vmul.f32 %v863, %v866
      %v897 = vmul.f32 %v864, %v866
      %v898 = vmul.f32 %v865, %v866
      %v899 = vadd.f32 %v802, %v867
      %v900 = vadd.f32 %v803, %v868
      %v901 = vadd.f32 %v804, %v869
      %v902 = vadd.f32 %v805, %v870
      %v903 = vadd.f32 %v806, %v871
      %v904 = vadd.f32 %v807, %v872
      %v905 = vadd.f32 %v808, %v873
      %v906 = vadd.f32 %v809, %v874
      %v907 = vadd.f32 %v810, %v875
      %v908 = vadd.f32 %v811, %v876
      %v909 = vadd.f32 %v812, %v877
      %v910 = vadd.f32 %v813, %v878
      %v911 = vadd.f32 %v814, %v879
      %v912 = vadd.f32 %v815, %v880
      %v913 = vadd.f32 %v816, %v881
      %v914 = vadd.f32 %v817, %v882
      %v915 = vadd.f32 %v818, %v883
      %v916 = vadd.f32 %v819, %v884
      %v917 = vadd.f32 %v820, %v885
      %v918 = vadd.f32 %v821, %v886
      %v919 = vadd.f32 %v822, %v887
      %v920 = vadd.f32 %v823, %v888
      %v921 = vadd.f32 %v824, %v889
      %v922 = vadd.f32 %v825, %v890
      %v923 = vadd.f32 %v826, %v891
      %v924 = vadd.f32 %v827, %v892
      %v925 = vadd.f32 %v828, %v893
      %v926 = vadd.f32 %v829, %v894
      %v927 = vadd.f32 %v830, %v895
      %v928 = vadd.f32 %v831, %v896
      %v929 = vadd.f32 %v832, %v897
      %v930 = vadd.f32 %v833, %v898
      %s931 = scalar_lea.vmem %s234, 24
      %v932 = vld [vmem:[%s931] sm:$0xff]
      %v933 = vld [vmem:[%s931 + $0x8] sm:$0xff]
      %v934 = vld [vmem:[%s931 + $0x18] sm:$0xff]
      %v935 = vld [vmem:[%s931 + $0x20] sm:$0xff]
      %v936 = vld [vmem:[%s931 + $0x30] sm:$0xff]
      %v937 = vld [vmem:[%s931 + $0x38] sm:$0xff]
      %v938 = vld [vmem:[%s931 + $0x48] sm:$0xff]
      %v939 = vld [vmem:[%s931 + $0x50] sm:$0xff]
      %v940 = vld [vmem:[%s931 + $0x60] sm:$0xff]
      %v941 = vld [vmem:[%s931 + $0x68] sm:$0xff]
      %v942 = vld [vmem:[%s931 + $0x78] sm:$0xff]
      %v943 = vld [vmem:[%s931 + $0x80] sm:$0xff]
      %v944 = vld [vmem:[%s931 + $0x90] sm:$0xff]
      %v945 = vld [vmem:[%s931 + $0x98] sm:$0xff]
      %v946 = vld [vmem:[%s931 + $0xa8] sm:$0xff]
      %v947 = vld [vmem:[%s931 + $0xb0] sm:$0xff]
      %v948 = vld [vmem:[%s931 + $0xc0] sm:$0xff]
      %v949 = vld [vmem:[%s931 + $0xc8] sm:$0xff]
      %v950 = vld [vmem:[%s931 + $0xd8] sm:$0xff]
      %v951 = vld [vmem:[%s931 + $0xe0] sm:$0xff]
      %v952 = vld [vmem:[%s931 + $0xf0] sm:$0xff]
      %v953 = vld [vmem:[%s931 + $0xf8] sm:$0xff]
      %v954 = vld [vmem:[%s931 + $0x108] sm:$0xff]
      %v955 = vld [vmem:[%s931 + $0x110] sm:$0xff]
      %v956 = vld [vmem:[%s931 + $0x120] sm:$0xff]
      %v957 = vld [vmem:[%s931 + $0x128] sm:$0xff]
      %v958 = vld [vmem:[%s931 + $0x138] sm:$0xff]
      %v959 = vld [vmem:[%s931 + $0x140] sm:$0xff]
      %v960 = vld [vmem:[%s931 + $0x150] sm:$0xff]
      %v961 = vld [vmem:[%s931 + $0x158] sm:$0xff]
      %v962 = vld [vmem:[%s931 + $0x168] sm:$0xff]
      %v963 = vld [vmem:[%s931 + $0x170] sm:$0xff]
      %v964 = vperm.slane %v277, 7
      %v965 = vmul.f32 %v932, %v964
      %v966 = vmul.f32 %v933, %v964
      %v967 = vmul.f32 %v934, %v964
      %v968 = vmul.f32 %v935, %v964
      %v969 = vmul.f32 %v936, %v964
      %v970 = vmul.f32 %v937, %v964
      %v971 = vmul.f32 %v938, %v964
      %v972 = vmul.f32 %v939, %v964
      %v973 = vmul.f32 %v940, %v964
      %v974 = vmul.f32 %v941, %v964
      %v975 = vmul.f32 %v942, %v964
      %v976 = vmul.f32 %v943, %v964
      %v977 = vmul.f32 %v944, %v964
      %v978 = vmul.f32 %v945, %v964
      %v979 = vmul.f32 %v946, %v964
      %v980 = vmul.f32 %v947, %v964
      %v981 = vmul.f32 %v948, %v964
      %v982 = vmul.f32 %v949, %v964
      %v983 = vmul.f32 %v950, %v964
      %v984 = vmul.f32 %v951, %v964
      %v985 = vmul.f32 %v952, %v964
      %v986 = vmul.f32 %v953, %v964
      %v987 = vmul.f32 %v954, %v964
      %v988 = vmul.f32 %v955, %v964
      %v989 = vmul.f32 %v956, %v964
      %v990 = vmul.f32 %v957, %v964
      %v991 = vmul.f32 %v958, %v964
      %v992 = vmul.f32 %v959, %v964
      %v993 = vmul.f32 %v960, %v964
      %v994 = vmul.f32 %v961, %v964
      %v995 = vmul.f32 %v962, %v964
      %v996 = vmul.f32 %v963, %v964
      %v997 = vadd.f32 %v899, %v965
      %v998 = vadd.f32 %v900, %v966
      %v999 = vadd.f32 %v901, %v967
      %v1000 = vadd.f32 %v902, %v968
      %v1001 = vadd.f32 %v903, %v969
      %v1002 = vadd.f32 %v904, %v970
      %v1003 = vadd.f32 %v905, %v971
      %v1004 = vadd.f32 %v906, %v972
      %v1005 = vadd.f32 %v907, %v973
      %v1006 = vadd.f32 %v908, %v974
      %v1007 = vadd.f32 %v909, %v975
      %v1008 = vadd.f32 %v910, %v976
      %v1009 = vadd.f32 %v911, %v977
      %v1010 = vadd.f32 %v912, %v978
      %v1011 = vadd.f32 %v913, %v979
      %v1012 = vadd.f32 %v914, %v980
      %v1013 = vadd.f32 %v915, %v981
      %v1014 = vadd.f32 %v916, %v982
      %v1015 = vadd.f32 %v917, %v983
      %v1016 = vadd.f32 %v918, %v984
      %v1017 = vadd.f32 %v919, %v985
      %v1018 = vadd.f32 %v920, %v986
      %v1019 = vadd.f32 %v921, %v987
      %v1020 = vadd.f32 %v922, %v988
      %v1021 = vadd.f32 %v923, %v989
      %v1022 = vadd.f32 %v924, %v990
      %v1023 = vadd.f32 %v925, %v991
      %v1024 = vadd.f32 %v926, %v992
      %v1025 = vadd.f32 %v927, %v993
      %v1026 = vadd.f32 %v928, %v994
      %v1027 = vadd.f32 %v929, %v995
      %v1028 = vadd.f32 %v930, %v996
      %v1029 = vld [vmem:[%s931 + $0x1] sm:$0xff]
      %v1030 = vld [vmem:[%s931 + $0x9] sm:$0xff]
      %v1031 = vld [vmem:[%s931 + $0x19] sm:$0xff]
      %v1032 = vld [vmem:[%s931 + $0x21] sm:$0xff]
      %v1033 = vld [vmem:[%s931 + $0x31] sm:$0xff]
      %v1034 = vld [vmem:[%s931 + $0x39] sm:$0xff]
      %v1035 = vld [vmem:[%s931 + $0x49] sm:$0xff]
      %v1036 = vld [vmem:[%s931 + $0x51] sm:$0xff]
      %v1037 = vld [vmem:[%s931 + $0x61] sm:$0xff]
      %v1038 = vld [vmem:[%s931 + $0x69] sm:$0xff]
      %v1039 = vld [vmem:[%s931 + $0x79] sm:$0xff]
      %v1040 = vld [vmem:[%s931 + $0x81] sm:$0xff]
      %v1041 = vld [vmem:[%s931 + $0x91] sm:$0xff]
      %v1042 = vld [vmem:[%s931 + $0x99] sm:$0xff]
      %v1043 = vld [vmem:[%s931 + $0xa9] sm:$0xff]
      %v1044 = vld [vmem:[%s931 + $0xb1] sm:$0xff]
      %v1045 = vld [vmem:[%s931 + $0xc1] sm:$0xff]
      %v1046 = vld [vmem:[%s931 + $0xc9] sm:$0xff]
      %v1047 = vld [vmem:[%s931 + $0xd9] sm:$0xff]
      %v1048 = vld [vmem:[%s931 + $0xe1] sm:$0xff]
      %v1049 = vld [vmem:[%s931 + $0xf1] sm:$0xff]
      %v1050 = vld [vmem:[%s931 + $0xf9] sm:$0xff]
      %v1051 = vld [vmem:[%s931 + $0x109] sm:$0xff]
      %v1052 = vld [vmem:[%s931 + $0x111] sm:$0xff]
      %v1053 = vld [vmem:[%s931 + $0x121] sm:$0xff]
      %v1054 = vld [vmem:[%s931 + $0x129] sm:$0xff]
      %v1055 = vld [vmem:[%s931 + $0x139] sm:$0xff]
      %v1056 = vld [vmem:[%s931 + $0x141] sm:$0xff]
      %v1057 = vld [vmem:[%s931 + $0x151] sm:$0xff]
      %v1058 = vld [vmem:[%s931 + $0x159] sm:$0xff]
      %v1059 = vld [vmem:[%s931 + $0x169] sm:$0xff]
      %v1060 = vld [vmem:[%s931 + $0x171] sm:$0xff]
      %v1061 = vperm.slane %v278, 0
      %v1062 = vmul.f32 %v1029, %v1061
      %v1063 = vmul.f32 %v1030, %v1061
      %v1064 = vmul.f32 %v1031, %v1061
      %v1065 = vmul.f32 %v1032, %v1061
      %v1066 = vmul.f32 %v1033, %v1061
      %v1067 = vmul.f32 %v1034, %v1061
      %v1068 = vmul.f32 %v1035, %v1061
      %v1069 = vmul.f32 %v1036, %v1061
      %v1070 = vmul.f32 %v1037, %v1061
      %v1071 = vmul.f32 %v1038, %v1061
      %v1072 = vmul.f32 %v1039, %v1061
      %v1073 = vmul.f32 %v1040, %v1061
      %v1074 = vmul.f32 %v1041, %v1061
      %v1075 = vmul.f32 %v1042, %v1061
      %v1076 = vmul.f32 %v1043, %v1061
      %v1077 = vmul.f32 %v1044, %v1061
      %v1078 = vmul.f32 %v1045, %v1061
      %v1079 = vmul.f32 %v1046, %v1061
      %v1080 = vmul.f32 %v1047, %v1061
      %v1081 = vmul.f32 %v1048, %v1061
      %v1082 = vmul.f32 %v1049, %v1061
      %v1083 = vmul.f32 %v1050, %v1061
      %v1084 = vmul.f32 %v1051, %v1061
      %v1085 = vmul.f32 %v1052, %v1061
      %v1086 = vmul.f32 %v1053, %v1061
      %v1087 = vmul.f32 %v1054, %v1061
      %v1088 = vmul.f32 %v1055, %v1061
      %v1089 = vmul.f32 %v1056, %v1061
      %v1090 = vmul.f32 %v1057, %v1061
      %v1091 = vmul.f32 %v1058, %v1061
      %v1092 = vmul.f32 %v1059, %v1061
      %v1093 = vmul.f32 %v1060, %v1061
      %v1094 = vadd.f32 %v997, %v1062
      %v1095 = vadd.f32 %v998, %v1063
      %v1096 = vadd.f32 %v999, %v1064
      %v1097 = vadd.f32 %v1000, %v1065
      %v1098 = vadd.f32 %v1001, %v1066
      %v1099 = vadd.f32 %v1002, %v1067
      %v1100 = vadd.f32 %v1003, %v1068
      %v1101 = vadd.f32 %v1004, %v1069
      %v1102 = vadd.f32 %v1005, %v1070
      %v1103 = vadd.f32 %v1006, %v1071
      %v1104 = vadd.f32 %v1007, %v1072
      %v1105 = vadd.f32 %v1008, %v1073
      %v1106 = vadd.f32 %v1009, %v1074
      %v1107 = vadd.f32 %v1010, %v1075
      %v1108 = vadd.f32 %v1011, %v1076
      %v1109 = vadd.f32 %v1012, %v1077
      %v1110 = vadd.f32 %v1013, %v1078
      %v1111 = vadd.f32 %v1014, %v1079
      %v1112 = vadd.f32 %v1015, %v1080
      %v1113 = vadd.f32 %v1016, %v1081
      %v1114 = vadd.f32 %v1017, %v1082
      %v1115 = vadd.f32 %v1018, %v1083
      %v1116 = vadd.f32 %v1019, %v1084
      %v1117 = vadd.f32 %v1020, %v1085
      %v1118 = vadd.f32 %v1021, %v1086
      %v1119 = vadd.f32 %v1022, %v1087
      %v1120 = vadd.f32 %v1023, %v1088
      %v1121 = vadd.f32 %v1024, %v1089
      %v1122 = vadd.f32 %v1025, %v1090
      %v1123 = vadd.f32 %v1026, %v1091
      %v1124 = vadd.f32 %v1027, %v1092
      %v1125 = vadd.f32 %v1028, %v1093
      %v1126 = vld [vmem:[%s931 + $0x2] sm:$0xff]
      %v1127 = vld [vmem:[%s931 + $0xa] sm:$0xff]
      %v1128 = vld [vmem:[%s931 + $0x1a] sm:$0xff]
      %v1129 = vld [vmem:[%s931 + $0x22] sm:$0xff]
      %v1130 = vld [vmem:[%s931 + $0x32] sm:$0xff]
      %v1131 = vld [vmem:[%s931 + $0x3a] sm:$0xff]
      %v1132 = vld [vmem:[%s931 + $0x4a] sm:$0xff]
      %v1133 = vld [vmem:[%s931 + $0x52] sm:$0xff]
      %v1134 = vld [vmem:[%s931 + $0x62] sm:$0xff]
      %v1135 = vld [vmem:[%s931 + $0x6a] sm:$0xff]
      %v1136 = vld [vmem:[%s931 + $0x7a] sm:$0xff]
      %v1137 = vld [vmem:[%s931 + $0x82] sm:$0xff]
      %v1138 = vld [vmem:[%s931 + $0x92] sm:$0xff]
      %v1139 = vld [vmem:[%s931 + $0x9a] sm:$0xff]
      %v1140 = vld [vmem:[%s931 + $0xaa] sm:$0xff]
      %v1141 = vld [vmem:[%s931 + $0xb2] sm:$0xff]
      %v1142 = vld [vmem:[%s931 + $0xc2] sm:$0xff]
      %v1143 = vld [vmem:[%s931 + $0xca] sm:$0xff]
      %v1144 = vld [vmem:[%s931 + $0xda] sm:$0xff]
      %v1145 = vld [vmem:[%s931 + $0xe2] sm:$0xff]
      %v1146 = vld [vmem:[%s931 + $0xf2] sm:$0xff]
      %v1147 = vld [vmem:[%s931 + $0xfa] sm:$0xff]
      %v1148 = vld [vmem:[%s931 + $0x10a] sm:$0xff]
      %v1149 = vld [vmem:[%s931 + $0x112] sm:$0xff]
      %v1150 = vld [vmem:[%s931 + $0x122] sm:$0xff]
      %v1151 = vld [vmem:[%s931 + $0x12a] sm:$0xff]
      %v1152 = vld [vmem:[%s931 + $0x13a] sm:$0xff]
      %v1153 = vld [vmem:[%s931 + $0x142] sm:$0xff]
      %v1154 = vld [vmem:[%s931 + $0x152] sm:$0xff]
      %v1155 = vld [vmem:[%s931 + $0x15a] sm:$0xff]
      %v1156 = vld [vmem:[%s931 + $0x16a] sm:$0xff]
      %v1157 = vld [vmem:[%s931 + $0x172] sm:$0xff]
      %v1158 = vperm.slane %v278, 1
      %v1159 = vmul.f32 %v1126, %v1158
      %v1160 = vmul.f32 %v1127, %v1158
      %v1161 = vmul.f32 %v1128, %v1158
      %v1162 = vmul.f32 %v1129, %v1158
      %v1163 = vmul.f32 %v1130, %v1158
      %v1164 = vmul.f32 %v1131, %v1158
      %v1165 = vmul.f32 %v1132, %v1158
      %v1166 = vmul.f32 %v1133, %v1158
      %v1167 = vmul.f32 %v1134, %v1158
      %v1168 = vmul.f32 %v1135, %v1158
      %v1169 = vmul.f32 %v1136, %v1158
      %v1170 = vmul.f32 %v1137, %v1158
      %v1171 = vmul.f32 %v1138, %v1158
      %v1172 = vmul.f32 %v1139, %v1158
      %v1173 = vmul.f32 %v1140, %v1158
      %v1174 = vmul.f32 %v1141, %v1158
      %v1175 = vmul.f32 %v1142, %v1158
      %v1176 = vmul.f32 %v1143, %v1158
      %v1177 = vmul.f32 %v1144, %v1158
      %v1178 = vmul.f32 %v1145, %v1158
      %v1179 = vmul.f32 %v1146, %v1158
      %v1180 = vmul.f32 %v1147, %v1158
      %v1181 = vmul.f32 %v1148, %v1158
      %v1182 = vmul.f32 %v1149, %v1158
      %v1183 = vmul.f32 %v1150, %v1158
      %v1184 = vmul.f32 %v1151, %v1158
      %v1185 = vmul.f32 %v1152, %v1158
      %v1186 = vmul.f32 %v1153, %v1158
      %v1187 = vmul.f32 %v1154, %v1158
      %v1188 = vmul.f32 %v1155, %v1158
      %v1189 = vmul.f32 %v1156, %v1158
      %v1190 = vmul.f32 %v1157, %v1158
      %v1191 = vadd.f32 %v1094, %v1159
      %v1192 = vadd.f32 %v1095, %v1160
      %v1193 = vadd.f32 %v1096, %v1161
      %v1194 = vadd.f32 %v1097, %v1162
      %v1195 = vadd.f32 %v1098, %v1163
      %v1196 = vadd.f32 %v1099, %v1164
      %v1197 = vadd.f32 %v1100, %v1165
      %v1198 = vadd.f32 %v1101, %v1166
      %v1199 = vadd.f32 %v1102, %v1167
      %v1200 = vadd.f32 %v1103, %v1168
      %v1201 = vadd.f32 %v1104, %v1169
      %v1202 = vadd.f32 %v1105, %v1170
      %v1203 = vadd.f32 %v1106, %v1171
      %v1204 = vadd.f32 %v1107, %v1172
      %v1205 = vadd.f32 %v1108, %v1173
      %v1206 = vadd.f32 %v1109, %v1174
      %v1207 = vadd.f32 %v1110, %v1175
      %v1208 = vadd.f32 %v1111, %v1176
      %v1209 = vadd.f32 %v1112, %v1177
      %v1210 = vadd.f32 %v1113, %v1178
      %v1211 = vadd.f32 %v1114, %v1179
      %v1212 = vadd.f32 %v1115, %v1180
      %v1213 = vadd.f32 %v1116, %v1181
      %v1214 = vadd.f32 %v1117, %v1182
      %v1215 = vadd.f32 %v1118, %v1183
      %v1216 = vadd.f32 %v1119, %v1184
      %v1217 = vadd.f32 %v1120, %v1185
      %v1218 = vadd.f32 %v1121, %v1186
      %v1219 = vadd.f32 %v1122, %v1187
      %v1220 = vadd.f32 %v1123, %v1188
      %v1221 = vadd.f32 %v1124, %v1189
      %v1222 = vadd.f32 %v1125, %v1190
      %v1223 = vld [vmem:[%s931 + $0x3] sm:$0xff]
      %v1224 = vld [vmem:[%s931 + $0xb] sm:$0xff]
      %v1225 = vld [vmem:[%s931 + $0x1b] sm:$0xff]
      %v1226 = vld [vmem:[%s931 + $0x23] sm:$0xff]
      %v1227 = vld [vmem:[%s931 + $0x33] sm:$0xff]
      %v1228 = vld [vmem:[%s931 + $0x3b] sm:$0xff]
      %v1229 = vld [vmem:[%s931 + $0x4b] sm:$0xff]
      %v1230 = vld [vmem:[%s931 + $0x53] sm:$0xff]
      %v1231 = vld [vmem:[%s931 + $0x63] sm:$0xff]
      %v1232 = vld [vmem:[%s931 + $0x6b] sm:$0xff]
      %v1233 = vld [vmem:[%s931 + $0x7b] sm:$0xff]
      %v1234 = vld [vmem:[%s931 + $0x83] sm:$0xff]
      %v1235 = vld [vmem:[%s931 + $0x93] sm:$0xff]
      %v1236 = vld [vmem:[%s931 + $0x9b] sm:$0xff]
      %v1237 = vld [vmem:[%s931 + $0xab] sm:$0xff]
      %v1238 = vld [vmem:[%s931 + $0xb3] sm:$0xff]
      %v1239 = vld [vmem:[%s931 + $0xc3] sm:$0xff]
      %v1240 = vld [vmem:[%s931 + $0xcb] sm:$0xff]
      %v1241 = vld [vmem:[%s931 + $0xdb] sm:$0xff]
      %v1242 = vld [vmem:[%s931 + $0xe3] sm:$0xff]
      %v1243 = vld [vmem:[%s931 + $0xf3] sm:$0xff]
      %v1244 = vld [vmem:[%s931 + $0xfb] sm:$0xff]
      %v1245 = vld [vmem:[%s931 + $0x10b] sm:$0xff]
      %v1246 = vld [vmem:[%s931 + $0x113] sm:$0xff]
      %v1247 = vld [vmem:[%s931 + $0x123] sm:$0xff]
      %v1248 = vld [vmem:[%s931 + $0x12b] sm:$0xff]
      %v1249 = vld [vmem:[%s931 + $0x13b] sm:$0xff]
      %v1250 = vld [vmem:[%s931 + $0x143] sm:$0xff]
      %v1251 = vld [vmem:[%s931 + $0x153] sm:$0xff]
      %v1252 = vld [vmem:[%s931 + $0x15b] sm:$0xff]
      %v1253 = vld [vmem:[%s931 + $0x16b] sm:$0xff]
      %v1254 = vld [vmem:[%s931 + $0x173] sm:$0xff]
      %v1255 = vperm.slane %v278, 2
      %v1256 = vmul.f32 %v1223, %v1255
      %v1257 = vmul.f32 %v1224, %v1255
      %v1258 = vmul.f32 %v1225, %v1255
      %v1259 = vmul.f32 %v1226, %v1255
      %v1260 = vmul.f32 %v1227, %v1255
      %v1261 = vmul.f32 %v1228, %v1255
      %v1262 = vmul.f32 %v1229, %v1255
      %v1263 = vmul.f32 %v1230, %v1255
      %v1264 = vmul.f32 %v1231, %v1255
      %v1265 = vmul.f32 %v1232, %v1255
      %v1266 = vmul.f32 %v1233, %v1255
      %v1267 = vmul.f32 %v1234, %v1255
      %v1268 = vmul.f32 %v1235, %v1255
      %v1269 = vmul.f32 %v1236, %v1255
      %v1270 = vmul.f32 %v1237, %v1255
      %v1271 = vmul.f32 %v1238, %v1255
      %v1272 = vmul.f32 %v1239, %v1255
      %v1273 = vmul.f32 %v1240, %v1255
      %v1274 = vmul.f32 %v1241, %v1255
      %v1275 = vmul.f32 %v1242, %v1255
      %v1276 = vmul.f32 %v1243, %v1255
      %v1277 = vmul.f32 %v1244, %v1255
      %v1278 = vmul.f32 %v1245, %v1255
      %v1279 = vmul.f32 %v1246, %v1255
      %v1280 = vmul.f32 %v1247, %v1255
      %v1281 = vmul.f32 %v1248, %v1255
      %v1282 = vmul.f32 %v1249, %v1255
      %v1283 = vmul.f32 %v1250, %v1255
      %v1284 = vmul.f32 %v1251, %v1255
      %v1285 = vmul.f32 %v1252, %v1255
      %v1286 = vmul.f32 %v1253, %v1255
      %v1287 = vmul.f32 %v1254, %v1255
      %v1288 = vadd.f32 %v1191, %v1256
      %v1289 = vadd.f32 %v1192, %v1257
      %v1290 = vadd.f32 %v1193, %v1258
      %v1291 = vadd.f32 %v1194, %v1259
      %v1292 = vadd.f32 %v1195, %v1260
      %v1293 = vadd.f32 %v1196, %v1261
      %v1294 = vadd.f32 %v1197, %v1262
      %v1295 = vadd.f32 %v1198, %v1263
      %v1296 = vadd.f32 %v1199, %v1264
      %v1297 = vadd.f32 %v1200, %v1265
      %v1298 = vadd.f32 %v1201, %v1266
      %v1299 = vadd.f32 %v1202, %v1267
      %v1300 = vadd.f32 %v1203, %v1268
      %v1301 = vadd.f32 %v1204, %v1269
      %v1302 = vadd.f32 %v1205, %v1270
      %v1303 = vadd.f32 %v1206, %v1271
      %v1304 = vadd.f32 %v1207, %v1272
      %v1305 = vadd.f32 %v1208, %v1273
      %v1306 = vadd.f32 %v1209, %v1274
      %v1307 = vadd.f32 %v1210, %v1275
      %v1308 = vadd.f32 %v1211, %v1276
      %v1309 = vadd.f32 %v1212, %v1277
      %v1310 = vadd.f32 %v1213, %v1278
      %v1311 = vadd.f32 %v1214, %v1279
      %v1312 = vadd.f32 %v1215, %v1280
      %v1313 = vadd.f32 %v1216, %v1281
      %v1314 = vadd.f32 %v1217, %v1282
      %v1315 = vadd.f32 %v1218, %v1283
      %v1316 = vadd.f32 %v1219, %v1284
      %v1317 = vadd.f32 %v1220, %v1285
      %v1318 = vadd.f32 %v1221, %v1286
      %v1319 = vadd.f32 %v1222, %v1287
      %v1320 = vld [vmem:[%s931 + $0x4] sm:$0xff]
      %v1321 = vld [vmem:[%s931 + $0xc] sm:$0xff]
      %v1322 = vld [vmem:[%s931 + $0x1c] sm:$0xff]
      %v1323 = vld [vmem:[%s931 + $0x24] sm:$0xff]
      %v1324 = vld [vmem:[%s931 + $0x34] sm:$0xff]
      %v1325 = vld [vmem:[%s931 + $0x3c] sm:$0xff]
      %v1326 = vld [vmem:[%s931 + $0x4c] sm:$0xff]
      %v1327 = vld [vmem:[%s931 + $0x54] sm:$0xff]
      %v1328 = vld [vmem:[%s931 + $0x64] sm:$0xff]
      %v1329 = vld [vmem:[%s931 + $0x6c] sm:$0xff]
      %v1330 = vld [vmem:[%s931 + $0x7c] sm:$0xff]
      %v1331 = vld [vmem:[%s931 + $0x84] sm:$0xff]
      %v1332 = vld [vmem:[%s931 + $0x94] sm:$0xff]
      %v1333 = vld [vmem:[%s931 + $0x9c] sm:$0xff]
      %v1334 = vld [vmem:[%s931 + $0xac] sm:$0xff]
      %v1335 = vld [vmem:[%s931 + $0xb4] sm:$0xff]
      %v1336 = vld [vmem:[%s931 + $0xc4] sm:$0xff]
      %v1337 = vld [vmem:[%s931 + $0xcc] sm:$0xff]
      %v1338 = vld [vmem:[%s931 + $0xdc] sm:$0xff]
      %v1339 = vld [vmem:[%s931 + $0xe4] sm:$0xff]
      %v1340 = vld [vmem:[%s931 + $0xf4] sm:$0xff]
      %v1341 = vld [vmem:[%s931 + $0xfc] sm:$0xff]
      %v1342 = vld [vmem:[%s931 + $0x10c] sm:$0xff]
      %v1343 = vld [vmem:[%s931 + $0x114] sm:$0xff]
      %v1344 = vld [vmem:[%s931 + $0x124] sm:$0xff]
      %v1345 = vld [vmem:[%s931 + $0x12c] sm:$0xff]
      %v1346 = vld [vmem:[%s931 + $0x13c] sm:$0xff]
      %v1347 = vld [vmem:[%s931 + $0x144] sm:$0xff]
      %v1348 = vld [vmem:[%s931 + $0x154] sm:$0xff]
      %v1349 = vld [vmem:[%s931 + $0x15c] sm:$0xff]
      %v1350 = vld [vmem:[%s931 + $0x16c] sm:$0xff]
      %v1351 = vld [vmem:[%s931 + $0x174] sm:$0xff]
      %v1352 = vperm.slane %v278, 3
      %v1353 = vmul.f32 %v1320, %v1352
      %v1354 = vmul.f32 %v1321, %v1352
      %v1355 = vmul.f32 %v1322, %v1352
      %v1356 = vmul.f32 %v1323, %v1352
      %v1357 = vmul.f32 %v1324, %v1352
      %v1358 = vmul.f32 %v1325, %v1352
      %v1359 = vmul.f32 %v1326, %v1352
      %v1360 = vmul.f32 %v1327, %v1352
      %v1361 = vmul.f32 %v1328, %v1352
      %v1362 = vmul.f32 %v1329, %v1352
      %v1363 = vmul.f32 %v1330, %v1352
      %v1364 = vmul.f32 %v1331, %v1352
      %v1365 = vmul.f32 %v1332, %v1352
      %v1366 = vmul.f32 %v1333, %v1352
      %v1367 = vmul.f32 %v1334, %v1352
      %v1368 = vmul.f32 %v1335, %v1352
      %v1369 = vmul.f32 %v1336, %v1352
      %v1370 = vmul.f32 %v1337, %v1352
      %v1371 = vmul.f32 %v1338, %v1352
      %v1372 = vmul.f32 %v1339, %v1352
      %v1373 = vmul.f32 %v1340, %v1352
      %v1374 = vmul.f32 %v1341, %v1352
      %v1375 = vmul.f32 %v1342, %v1352
      %v1376 = vmul.f32 %v1343, %v1352
      %v1377 = vmul.f32 %v1344, %v1352
      %v1378 = vmul.f32 %v1345, %v1352
      %v1379 = vmul.f32 %v1346, %v1352
      %v1380 = vmul.f32 %v1347, %v1352
      %v1381 = vmul.f32 %v1348, %v1352
      %v1382 = vmul.f32 %v1349, %v1352
      %v1383 = vmul.f32 %v1350, %v1352
      %v1384 = vmul.f32 %v1351, %v1352
      %v1385 = vadd.f32 %v1288, %v1353
      %v1386 = vadd.f32 %v1289, %v1354
      %v1387 = vadd.f32 %v1290, %v1355
      %v1388 = vadd.f32 %v1291, %v1356
      %v1389 = vadd.f32 %v1292, %v1357
      %v1390 = vadd.f32 %v1293, %v1358
      %v1391 = vadd.f32 %v1294, %v1359
      %v1392 = vadd.f32 %v1295, %v1360
      %v1393 = vadd.f32 %v1296, %v1361
      %v1394 = vadd.f32 %v1297, %v1362
      %v1395 = vadd.f32 %v1298, %v1363
      %v1396 = vadd.f32 %v1299, %v1364
      %v1397 = vadd.f32 %v1300, %v1365
      %v1398 = vadd.f32 %v1301, %v1366
      %v1399 = vadd.f32 %v1302, %v1367
      %v1400 = vadd.f32 %v1303, %v1368
      %v1401 = vadd.f32 %v1304, %v1369
      %v1402 = vadd.f32 %v1305, %v1370
      %v1403 = vadd.f32 %v1306, %v1371
      %v1404 = vadd.f32 %v1307, %v1372
      %v1405 = vadd.f32 %v1308, %v1373
      %v1406 = vadd.f32 %v1309, %v1374
      %v1407 = vadd.f32 %v1310, %v1375
      %v1408 = vadd.f32 %v1311, %v1376
      %v1409 = vadd.f32 %v1312, %v1377
      %v1410 = vadd.f32 %v1313, %v1378
      %v1411 = vadd.f32 %v1314, %v1379
      %v1412 = vadd.f32 %v1315, %v1380
      %v1413 = vadd.f32 %v1316, %v1381
      %v1414 = vadd.f32 %v1317, %v1382
      %v1415 = vadd.f32 %v1318, %v1383
      %v1416 = vadd.f32 %v1319, %v1384
      %v1417 = vld [vmem:[%s931 + $0x5] sm:$0xff]
      %v1418 = vld [vmem:[%s931 + $0xd] sm:$0xff]
      %v1419 = vld [vmem:[%s931 + $0x1d] sm:$0xff]
      %v1420 = vld [vmem:[%s931 + $0x25] sm:$0xff]
      %v1421 = vld [vmem:[%s931 + $0x35] sm:$0xff]
      %v1422 = vld [vmem:[%s931 + $0x3d] sm:$0xff]
      %v1423 = vld [vmem:[%s931 + $0x4d] sm:$0xff]
      %v1424 = vld [vmem:[%s931 + $0x55] sm:$0xff]
      %v1425 = vld [vmem:[%s931 + $0x65] sm:$0xff]
      %v1426 = vld [vmem:[%s931 + $0x6d] sm:$0xff]
      %v1427 = vld [vmem:[%s931 + $0x7d] sm:$0xff]
      %v1428 = vld [vmem:[%s931 + $0x85] sm:$0xff]
      %v1429 = vld [vmem:[%s931 + $0x95] sm:$0xff]
      %v1430 = vld [vmem:[%s931 + $0x9d] sm:$0xff]
      %v1431 = vld [vmem:[%s931 + $0xad] sm:$0xff]
      %v1432 = vld [vmem:[%s931 + $0xb5] sm:$0xff]
      %v1433 = vld [vmem:[%s931 + $0xc5] sm:$0xff]
      %v1434 = vld [vmem:[%s931 + $0xcd] sm:$0xff]
      %v1435 = vld [vmem:[%s931 + $0xdd] sm:$0xff]
      %v1436 = vld [vmem:[%s931 + $0xe5] sm:$0xff]
      %v1437 = vld [vmem:[%s931 + $0xf5] sm:$0xff]
      %v1438 = vld [vmem:[%s931 + $0xfd] sm:$0xff]
      %v1439 = vld [vmem:[%s931 + $0x10d] sm:$0xff]
      %v1440 = vld [vmem:[%s931 + $0x115] sm:$0xff]
      %v1441 = vld [vmem:[%s931 + $0x125] sm:$0xff]
      %v1442 = vld [vmem:[%s931 + $0x12d] sm:$0xff]
      %v1443 = vld [vmem:[%s931 + $0x13d] sm:$0xff]
      %v1444 = vld [vmem:[%s931 + $0x145] sm:$0xff]
      %v1445 = vld [vmem:[%s931 + $0x155] sm:$0xff]
      %v1446 = vld [vmem:[%s931 + $0x15d] sm:$0xff]
      %v1447 = vld [vmem:[%s931 + $0x16d] sm:$0xff]
      %v1448 = vld [vmem:[%s931 + $0x175] sm:$0xff]
      %v1449 = vperm.slane %v278, 4
      %v1450 = vmul.f32 %v1417, %v1449
      %v1451 = vmul.f32 %v1418, %v1449
      %v1452 = vmul.f32 %v1419, %v1449
      %v1453 = vmul.f32 %v1420, %v1449
      %v1454 = vmul.f32 %v1421, %v1449
      %v1455 = vmul.f32 %v1422, %v1449
      %v1456 = vmul.f32 %v1423, %v1449
      %v1457 = vmul.f32 %v1424, %v1449
      %v1458 = vmul.f32 %v1425, %v1449
      %v1459 = vmul.f32 %v1426, %v1449
      %v1460 = vmul.f32 %v1427, %v1449
      %v1461 = vmul.f32 %v1428, %v1449
      %v1462 = vmul.f32 %v1429, %v1449
      %v1463 = vmul.f32 %v1430, %v1449
      %v1464 = vmul.f32 %v1431, %v1449
      %v1465 = vmul.f32 %v1432, %v1449
      %v1466 = vmul.f32 %v1433, %v1449
      %v1467 = vmul.f32 %v1434, %v1449
      %v1468 = vmul.f32 %v1435, %v1449
      %v1469 = vmul.f32 %v1436, %v1449
      %v1470 = vmul.f32 %v1437, %v1449
      %v1471 = vmul.f32 %v1438, %v1449
      %v1472 = vmul.f32 %v1439, %v1449
      %v1473 = vmul.f32 %v1440, %v1449
      %v1474 = vmul.f32 %v1441, %v1449
      %v1475 = vmul.f32 %v1442, %v1449
      %v1476 = vmul.f32 %v1443, %v1449
      %v1477 = vmul.f32 %v1444, %v1449
      %v1478 = vmul.f32 %v1445, %v1449
      %v1479 = vmul.f32 %v1446, %v1449
      %v1480 = vmul.f32 %v1447, %v1449
      %v1481 = vmul.f32 %v1448, %v1449
      %v1482 = vadd.f32 %v1385, %v1450
      %v1483 = vadd.f32 %v1386, %v1451
      %v1484 = vadd.f32 %v1387, %v1452
      %v1485 = vadd.f32 %v1388, %v1453
      %v1486 = vadd.f32 %v1389, %v1454
      %v1487 = vadd.f32 %v1390, %v1455
      %v1488 = vadd.f32 %v1391, %v1456
      %v1489 = vadd.f32 %v1392, %v1457
      %v1490 = vadd.f32 %v1393, %v1458
      %v1491 = vadd.f32 %v1394, %v1459
      %v1492 = vadd.f32 %v1395, %v1460
      %v1493 = vadd.f32 %v1396, %v1461
      %v1494 = vadd.f32 %v1397, %v1462
      %v1495 = vadd.f32 %v1398, %v1463
      %v1496 = vadd.f32 %v1399, %v1464
      %v1497 = vadd.f32 %v1400, %v1465
      %v1498 = vadd.f32 %v1401, %v1466
      %v1499 = vadd.f32 %v1402, %v1467
      %v1500 = vadd.f32 %v1403, %v1468
      %v1501 = vadd.f32 %v1404, %v1469
      %v1502 = vadd.f32 %v1405, %v1470
      %v1503 = vadd.f32 %v1406, %v1471
      %v1504 = vadd.f32 %v1407, %v1472
      %v1505 = vadd.f32 %v1408, %v1473
      %v1506 = vadd.f32 %v1409, %v1474
      %v1507 = vadd.f32 %v1410, %v1475
      %v1508 = vadd.f32 %v1411, %v1476
      %v1509 = vadd.f32 %v1412, %v1477
      %v1510 = vadd.f32 %v1413, %v1478
      %v1511 = vadd.f32 %v1414, %v1479
      %v1512 = vadd.f32 %v1415, %v1480
      %v1513 = vadd.f32 %v1416, %v1481
      %v1514 = vld [vmem:[%s931 + $0x6] sm:$0xff]
      %v1515 = vld [vmem:[%s931 + $0xe] sm:$0xff]
      %v1516 = vld [vmem:[%s931 + $0x1e] sm:$0xff]
      %v1517 = vld [vmem:[%s931 + $0x26] sm:$0xff]
      %v1518 = vld [vmem:[%s931 + $0x36] sm:$0xff]
      %v1519 = vld [vmem:[%s931 + $0x3e] sm:$0xff]
      %v1520 = vld [vmem:[%s931 + $0x4e] sm:$0xff]
      %v1521 = vld [vmem:[%s931 + $0x56] sm:$0xff]
      %v1522 = vld [vmem:[%s931 + $0x66] sm:$0xff]
      %v1523 = vld [vmem:[%s931 + $0x6e] sm:$0xff]
      %v1524 = vld [vmem:[%s931 + $0x7e] sm:$0xff]
      %v1525 = vld [vmem:[%s931 + $0x86] sm:$0xff]
      %v1526 = vld [vmem:[%s931 + $0x96] sm:$0xff]
      %v1527 = vld [vmem:[%s931 + $0x9e] sm:$0xff]
      %v1528 = vld [vmem:[%s931 + $0xae] sm:$0xff]
      %v1529 = vld [vmem:[%s931 + $0xb6] sm:$0xff]
      %v1530 = vld [vmem:[%s931 + $0xc6] sm:$0xff]
      %v1531 = vld [vmem:[%s931 + $0xce] sm:$0xff]
      %v1532 = vld [vmem:[%s931 + $0xde] sm:$0xff]
      %v1533 = vld [vmem:[%s931 + $0xe6] sm:$0xff]
      %v1534 = vld [vmem:[%s931 + $0xf6] sm:$0xff]
      %v1535 = vld [vmem:[%s931 + $0xfe] sm:$0xff]
      %v1536 = vld [vmem:[%s931 + $0x10e] sm:$0xff]
      %v1537 = vld [vmem:[%s931 + $0x116] sm:$0xff]
      %v1538 = vld [vmem:[%s931 + $0x126] sm:$0xff]
      %v1539 = vld [vmem:[%s931 + $0x12e] sm:$0xff]
      %v1540 = vld [vmem:[%s931 + $0x13e] sm:$0xff]
      %v1541 = vld [vmem:[%s931 + $0x146] sm:$0xff]
      %v1542 = vld [vmem:[%s931 + $0x156] sm:$0xff]
      %v1543 = vld [vmem:[%s931 + $0x15e] sm:$0xff]
      %v1544 = vld [vmem:[%s931 + $0x16e] sm:$0xff]
      %v1545 = vld [vmem:[%s931 + $0x176] sm:$0xff]
      %v1546 = vperm.slane %v278, 5
      %v1547 = vmul.f32 %v1514, %v1546
      %v1548 = vmul.f32 %v1515, %v1546
      %v1549 = vmul.f32 %v1516, %v1546
      %v1550 = vmul.f32 %v1517, %v1546
      %v1551 = vmul.f32 %v1518, %v1546
      %v1552 = vmul.f32 %v1519, %v1546
      %v1553 = vmul.f32 %v1520, %v1546
      %v1554 = vmul.f32 %v1521, %v1546
      %v1555 = vmul.f32 %v1522, %v1546
      %v1556 = vmul.f32 %v1523, %v1546
      %v1557 = vmul.f32 %v1524, %v1546
      %v1558 = vmul.f32 %v1525, %v1546
      %v1559 = vmul.f32 %v1526, %v1546
      %v1560 = vmul.f32 %v1527, %v1546
      %v1561 = vmul.f32 %v1528, %v1546
      %v1562 = vmul.f32 %v1529, %v1546
      %v1563 = vmul.f32 %v1530, %v1546
      %v1564 = vmul.f32 %v1531, %v1546
      %v1565 = vmul.f32 %v1532, %v1546
      %v1566 = vmul.f32 %v1533, %v1546
      %v1567 = vmul.f32 %v1534, %v1546
      %v1568 = vmul.f32 %v1535, %v1546
      %v1569 = vmul.f32 %v1536, %v1546
      %v1570 = vmul.f32 %v1537, %v1546
      %v1571 = vmul.f32 %v1538, %v1546
      %v1572 = vmul.f32 %v1539, %v1546
      %v1573 = vmul.f32 %v1540, %v1546
      %v1574 = vmul.f32 %v1541, %v1546
      %v1575 = vmul.f32 %v1542, %v1546
      %v1576 = vmul.f32 %v1543, %v1546
      %v1577 = vmul.f32 %v1544, %v1546
      %v1578 = vmul.f32 %v1545, %v1546
      %v1579 = vadd.f32 %v1482, %v1547
      %v1580 = vadd.f32 %v1483, %v1548
      %v1581 = vadd.f32 %v1484, %v1549
      %v1582 = vadd.f32 %v1485, %v1550
      %v1583 = vadd.f32 %v1486, %v1551
      %v1584 = vadd.f32 %v1487, %v1552
      %v1585 = vadd.f32 %v1488, %v1553
      %v1586 = vadd.f32 %v1489, %v1554
      %v1587 = vadd.f32 %v1490, %v1555
      %v1588 = vadd.f32 %v1491, %v1556
      %v1589 = vadd.f32 %v1492, %v1557
      %v1590 = vadd.f32 %v1493, %v1558
      %v1591 = vadd.f32 %v1494, %v1559
      %v1592 = vadd.f32 %v1495, %v1560
      %v1593 = vadd.f32 %v1496, %v1561
      %v1594 = vadd.f32 %v1497, %v1562
      %v1595 = vadd.f32 %v1498, %v1563
      %v1596 = vadd.f32 %v1499, %v1564
      %v1597 = vadd.f32 %v1500, %v1565
      %v1598 = vadd.f32 %v1501, %v1566
      %v1599 = vadd.f32 %v1502, %v1567
      %v1600 = vadd.f32 %v1503, %v1568
      %v1601 = vadd.f32 %v1504, %v1569
      %v1602 = vadd.f32 %v1505, %v1570
      %v1603 = vadd.f32 %v1506, %v1571
      %v1604 = vadd.f32 %v1507, %v1572
      %v1605 = vadd.f32 %v1508, %v1573
      %v1606 = vadd.f32 %v1509, %v1574
      %v1607 = vadd.f32 %v1510, %v1575
      %v1608 = vadd.f32 %v1511, %v1576
      %v1609 = vadd.f32 %v1512, %v1577
      %v1610 = vadd.f32 %v1513, %v1578
      %s1611 = scalar_lea.vmem %s234, 48
      %v1612 = vld [vmem:[%s1611] sm:$0xff]
      %v1613 = vld [vmem:[%s1611 + $0x8] sm:$0xff]
      %v1614 = vld [vmem:[%s1611 + $0x18] sm:$0xff]
      %v1615 = vld [vmem:[%s1611 + $0x20] sm:$0xff]
      %v1616 = vld [vmem:[%s1611 + $0x30] sm:$0xff]
      %v1617 = vld [vmem:[%s1611 + $0x38] sm:$0xff]
      %v1618 = vld [vmem:[%s1611 + $0x48] sm:$0xff]
      %v1619 = vld [vmem:[%s1611 + $0x50] sm:$0xff]
      %v1620 = vld [vmem:[%s1611 + $0x60] sm:$0xff]
      %v1621 = vld [vmem:[%s1611 + $0x68] sm:$0xff]
      %v1622 = vld [vmem:[%s1611 + $0x78] sm:$0xff]
      %v1623 = vld [vmem:[%s1611 + $0x80] sm:$0xff]
      %v1624 = vld [vmem:[%s1611 + $0x90] sm:$0xff]
      %v1625 = vld [vmem:[%s1611 + $0x98] sm:$0xff]
      %v1626 = vld [vmem:[%s1611 + $0xa8] sm:$0xff]
      %v1627 = vld [vmem:[%s1611 + $0xb0] sm:$0xff]
      %v1628 = vld [vmem:[%s1611 + $0xc0] sm:$0xff]
      %v1629 = vld [vmem:[%s1611 + $0xc8] sm:$0xff]
      %v1630 = vld [vmem:[%s1611 + $0xd8] sm:$0xff]
      %v1631 = vld [vmem:[%s1611 + $0xe0] sm:$0xff]
      %v1632 = vld [vmem:[%s1611 + $0xf0] sm:$0xff]
      %v1633 = vld [vmem:[%s1611 + $0xf8] sm:$0xff]
      %v1634 = vld [vmem:[%s1611 + $0x108] sm:$0xff]
      %v1635 = vld [vmem:[%s1611 + $0x110] sm:$0xff]
      %v1636 = vld [vmem:[%s1611 + $0x120] sm:$0xff]
      %v1637 = vld [vmem:[%s1611 + $0x128] sm:$0xff]
      %v1638 = vld [vmem:[%s1611 + $0x138] sm:$0xff]
      %v1639 = vld [vmem:[%s1611 + $0x140] sm:$0xff]
      %v1640 = vld [vmem:[%s1611 + $0x150] sm:$0xff]
      %v1641 = vld [vmem:[%s1611 + $0x158] sm:$0xff]
      %v1642 = vld [vmem:[%s1611 + $0x168] sm:$0xff]
      %v1643 = vld [vmem:[%s1611 + $0x170] sm:$0xff]
      %v1644 = vperm.slane %v278, 6
      %v1645 = vmul.f32 %v1612, %v1644
      %v1646 = vmul.f32 %v1613, %v1644
      %v1647 = vmul.f32 %v1614, %v1644
      %v1648 = vmul.f32 %v1615, %v1644
      %v1649 = vmul.f32 %v1616, %v1644
      %v1650 = vmul.f32 %v1617, %v1644
      %v1651 = vmul.f32 %v1618, %v1644
      %v1652 = vmul.f32 %v1619, %v1644
      %v1653 = vmul.f32 %v1620, %v1644
      %v1654 = vmul.f32 %v1621, %v1644
      %v1655 = vmul.f32 %v1622, %v1644
      %v1656 = vmul.f32 %v1623, %v1644
      %v1657 = vmul.f32 %v1624, %v1644
      %v1658 = vmul.f32 %v1625, %v1644
      %v1659 = vmul.f32 %v1626, %v1644
      %v1660 = vmul.f32 %v1627, %v1644
      %v1661 = vmul.f32 %v1628, %v1644
      %v1662 = vmul.f32 %v1629, %v1644
      %v1663 = vmul.f32 %v1630, %v1644
      %v1664 = vmul.f32 %v1631, %v1644
      %v1665 = vmul.f32 %v1632, %v1644
      %v1666 = vmul.f32 %v1633, %v1644
      %v1667 = vmul.f32 %v1634, %v1644
      %v1668 = vmul.f32 %v1635, %v1644
      %v1669 = vmul.f32 %v1636, %v1644
      %v1670 = vmul.f32 %v1637, %v1644
      %v1671 = vmul.f32 %v1638, %v1644
      %v1672 = vmul.f32 %v1639, %v1644
      %v1673 = vmul.f32 %v1640, %v1644
      %v1674 = vmul.f32 %v1641, %v1644
      %v1675 = vmul.f32 %v1642, %v1644
      %v1676 = vmul.f32 %v1643, %v1644
      %v1677 = vadd.f32 %v1579, %v1645
      %v1678 = vadd.f32 %v1580, %v1646
      %v1679 = vadd.f32 %v1581, %v1647
      %v1680 = vadd.f32 %v1582, %v1648
      %v1681 = vadd.f32 %v1583, %v1649
      %v1682 = vadd.f32 %v1584, %v1650
      %v1683 = vadd.f32 %v1585, %v1651
      %v1684 = vadd.f32 %v1586, %v1652
      %v1685 = vadd.f32 %v1587, %v1653
      %v1686 = vadd.f32 %v1588, %v1654
      %v1687 = vadd.f32 %v1589, %v1655
      %v1688 = vadd.f32 %v1590, %v1656
      %v1689 = vadd.f32 %v1591, %v1657
      %v1690 = vadd.f32 %v1592, %v1658
      %v1691 = vadd.f32 %v1593, %v1659
      %v1692 = vadd.f32 %v1594, %v1660
      %v1693 = vadd.f32 %v1595, %v1661
      %v1694 = vadd.f32 %v1596, %v1662
      %v1695 = vadd.f32 %v1597, %v1663
      %v1696 = vadd.f32 %v1598, %v1664
      %v1697 = vadd.f32 %v1599, %v1665
      %v1698 = vadd.f32 %v1600, %v1666
      %v1699 = vadd.f32 %v1601, %v1667
      %v1700 = vadd.f32 %v1602, %v1668
      %v1701 = vadd.f32 %v1603, %v1669
      %v1702 = vadd.f32 %v1604, %v1670
      %v1703 = vadd.f32 %v1605, %v1671
      %v1704 = vadd.f32 %v1606, %v1672
      %v1705 = vadd.f32 %v1607, %v1673
      %v1706 = vadd.f32 %v1608, %v1674
      %v1707 = vadd.f32 %v1609, %v1675
      %v1708 = vadd.f32 %v1610, %v1676
      %v1709 = vld [vmem:[%s1611 + $0x1] sm:$0xff]
      %v1710 = vld [vmem:[%s1611 + $0x9] sm:$0xff]
      %v1711 = vld [vmem:[%s1611 + $0x19] sm:$0xff]
      %v1712 = vld [vmem:[%s1611 + $0x21] sm:$0xff]
      %v1713 = vld [vmem:[%s1611 + $0x31] sm:$0xff]
      %v1714 = vld [vmem:[%s1611 + $0x39] sm:$0xff]
      %v1715 = vld [vmem:[%s1611 + $0x49] sm:$0xff]
      %v1716 = vld [vmem:[%s1611 + $0x51] sm:$0xff]
      %v1717 = vld [vmem:[%s1611 + $0x61] sm:$0xff]
      %v1718 = vld [vmem:[%s1611 + $0x69] sm:$0xff]
      %v1719 = vld [vmem:[%s1611 + $0x79] sm:$0xff]
      %v1720 = vld [vmem:[%s1611 + $0x81] sm:$0xff]
      %v1721 = vld [vmem:[%s1611 + $0x91] sm:$0xff]
      %v1722 = vld [vmem:[%s1611 + $0x99] sm:$0xff]
      %v1723 = vld [vmem:[%s1611 + $0xa9] sm:$0xff]
      %v1724 = vld [vmem:[%s1611 + $0xb1] sm:$0xff]
      %v1725 = vld [vmem:[%s1611 + $0xc1] sm:$0xff]
      %v1726 = vld [vmem:[%s1611 + $0xc9] sm:$0xff]
      %v1727 = vld [vmem:[%s1611 + $0xd9] sm:$0xff]
      %v1728 = vld [vmem:[%s1611 + $0xe1] sm:$0xff]
      %v1729 = vld [vmem:[%s1611 + $0xf1] sm:$0xff]
      %v1730 = vld [vmem:[%s1611 + $0xf9] sm:$0xff]
      %v1731 = vld [vmem:[%s1611 + $0x109] sm:$0xff]
      %v1732 = vld [vmem:[%s1611 + $0x111] sm:$0xff]
      %v1733 = vld [vmem:[%s1611 + $0x121] sm:$0xff]
      %v1734 = vld [vmem:[%s1611 + $0x129] sm:$0xff]
      %v1735 = vld [vmem:[%s1611 + $0x139] sm:$0xff]
      %v1736 = vld [vmem:[%s1611 + $0x141] sm:$0xff]
      %v1737 = vld [vmem:[%s1611 + $0x151] sm:$0xff]
      %v1738 = vld [vmem:[%s1611 + $0x159] sm:$0xff]
      %v1739 = vld [vmem:[%s1611 + $0x169] sm:$0xff]
      %v1740 = vld [vmem:[%s1611 + $0x171] sm:$0xff]
      %v1741 = vperm.slane %v278, 7
      %v1742 = vmul.f32 %v1709, %v1741
      %v1743 = vmul.f32 %v1710, %v1741
      %v1744 = vmul.f32 %v1711, %v1741
      %v1745 = vmul.f32 %v1712, %v1741
      %v1746 = vmul.f32 %v1713, %v1741
      %v1747 = vmul.f32 %v1714, %v1741
      %v1748 = vmul.f32 %v1715, %v1741
      %v1749 = vmul.f32 %v1716, %v1741
      %v1750 = vmul.f32 %v1717, %v1741
      %v1751 = vmul.f32 %v1718, %v1741
      %v1752 = vmul.f32 %v1719, %v1741
      %v1753 = vmul.f32 %v1720, %v1741
      %v1754 = vmul.f32 %v1721, %v1741
      %v1755 = vmul.f32 %v1722, %v1741
      %v1756 = vmul.f32 %v1723, %v1741
      %v1757 = vmul.f32 %v1724, %v1741
      %v1758 = vmul.f32 %v1725, %v1741
      %v1759 = vmul.f32 %v1726, %v1741
      %v1760 = vmul.f32 %v1727, %v1741
      %v1761 = vmul.f32 %v1728, %v1741
      %v1762 = vmul.f32 %v1729, %v1741
      %v1763 = vmul.f32 %v1730, %v1741
      %v1764 = vmul.f32 %v1731, %v1741
      %v1765 = vmul.f32 %v1732, %v1741
      %v1766 = vmul.f32 %v1733, %v1741
      %v1767 = vmul.f32 %v1734, %v1741
      %v1768 = vmul.f32 %v1735, %v1741
      %v1769 = vmul.f32 %v1736, %v1741
      %v1770 = vmul.f32 %v1737, %v1741
      %v1771 = vmul.f32 %v1738, %v1741
      %v1772 = vmul.f32 %v1739, %v1741
      %v1773 = vmul.f32 %v1740, %v1741
      %v1774 = vadd.f32 %v1677, %v1742
      %v1775 = vadd.f32 %v1678, %v1743
      %v1776 = vadd.f32 %v1679, %v1744
      %v1777 = vadd.f32 %v1680, %v1745
      %v1778 = vadd.f32 %v1681, %v1746
      %v1779 = vadd.f32 %v1682, %v1747
      %v1780 = vadd.f32 %v1683, %v1748
      %v1781 = vadd.f32 %v1684, %v1749
      %v1782 = vadd.f32 %v1685, %v1750
      %v1783 = vadd.f32 %v1686, %v1751
      %v1784 = vadd.f32 %v1687, %v1752
      %v1785 = vadd.f32 %v1688, %v1753
      %v1786 = vadd.f32 %v1689, %v1754
      %v1787 = vadd.f32 %v1690, %v1755
      %v1788 = vadd.f32 %v1691, %v1756
      %v1789 = vadd.f32 %v1692, %v1757
      %v1790 = vadd.f32 %v1693, %v1758
      %v1791 = vadd.f32 %v1694, %v1759
      %v1792 = vadd.f32 %v1695, %v1760
      %v1793 = vadd.f32 %v1696, %v1761
      %v1794 = vadd.f32 %v1697, %v1762
      %v1795 = vadd.f32 %v1698, %v1763
      %v1796 = vadd.f32 %v1699, %v1764
      %v1797 = vadd.f32 %v1700, %v1765
      %v1798 = vadd.f32 %v1701, %v1766
      %v1799 = vadd.f32 %v1702, %v1767
      %v1800 = vadd.f32 %v1703, %v1768
      %v1801 = vadd.f32 %v1704, %v1769
      %v1802 = vadd.f32 %v1705, %v1770
      %v1803 = vadd.f32 %v1706, %v1771
      %v1804 = vadd.f32 %v1707, %v1772
      %v1805 = vadd.f32 %v1708, %v1773
      %v1806 = vld [vmem:[%s1611 + $0x2] sm:$0xff]
      %v1807 = vld [vmem:[%s1611 + $0xa] sm:$0xff]
      %v1808 = vld [vmem:[%s1611 + $0x1a] sm:$0xff]
      %v1809 = vld [vmem:[%s1611 + $0x22] sm:$0xff]
      %v1810 = vld [vmem:[%s1611 + $0x32] sm:$0xff]
      %v1811 = vld [vmem:[%s1611 + $0x3a] sm:$0xff]
      %v1812 = vld [vmem:[%s1611 + $0x4a] sm:$0xff]
      %v1813 = vld [vmem:[%s1611 + $0x52] sm:$0xff]
      %v1814 = vld [vmem:[%s1611 + $0x62] sm:$0xff]
      %v1815 = vld [vmem:[%s1611 + $0x6a] sm:$0xff]
      %v1816 = vld [vmem:[%s1611 + $0x7a] sm:$0xff]
      %v1817 = vld [vmem:[%s1611 + $0x82] sm:$0xff]
      %v1818 = vld [vmem:[%s1611 + $0x92] sm:$0xff]
      %v1819 = vld [vmem:[%s1611 + $0x9a] sm:$0xff]
      %v1820 = vld [vmem:[%s1611 + $0xaa] sm:$0xff]
      %v1821 = vld [vmem:[%s1611 + $0xb2] sm:$0xff]
      %v1822 = vld [vmem:[%s1611 + $0xc2] sm:$0xff]
      %v1823 = vld [vmem:[%s1611 + $0xca] sm:$0xff]
      %v1824 = vld [vmem:[%s1611 + $0xda] sm:$0xff]
      %v1825 = vld [vmem:[%s1611 + $0xe2] sm:$0xff]
      %v1826 = vld [vmem:[%s1611 + $0xf2] sm:$0xff]
      %v1827 = vld [vmem:[%s1611 + $0xfa] sm:$0xff]
      %v1828 = vld [vmem:[%s1611 + $0x10a] sm:$0xff]
      %v1829 = vld [vmem:[%s1611 + $0x112] sm:$0xff]
      %v1830 = vld [vmem:[%s1611 + $0x122] sm:$0xff]
      %v1831 = vld [vmem:[%s1611 + $0x12a] sm:$0xff]
      %v1832 = vld [vmem:[%s1611 + $0x13a] sm:$0xff]
      %v1833 = vld [vmem:[%s1611 + $0x142] sm:$0xff]
      %v1834 = vld [vmem:[%s1611 + $0x152] sm:$0xff]
      %v1835 = vld [vmem:[%s1611 + $0x15a] sm:$0xff]
      %v1836 = vld [vmem:[%s1611 + $0x16a] sm:$0xff]
      %v1837 = vld [vmem:[%s1611 + $0x172] sm:$0xff]
      %v1838 = vperm.slane %v279, 0
      %v1839 = vmul.f32 %v1806, %v1838
      %v1840 = vmul.f32 %v1807, %v1838
      %v1841 = vmul.f32 %v1808, %v1838
      %v1842 = vmul.f32 %v1809, %v1838
      %v1843 = vmul.f32 %v1810, %v1838
      %v1844 = vmul.f32 %v1811, %v1838
      %v1845 = vmul.f32 %v1812, %v1838
      %v1846 = vmul.f32 %v1813, %v1838
      %v1847 = vmul.f32 %v1814, %v1838
      %v1848 = vmul.f32 %v1815, %v1838
      %v1849 = vmul.f32 %v1816, %v1838
      %v1850 = vmul.f32 %v1817, %v1838
      %v1851 = vmul.f32 %v1818, %v1838
      %v1852 = vmul.f32 %v1819, %v1838
      %v1853 = vmul.f32 %v1820, %v1838
      %v1854 = vmul.f32 %v1821, %v1838
      %v1855 = vmul.f32 %v1822, %v1838
      %v1856 = vmul.f32 %v1823, %v1838
      %v1857 = vmul.f32 %v1824, %v1838
      %v1858 = vmul.f32 %v1825, %v1838
      %v1859 = vmul.f32 %v1826, %v1838
      %v1860 = vmul.f32 %v1827, %v1838
      %v1861 = vmul.f32 %v1828, %v1838
      %v1862 = vmul.f32 %v1829, %v1838
      %v1863 = vmul.f32 %v1830, %v1838
      %v1864 = vmul.f32 %v1831, %v1838
      %v1865 = vmul.f32 %v1832, %v1838
      %v1866 = vmul.f32 %v1833, %v1838
      %v1867 = vmul.f32 %v1834, %v1838
      %v1868 = vmul.f32 %v1835, %v1838
      %v1869 = vmul.f32 %v1836, %v1838
      %v1870 = vmul.f32 %v1837, %v1838
      %v1871 = vadd.f32 %v1774, %v1839
      %v1872 = vadd.f32 %v1775, %v1840
      %v1873 = vadd.f32 %v1776, %v1841
      %v1874 = vadd.f32 %v1777, %v1842
      %v1875 = vadd.f32 %v1778, %v1843
      %v1876 = vadd.f32 %v1779, %v1844
      %v1877 = vadd.f32 %v1780, %v1845
      %v1878 = vadd.f32 %v1781, %v1846
      %v1879 = vadd.f32 %v1782, %v1847
      %v1880 = vadd.f32 %v1783, %v1848
      %v1881 = vadd.f32 %v1784, %v1849
      %v1882 = vadd.f32 %v1785, %v1850
      %v1883 = vadd.f32 %v1786, %v1851
      %v1884 = vadd.f32 %v1787, %v1852
      %v1885 = vadd.f32 %v1788, %v1853
      %v1886 = vadd.f32 %v1789, %v1854
      %v1887 = vadd.f32 %v1790, %v1855
      %v1888 = vadd.f32 %v1791, %v1856
      %v1889 = vadd.f32 %v1792, %v1857
      %v1890 = vadd.f32 %v1793, %v1858
      %v1891 = vadd.f32 %v1794, %v1859
      %v1892 = vadd.f32 %v1795, %v1860
      %v1893 = vadd.f32 %v1796, %v1861
      %v1894 = vadd.f32 %v1797, %v1862
      %v1895 = vadd.f32 %v1798, %v1863
      %v1896 = vadd.f32 %v1799, %v1864
      %v1897 = vadd.f32 %v1800, %v1865
      %v1898 = vadd.f32 %v1801, %v1866
      %v1899 = vadd.f32 %v1802, %v1867
      %v1900 = vadd.f32 %v1803, %v1868
      %v1901 = vadd.f32 %v1804, %v1869
      %v1902 = vadd.f32 %v1805, %v1870
      %v1903 = vld [vmem:[%s1611 + $0x3] sm:$0xff]
      %v1904 = vld [vmem:[%s1611 + $0xb] sm:$0xff]
      %v1905 = vld [vmem:[%s1611 + $0x1b] sm:$0xff]
      %v1906 = vld [vmem:[%s1611 + $0x23] sm:$0xff]
      %v1907 = vld [vmem:[%s1611 + $0x33] sm:$0xff]
      %v1908 = vld [vmem:[%s1611 + $0x3b] sm:$0xff]
      %v1909 = vld [vmem:[%s1611 + $0x4b] sm:$0xff]
      %v1910 = vld [vmem:[%s1611 + $0x53] sm:$0xff]
      %v1911 = vld [vmem:[%s1611 + $0x63] sm:$0xff]
      %v1912 = vld [vmem:[%s1611 + $0x6b] sm:$0xff]
      %v1913 = vld [vmem:[%s1611 + $0x7b] sm:$0xff]
      %v1914 = vld [vmem:[%s1611 + $0x83] sm:$0xff]
      %v1915 = vld [vmem:[%s1611 + $0x93] sm:$0xff]
      %v1916 = vld [vmem:[%s1611 + $0x9b] sm:$0xff]
      %v1917 = vld [vmem:[%s1611 + $0xab] sm:$0xff]
      %v1918 = vld [vmem:[%s1611 + $0xb3] sm:$0xff]
      %v1919 = vld [vmem:[%s1611 + $0xc3] sm:$0xff]
      %v1920 = vld [vmem:[%s1611 + $0xcb] sm:$0xff]
      %v1921 = vld [vmem:[%s1611 + $0xdb] sm:$0xff]
      %v1922 = vld [vmem:[%s1611 + $0xe3] sm:$0xff]
      %v1923 = vld [vmem:[%s1611 + $0xf3] sm:$0xff]
      %v1924 = vld [vmem:[%s1611 + $0xfb] sm:$0xff]
      %v1925 = vld [vmem:[%s1611 + $0x10b] sm:$0xff]
      %v1926 = vld [vmem:[%s1611 + $0x113] sm:$0xff]
      %v1927 = vld [vmem:[%s1611 + $0x123] sm:$0xff]
      %v1928 = vld [vmem:[%s1611 + $0x12b] sm:$0xff]
      %v1929 = vld [vmem:[%s1611 + $0x13b] sm:$0xff]
      %v1930 = vld [vmem:[%s1611 + $0x143] sm:$0xff]
      %v1931 = vld [vmem:[%s1611 + $0x153] sm:$0xff]
      %v1932 = vld [vmem:[%s1611 + $0x15b] sm:$0xff]
      %v1933 = vld [vmem:[%s1611 + $0x16b] sm:$0xff]
      %v1934 = vld [vmem:[%s1611 + $0x173] sm:$0xff]
      %v1935 = vperm.slane %v279, 1
      %v1936 = vmul.f32 %v1903, %v1935
      %v1937 = vmul.f32 %v1904, %v1935
      %v1938 = vmul.f32 %v1905, %v1935
      %v1939 = vmul.f32 %v1906, %v1935
      %v1940 = vmul.f32 %v1907, %v1935
      %v1941 = vmul.f32 %v1908, %v1935
      %v1942 = vmul.f32 %v1909, %v1935
      %v1943 = vmul.f32 %v1910, %v1935
      %v1944 = vmul.f32 %v1911, %v1935
      %v1945 = vmul.f32 %v1912, %v1935
      %v1946 = vmul.f32 %v1913, %v1935
      %v1947 = vmul.f32 %v1914, %v1935
      %v1948 = vmul.f32 %v1915, %v1935
      %v1949 = vmul.f32 %v1916, %v1935
      %v1950 = vmul.f32 %v1917, %v1935
      %v1951 = vmul.f32 %v1918, %v1935
      %v1952 = vmul.f32 %v1919, %v1935
      %v1953 = vmul.f32 %v1920, %v1935
      %v1954 = vmul.f32 %v1921, %v1935
      %v1955 = vmul.f32 %v1922, %v1935
      %v1956 = vmul.f32 %v1923, %v1935
      %v1957 = vmul.f32 %v1924, %v1935
      %v1958 = vmul.f32 %v1925, %v1935
      %v1959 = vmul.f32 %v1926, %v1935
      %v1960 = vmul.f32 %v1927, %v1935
      %v1961 = vmul.f32 %v1928, %v1935
      %v1962 = vmul.f32 %v1929, %v1935
      %v1963 = vmul.f32 %v1930, %v1935
      %v1964 = vmul.f32 %v1931, %v1935
      %v1965 = vmul.f32 %v1932, %v1935
      %v1966 = vmul.f32 %v1933, %v1935
      %v1967 = vmul.f32 %v1934, %v1935
      %v1968 = vadd.f32 %v1871, %v1936
      %v1969 = vadd.f32 %v1872, %v1937
      %v1970 = vadd.f32 %v1873, %v1938
      %v1971 = vadd.f32 %v1874, %v1939
      %v1972 = vadd.f32 %v1875, %v1940
      %v1973 = vadd.f32 %v1876, %v1941
      %v1974 = vadd.f32 %v1877, %v1942
      %v1975 = vadd.f32 %v1878, %v1943
      %v1976 = vadd.f32 %v1879, %v1944
      %v1977 = vadd.f32 %v1880, %v1945
      %v1978 = vadd.f32 %v1881, %v1946
      %v1979 = vadd.f32 %v1882, %v1947
      %v1980 = vadd.f32 %v1883, %v1948
      %v1981 = vadd.f32 %v1884, %v1949
      %v1982 = vadd.f32 %v1885, %v1950
      %v1983 = vadd.f32 %v1886, %v1951
      %v1984 = vadd.f32 %v1887, %v1952
      %v1985 = vadd.f32 %v1888, %v1953
      %v1986 = vadd.f32 %v1889, %v1954
      %v1987 = vadd.f32 %v1890, %v1955
      %v1988 = vadd.f32 %v1891, %v1956
      %v1989 = vadd.f32 %v1892, %v1957
      %v1990 = vadd.f32 %v1893, %v1958
      %v1991 = vadd.f32 %v1894, %v1959
      %v1992 = vadd.f32 %v1895, %v1960
      %v1993 = vadd.f32 %v1896, %v1961
      %v1994 = vadd.f32 %v1897, %v1962
      %v1995 = vadd.f32 %v1898, %v1963
      %v1996 = vadd.f32 %v1899, %v1964
      %v1997 = vadd.f32 %v1900, %v1965
      %v1998 = vadd.f32 %v1901, %v1966
      %v1999 = vadd.f32 %v1902, %v1967
      %v2000 = vld [vmem:[%s1611 + $0x4] sm:$0xff]
      %v2001 = vld [vmem:[%s1611 + $0xc] sm:$0xff]
      %v2002 = vld [vmem:[%s1611 + $0x1c] sm:$0xff]
      %v2003 = vld [vmem:[%s1611 + $0x24] sm:$0xff]
      %v2004 = vld [vmem:[%s1611 + $0x34] sm:$0xff]
      %v2005 = vld [vmem:[%s1611 + $0x3c] sm:$0xff]
      %v2006 = vld [vmem:[%s1611 + $0x4c] sm:$0xff]
      %v2007 = vld [vmem:[%s1611 + $0x54] sm:$0xff]
      %v2008 = vld [vmem:[%s1611 + $0x64] sm:$0xff]
      %v2009 = vld [vmem:[%s1611 + $0x6c] sm:$0xff]
      %v2010 = vld [vmem:[%s1611 + $0x7c] sm:$0xff]
      %v2011 = vld [vmem:[%s1611 + $0x84] sm:$0xff]
      %v2012 = vld [vmem:[%s1611 + $0x94] sm:$0xff]
      %v2013 = vld [vmem:[%s1611 + $0x9c] sm:$0xff]
      %v2014 = vld [vmem:[%s1611 + $0xac] sm:$0xff]
      %v2015 = vld [vmem:[%s1611 + $0xb4] sm:$0xff]
      %v2016 = vld [vmem:[%s1611 + $0xc4] sm:$0xff]
      %v2017 = vld [vmem:[%s1611 + $0xcc] sm:$0xff]
      %v2018 = vld [vmem:[%s1611 + $0xdc] sm:$0xff]
      %v2019 = vld [vmem:[%s1611 + $0xe4] sm:$0xff]
      %v2020 = vld [vmem:[%s1611 + $0xf4] sm:$0xff]
      %v2021 = vld [vmem:[%s1611 + $0xfc] sm:$0xff]
      %v2022 = vld [vmem:[%s1611 + $0x10c] sm:$0xff]
      %v2023 = vld [vmem:[%s1611 + $0x114] sm:$0xff]
      %v2024 = vld [vmem:[%s1611 + $0x124] sm:$0xff]
      %v2025 = vld [vmem:[%s1611 + $0x12c] sm:$0xff]
      %v2026 = vld [vmem:[%s1611 + $0x13c] sm:$0xff]
      %v2027 = vld [vmem:[%s1611 + $0x144] sm:$0xff]
      %v2028 = vld [vmem:[%s1611 + $0x154] sm:$0xff]
      %v2029 = vld [vmem:[%s1611 + $0x15c] sm:$0xff]
      %v2030 = vld [vmem:[%s1611 + $0x16c] sm:$0xff]
      %v2031 = vld [vmem:[%s1611 + $0x174] sm:$0xff]
      %v2032 = vperm.slane %v279, 2
      %v2033 = vmul.f32 %v2000, %v2032
      %v2034 = vmul.f32 %v2001, %v2032
      %v2035 = vmul.f32 %v2002, %v2032
      %v2036 = vmul.f32 %v2003, %v2032
      %v2037 = vmul.f32 %v2004, %v2032
      %v2038 = vmul.f32 %v2005, %v2032
      %v2039 = vmul.f32 %v2006, %v2032
      %v2040 = vmul.f32 %v2007, %v2032
      %v2041 = vmul.f32 %v2008, %v2032
      %v2042 = vmul.f32 %v2009, %v2032
      %v2043 = vmul.f32 %v2010, %v2032
      %v2044 = vmul.f32 %v2011, %v2032
      %v2045 = vmul.f32 %v2012, %v2032
      %v2046 = vmul.f32 %v2013, %v2032
      %v2047 = vmul.f32 %v2014, %v2032
      %v2048 = vmul.f32 %v2015, %v2032
      %v2049 = vmul.f32 %v2016, %v2032
      %v2050 = vmul.f32 %v2017, %v2032
      %v2051 = vmul.f32 %v2018, %v2032
      %v2052 = vmul.f32 %v2019, %v2032
      %v2053 = vmul.f32 %v2020, %v2032
      %v2054 = vmul.f32 %v2021, %v2032
      %v2055 = vmul.f32 %v2022, %v2032
      %v2056 = vmul.f32 %v2023, %v2032
      %v2057 = vmul.f32 %v2024, %v2032
      %v2058 = vmul.f32 %v2025, %v2032
      %v2059 = vmul.f32 %v2026, %v2032
      %v2060 = vmul.f32 %v2027, %v2032
      %v2061 = vmul.f32 %v2028, %v2032
      %v2062 = vmul.f32 %v2029, %v2032
      %v2063 = vmul.f32 %v2030, %v2032
      %v2064 = vmul.f32 %v2031, %v2032
      %v2065 = vadd.f32 %v1968, %v2033
      %v2066 = vadd.f32 %v1969, %v2034
      %v2067 = vadd.f32 %v1970, %v2035
      %v2068 = vadd.f32 %v1971, %v2036
      %v2069 = vadd.f32 %v1972, %v2037
      %v2070 = vadd.f32 %v1973, %v2038
      %v2071 = vadd.f32 %v1974, %v2039
      %v2072 = vadd.f32 %v1975, %v2040
      %v2073 = vadd.f32 %v1976, %v2041
      %v2074 = vadd.f32 %v1977, %v2042
      %v2075 = vadd.f32 %v1978, %v2043
      %v2076 = vadd.f32 %v1979, %v2044
      %v2077 = vadd.f32 %v1980, %v2045
      %v2078 = vadd.f32 %v1981, %v2046
      %v2079 = vadd.f32 %v1982, %v2047
      %v2080 = vadd.f32 %v1983, %v2048
      %v2081 = vadd.f32 %v1984, %v2049
      %v2082 = vadd.f32 %v1985, %v2050
      %v2083 = vadd.f32 %v1986, %v2051
      %v2084 = vadd.f32 %v1987, %v2052
      %v2085 = vadd.f32 %v1988, %v2053
      %v2086 = vadd.f32 %v1989, %v2054
      %v2087 = vadd.f32 %v1990, %v2055
      %v2088 = vadd.f32 %v1991, %v2056
      %v2089 = vadd.f32 %v1992, %v2057
      %v2090 = vadd.f32 %v1993, %v2058
      %v2091 = vadd.f32 %v1994, %v2059
      %v2092 = vadd.f32 %v1995, %v2060
      %v2093 = vadd.f32 %v1996, %v2061
      %v2094 = vadd.f32 %v1997, %v2062
      %v2095 = vadd.f32 %v1998, %v2063
      %v2096 = vadd.f32 %v1999, %v2064
      %v2097 = vld [vmem:[%s1611 + $0x5] sm:$0xff]
      %v2098 = vld [vmem:[%s1611 + $0xd] sm:$0xff]
      %v2099 = vld [vmem:[%s1611 + $0x1d] sm:$0xff]
      %v2100 = vld [vmem:[%s1611 + $0x25] sm:$0xff]
      %v2101 = vld [vmem:[%s1611 + $0x35] sm:$0xff]
      %v2102 = vld [vmem:[%s1611 + $0x3d] sm:$0xff]
      %v2103 = vld [vmem:[%s1611 + $0x4d] sm:$0xff]
      %v2104 = vld [vmem:[%s1611 + $0x55] sm:$0xff]
      %v2105 = vld [vmem:[%s1611 + $0x65] sm:$0xff]
      %v2106 = vld [vmem:[%s1611 + $0x6d] sm:$0xff]
      %v2107 = vld [vmem:[%s1611 + $0x7d] sm:$0xff]
      %v2108 = vld [vmem:[%s1611 + $0x85] sm:$0xff]
      %v2109 = vld [vmem:[%s1611 + $0x95] sm:$0xff]
      %v2110 = vld [vmem:[%s1611 + $0x9d] sm:$0xff]
      %v2111 = vld [vmem:[%s1611 + $0xad] sm:$0xff]
      %v2112 = vld [vmem:[%s1611 + $0xb5] sm:$0xff]
      %v2113 = vld [vmem:[%s1611 + $0xc5] sm:$0xff]
      %v2114 = vld [vmem:[%s1611 + $0xcd] sm:$0xff]
      %v2115 = vld [vmem:[%s1611 + $0xdd] sm:$0xff]
      %v2116 = vld [vmem:[%s1611 + $0xe5] sm:$0xff]
      %v2117 = vld [vmem:[%s1611 + $0xf5] sm:$0xff]
      %v2118 = vld [vmem:[%s1611 + $0xfd] sm:$0xff]
      %v2119 = vld [vmem:[%s1611 + $0x10d] sm:$0xff]
      %v2120 = vld [vmem:[%s1611 + $0x115] sm:$0xff]
      %v2121 = vld [vmem:[%s1611 + $0x125] sm:$0xff]
      %v2122 = vld [vmem:[%s1611 + $0x12d] sm:$0xff]
      %v2123 = vld [vmem:[%s1611 + $0x13d] sm:$0xff]
      %v2124 = vld [vmem:[%s1611 + $0x145] sm:$0xff]
      %v2125 = vld [vmem:[%s1611 + $0x155] sm:$0xff]
      %v2126 = vld [vmem:[%s1611 + $0x15d] sm:$0xff]
      %v2127 = vld [vmem:[%s1611 + $0x16d] sm:$0xff]
      %v2128 = vld [vmem:[%s1611 + $0x175] sm:$0xff]
      %v2129 = vperm.slane %v279, 3
      %v2130 = vmul.f32 %v2097, %v2129
      %v2131 = vmul.f32 %v2098, %v2129
      %v2132 = vmul.f32 %v2099, %v2129
      %v2133 = vmul.f32 %v2100, %v2129
      %v2134 = vmul.f32 %v2101, %v2129
      %v2135 = vmul.f32 %v2102, %v2129
      %v2136 = vmul.f32 %v2103, %v2129
      %v2137 = vmul.f32 %v2104, %v2129
      %v2138 = vmul.f32 %v2105, %v2129
      %v2139 = vmul.f32 %v2106, %v2129
      %v2140 = vmul.f32 %v2107, %v2129
      %v2141 = vmul.f32 %v2108, %v2129
      %v2142 = vmul.f32 %v2109, %v2129
      %v2143 = vmul.f32 %v2110, %v2129
      %v2144 = vmul.f32 %v2111, %v2129
      %v2145 = vmul.f32 %v2112, %v2129
      %v2146 = vmul.f32 %v2113, %v2129
      %v2147 = vmul.f32 %v2114, %v2129
      %v2148 = vmul.f32 %v2115, %v2129
      %v2149 = vmul.f32 %v2116, %v2129
      %v2150 = vmul.f32 %v2117, %v2129
      %v2151 = vmul.f32 %v2118, %v2129
      %v2152 = vmul.f32 %v2119, %v2129
      %v2153 = vmul.f32 %v2120, %v2129
      %v2154 = vmul.f32 %v2121, %v2129
      %v2155 = vmul.f32 %v2122, %v2129
      %v2156 = vmul.f32 %v2123, %v2129
      %v2157 = vmul.f32 %v2124, %v2129
      %v2158 = vmul.f32 %v2125, %v2129
      %v2159 = vmul.f32 %v2126, %v2129
      %v2160 = vmul.f32 %v2127, %v2129
      %v2161 = vmul.f32 %v2128, %v2129
      %v2162 = vadd.f32 %v2065, %v2130
      %v2163 = vadd.f32 %v2066, %v2131
      %v2164 = vadd.f32 %v2067, %v2132
      %v2165 = vadd.f32 %v2068, %v2133
      %v2166 = vadd.f32 %v2069, %v2134
      %v2167 = vadd.f32 %v2070, %v2135
      %v2168 = vadd.f32 %v2071, %v2136
      %v2169 = vadd.f32 %v2072, %v2137
      %v2170 = vadd.f32 %v2073, %v2138
      %v2171 = vadd.f32 %v2074, %v2139
      %v2172 = vadd.f32 %v2075, %v2140
      %v2173 = vadd.f32 %v2076, %v2141
      %v2174 = vadd.f32 %v2077, %v2142
      %v2175 = vadd.f32 %v2078, %v2143
      %v2176 = vadd.f32 %v2079, %v2144
      %v2177 = vadd.f32 %v2080, %v2145
      %v2178 = vadd.f32 %v2081, %v2146
      %v2179 = vadd.f32 %v2082, %v2147
      %v2180 = vadd.f32 %v2083, %v2148
      %v2181 = vadd.f32 %v2084, %v2149
      %v2182 = vadd.f32 %v2085, %v2150
      %v2183 = vadd.f32 %v2086, %v2151
      %v2184 = vadd.f32 %v2087, %v2152
      %v2185 = vadd.f32 %v2088, %v2153
      %v2186 = vadd.f32 %v2089, %v2154
      %v2187 = vadd.f32 %v2090, %v2155
      %v2188 = vadd.f32 %v2091, %v2156
      %v2189 = vadd.f32 %v2092, %v2157
      %v2190 = vadd.f32 %v2093, %v2158
      %v2191 = vadd.f32 %v2094, %v2159
      %v2192 = vadd.f32 %v2095, %v2160
      %v2193 = vadd.f32 %v2096, %v2161
      %v2194 = vld [vmem:[%s1611 + $0x6] sm:$0xff]
      %v2195 = vld [vmem:[%s1611 + $0xe] sm:$0xff]
      %v2196 = vld [vmem:[%s1611 + $0x1e] sm:$0xff]
      %v2197 = vld [vmem:[%s1611 + $0x26] sm:$0xff]
      %v2198 = vld [vmem:[%s1611 + $0x36] sm:$0xff]
      %v2199 = vld [vmem:[%s1611 + $0x3e] sm:$0xff]
      %v2200 = vld [vmem:[%s1611 + $0x4e] sm:$0xff]
      %v2201 = vld [vmem:[%s1611 + $0x56] sm:$0xff]
      %v2202 = vld [vmem:[%s1611 + $0x66] sm:$0xff]
      %v2203 = vld [vmem:[%s1611 + $0x6e] sm:$0xff]
      %v2204 = vld [vmem:[%s1611 + $0x7e] sm:$0xff]
      %v2205 = vld [vmem:[%s1611 + $0x86] sm:$0xff]
      %v2206 = vld [vmem:[%s1611 + $0x96] sm:$0xff]
      %v2207 = vld [vmem:[%s1611 + $0x9e] sm:$0xff]
      %v2208 = vld [vmem:[%s1611 + $0xae] sm:$0xff]
      %v2209 = vld [vmem:[%s1611 + $0xb6] sm:$0xff]
      %v2210 = vld [vmem:[%s1611 + $0xc6] sm:$0xff]
      %v2211 = vld [vmem:[%s1611 + $0xce] sm:$0xff]
      %v2212 = vld [vmem:[%s1611 + $0xde] sm:$0xff]
      %v2213 = vld [vmem:[%s1611 + $0xe6] sm:$0xff]
      %v2214 = vld [vmem:[%s1611 + $0xf6] sm:$0xff]
      %v2215 = vld [vmem:[%s1611 + $0xfe] sm:$0xff]
      %v2216 = vld [vmem:[%s1611 + $0x10e] sm:$0xff]
      %v2217 = vld [vmem:[%s1611 + $0x116] sm:$0xff]
      %v2218 = vld [vmem:[%s1611 + $0x126] sm:$0xff]
      %v2219 = vld [vmem:[%s1611 + $0x12e] sm:$0xff]
      %v2220 = vld [vmem:[%s1611 + $0x13e] sm:$0xff]
      %v2221 = vld [vmem:[%s1611 + $0x146] sm:$0xff]
      %v2222 = vld [vmem:[%s1611 + $0x156] sm:$0xff]
      %v2223 = vld [vmem:[%s1611 + $0x15e] sm:$0xff]
      %v2224 = vld [vmem:[%s1611 + $0x16e] sm:$0xff]
      %v2225 = vld [vmem:[%s1611 + $0x176] sm:$0xff]
      %v2226 = vperm.slane %v279, 4
      %v2227 = vmul.f32 %v2194, %v2226
      %v2228 = vmul.f32 %v2195, %v2226
      %v2229 = vmul.f32 %v2196, %v2226
      %v2230 = vmul.f32 %v2197, %v2226
      %v2231 = vmul.f32 %v2198, %v2226
      %v2232 = vmul.f32 %v2199, %v2226
      %v2233 = vmul.f32 %v2200, %v2226
      %v2234 = vmul.f32 %v2201, %v2226
      %v2235 = vmul.f32 %v2202, %v2226
      %v2236 = vmul.f32 %v2203, %v2226
      %v2237 = vmul.f32 %v2204, %v2226
      %v2238 = vmul.f32 %v2205, %v2226
      %v2239 = vmul.f32 %v2206, %v2226
      %v2240 = vmul.f32 %v2207, %v2226
      %v2241 = vmul.f32 %v2208, %v2226
      %v2242 = vmul.f32 %v2209, %v2226
      %v2243 = vmul.f32 %v2210, %v2226
      %v2244 = vmul.f32 %v2211, %v2226
      %v2245 = vmul.f32 %v2212, %v2226
      %v2246 = vmul.f32 %v2213, %v2226
      %v2247 = vmul.f32 %v2214, %v2226
      %v2248 = vmul.f32 %v2215, %v2226
      %v2249 = vmul.f32 %v2216, %v2226
      %v2250 = vmul.f32 %v2217, %v2226
      %v2251 = vmul.f32 %v2218, %v2226
      %v2252 = vmul.f32 %v2219, %v2226
      %v2253 = vmul.f32 %v2220, %v2226
      %v2254 = vmul.f32 %v2221, %v2226
      %v2255 = vmul.f32 %v2222, %v2226
      %v2256 = vmul.f32 %v2223, %v2226
      %v2257 = vmul.f32 %v2224, %v2226
      %v2258 = vmul.f32 %v2225, %v2226
      %v2259 = vadd.f32 %v2162, %v2227
      %v2260 = vadd.f32 %v2163, %v2228
      %v2261 = vadd.f32 %v2164, %v2229
      %v2262 = vadd.f32 %v2165, %v2230
      %v2263 = vadd.f32 %v2166, %v2231
      %v2264 = vadd.f32 %v2167, %v2232
      %v2265 = vadd.f32 %v2168, %v2233
      %v2266 = vadd.f32 %v2169, %v2234
      %v2267 = vadd.f32 %v2170, %v2235
      %v2268 = vadd.f32 %v2171, %v2236
      %v2269 = vadd.f32 %v2172, %v2237
      %v2270 = vadd.f32 %v2173, %v2238
      %v2271 = vadd.f32 %v2174, %v2239
      %v2272 = vadd.f32 %v2175, %v2240
      %v2273 = vadd.f32 %v2176, %v2241
      %v2274 = vadd.f32 %v2177, %v2242
      %v2275 = vadd.f32 %v2178, %v2243
      %v2276 = vadd.f32 %v2179, %v2244
      %v2277 = vadd.f32 %v2180, %v2245
      %v2278 = vadd.f32 %v2181, %v2246
      %v2279 = vadd.f32 %v2182, %v2247
      %v2280 = vadd.f32 %v2183, %v2248
      %v2281 = vadd.f32 %v2184, %v2249
      %v2282 = vadd.f32 %v2185, %v2250
      %v2283 = vadd.f32 %v2186, %v2251
      %v2284 = vadd.f32 %v2187, %v2252
      %v2285 = vadd.f32 %v2188, %v2253
      %v2286 = vadd.f32 %v2189, %v2254
      %v2287 = vadd.f32 %v2190, %v2255
      %v2288 = vadd.f32 %v2191, %v2256
      %v2289 = vadd.f32 %v2192, %v2257
      %v2290 = vadd.f32 %v2193, %v2258
      %s2291 = scalar_lea.vmem %s234, 72
      %v2292 = vld [vmem:[%s2291] sm:$0xff]
      %v2293 = vld [vmem:[%s2291 + $0x8] sm:$0xff]
      %v2294 = vld [vmem:[%s2291 + $0x18] sm:$0xff]
      %v2295 = vld [vmem:[%s2291 + $0x20] sm:$0xff]
      %v2296 = vld [vmem:[%s2291 + $0x30] sm:$0xff]
      %v2297 = vld [vmem:[%s2291 + $0x38] sm:$0xff]
      %v2298 = vld [vmem:[%s2291 + $0x48] sm:$0xff]
      %v2299 = vld [vmem:[%s2291 + $0x50] sm:$0xff]
      %v2300 = vld [vmem:[%s2291 + $0x60] sm:$0xff]
      %v2301 = vld [vmem:[%s2291 + $0x68] sm:$0xff]
      %v2302 = vld [vmem:[%s2291 + $0x78] sm:$0xff]
      %v2303 = vld [vmem:[%s2291 + $0x80] sm:$0xff]
      %v2304 = vld [vmem:[%s2291 + $0x90] sm:$0xff]
      %v2305 = vld [vmem:[%s2291 + $0x98] sm:$0xff]
      %v2306 = vld [vmem:[%s2291 + $0xa8] sm:$0xff]
      %v2307 = vld [vmem:[%s2291 + $0xb0] sm:$0xff]
      %v2308 = vld [vmem:[%s2291 + $0xc0] sm:$0xff]
      %v2309 = vld [vmem:[%s2291 + $0xc8] sm:$0xff]
      %v2310 = vld [vmem:[%s2291 + $0xd8] sm:$0xff]
      %v2311 = vld [vmem:[%s2291 + $0xe0] sm:$0xff]
      %v2312 = vld [vmem:[%s2291 + $0xf0] sm:$0xff]
      %v2313 = vld [vmem:[%s2291 + $0xf8] sm:$0xff]
      %v2314 = vld [vmem:[%s2291 + $0x108] sm:$0xff]
      %v2315 = vld [vmem:[%s2291 + $0x110] sm:$0xff]
      %v2316 = vld [vmem:[%s2291 + $0x120] sm:$0xff]
      %v2317 = vld [vmem:[%s2291 + $0x128] sm:$0xff]
      %v2318 = vld [vmem:[%s2291 + $0x138] sm:$0xff]
      %v2319 = vld [vmem:[%s2291 + $0x140] sm:$0xff]
      %v2320 = vld [vmem:[%s2291 + $0x150] sm:$0xff]
      %v2321 = vld [vmem:[%s2291 + $0x158] sm:$0xff]
      %v2322 = vld [vmem:[%s2291 + $0x168] sm:$0xff]
      %v2323 = vld [vmem:[%s2291 + $0x170] sm:$0xff]
      %v2324 = vperm.slane %v279, 5
      %v2325 = vmul.f32 %v2292, %v2324
      %v2326 = vmul.f32 %v2293, %v2324
      %v2327 = vmul.f32 %v2294, %v2324
      %v2328 = vmul.f32 %v2295, %v2324
      %v2329 = vmul.f32 %v2296, %v2324
      %v2330 = vmul.f32 %v2297, %v2324
      %v2331 = vmul.f32 %v2298, %v2324
      %v2332 = vmul.f32 %v2299, %v2324
      %v2333 = vmul.f32 %v2300, %v2324
      %v2334 = vmul.f32 %v2301, %v2324
      %v2335 = vmul.f32 %v2302, %v2324
      %v2336 = vmul.f32 %v2303, %v2324
      %v2337 = vmul.f32 %v2304, %v2324
      %v2338 = vmul.f32 %v2305, %v2324
      %v2339 = vmul.f32 %v2306, %v2324
      %v2340 = vmul.f32 %v2307, %v2324
      %v2341 = vmul.f32 %v2308, %v2324
      %v2342 = vmul.f32 %v2309, %v2324
      %v2343 = vmul.f32 %v2310, %v2324
      %v2344 = vmul.f32 %v2311, %v2324
      %v2345 = vmul.f32 %v2312, %v2324
      %v2346 = vmul.f32 %v2313, %v2324
      %v2347 = vmul.f32 %v2314, %v2324
      %v2348 = vmul.f32 %v2315, %v2324
      %v2349 = vmul.f32 %v2316, %v2324
      %v2350 = vmul.f32 %v2317, %v2324
      %v2351 = vmul.f32 %v2318, %v2324
      %v2352 = vmul.f32 %v2319, %v2324
      %v2353 = vmul.f32 %v2320, %v2324
      %v2354 = vmul.f32 %v2321, %v2324
      %v2355 = vmul.f32 %v2322, %v2324
      %v2356 = vmul.f32 %v2323, %v2324
      %v2357 = vadd.f32 %v2259, %v2325
      %v2358 = vadd.f32 %v2260, %v2326
      %v2359 = vadd.f32 %v2261, %v2327
      %v2360 = vadd.f32 %v2262, %v2328
      %v2361 = vadd.f32 %v2263, %v2329
      %v2362 = vadd.f32 %v2264, %v2330
      %v2363 = vadd.f32 %v2265, %v2331
      %v2364 = vadd.f32 %v2266, %v2332
      %v2365 = vadd.f32 %v2267, %v2333
      %v2366 = vadd.f32 %v2268, %v2334
      %v2367 = vadd.f32 %v2269, %v2335
      %v2368 = vadd.f32 %v2270, %v2336
      %v2369 = vadd.f32 %v2271, %v2337
      %v2370 = vadd.f32 %v2272, %v2338
      %v2371 = vadd.f32 %v2273, %v2339
      %v2372 = vadd.f32 %v2274, %v2340
      %v2373 = vadd.f32 %v2275, %v2341
      %v2374 = vadd.f32 %v2276, %v2342
      %v2375 = vadd.f32 %v2277, %v2343
      %v2376 = vadd.f32 %v2278, %v2344
      %v2377 = vadd.f32 %v2279, %v2345
      %v2378 = vadd.f32 %v2280, %v2346
      %v2379 = vadd.f32 %v2281, %v2347
      %v2380 = vadd.f32 %v2282, %v2348
      %v2381 = vadd.f32 %v2283, %v2349
      %v2382 = vadd.f32 %v2284, %v2350
      %v2383 = vadd.f32 %v2285, %v2351
      %v2384 = vadd.f32 %v2286, %v2352
      %v2385 = vadd.f32 %v2287, %v2353
      %v2386 = vadd.f32 %v2288, %v2354
      %v2387 = vadd.f32 %v2289, %v2355
      %v2388 = vadd.f32 %v2290, %v2356
      %v2389 = vld [vmem:[%s2291 + $0x1] sm:$0xff]
      %v2390 = vld [vmem:[%s2291 + $0x9] sm:$0xff]
      %v2391 = vld [vmem:[%s2291 + $0x19] sm:$0xff]
      %v2392 = vld [vmem:[%s2291 + $0x21] sm:$0xff]
      %v2393 = vld [vmem:[%s2291 + $0x31] sm:$0xff]
      %v2394 = vld [vmem:[%s2291 + $0x39] sm:$0xff]
      %v2395 = vld [vmem:[%s2291 + $0x49] sm:$0xff]
      %v2396 = vld [vmem:[%s2291 + $0x51] sm:$0xff]
      %v2397 = vld [vmem:[%s2291 + $0x61] sm:$0xff]
      %v2398 = vld [vmem:[%s2291 + $0x69] sm:$0xff]
      %v2399 = vld [vmem:[%s2291 + $0x79] sm:$0xff]
      %v2400 = vld [vmem:[%s2291 + $0x81] sm:$0xff]
      %v2401 = vld [vmem:[%s2291 + $0x91] sm:$0xff]
      %v2402 = vld [vmem:[%s2291 + $0x99] sm:$0xff]
      %v2403 = vld [vmem:[%s2291 + $0xa9] sm:$0xff]
      %v2404 = vld [vmem:[%s2291 + $0xb1] sm:$0xff]
      %v2405 = vld [vmem:[%s2291 + $0xc1] sm:$0xff]
      %v2406 = vld [vmem:[%s2291 + $0xc9] sm:$0xff]
      %v2407 = vld [vmem:[%s2291 + $0xd9] sm:$0xff]
      %v2408 = vld [vmem:[%s2291 + $0xe1] sm:$0xff]
      %v2409 = vld [vmem:[%s2291 + $0xf1] sm:$0xff]
      %v2410 = vld [vmem:[%s2291 + $0xf9] sm:$0xff]
      %v2411 = vld [vmem:[%s2291 + $0x109] sm:$0xff]
      %v2412 = vld [vmem:[%s2291 + $0x111] sm:$0xff]
      %v2413 = vld [vmem:[%s2291 + $0x121] sm:$0xff]
      %v2414 = vld [vmem:[%s2291 + $0x129] sm:$0xff]
      %v2415 = vld [vmem:[%s2291 + $0x139] sm:$0xff]
      %v2416 = vld [vmem:[%s2291 + $0x141] sm:$0xff]
      %v2417 = vld [vmem:[%s2291 + $0x151] sm:$0xff]
      %v2418 = vld [vmem:[%s2291 + $0x159] sm:$0xff]
      %v2419 = vld [vmem:[%s2291 + $0x169] sm:$0xff]
      %v2420 = vld [vmem:[%s2291 + $0x171] sm:$0xff]
      %v2421 = vperm.slane %v279, 6
      %v2422 = vmul.f32 %v2389, %v2421
      %v2423 = vmul.f32 %v2390, %v2421
      %v2424 = vmul.f32 %v2391, %v2421
      %v2425 = vmul.f32 %v2392, %v2421
      %v2426 = vmul.f32 %v2393, %v2421
      %v2427 = vmul.f32 %v2394, %v2421
      %v2428 = vmul.f32 %v2395, %v2421
      %v2429 = vmul.f32 %v2396, %v2421
      %v2430 = vmul.f32 %v2397, %v2421
      %v2431 = vmul.f32 %v2398, %v2421
      %v2432 = vmul.f32 %v2399, %v2421
      %v2433 = vmul.f32 %v2400, %v2421
      %v2434 = vmul.f32 %v2401, %v2421
      %v2435 = vmul.f32 %v2402, %v2421
      %v2436 = vmul.f32 %v2403, %v2421
      %v2437 = vmul.f32 %v2404, %v2421
      %v2438 = vmul.f32 %v2405, %v2421
      %v2439 = vmul.f32 %v2406, %v2421
      %v2440 = vmul.f32 %v2407, %v2421
      %v2441 = vmul.f32 %v2408, %v2421
      %v2442 = vmul.f32 %v2409, %v2421
      %v2443 = vmul.f32 %v2410, %v2421
      %v2444 = vmul.f32 %v2411, %v2421
      %v2445 = vmul.f32 %v2412, %v2421
      %v2446 = vmul.f32 %v2413, %v2421
      %v2447 = vmul.f32 %v2414, %v2421
      %v2448 = vmul.f32 %v2415, %v2421
      %v2449 = vmul.f32 %v2416, %v2421
      %v2450 = vmul.f32 %v2417, %v2421
      %v2451 = vmul.f32 %v2418, %v2421
      %v2452 = vmul.f32 %v2419, %v2421
      %v2453 = vmul.f32 %v2420, %v2421
      %v2454 = vadd.f32 %v2357, %v2422
      %v2455 = vadd.f32 %v2358, %v2423
      %v2456 = vadd.f32 %v2359, %v2424
      %v2457 = vadd.f32 %v2360, %v2425
      %v2458 = vadd.f32 %v2361, %v2426
      %v2459 = vadd.f32 %v2362, %v2427
      %v2460 = vadd.f32 %v2363, %v2428
      %v2461 = vadd.f32 %v2364, %v2429
      %v2462 = vadd.f32 %v2365, %v2430
      %v2463 = vadd.f32 %v2366, %v2431
      %v2464 = vadd.f32 %v2367, %v2432
      %v2465 = vadd.f32 %v2368, %v2433
      %v2466 = vadd.f32 %v2369, %v2434
      %v2467 = vadd.f32 %v2370, %v2435
      %v2468 = vadd.f32 %v2371, %v2436
      %v2469 = vadd.f32 %v2372, %v2437
      %v2470 = vadd.f32 %v2373, %v2438
      %v2471 = vadd.f32 %v2374, %v2439
      %v2472 = vadd.f32 %v2375, %v2440
      %v2473 = vadd.f32 %v2376, %v2441
      %v2474 = vadd.f32 %v2377, %v2442
      %v2475 = vadd.f32 %v2378, %v2443
      %v2476 = vadd.f32 %v2379, %v2444
      %v2477 = vadd.f32 %v2380, %v2445
      %v2478 = vadd.f32 %v2381, %v2446
      %v2479 = vadd.f32 %v2382, %v2447
      %v2480 = vadd.f32 %v2383, %v2448
      %v2481 = vadd.f32 %v2384, %v2449
      %v2482 = vadd.f32 %v2385, %v2450
      %v2483 = vadd.f32 %v2386, %v2451
      %v2484 = vadd.f32 %v2387, %v2452
      %v2485 = vadd.f32 %v2388, %v2453
      %v2486 = vld [vmem:[%s2291 + $0x2] sm:$0xff]
      %v2487 = vld [vmem:[%s2291 + $0xa] sm:$0xff]
      %v2488 = vld [vmem:[%s2291 + $0x1a] sm:$0xff]
      %v2489 = vld [vmem:[%s2291 + $0x22] sm:$0xff]
      %v2490 = vld [vmem:[%s2291 + $0x32] sm:$0xff]
      %v2491 = vld [vmem:[%s2291 + $0x3a] sm:$0xff]
      %v2492 = vld [vmem:[%s2291 + $0x4a] sm:$0xff]
      %v2493 = vld [vmem:[%s2291 + $0x52] sm:$0xff]
      %v2494 = vld [vmem:[%s2291 + $0x62] sm:$0xff]
      %v2495 = vld [vmem:[%s2291 + $0x6a] sm:$0xff]
      %v2496 = vld [vmem:[%s2291 + $0x7a] sm:$0xff]
      %v2497 = vld [vmem:[%s2291 + $0x82] sm:$0xff]
      %v2498 = vld [vmem:[%s2291 + $0x92] sm:$0xff]
      %v2499 = vld [vmem:[%s2291 + $0x9a] sm:$0xff]
      %v2500 = vld [vmem:[%s2291 + $0xaa] sm:$0xff]
      %v2501 = vld [vmem:[%s2291 + $0xb2] sm:$0xff]
      %v2502 = vld [vmem:[%s2291 + $0xc2] sm:$0xff]
      %v2503 = vld [vmem:[%s2291 + $0xca] sm:$0xff]
      %v2504 = vld [vmem:[%s2291 + $0xda] sm:$0xff]
      %v2505 = vld [vmem:[%s2291 + $0xe2] sm:$0xff]
      %v2506 = vld [vmem:[%s2291 + $0xf2] sm:$0xff]
      %v2507 = vld [vmem:[%s2291 + $0xfa] sm:$0xff]
      %v2508 = vld [vmem:[%s2291 + $0x10a] sm:$0xff]
      %v2509 = vld [vmem:[%s2291 + $0x112] sm:$0xff]
      %v2510 = vld [vmem:[%s2291 + $0x122] sm:$0xff]
      %v2511 = vld [vmem:[%s2291 + $0x12a] sm:$0xff]
      %v2512 = vld [vmem:[%s2291 + $0x13a] sm:$0xff]
      %v2513 = vld [vmem:[%s2291 + $0x142] sm:$0xff]
      %v2514 = vld [vmem:[%s2291 + $0x152] sm:$0xff]
      %v2515 = vld [vmem:[%s2291 + $0x15a] sm:$0xff]
      %v2516 = vld [vmem:[%s2291 + $0x16a] sm:$0xff]
      %v2517 = vld [vmem:[%s2291 + $0x172] sm:$0xff]
      %v2518 = vperm.slane %v279, 7
      %v2519 = vmul.f32 %v2486, %v2518
      %v2520 = vmul.f32 %v2487, %v2518
      %v2521 = vmul.f32 %v2488, %v2518
      %v2522 = vmul.f32 %v2489, %v2518
      %v2523 = vmul.f32 %v2490, %v2518
      %v2524 = vmul.f32 %v2491, %v2518
      %v2525 = vmul.f32 %v2492, %v2518
      %v2526 = vmul.f32 %v2493, %v2518
      %v2527 = vmul.f32 %v2494, %v2518
      %v2528 = vmul.f32 %v2495, %v2518
      %v2529 = vmul.f32 %v2496, %v2518
      %v2530 = vmul.f32 %v2497, %v2518
      %v2531 = vmul.f32 %v2498, %v2518
      %v2532 = vmul.f32 %v2499, %v2518
      %v2533 = vmul.f32 %v2500, %v2518
      %v2534 = vmul.f32 %v2501, %v2518
      %v2535 = vmul.f32 %v2502, %v2518
      %v2536 = vmul.f32 %v2503, %v2518
      %v2537 = vmul.f32 %v2504, %v2518
      %v2538 = vmul.f32 %v2505, %v2518
      %v2539 = vmul.f32 %v2506, %v2518
      %v2540 = vmul.f32 %v2507, %v2518
      %v2541 = vmul.f32 %v2508, %v2518
      %v2542 = vmul.f32 %v2509, %v2518
      %v2543 = vmul.f32 %v2510, %v2518
      %v2544 = vmul.f32 %v2511, %v2518
      %v2545 = vmul.f32 %v2512, %v2518
      %v2546 = vmul.f32 %v2513, %v2518
      %v2547 = vmul.f32 %v2514, %v2518
      %v2548 = vmul.f32 %v2515, %v2518
      %v2549 = vmul.f32 %v2516, %v2518
      %v2550 = vmul.f32 %v2517, %v2518
      %v2551 = vadd.f32 %v2454, %v2519
      %v2552 = vadd.f32 %v2455, %v2520
      %v2553 = vadd.f32 %v2456, %v2521
      %v2554 = vadd.f32 %v2457, %v2522
      %v2555 = vadd.f32 %v2458, %v2523
      %v2556 = vadd.f32 %v2459, %v2524
      %v2557 = vadd.f32 %v2460, %v2525
      %v2558 = vadd.f32 %v2461, %v2526
      %v2559 = vadd.f32 %v2462, %v2527
      %v2560 = vadd.f32 %v2463, %v2528
      %v2561 = vadd.f32 %v2464, %v2529
      %v2562 = vadd.f32 %v2465, %v2530
      %v2563 = vadd.f32 %v2466, %v2531
      %v2564 = vadd.f32 %v2467, %v2532
      %v2565 = vadd.f32 %v2468, %v2533
      %v2566 = vadd.f32 %v2469, %v2534
      %v2567 = vadd.f32 %v2470, %v2535
      %v2568 = vadd.f32 %v2471, %v2536
      %v2569 = vadd.f32 %v2472, %v2537
      %v2570 = vadd.f32 %v2473, %v2538
      %v2571 = vadd.f32 %v2474, %v2539
      %v2572 = vadd.f32 %v2475, %v2540
      %v2573 = vadd.f32 %v2476, %v2541
      %v2574 = vadd.f32 %v2477, %v2542
      %v2575 = vadd.f32 %v2478, %v2543
      %v2576 = vadd.f32 %v2479, %v2544
      %v2577 = vadd.f32 %v2480, %v2545
      %v2578 = vadd.f32 %v2481, %v2546
      %v2579 = vadd.f32 %v2482, %v2547
      %v2580 = vadd.f32 %v2483, %v2548
      %v2581 = vadd.f32 %v2484, %v2549
      %v2582 = vadd.f32 %v2485, %v2550
      %v2583 = vld [vmem:[%s2291 + $0x3] sm:$0xff]
      %v2584 = vld [vmem:[%s2291 + $0xb] sm:$0xff]
      %v2585 = vld [vmem:[%s2291 + $0x1b] sm:$0xff]
      %v2586 = vld [vmem:[%s2291 + $0x23] sm:$0xff]
      %v2587 = vld [vmem:[%s2291 + $0x33] sm:$0xff]
      %v2588 = vld [vmem:[%s2291 + $0x3b] sm:$0xff]
      %v2589 = vld [vmem:[%s2291 + $0x4b] sm:$0xff]
      %v2590 = vld [vmem:[%s2291 + $0x53] sm:$0xff]
      %v2591 = vld [vmem:[%s2291 + $0x63] sm:$0xff]
      %v2592 = vld [vmem:[%s2291 + $0x6b] sm:$0xff]
      %v2593 = vld [vmem:[%s2291 + $0x7b] sm:$0xff]
      %v2594 = vld [vmem:[%s2291 + $0x83] sm:$0xff]
      %v2595 = vld [vmem:[%s2291 + $0x93] sm:$0xff]
      %v2596 = vld [vmem:[%s2291 + $0x9b] sm:$0xff]
      %v2597 = vld [vmem:[%s2291 + $0xab] sm:$0xff]
      %v2598 = vld [vmem:[%s2291 + $0xb3] sm:$0xff]
      %v2599 = vld [vmem:[%s2291 + $0xc3] sm:$0xff]
      %v2600 = vld [vmem:[%s2291 + $0xcb] sm:$0xff]
      %v2601 = vld [vmem:[%s2291 + $0xdb] sm:$0xff]
      %v2602 = vld [vmem:[%s2291 + $0xe3] sm:$0xff]
      %v2603 = vld [vmem:[%s2291 + $0xf3] sm:$0xff]
      %v2604 = vld [vmem:[%s2291 + $0xfb] sm:$0xff]
      %v2605 = vld [vmem:[%s2291 + $0x10b] sm:$0xff]
      %v2606 = vld [vmem:[%s2291 + $0x113] sm:$0xff]
      %v2607 = vld [vmem:[%s2291 + $0x123] sm:$0xff]
      %v2608 = vld [vmem:[%s2291 + $0x12b] sm:$0xff]
      %v2609 = vld [vmem:[%s2291 + $0x13b] sm:$0xff]
      %v2610 = vld [vmem:[%s2291 + $0x143] sm:$0xff]
      %v2611 = vld [vmem:[%s2291 + $0x153] sm:$0xff]
      %v2612 = vld [vmem:[%s2291 + $0x15b] sm:$0xff]
      %v2613 = vld [vmem:[%s2291 + $0x16b] sm:$0xff]
      %v2614 = vld [vmem:[%s2291 + $0x173] sm:$0xff]
      %v2615 = vperm.slane %v280, 0
      %v2616 = vmul.f32 %v2583, %v2615
      %v2617 = vmul.f32 %v2584, %v2615
      %v2618 = vmul.f32 %v2585, %v2615
      %v2619 = vmul.f32 %v2586, %v2615
      %v2620 = vmul.f32 %v2587, %v2615
      %v2621 = vmul.f32 %v2588, %v2615
      %v2622 = vmul.f32 %v2589, %v2615
      %v2623 = vmul.f32 %v2590, %v2615
      %v2624 = vmul.f32 %v2591, %v2615
      %v2625 = vmul.f32 %v2592, %v2615
      %v2626 = vmul.f32 %v2593, %v2615
      %v2627 = vmul.f32 %v2594, %v2615
      %v2628 = vmul.f32 %v2595, %v2615
      %v2629 = vmul.f32 %v2596, %v2615
      %v2630 = vmul.f32 %v2597, %v2615
      %v2631 = vmul.f32 %v2598, %v2615
      %v2632 = vmul.f32 %v2599, %v2615
      %v2633 = vmul.f32 %v2600, %v2615
      %v2634 = vmul.f32 %v2601, %v2615
      %v2635 = vmul.f32 %v2602, %v2615
      %v2636 = vmul.f32 %v2603, %v2615
      %v2637 = vmul.f32 %v2604, %v2615
      %v2638 = vmul.f32 %v2605, %v2615
      %v2639 = vmul.f32 %v2606, %v2615
      %v2640 = vmul.f32 %v2607, %v2615
      %v2641 = vmul.f32 %v2608, %v2615
      %v2642 = vmul.f32 %v2609, %v2615
      %v2643 = vmul.f32 %v2610, %v2615
      %v2644 = vmul.f32 %v2611, %v2615
      %v2645 = vmul.f32 %v2612, %v2615
      %v2646 = vmul.f32 %v2613, %v2615
      %v2647 = vmul.f32 %v2614, %v2615
      %v2648 = vadd.f32 %v2551, %v2616
      %v2649 = vadd.f32 %v2552, %v2617
      %v2650 = vadd.f32 %v2553, %v2618
      %v2651 = vadd.f32 %v2554, %v2619
      %v2652 = vadd.f32 %v2555, %v2620
      %v2653 = vadd.f32 %v2556, %v2621
      %v2654 = vadd.f32 %v2557, %v2622
      %v2655 = vadd.f32 %v2558, %v2623
      %v2656 = vadd.f32 %v2559, %v2624
      %v2657 = vadd.f32 %v2560, %v2625
      %v2658 = vadd.f32 %v2561, %v2626
      %v2659 = vadd.f32 %v2562, %v2627
      %v2660 = vadd.f32 %v2563, %v2628
      %v2661 = vadd.f32 %v2564, %v2629
      %v2662 = vadd.f32 %v2565, %v2630
      %v2663 = vadd.f32 %v2566, %v2631
      %v2664 = vadd.f32 %v2567, %v2632
      %v2665 = vadd.f32 %v2568, %v2633
      %v2666 = vadd.f32 %v2569, %v2634
      %v2667 = vadd.f32 %v2570, %v2635
      %v2668 = vadd.f32 %v2571, %v2636
      %v2669 = vadd.f32 %v2572, %v2637
      %v2670 = vadd.f32 %v2573, %v2638
      %v2671 = vadd.f32 %v2574, %v2639
      %v2672 = vadd.f32 %v2575, %v2640
      %v2673 = vadd.f32 %v2576, %v2641
      %v2674 = vadd.f32 %v2577, %v2642
      %v2675 = vadd.f32 %v2578, %v2643
      %v2676 = vadd.f32 %v2579, %v2644
      %v2677 = vadd.f32 %v2580, %v2645
      %v2678 = vadd.f32 %v2581, %v2646
      %v2679 = vadd.f32 %v2582, %v2647
      %v2680 = vld [vmem:[%s2291 + $0x4] sm:$0xff]
      %v2681 = vld [vmem:[%s2291 + $0xc] sm:$0xff]
      %v2682 = vld [vmem:[%s2291 + $0x1c] sm:$0xff]
      %v2683 = vld [vmem:[%s2291 + $0x24] sm:$0xff]
      %v2684 = vld [vmem:[%s2291 + $0x34] sm:$0xff]
      %v2685 = vld [vmem:[%s2291 + $0x3c] sm:$0xff]
      %v2686 = vld [vmem:[%s2291 + $0x4c] sm:$0xff]
      %v2687 = vld [vmem:[%s2291 + $0x54] sm:$0xff]
      %v2688 = vld [vmem:[%s2291 + $0x64] sm:$0xff]
      %v2689 = vld [vmem:[%s2291 + $0x6c] sm:$0xff]
      %v2690 = vld [vmem:[%s2291 + $0x7c] sm:$0xff]
      %v2691 = vld [vmem:[%s2291 + $0x84] sm:$0xff]
      %v2692 = vld [vmem:[%s2291 + $0x94] sm:$0xff]
      %v2693 = vld [vmem:[%s2291 + $0x9c] sm:$0xff]
      %v2694 = vld [vmem:[%s2291 + $0xac] sm:$0xff]
      %v2695 = vld [vmem:[%s2291 + $0xb4] sm:$0xff]
      %v2696 = vld [vmem:[%s2291 + $0xc4] sm:$0xff]
      %v2697 = vld [vmem:[%s2291 + $0xcc] sm:$0xff]
      %v2698 = vld [vmem:[%s2291 + $0xdc] sm:$0xff]
      %v2699 = vld [vmem:[%s2291 + $0xe4] sm:$0xff]
      %v2700 = vld [vmem:[%s2291 + $0xf4] sm:$0xff]
      %v2701 = vld [vmem:[%s2291 + $0xfc] sm:$0xff]
      %v2702 = vld [vmem:[%s2291 + $0x10c] sm:$0xff]
      %v2703 = vld [vmem:[%s2291 + $0x114] sm:$0xff]
      %v2704 = vld [vmem:[%s2291 + $0x124] sm:$0xff]
      %v2705 = vld [vmem:[%s2291 + $0x12c] sm:$0xff]
      %v2706 = vld [vmem:[%s2291 + $0x13c] sm:$0xff]
      %v2707 = vld [vmem:[%s2291 + $0x144] sm:$0xff]
      %v2708 = vld [vmem:[%s2291 + $0x154] sm:$0xff]
      %v2709 = vld [vmem:[%s2291 + $0x15c] sm:$0xff]
      %v2710 = vld [vmem:[%s2291 + $0x16c] sm:$0xff]
      %v2711 = vld [vmem:[%s2291 + $0x174] sm:$0xff]
      %v2712 = vperm.slane %v280, 1
      %v2713 = vmul.f32 %v2680, %v2712
      %v2714 = vmul.f32 %v2681, %v2712
      %v2715 = vmul.f32 %v2682, %v2712
      %v2716 = vmul.f32 %v2683, %v2712
      %v2717 = vmul.f32 %v2684, %v2712
      %v2718 = vmul.f32 %v2685, %v2712
      %v2719 = vmul.f32 %v2686, %v2712
      %v2720 = vmul.f32 %v2687, %v2712
      %v2721 = vmul.f32 %v2688, %v2712
      %v2722 = vmul.f32 %v2689, %v2712
      %v2723 = vmul.f32 %v2690, %v2712
      %v2724 = vmul.f32 %v2691, %v2712
      %v2725 = vmul.f32 %v2692, %v2712
      %v2726 = vmul.f32 %v2693, %v2712
      %v2727 = vmul.f32 %v2694, %v2712
      %v2728 = vmul.f32 %v2695, %v2712
      %v2729 = vmul.f32 %v2696, %v2712
      %v2730 = vmul.f32 %v2697, %v2712
      %v2731 = vmul.f32 %v2698, %v2712
      %v2732 = vmul.f32 %v2699, %v2712
      %v2733 = vmul.f32 %v2700, %v2712
      %v2734 = vmul.f32 %v2701, %v2712
      %v2735 = vmul.f32 %v2702, %v2712
      %v2736 = vmul.f32 %v2703, %v2712
      %v2737 = vmul.f32 %v2704, %v2712
      %v2738 = vmul.f32 %v2705, %v2712
      %v2739 = vmul.f32 %v2706, %v2712
      %v2740 = vmul.f32 %v2707, %v2712
      %v2741 = vmul.f32 %v2708, %v2712
      %v2742 = vmul.f32 %v2709, %v2712
      %v2743 = vmul.f32 %v2710, %v2712
      %v2744 = vmul.f32 %v2711, %v2712
      %v2745 = vadd.f32 %v2648, %v2713
      %v2746 = vadd.f32 %v2649, %v2714
      %v2747 = vadd.f32 %v2650, %v2715
      %v2748 = vadd.f32 %v2651, %v2716
      %v2749 = vadd.f32 %v2652, %v2717
      %v2750 = vadd.f32 %v2653, %v2718
      %v2751 = vadd.f32 %v2654, %v2719
      %v2752 = vadd.f32 %v2655, %v2720
      %v2753 = vadd.f32 %v2656, %v2721
      %v2754 = vadd.f32 %v2657, %v2722
      %v2755 = vadd.f32 %v2658, %v2723
      %v2756 = vadd.f32 %v2659, %v2724
      %v2757 = vadd.f32 %v2660, %v2725
      %v2758 = vadd.f32 %v2661, %v2726
      %v2759 = vadd.f32 %v2662, %v2727
      %v2760 = vadd.f32 %v2663, %v2728
      %v2761 = vadd.f32 %v2664, %v2729
      %v2762 = vadd.f32 %v2665, %v2730
      %v2763 = vadd.f32 %v2666, %v2731
      %v2764 = vadd.f32 %v2667, %v2732
      %v2765 = vadd.f32 %v2668, %v2733
      %v2766 = vadd.f32 %v2669, %v2734
      %v2767 = vadd.f32 %v2670, %v2735
      %v2768 = vadd.f32 %v2671, %v2736
      %v2769 = vadd.f32 %v2672, %v2737
      %v2770 = vadd.f32 %v2673, %v2738
      %v2771 = vadd.f32 %v2674, %v2739
      %v2772 = vadd.f32 %v2675, %v2740
      %v2773 = vadd.f32 %v2676, %v2741
      %v2774 = vadd.f32 %v2677, %v2742
      %v2775 = vadd.f32 %v2678, %v2743
      %v2776 = vadd.f32 %v2679, %v2744
      %v2777 = vld [vmem:[%s2291 + $0x5] sm:$0xff]
      %v2778 = vld [vmem:[%s2291 + $0xd] sm:$0xff]
      %v2779 = vld [vmem:[%s2291 + $0x1d] sm:$0xff]
      %v2780 = vld [vmem:[%s2291 + $0x25] sm:$0xff]
      %v2781 = vld [vmem:[%s2291 + $0x35] sm:$0xff]
      %v2782 = vld [vmem:[%s2291 + $0x3d] sm:$0xff]
      %v2783 = vld [vmem:[%s2291 + $0x4d] sm:$0xff]
      %v2784 = vld [vmem:[%s2291 + $0x55] sm:$0xff]
      %v2785 = vld [vmem:[%s2291 + $0x65] sm:$0xff]
      %v2786 = vld [vmem:[%s2291 + $0x6d] sm:$0xff]
      %v2787 = vld [vmem:[%s2291 + $0x7d] sm:$0xff]
      %v2788 = vld [vmem:[%s2291 + $0x85] sm:$0xff]
      %v2789 = vld [vmem:[%s2291 + $0x95] sm:$0xff]
      %v2790 = vld [vmem:[%s2291 + $0x9d] sm:$0xff]
      %v2791 = vld [vmem:[%s2291 + $0xad] sm:$0xff]
      %v2792 = vld [vmem:[%s2291 + $0xb5] sm:$0xff]
      %v2793 = vld [vmem:[%s2291 + $0xc5] sm:$0xff]
      %v2794 = vld [vmem:[%s2291 + $0xcd] sm:$0xff]
      %v2795 = vld [vmem:[%s2291 + $0xdd] sm:$0xff]
      %v2796 = vld [vmem:[%s2291 + $0xe5] sm:$0xff]
      %v2797 = vld [vmem:[%s2291 + $0xf5] sm:$0xff]
      %v2798 = vld [vmem:[%s2291 + $0xfd] sm:$0xff]
      %v2799 = vld [vmem:[%s2291 + $0x10d] sm:$0xff]
      %v2800 = vld [vmem:[%s2291 + $0x115] sm:$0xff]
      %v2801 = vld [vmem:[%s2291 + $0x125] sm:$0xff]
      %v2802 = vld [vmem:[%s2291 + $0x12d] sm:$0xff]
      %v2803 = vld [vmem:[%s2291 + $0x13d] sm:$0xff]
      %v2804 = vld [vmem:[%s2291 + $0x145] sm:$0xff]
      %v2805 = vld [vmem:[%s2291 + $0x155] sm:$0xff]
      %v2806 = vld [vmem:[%s2291 + $0x15d] sm:$0xff]
      %v2807 = vld [vmem:[%s2291 + $0x16d] sm:$0xff]
      %v2808 = vld [vmem:[%s2291 + $0x175] sm:$0xff]
      %v2809 = vperm.slane %v280, 2
      %v2810 = vmul.f32 %v2777, %v2809
      %v2811 = vmul.f32 %v2778, %v2809
      %v2812 = vmul.f32 %v2779, %v2809
      %v2813 = vmul.f32 %v2780, %v2809
      %v2814 = vmul.f32 %v2781, %v2809
      %v2815 = vmul.f32 %v2782, %v2809
      %v2816 = vmul.f32 %v2783, %v2809
      %v2817 = vmul.f32 %v2784, %v2809
      %v2818 = vmul.f32 %v2785, %v2809
      %v2819 = vmul.f32 %v2786, %v2809
      %v2820 = vmul.f32 %v2787, %v2809
      %v2821 = vmul.f32 %v2788, %v2809
      %v2822 = vmul.f32 %v2789, %v2809
      %v2823 = vmul.f32 %v2790, %v2809
      %v2824 = vmul.f32 %v2791, %v2809
      %v2825 = vmul.f32 %v2792, %v2809
      %v2826 = vmul.f32 %v2793, %v2809
      %v2827 = vmul.f32 %v2794, %v2809
      %v2828 = vmul.f32 %v2795, %v2809
      %v2829 = vmul.f32 %v2796, %v2809
      %v2830 = vmul.f32 %v2797, %v2809
      %v2831 = vmul.f32 %v2798, %v2809
      %v2832 = vmul.f32 %v2799, %v2809
      %v2833 = vmul.f32 %v2800, %v2809
      %v2834 = vmul.f32 %v2801, %v2809
      %v2835 = vmul.f32 %v2802, %v2809
      %v2836 = vmul.f32 %v2803, %v2809
      %v2837 = vmul.f32 %v2804, %v2809
      %v2838 = vmul.f32 %v2805, %v2809
      %v2839 = vmul.f32 %v2806, %v2809
      %v2840 = vmul.f32 %v2807, %v2809
      %v2841 = vmul.f32 %v2808, %v2809
      %v2842 = vadd.f32 %v2745, %v2810
      %v2843 = vadd.f32 %v2746, %v2811
      %v2844 = vadd.f32 %v2747, %v2812
      %v2845 = vadd.f32 %v2748, %v2813
      %v2846 = vadd.f32 %v2749, %v2814
      %v2847 = vadd.f32 %v2750, %v2815
      %v2848 = vadd.f32 %v2751, %v2816
      %v2849 = vadd.f32 %v2752, %v2817
      %v2850 = vadd.f32 %v2753, %v2818
      %v2851 = vadd.f32 %v2754, %v2819
      %v2852 = vadd.f32 %v2755, %v2820
      %v2853 = vadd.f32 %v2756, %v2821
      %v2854 = vadd.f32 %v2757, %v2822
      %v2855 = vadd.f32 %v2758, %v2823
      %v2856 = vadd.f32 %v2759, %v2824
      %v2857 = vadd.f32 %v2760, %v2825
      %v2858 = vadd.f32 %v2761, %v2826
      %v2859 = vadd.f32 %v2762, %v2827
      %v2860 = vadd.f32 %v2763, %v2828
      %v2861 = vadd.f32 %v2764, %v2829
      %v2862 = vadd.f32 %v2765, %v2830
      %v2863 = vadd.f32 %v2766, %v2831
      %v2864 = vadd.f32 %v2767, %v2832
      %v2865 = vadd.f32 %v2768, %v2833
      %v2866 = vadd.f32 %v2769, %v2834
      %v2867 = vadd.f32 %v2770, %v2835
      %v2868 = vadd.f32 %v2771, %v2836
      %v2869 = vadd.f32 %v2772, %v2837
      %v2870 = vadd.f32 %v2773, %v2838
      %v2871 = vadd.f32 %v2774, %v2839
      %v2872 = vadd.f32 %v2775, %v2840
      %v2873 = vadd.f32 %v2776, %v2841
      %v2874 = vld [vmem:[%s2291 + $0x6] sm:$0xff]
      %v2875 = vld [vmem:[%s2291 + $0xe] sm:$0xff]
      %v2876 = vld [vmem:[%s2291 + $0x1e] sm:$0xff]
      %v2877 = vld [vmem:[%s2291 + $0x26] sm:$0xff]
      %v2878 = vld [vmem:[%s2291 + $0x36] sm:$0xff]
      %v2879 = vld [vmem:[%s2291 + $0x3e] sm:$0xff]
      %v2880 = vld [vmem:[%s2291 + $0x4e] sm:$0xff]
      %v2881 = vld [vmem:[%s2291 + $0x56] sm:$0xff]
      %v2882 = vld [vmem:[%s2291 + $0x66] sm:$0xff]
      %v2883 = vld [vmem:[%s2291 + $0x6e] sm:$0xff]
      %v2884 = vld [vmem:[%s2291 + $0x7e] sm:$0xff]
      %v2885 = vld [vmem:[%s2291 + $0x86] sm:$0xff]
      %v2886 = vld [vmem:[%s2291 + $0x96] sm:$0xff]
      %v2887 = vld [vmem:[%s2291 + $0x9e] sm:$0xff]
      %v2888 = vld [vmem:[%s2291 + $0xae] sm:$0xff]
      %v2889 = vld [vmem:[%s2291 + $0xb6] sm:$0xff]
      %v2890 = vld [vmem:[%s2291 + $0xc6] sm:$0xff]
      %v2891 = vld [vmem:[%s2291 + $0xce] sm:$0xff]
      %v2892 = vld [vmem:[%s2291 + $0xde] sm:$0xff]
      %v2893 = vld [vmem:[%s2291 + $0xe6] sm:$0xff]
      %v2894 = vld [vmem:[%s2291 + $0xf6] sm:$0xff]
      %v2895 = vld [vmem:[%s2291 + $0xfe] sm:$0xff]
      %v2896 = vld [vmem:[%s2291 + $0x10e] sm:$0xff]
      %v2897 = vld [vmem:[%s2291 + $0x116] sm:$0xff]
      %v2898 = vld [vmem:[%s2291 + $0x126] sm:$0xff]
      %v2899 = vld [vmem:[%s2291 + $0x12e] sm:$0xff]
      %v2900 = vld [vmem:[%s2291 + $0x13e] sm:$0xff]
      %v2901 = vld [vmem:[%s2291 + $0x146] sm:$0xff]
      %v2902 = vld [vmem:[%s2291 + $0x156] sm:$0xff]
      %v2903 = vld [vmem:[%s2291 + $0x15e] sm:$0xff]
      %v2904 = vld [vmem:[%s2291 + $0x16e] sm:$0xff]
      %v2905 = vld [vmem:[%s2291 + $0x176] sm:$0xff]
      %v2906 = vperm.slane %v280, 3
      %v2907 = vmul.f32 %v2874, %v2906
      %v2908 = vmul.f32 %v2875, %v2906
      %v2909 = vmul.f32 %v2876, %v2906
      %v2910 = vmul.f32 %v2877, %v2906
      %v2911 = vmul.f32 %v2878, %v2906
      %v2912 = vmul.f32 %v2879, %v2906
      %v2913 = vmul.f32 %v2880, %v2906
      %v2914 = vmul.f32 %v2881, %v2906
      %v2915 = vmul.f32 %v2882, %v2906
      %v2916 = vmul.f32 %v2883, %v2906
      %v2917 = vmul.f32 %v2884, %v2906
      %v2918 = vmul.f32 %v2885, %v2906
      %v2919 = vmul.f32 %v2886, %v2906
      %v2920 = vmul.f32 %v2887, %v2906
      %v2921 = vmul.f32 %v2888, %v2906
      %v2922 = vmul.f32 %v2889, %v2906
      %v2923 = vmul.f32 %v2890, %v2906
      %v2924 = vmul.f32 %v2891, %v2906
      %v2925 = vmul.f32 %v2892, %v2906
      %v2926 = vmul.f32 %v2893, %v2906
      %v2927 = vmul.f32 %v2894, %v2906
      %v2928 = vmul.f32 %v2895, %v2906
      %v2929 = vmul.f32 %v2896, %v2906
      %v2930 = vmul.f32 %v2897, %v2906
      %v2931 = vmul.f32 %v2898, %v2906
      %v2932 = vmul.f32 %v2899, %v2906
      %v2933 = vmul.f32 %v2900, %v2906
      %v2934 = vmul.f32 %v2901, %v2906
      %v2935 = vmul.f32 %v2902, %v2906
      %v2936 = vmul.f32 %v2903, %v2906
      %v2937 = vmul.f32 %v2904, %v2906
      %v2938 = vmul.f32 %v2905, %v2906
      %v2939 = vadd.f32 %v2842, %v2907
      %v2940 = vadd.f32 %v2843, %v2908
      %v2941 = vadd.f32 %v2844, %v2909
      %v2942 = vadd.f32 %v2845, %v2910
      %v2943 = vadd.f32 %v2846, %v2911
      %v2944 = vadd.f32 %v2847, %v2912
      %v2945 = vadd.f32 %v2848, %v2913
      %v2946 = vadd.f32 %v2849, %v2914
      %v2947 = vadd.f32 %v2850, %v2915
      %v2948 = vadd.f32 %v2851, %v2916
      %v2949 = vadd.f32 %v2852, %v2917
      %v2950 = vadd.f32 %v2853, %v2918
      %v2951 = vadd.f32 %v2854, %v2919
      %v2952 = vadd.f32 %v2855, %v2920
      %v2953 = vadd.f32 %v2856, %v2921
      %v2954 = vadd.f32 %v2857, %v2922
      %v2955 = vadd.f32 %v2858, %v2923
      %v2956 = vadd.f32 %v2859, %v2924
      %v2957 = vadd.f32 %v2860, %v2925
      %v2958 = vadd.f32 %v2861, %v2926
      %v2959 = vadd.f32 %v2862, %v2927
      %v2960 = vadd.f32 %v2863, %v2928
      %v2961 = vadd.f32 %v2864, %v2929
      %v2962 = vadd.f32 %v2865, %v2930
      %v2963 = vadd.f32 %v2866, %v2931
      %v2964 = vadd.f32 %v2867, %v2932
      %v2965 = vadd.f32 %v2868, %v2933
      %v2966 = vadd.f32 %v2869, %v2934
      %v2967 = vadd.f32 %v2870, %v2935
      %v2968 = vadd.f32 %v2871, %v2936
      %v2969 = vadd.f32 %v2872, %v2937
      %v2970 = vadd.f32 %v2873, %v2938
      %s2971 = scalar_lea.vmem %s234, 96
      %v2972 = vld [vmem:[%s2971] sm:$0xff]
      %v2973 = vld [vmem:[%s2971 + $0x8] sm:$0xff]
      %v2974 = vld [vmem:[%s2971 + $0x18] sm:$0xff]
      %v2975 = vld [vmem:[%s2971 + $0x20] sm:$0xff]
      %v2976 = vld [vmem:[%s2971 + $0x30] sm:$0xff]
      %v2977 = vld [vmem:[%s2971 + $0x38] sm:$0xff]
      %v2978 = vld [vmem:[%s2971 + $0x48] sm:$0xff]
      %v2979 = vld [vmem:[%s2971 + $0x50] sm:$0xff]
      %v2980 = vld [vmem:[%s2971 + $0x60] sm:$0xff]
      %v2981 = vld [vmem:[%s2971 + $0x68] sm:$0xff]
      %v2982 = vld [vmem:[%s2971 + $0x78] sm:$0xff]
      %v2983 = vld [vmem:[%s2971 + $0x80] sm:$0xff]
      %v2984 = vld [vmem:[%s2971 + $0x90] sm:$0xff]
      %v2985 = vld [vmem:[%s2971 + $0x98] sm:$0xff]
      %v2986 = vld [vmem:[%s2971 + $0xa8] sm:$0xff]
      %v2987 = vld [vmem:[%s2971 + $0xb0] sm:$0xff]
      %v2988 = vld [vmem:[%s2971 + $0xc0] sm:$0xff]
      %v2989 = vld [vmem:[%s2971 + $0xc8] sm:$0xff]
      %v2990 = vld [vmem:[%s2971 + $0xd8] sm:$0xff]
      %v2991 = vld [vmem:[%s2971 + $0xe0] sm:$0xff]
      %v2992 = vld [vmem:[%s2971 + $0xf0] sm:$0xff]
      %v2993 = vld [vmem:[%s2971 + $0xf8] sm:$0xff]
      %v2994 = vld [vmem:[%s2971 + $0x108] sm:$0xff]
      %v2995 = vld [vmem:[%s2971 + $0x110] sm:$0xff]
      %v2996 = vld [vmem:[%s2971 + $0x120] sm:$0xff]
      %v2997 = vld [vmem:[%s2971 + $0x128] sm:$0xff]
      %v2998 = vld [vmem:[%s2971 + $0x138] sm:$0xff]
      %v2999 = vld [vmem:[%s2971 + $0x140] sm:$0xff]
      %v3000 = vld [vmem:[%s2971 + $0x150] sm:$0xff]
      %v3001 = vld [vmem:[%s2971 + $0x158] sm:$0xff]
      %v3002 = vld [vmem:[%s2971 + $0x168] sm:$0xff]
      %v3003 = vld [vmem:[%s2971 + $0x170] sm:$0xff]
      %v3004 = vperm.slane %v280, 4
      %v3005 = vmul.f32 %v2972, %v3004
      %v3006 = vmul.f32 %v2973, %v3004
      %v3007 = vmul.f32 %v2974, %v3004
      %v3008 = vmul.f32 %v2975, %v3004
      %v3009 = vmul.f32 %v2976, %v3004
      %v3010 = vmul.f32 %v2977, %v3004
      %v3011 = vmul.f32 %v2978, %v3004
      %v3012 = vmul.f32 %v2979, %v3004
      %v3013 = vmul.f32 %v2980, %v3004
      %v3014 = vmul.f32 %v2981, %v3004
      %v3015 = vmul.f32 %v2982, %v3004
      %v3016 = vmul.f32 %v2983, %v3004
      %v3017 = vmul.f32 %v2984, %v3004
      %v3018 = vmul.f32 %v2985, %v3004
      %v3019 = vmul.f32 %v2986, %v3004
      %v3020 = vmul.f32 %v2987, %v3004
      %v3021 = vmul.f32 %v2988, %v3004
      %v3022 = vmul.f32 %v2989, %v3004
      %v3023 = vmul.f32 %v2990, %v3004
      %v3024 = vmul.f32 %v2991, %v3004
      %v3025 = vmul.f32 %v2992, %v3004
      %v3026 = vmul.f32 %v2993, %v3004
      %v3027 = vmul.f32 %v2994, %v3004
      %v3028 = vmul.f32 %v2995, %v3004
      %v3029 = vmul.f32 %v2996, %v3004
      %v3030 = vmul.f32 %v2997, %v3004
      %v3031 = vmul.f32 %v2998, %v3004
      %v3032 = vmul.f32 %v2999, %v3004
      %v3033 = vmul.f32 %v3000, %v3004
      %v3034 = vmul.f32 %v3001, %v3004
      %v3035 = vmul.f32 %v3002, %v3004
      %v3036 = vmul.f32 %v3003, %v3004
      %v3037 = vadd.f32 %v2939, %v3005
      %v3038 = vadd.f32 %v2940, %v3006
      %v3039 = vadd.f32 %v2941, %v3007
      %v3040 = vadd.f32 %v2942, %v3008
      %v3041 = vadd.f32 %v2943, %v3009
      %v3042 = vadd.f32 %v2944, %v3010
      %v3043 = vadd.f32 %v2945, %v3011
      %v3044 = vadd.f32 %v2946, %v3012
      %v3045 = vadd.f32 %v2947, %v3013
      %v3046 = vadd.f32 %v2948, %v3014
      %v3047 = vadd.f32 %v2949, %v3015
      %v3048 = vadd.f32 %v2950, %v3016
      %v3049 = vadd.f32 %v2951, %v3017
      %v3050 = vadd.f32 %v2952, %v3018
      %v3051 = vadd.f32 %v2953, %v3019
      %v3052 = vadd.f32 %v2954, %v3020
      %v3053 = vadd.f32 %v2955, %v3021
      %v3054 = vadd.f32 %v2956, %v3022
      %v3055 = vadd.f32 %v2957, %v3023
      %v3056 = vadd.f32 %v2958, %v3024
      %v3057 = vadd.f32 %v2959, %v3025
      %v3058 = vadd.f32 %v2960, %v3026
      %v3059 = vadd.f32 %v2961, %v3027
      %v3060 = vadd.f32 %v2962, %v3028
      %v3061 = vadd.f32 %v2963, %v3029
      %v3062 = vadd.f32 %v2964, %v3030
      %v3063 = vadd.f32 %v2965, %v3031
      %v3064 = vadd.f32 %v2966, %v3032
      %v3065 = vadd.f32 %v2967, %v3033
      %v3066 = vadd.f32 %v2968, %v3034
      %v3067 = vadd.f32 %v2969, %v3035
      %v3068 = vadd.f32 %v2970, %v3036
      %v3069 = vld [vmem:[%s2971 + $0x1] sm:$0xff]
      %v3070 = vld [vmem:[%s2971 + $0x9] sm:$0xff]
      %v3071 = vld [vmem:[%s2971 + $0x19] sm:$0xff]
      %v3072 = vld [vmem:[%s2971 + $0x21] sm:$0xff]
      %v3073 = vld [vmem:[%s2971 + $0x31] sm:$0xff]
      %v3074 = vld [vmem:[%s2971 + $0x39] sm:$0xff]
      %v3075 = vld [vmem:[%s2971 + $0x49] sm:$0xff]
      %v3076 = vld [vmem:[%s2971 + $0x51] sm:$0xff]
      %v3077 = vld [vmem:[%s2971 + $0x61] sm:$0xff]
      %v3078 = vld [vmem:[%s2971 + $0x69] sm:$0xff]
      %v3079 = vld [vmem:[%s2971 + $0x79] sm:$0xff]
      %v3080 = vld [vmem:[%s2971 + $0x81] sm:$0xff]
      %v3081 = vld [vmem:[%s2971 + $0x91] sm:$0xff]
      %v3082 = vld [vmem:[%s2971 + $0x99] sm:$0xff]
      %v3083 = vld [vmem:[%s2971 + $0xa9] sm:$0xff]
      %v3084 = vld [vmem:[%s2971 + $0xb1] sm:$0xff]
      %v3085 = vld [vmem:[%s2971 + $0xc1] sm:$0xff]
      %v3086 = vld [vmem:[%s2971 + $0xc9] sm:$0xff]
      %v3087 = vld [vmem:[%s2971 + $0xd9] sm:$0xff]
      %v3088 = vld [vmem:[%s2971 + $0xe1] sm:$0xff]
      %v3089 = vld [vmem:[%s2971 + $0xf1] sm:$0xff]
      %v3090 = vld [vmem:[%s2971 + $0xf9] sm:$0xff]
      %v3091 = vld [vmem:[%s2971 + $0x109] sm:$0xff]
      %v3092 = vld [vmem:[%s2971 + $0x111] sm:$0xff]
      %v3093 = vld [vmem:[%s2971 + $0x121] sm:$0xff]
      %v3094 = vld [vmem:[%s2971 + $0x129] sm:$0xff]
      %v3095 = vld [vmem:[%s2971 + $0x139] sm:$0xff]
      %v3096 = vld [vmem:[%s2971 + $0x141] sm:$0xff]
      %v3097 = vld [vmem:[%s2971 + $0x151] sm:$0xff]
      %v3098 = vld [vmem:[%s2971 + $0x159] sm:$0xff]
      %v3099 = vld [vmem:[%s2971 + $0x169] sm:$0xff]
      %v3100 = vld [vmem:[%s2971 + $0x171] sm:$0xff]
      %v3101 = vperm.slane %v280, 5
      %v3102 = vmul.f32 %v3069, %v3101
      %v3103 = vmul.f32 %v3070, %v3101
      %v3104 = vmul.f32 %v3071, %v3101
      %v3105 = vmul.f32 %v3072, %v3101
      %v3106 = vmul.f32 %v3073, %v3101
      %v3107 = vmul.f32 %v3074, %v3101
      %v3108 = vmul.f32 %v3075, %v3101
      %v3109 = vmul.f32 %v3076, %v3101
      %v3110 = vmul.f32 %v3077, %v3101
      %v3111 = vmul.f32 %v3078, %v3101
      %v3112 = vmul.f32 %v3079, %v3101
      %v3113 = vmul.f32 %v3080, %v3101
      %v3114 = vmul.f32 %v3081, %v3101
      %v3115 = vmul.f32 %v3082, %v3101
      %v3116 = vmul.f32 %v3083, %v3101
      %v3117 = vmul.f32 %v3084, %v3101
      %v3118 = vmul.f32 %v3085, %v3101
      %v3119 = vmul.f32 %v3086, %v3101
      %v3120 = vmul.f32 %v3087, %v3101
      %v3121 = vmul.f32 %v3088, %v3101
      %v3122 = vmul.f32 %v3089, %v3101
      %v3123 = vmul.f32 %v3090, %v3101
      %v3124 = vmul.f32 %v3091, %v3101
      %v3125 = vmul.f32 %v3092, %v3101
      %v3126 = vmul.f32 %v3093, %v3101
      %v3127 = vmul.f32 %v3094, %v3101
      %v3128 = vmul.f32 %v3095, %v3101
      %v3129 = vmul.f32 %v3096, %v3101
      %v3130 = vmul.f32 %v3097, %v3101
      %v3131 = vmul.f32 %v3098, %v3101
      %v3132 = vmul.f32 %v3099, %v3101
      %v3133 = vmul.f32 %v3100, %v3101
      %v3134 = vadd.f32 %v3037, %v3102
      %v3135 = vadd.f32 %v3038, %v3103
      %v3136 = vadd.f32 %v3039, %v3104
      %v3137 = vadd.f32 %v3040, %v3105
      %v3138 = vadd.f32 %v3041, %v3106
      %v3139 = vadd.f32 %v3042, %v3107
      %v3140 = vadd.f32 %v3043, %v3108
      %v3141 = vadd.f32 %v3044, %v3109
      %v3142 = vadd.f32 %v3045, %v3110
      %v3143 = vadd.f32 %v3046, %v3111
      %v3144 = vadd.f32 %v3047, %v3112
      %v3145 = vadd.f32 %v3048, %v3113
      %v3146 = vadd.f32 %v3049, %v3114
      %v3147 = vadd.f32 %v3050, %v3115
      %v3148 = vadd.f32 %v3051, %v3116
      %v3149 = vadd.f32 %v3052, %v3117
      %v3150 = vadd.f32 %v3053, %v3118
      %v3151 = vadd.f32 %v3054, %v3119
      %v3152 = vadd.f32 %v3055, %v3120
      %v3153 = vadd.f32 %v3056, %v3121
      %v3154 = vadd.f32 %v3057, %v3122
      %v3155 = vadd.f32 %v3058, %v3123
      %v3156 = vadd.f32 %v3059, %v3124
      %v3157 = vadd.f32 %v3060, %v3125
      %v3158 = vadd.f32 %v3061, %v3126
      %v3159 = vadd.f32 %v3062, %v3127
      %v3160 = vadd.f32 %v3063, %v3128
      %v3161 = vadd.f32 %v3064, %v3129
      %v3162 = vadd.f32 %v3065, %v3130
      %v3163 = vadd.f32 %v3066, %v3131
      %v3164 = vadd.f32 %v3067, %v3132
      %v3165 = vadd.f32 %v3068, %v3133
      %v3166 = vld [vmem:[%s2971 + $0x2] sm:$0xff]
      %v3167 = vld [vmem:[%s2971 + $0xa] sm:$0xff]
      %v3168 = vld [vmem:[%s2971 + $0x1a] sm:$0xff]
      %v3169 = vld [vmem:[%s2971 + $0x22] sm:$0xff]
      %v3170 = vld [vmem:[%s2971 + $0x32] sm:$0xff]
      %v3171 = vld [vmem:[%s2971 + $0x3a] sm:$0xff]
      %v3172 = vld [vmem:[%s2971 + $0x4a] sm:$0xff]
      %v3173 = vld [vmem:[%s2971 + $0x52] sm:$0xff]
      %v3174 = vld [vmem:[%s2971 + $0x62] sm:$0xff]
      %v3175 = vld [vmem:[%s2971 + $0x6a] sm:$0xff]
      %v3176 = vld [vmem:[%s2971 + $0x7a] sm:$0xff]
      %v3177 = vld [vmem:[%s2971 + $0x82] sm:$0xff]
      %v3178 = vld [vmem:[%s2971 + $0x92] sm:$0xff]
      %v3179 = vld [vmem:[%s2971 + $0x9a] sm:$0xff]
      %v3180 = vld [vmem:[%s2971 + $0xaa] sm:$0xff]
      %v3181 = vld [vmem:[%s2971 + $0xb2] sm:$0xff]
      %v3182 = vld [vmem:[%s2971 + $0xc2] sm:$0xff]
      %v3183 = vld [vmem:[%s2971 + $0xca] sm:$0xff]
      %v3184 = vld [vmem:[%s2971 + $0xda] sm:$0xff]
      %v3185 = vld [vmem:[%s2971 + $0xe2] sm:$0xff]
      %v3186 = vld [vmem:[%s2971 + $0xf2] sm:$0xff]
      %v3187 = vld [vmem:[%s2971 + $0xfa] sm:$0xff]
      %v3188 = vld [vmem:[%s2971 + $0x10a] sm:$0xff]
      %v3189 = vld [vmem:[%s2971 + $0x112] sm:$0xff]
      %v3190 = vld [vmem:[%s2971 + $0x122] sm:$0xff]
      %v3191 = vld [vmem:[%s2971 + $0x12a] sm:$0xff]
      %v3192 = vld [vmem:[%s2971 + $0x13a] sm:$0xff]
      %v3193 = vld [vmem:[%s2971 + $0x142] sm:$0xff]
      %v3194 = vld [vmem:[%s2971 + $0x152] sm:$0xff]
      %v3195 = vld [vmem:[%s2971 + $0x15a] sm:$0xff]
      %v3196 = vld [vmem:[%s2971 + $0x16a] sm:$0xff]
      %v3197 = vld [vmem:[%s2971 + $0x172] sm:$0xff]
      %v3198 = vperm.slane %v280, 6
      %v3199 = vmul.f32 %v3166, %v3198
      %v3200 = vmul.f32 %v3167, %v3198
      %v3201 = vmul.f32 %v3168, %v3198
      %v3202 = vmul.f32 %v3169, %v3198
      %v3203 = vmul.f32 %v3170, %v3198
      %v3204 = vmul.f32 %v3171, %v3198
      %v3205 = vmul.f32 %v3172, %v3198
      %v3206 = vmul.f32 %v3173, %v3198
      %v3207 = vmul.f32 %v3174, %v3198
      %v3208 = vmul.f32 %v3175, %v3198
      %v3209 = vmul.f32 %v3176, %v3198
      %v3210 = vmul.f32 %v3177, %v3198
      %v3211 = vmul.f32 %v3178, %v3198
      %v3212 = vmul.f32 %v3179, %v3198
      %v3213 = vmul.f32 %v3180, %v3198
      %v3214 = vmul.f32 %v3181, %v3198
      %v3215 = vmul.f32 %v3182, %v3198
      %v3216 = vmul.f32 %v3183, %v3198
      %v3217 = vmul.f32 %v3184, %v3198
      %v3218 = vmul.f32 %v3185, %v3198
      %v3219 = vmul.f32 %v3186, %v3198
      %v3220 = vmul.f32 %v3187, %v3198
      %v3221 = vmul.f32 %v3188, %v3198
      %v3222 = vmul.f32 %v3189, %v3198
      %v3223 = vmul.f32 %v3190, %v3198
      %v3224 = vmul.f32 %v3191, %v3198
      %v3225 = vmul.f32 %v3192, %v3198
      %v3226 = vmul.f32 %v3193, %v3198
      %v3227 = vmul.f32 %v3194, %v3198
      %v3228 = vmul.f32 %v3195, %v3198
      %v3229 = vmul.f32 %v3196, %v3198
      %v3230 = vmul.f32 %v3197, %v3198
      %v3231 = vadd.f32 %v3134, %v3199
      %v3232 = vadd.f32 %v3135, %v3200
      %v3233 = vadd.f32 %v3136, %v3201
      %v3234 = vadd.f32 %v3137, %v3202
      %v3235 = vadd.f32 %v3138, %v3203
      %v3236 = vadd.f32 %v3139, %v3204
      %v3237 = vadd.f32 %v3140, %v3205
      %v3238 = vadd.f32 %v3141, %v3206
      %v3239 = vadd.f32 %v3142, %v3207
      %v3240 = vadd.f32 %v3143, %v3208
      %v3241 = vadd.f32 %v3144, %v3209
      %v3242 = vadd.f32 %v3145, %v3210
      %v3243 = vadd.f32 %v3146, %v3211
      %v3244 = vadd.f32 %v3147, %v3212
      %v3245 = vadd.f32 %v3148, %v3213
      %v3246 = vadd.f32 %v3149, %v3214
      %v3247 = vadd.f32 %v3150, %v3215
      %v3248 = vadd.f32 %v3151, %v3216
      %v3249 = vadd.f32 %v3152, %v3217
      %v3250 = vadd.f32 %v3153, %v3218
      %v3251 = vadd.f32 %v3154, %v3219
      %v3252 = vadd.f32 %v3155, %v3220
      %v3253 = vadd.f32 %v3156, %v3221
      %v3254 = vadd.f32 %v3157, %v3222
      %v3255 = vadd.f32 %v3158, %v3223
      %v3256 = vadd.f32 %v3159, %v3224
      %v3257 = vadd.f32 %v3160, %v3225
      %v3258 = vadd.f32 %v3161, %v3226
      %v3259 = vadd.f32 %v3162, %v3227
      %v3260 = vadd.f32 %v3163, %v3228
      %v3261 = vadd.f32 %v3164, %v3229
      %v3262 = vadd.f32 %v3165, %v3230
      %v3263 = vld [vmem:[%s2971 + $0x3] sm:$0xff]
      %v3264 = vld [vmem:[%s2971 + $0xb] sm:$0xff]
      %v3265 = vld [vmem:[%s2971 + $0x1b] sm:$0xff]
      %v3266 = vld [vmem:[%s2971 + $0x23] sm:$0xff]
      %v3267 = vld [vmem:[%s2971 + $0x33] sm:$0xff]
      %v3268 = vld [vmem:[%s2971 + $0x3b] sm:$0xff]
      %v3269 = vld [vmem:[%s2971 + $0x4b] sm:$0xff]
      %v3270 = vld [vmem:[%s2971 + $0x53] sm:$0xff]
      %v3271 = vld [vmem:[%s2971 + $0x63] sm:$0xff]
      %v3272 = vld [vmem:[%s2971 + $0x6b] sm:$0xff]
      %v3273 = vld [vmem:[%s2971 + $0x7b] sm:$0xff]
      %v3274 = vld [vmem:[%s2971 + $0x83] sm:$0xff]
      %v3275 = vld [vmem:[%s2971 + $0x93] sm:$0xff]
      %v3276 = vld [vmem:[%s2971 + $0x9b] sm:$0xff]
      %v3277 = vld [vmem:[%s2971 + $0xab] sm:$0xff]
      %v3278 = vld [vmem:[%s2971 + $0xb3] sm:$0xff]
      %v3279 = vld [vmem:[%s2971 + $0xc3] sm:$0xff]
      %v3280 = vld [vmem:[%s2971 + $0xcb] sm:$0xff]
      %v3281 = vld [vmem:[%s2971 + $0xdb] sm:$0xff]
      %v3282 = vld [vmem:[%s2971 + $0xe3] sm:$0xff]
      %v3283 = vld [vmem:[%s2971 + $0xf3] sm:$0xff]
      %v3284 = vld [vmem:[%s2971 + $0xfb] sm:$0xff]
      %v3285 = vld [vmem:[%s2971 + $0x10b] sm:$0xff]
      %v3286 = vld [vmem:[%s2971 + $0x113] sm:$0xff]
      %v3287 = vld [vmem:[%s2971 + $0x123] sm:$0xff]
      %v3288 = vld [vmem:[%s2971 + $0x12b] sm:$0xff]
      %v3289 = vld [vmem:[%s2971 + $0x13b] sm:$0xff]
      %v3290 = vld [vmem:[%s2971 + $0x143] sm:$0xff]
      %v3291 = vld [vmem:[%s2971 + $0x153] sm:$0xff]
      %v3292 = vld [vmem:[%s2971 + $0x15b] sm:$0xff]
      %v3293 = vld [vmem:[%s2971 + $0x16b] sm:$0xff]
      %v3294 = vld [vmem:[%s2971 + $0x173] sm:$0xff]
      %v3295 = vperm.slane %v280, 7
      %v3296 = vmul.f32 %v3263, %v3295
      %v3297 = vmul.f32 %v3264, %v3295
      %v3298 = vmul.f32 %v3265, %v3295
      %v3299 = vmul.f32 %v3266, %v3295
      %v3300 = vmul.f32 %v3267, %v3295
      %v3301 = vmul.f32 %v3268, %v3295
      %v3302 = vmul.f32 %v3269, %v3295
      %v3303 = vmul.f32 %v3270, %v3295
      %v3304 = vmul.f32 %v3271, %v3295
      %v3305 = vmul.f32 %v3272, %v3295
      %v3306 = vmul.f32 %v3273, %v3295
      %v3307 = vmul.f32 %v3274, %v3295
      %v3308 = vmul.f32 %v3275, %v3295
      %v3309 = vmul.f32 %v3276, %v3295
      %v3310 = vmul.f32 %v3277, %v3295
      %v3311 = vmul.f32 %v3278, %v3295
      %v3312 = vmul.f32 %v3279, %v3295
      %v3313 = vmul.f32 %v3280, %v3295
      %v3314 = vmul.f32 %v3281, %v3295
      %v3315 = vmul.f32 %v3282, %v3295
      %v3316 = vmul.f32 %v3283, %v3295
      %v3317 = vmul.f32 %v3284, %v3295
      %v3318 = vmul.f32 %v3285, %v3295
      %v3319 = vmul.f32 %v3286, %v3295
      %v3320 = vmul.f32 %v3287, %v3295
      %v3321 = vmul.f32 %v3288, %v3295
      %v3322 = vmul.f32 %v3289, %v3295
      %v3323 = vmul.f32 %v3290, %v3295
      %v3324 = vmul.f32 %v3291, %v3295
      %v3325 = vmul.f32 %v3292, %v3295
      %v3326 = vmul.f32 %v3293, %v3295
      %v3327 = vmul.f32 %v3294, %v3295
      %v3328 = vadd.f32 %v3231, %v3296
      %v3329 = vadd.f32 %v3232, %v3297
      %v3330 = vadd.f32 %v3233, %v3298
      %v3331 = vadd.f32 %v3234, %v3299
      %v3332 = vadd.f32 %v3235, %v3300
      %v3333 = vadd.f32 %v3236, %v3301
      %v3334 = vadd.f32 %v3237, %v3302
      %v3335 = vadd.f32 %v3238, %v3303
      %v3336 = vadd.f32 %v3239, %v3304
      %v3337 = vadd.f32 %v3240, %v3305
      %v3338 = vadd.f32 %v3241, %v3306
      %v3339 = vadd.f32 %v3242, %v3307
      %v3340 = vadd.f32 %v3243, %v3308
      %v3341 = vadd.f32 %v3244, %v3309
      %v3342 = vadd.f32 %v3245, %v3310
      %v3343 = vadd.f32 %v3246, %v3311
      %v3344 = vadd.f32 %v3247, %v3312
      %v3345 = vadd.f32 %v3248, %v3313
      %v3346 = vadd.f32 %v3249, %v3314
      %v3347 = vadd.f32 %v3250, %v3315
      %v3348 = vadd.f32 %v3251, %v3316
      %v3349 = vadd.f32 %v3252, %v3317
      %v3350 = vadd.f32 %v3253, %v3318
      %v3351 = vadd.f32 %v3254, %v3319
      %v3352 = vadd.f32 %v3255, %v3320
      %v3353 = vadd.f32 %v3256, %v3321
      %v3354 = vadd.f32 %v3257, %v3322
      %v3355 = vadd.f32 %v3258, %v3323
      %v3356 = vadd.f32 %v3259, %v3324
      %v3357 = vadd.f32 %v3260, %v3325
      %v3358 = vadd.f32 %v3261, %v3326
      %v3359 = vadd.f32 %v3262, %v3327
      %v3360 = vld [vmem:[%s2971 + $0x4] sm:$0xff]
      %v3361 = vld [vmem:[%s2971 + $0xc] sm:$0xff]
      %v3362 = vld [vmem:[%s2971 + $0x1c] sm:$0xff]
      %v3363 = vld [vmem:[%s2971 + $0x24] sm:$0xff]
      %v3364 = vld [vmem:[%s2971 + $0x34] sm:$0xff]
      %v3365 = vld [vmem:[%s2971 + $0x3c] sm:$0xff]
      %v3366 = vld [vmem:[%s2971 + $0x4c] sm:$0xff]
      %v3367 = vld [vmem:[%s2971 + $0x54] sm:$0xff]
      %v3368 = vld [vmem:[%s2971 + $0x64] sm:$0xff]
      %v3369 = vld [vmem:[%s2971 + $0x6c] sm:$0xff]
      %v3370 = vld [vmem:[%s2971 + $0x7c] sm:$0xff]
      %v3371 = vld [vmem:[%s2971 + $0x84] sm:$0xff]
      %v3372 = vld [vmem:[%s2971 + $0x94] sm:$0xff]
      %v3373 = vld [vmem:[%s2971 + $0x9c] sm:$0xff]
      %v3374 = vld [vmem:[%s2971 + $0xac] sm:$0xff]
      %v3375 = vld [vmem:[%s2971 + $0xb4] sm:$0xff]
      %v3376 = vld [vmem:[%s2971 + $0xc4] sm:$0xff]
      %v3377 = vld [vmem:[%s2971 + $0xcc] sm:$0xff]
      %v3378 = vld [vmem:[%s2971 + $0xdc] sm:$0xff]
      %v3379 = vld [vmem:[%s2971 + $0xe4] sm:$0xff]
      %v3380 = vld [vmem:[%s2971 + $0xf4] sm:$0xff]
      %v3381 = vld [vmem:[%s2971 + $0xfc] sm:$0xff]
      %v3382 = vld [vmem:[%s2971 + $0x10c] sm:$0xff]
      %v3383 = vld [vmem:[%s2971 + $0x114] sm:$0xff]
      %v3384 = vld [vmem:[%s2971 + $0x124] sm:$0xff]
      %v3385 = vld [vmem:[%s2971 + $0x12c] sm:$0xff]
      %v3386 = vld [vmem:[%s2971 + $0x13c] sm:$0xff]
      %v3387 = vld [vmem:[%s2971 + $0x144] sm:$0xff]
      %v3388 = vld [vmem:[%s2971 + $0x154] sm:$0xff]
      %v3389 = vld [vmem:[%s2971 + $0x15c] sm:$0xff]
      %v3390 = vld [vmem:[%s2971 + $0x16c] sm:$0xff]
      %v3391 = vld [vmem:[%s2971 + $0x174] sm:$0xff]
      %v3392 = vperm.slane %v281, 0
      %v3393 = vmul.f32 %v3360, %v3392
      %v3394 = vmul.f32 %v3361, %v3392
      %v3395 = vmul.f32 %v3362, %v3392
      %v3396 = vmul.f32 %v3363, %v3392
      %v3397 = vmul.f32 %v3364, %v3392
      %v3398 = vmul.f32 %v3365, %v3392
      %v3399 = vmul.f32 %v3366, %v3392
      %v3400 = vmul.f32 %v3367, %v3392
      %v3401 = vmul.f32 %v3368, %v3392
      %v3402 = vmul.f32 %v3369, %v3392
      %v3403 = vmul.f32 %v3370, %v3392
      %v3404 = vmul.f32 %v3371, %v3392
      %v3405 = vmul.f32 %v3372, %v3392
      %v3406 = vmul.f32 %v3373, %v3392
      %v3407 = vmul.f32 %v3374, %v3392
      %v3408 = vmul.f32 %v3375, %v3392
      %v3409 = vmul.f32 %v3376, %v3392
      %v3410 = vmul.f32 %v3377, %v3392
      %v3411 = vmul.f32 %v3378, %v3392
      %v3412 = vmul.f32 %v3379, %v3392
      %v3413 = vmul.f32 %v3380, %v3392
      %v3414 = vmul.f32 %v3381, %v3392
      %v3415 = vmul.f32 %v3382, %v3392
      %v3416 = vmul.f32 %v3383, %v3392
      %v3417 = vmul.f32 %v3384, %v3392
      %v3418 = vmul.f32 %v3385, %v3392
      %v3419 = vmul.f32 %v3386, %v3392
      %v3420 = vmul.f32 %v3387, %v3392
      %v3421 = vmul.f32 %v3388, %v3392
      %v3422 = vmul.f32 %v3389, %v3392
      %v3423 = vmul.f32 %v3390, %v3392
      %v3424 = vmul.f32 %v3391, %v3392
      %v3425 = vadd.f32 %v3328, %v3393
      %v3426 = vadd.f32 %v3329, %v3394
      %v3427 = vadd.f32 %v3330, %v3395
      %v3428 = vadd.f32 %v3331, %v3396
      %v3429 = vadd.f32 %v3332, %v3397
      %v3430 = vadd.f32 %v3333, %v3398
      %v3431 = vadd.f32 %v3334, %v3399
      %v3432 = vadd.f32 %v3335, %v3400
      %v3433 = vadd.f32 %v3336, %v3401
      %v3434 = vadd.f32 %v3337, %v3402
      %v3435 = vadd.f32 %v3338, %v3403
      %v3436 = vadd.f32 %v3339, %v3404
      %v3437 = vadd.f32 %v3340, %v3405
      %v3438 = vadd.f32 %v3341, %v3406
      %v3439 = vadd.f32 %v3342, %v3407
      %v3440 = vadd.f32 %v3343, %v3408
      %v3441 = vadd.f32 %v3344, %v3409
      %v3442 = vadd.f32 %v3345, %v3410
      %v3443 = vadd.f32 %v3346, %v3411
      %v3444 = vadd.f32 %v3347, %v3412
      %v3445 = vadd.f32 %v3348, %v3413
      %v3446 = vadd.f32 %v3349, %v3414
      %v3447 = vadd.f32 %v3350, %v3415
      %v3448 = vadd.f32 %v3351, %v3416
      %v3449 = vadd.f32 %v3352, %v3417
      %v3450 = vadd.f32 %v3353, %v3418
      %v3451 = vadd.f32 %v3354, %v3419
      %v3452 = vadd.f32 %v3355, %v3420
      %v3453 = vadd.f32 %v3356, %v3421
      %v3454 = vadd.f32 %v3357, %v3422
      %v3455 = vadd.f32 %v3358, %v3423
      %v3456 = vadd.f32 %v3359, %v3424
      %v3457 = vld [vmem:[%s2971 + $0x5] sm:$0xff]
      %v3458 = vld [vmem:[%s2971 + $0xd] sm:$0xff]
      %v3459 = vld [vmem:[%s2971 + $0x1d] sm:$0xff]
      %v3460 = vld [vmem:[%s2971 + $0x25] sm:$0xff]
      %v3461 = vld [vmem:[%s2971 + $0x35] sm:$0xff]
      %v3462 = vld [vmem:[%s2971 + $0x3d] sm:$0xff]
      %v3463 = vld [vmem:[%s2971 + $0x4d] sm:$0xff]
      %v3464 = vld [vmem:[%s2971 + $0x55] sm:$0xff]
      %v3465 = vld [vmem:[%s2971 + $0x65] sm:$0xff]
      %v3466 = vld [vmem:[%s2971 + $0x6d] sm:$0xff]
      %v3467 = vld [vmem:[%s2971 + $0x7d] sm:$0xff]
      %v3468 = vld [vmem:[%s2971 + $0x85] sm:$0xff]
      %v3469 = vld [vmem:[%s2971 + $0x95] sm:$0xff]
      %v3470 = vld [vmem:[%s2971 + $0x9d] sm:$0xff]
      %v3471 = vld [vmem:[%s2971 + $0xad] sm:$0xff]
      %v3472 = vld [vmem:[%s2971 + $0xb5] sm:$0xff]
      %v3473 = vld [vmem:[%s2971 + $0xc5] sm:$0xff]
      %v3474 = vld [vmem:[%s2971 + $0xcd] sm:$0xff]
      %v3475 = vld [vmem:[%s2971 + $0xdd] sm:$0xff]
      %v3476 = vld [vmem:[%s2971 + $0xe5] sm:$0xff]
      %v3477 = vld [vmem:[%s2971 + $0xf5] sm:$0xff]
      %v3478 = vld [vmem:[%s2971 + $0xfd] sm:$0xff]
      %v3479 = vld [vmem:[%s2971 + $0x10d] sm:$0xff]
      %v3480 = vld [vmem:[%s2971 + $0x115] sm:$0xff]
      %v3481 = vld [vmem:[%s2971 + $0x125] sm:$0xff]
      %v3482 = vld [vmem:[%s2971 + $0x12d] sm:$0xff]
      %v3483 = vld [vmem:[%s2971 + $0x13d] sm:$0xff]
      %v3484 = vld [vmem:[%s2971 + $0x145] sm:$0xff]
      %v3485 = vld [vmem:[%s2971 + $0x155] sm:$0xff]
      %v3486 = vld [vmem:[%s2971 + $0x15d] sm:$0xff]
      %v3487 = vld [vmem:[%s2971 + $0x16d] sm:$0xff]
      %v3488 = vld [vmem:[%s2971 + $0x175] sm:$0xff]
      %v3489 = vperm.slane %v281, 1
      %v3490 = vmul.f32 %v3457, %v3489
      %v3491 = vmul.f32 %v3458, %v3489
      %v3492 = vmul.f32 %v3459, %v3489
      %v3493 = vmul.f32 %v3460, %v3489
      %v3494 = vmul.f32 %v3461, %v3489
      %v3495 = vmul.f32 %v3462, %v3489
      %v3496 = vmul.f32 %v3463, %v3489
      %v3497 = vmul.f32 %v3464, %v3489
      %v3498 = vmul.f32 %v3465, %v3489
      %v3499 = vmul.f32 %v3466, %v3489
      %v3500 = vmul.f32 %v3467, %v3489
      %v3501 = vmul.f32 %v3468, %v3489
      %v3502 = vmul.f32 %v3469, %v3489
      %v3503 = vmul.f32 %v3470, %v3489
      %v3504 = vmul.f32 %v3471, %v3489
      %v3505 = vmul.f32 %v3472, %v3489
      %v3506 = vmul.f32 %v3473, %v3489
      %v3507 = vmul.f32 %v3474, %v3489
      %v3508 = vmul.f32 %v3475, %v3489
      %v3509 = vmul.f32 %v3476, %v3489
      %v3510 = vmul.f32 %v3477, %v3489
      %v3511 = vmul.f32 %v3478, %v3489
      %v3512 = vmul.f32 %v3479, %v3489
      %v3513 = vmul.f32 %v3480, %v3489
      %v3514 = vmul.f32 %v3481, %v3489
      %v3515 = vmul.f32 %v3482, %v3489
      %v3516 = vmul.f32 %v3483, %v3489
      %v3517 = vmul.f32 %v3484, %v3489
      %v3518 = vmul.f32 %v3485, %v3489
      %v3519 = vmul.f32 %v3486, %v3489
      %v3520 = vmul.f32 %v3487, %v3489
      %v3521 = vmul.f32 %v3488, %v3489
      %v3522 = vadd.f32 %v3425, %v3490
      %v3523 = vadd.f32 %v3426, %v3491
      %v3524 = vadd.f32 %v3427, %v3492
      %v3525 = vadd.f32 %v3428, %v3493
      %v3526 = vadd.f32 %v3429, %v3494
      %v3527 = vadd.f32 %v3430, %v3495
      %v3528 = vadd.f32 %v3431, %v3496
      %v3529 = vadd.f32 %v3432, %v3497
      %v3530 = vadd.f32 %v3433, %v3498
      %v3531 = vadd.f32 %v3434, %v3499
      %v3532 = vadd.f32 %v3435, %v3500
      %v3533 = vadd.f32 %v3436, %v3501
      %v3534 = vadd.f32 %v3437, %v3502
      %v3535 = vadd.f32 %v3438, %v3503
      %v3536 = vadd.f32 %v3439, %v3504
      %v3537 = vadd.f32 %v3440, %v3505
      %v3538 = vadd.f32 %v3441, %v3506
      %v3539 = vadd.f32 %v3442, %v3507
      %v3540 = vadd.f32 %v3443, %v3508
      %v3541 = vadd.f32 %v3444, %v3509
      %v3542 = vadd.f32 %v3445, %v3510
      %v3543 = vadd.f32 %v3446, %v3511
      %v3544 = vadd.f32 %v3447, %v3512
      %v3545 = vadd.f32 %v3448, %v3513
      %v3546 = vadd.f32 %v3449, %v3514
      %v3547 = vadd.f32 %v3450, %v3515
      %v3548 = vadd.f32 %v3451, %v3516
      %v3549 = vadd.f32 %v3452, %v3517
      %v3550 = vadd.f32 %v3453, %v3518
      %v3551 = vadd.f32 %v3454, %v3519
      %v3552 = vadd.f32 %v3455, %v3520
      %v3553 = vadd.f32 %v3456, %v3521
      %v3554 = vld [vmem:[%s2971 + $0x6] sm:$0xff]
      %v3555 = vld [vmem:[%s2971 + $0xe] sm:$0xff]
      %v3556 = vld [vmem:[%s2971 + $0x1e] sm:$0xff]
      %v3557 = vld [vmem:[%s2971 + $0x26] sm:$0xff]
      %v3558 = vld [vmem:[%s2971 + $0x36] sm:$0xff]
      %v3559 = vld [vmem:[%s2971 + $0x3e] sm:$0xff]
      %v3560 = vld [vmem:[%s2971 + $0x4e] sm:$0xff]
      %v3561 = vld [vmem:[%s2971 + $0x56] sm:$0xff]
      %v3562 = vld [vmem:[%s2971 + $0x66] sm:$0xff]
      %v3563 = vld [vmem:[%s2971 + $0x6e] sm:$0xff]
      %v3564 = vld [vmem:[%s2971 + $0x7e] sm:$0xff]
      %v3565 = vld [vmem:[%s2971 + $0x86] sm:$0xff]
      %v3566 = vld [vmem:[%s2971 + $0x96] sm:$0xff]
      %v3567 = vld [vmem:[%s2971 + $0x9e] sm:$0xff]
      %v3568 = vld [vmem:[%s2971 + $0xae] sm:$0xff]
      %v3569 = vld [vmem:[%s2971 + $0xb6] sm:$0xff]
      %v3570 = vld [vmem:[%s2971 + $0xc6] sm:$0xff]
      %v3571 = vld [vmem:[%s2971 + $0xce] sm:$0xff]
      %v3572 = vld [vmem:[%s2971 + $0xde] sm:$0xff]
      %v3573 = vld [vmem:[%s2971 + $0xe6] sm:$0xff]
      %v3574 = vld [vmem:[%s2971 + $0xf6] sm:$0xff]
      %v3575 = vld [vmem:[%s2971 + $0xfe] sm:$0xff]
      %v3576 = vld [vmem:[%s2971 + $0x10e] sm:$0xff]
      %v3577 = vld [vmem:[%s2971 + $0x116] sm:$0xff]
      %v3578 = vld [vmem:[%s2971 + $0x126] sm:$0xff]
      %v3579 = vld [vmem:[%s2971 + $0x12e] sm:$0xff]
      %v3580 = vld [vmem:[%s2971 + $0x13e] sm:$0xff]
      %v3581 = vld [vmem:[%s2971 + $0x146] sm:$0xff]
      %v3582 = vld [vmem:[%s2971 + $0x156] sm:$0xff]
      %v3583 = vld [vmem:[%s2971 + $0x15e] sm:$0xff]
      %v3584 = vld [vmem:[%s2971 + $0x16e] sm:$0xff]
      %v3585 = vld [vmem:[%s2971 + $0x176] sm:$0xff]
      %v3586 = vperm.slane %v281, 2
      %v3587 = vmul.f32 %v3554, %v3586
      %v3588 = vmul.f32 %v3555, %v3586
      %v3589 = vmul.f32 %v3556, %v3586
      %v3590 = vmul.f32 %v3557, %v3586
      %v3591 = vmul.f32 %v3558, %v3586
      %v3592 = vmul.f32 %v3559, %v3586
      %v3593 = vmul.f32 %v3560, %v3586
      %v3594 = vmul.f32 %v3561, %v3586
      %v3595 = vmul.f32 %v3562, %v3586
      %v3596 = vmul.f32 %v3563, %v3586
      %v3597 = vmul.f32 %v3564, %v3586
      %v3598 = vmul.f32 %v3565, %v3586
      %v3599 = vmul.f32 %v3566, %v3586
      %v3600 = vmul.f32 %v3567, %v3586
      %v3601 = vmul.f32 %v3568, %v3586
      %v3602 = vmul.f32 %v3569, %v3586
      %v3603 = vmul.f32 %v3570, %v3586
      %v3604 = vmul.f32 %v3571, %v3586
      %v3605 = vmul.f32 %v3572, %v3586
      %v3606 = vmul.f32 %v3573, %v3586
      %v3607 = vmul.f32 %v3574, %v3586
      %v3608 = vmul.f32 %v3575, %v3586
      %v3609 = vmul.f32 %v3576, %v3586
      %v3610 = vmul.f32 %v3577, %v3586
      %v3611 = vmul.f32 %v3578, %v3586
      %v3612 = vmul.f32 %v3579, %v3586
      %v3613 = vmul.f32 %v3580, %v3586
      %v3614 = vmul.f32 %v3581, %v3586
      %v3615 = vmul.f32 %v3582, %v3586
      %v3616 = vmul.f32 %v3583, %v3586
      %v3617 = vmul.f32 %v3584, %v3586
      %v3618 = vmul.f32 %v3585, %v3586
      %v3619 = vadd.f32 %v3522, %v3587
      %v3620 = vadd.f32 %v3523, %v3588
      %v3621 = vadd.f32 %v3524, %v3589
      %v3622 = vadd.f32 %v3525, %v3590
      %v3623 = vadd.f32 %v3526, %v3591
      %v3624 = vadd.f32 %v3527, %v3592
      %v3625 = vadd.f32 %v3528, %v3593
      %v3626 = vadd.f32 %v3529, %v3594
      %v3627 = vadd.f32 %v3530, %v3595
      %v3628 = vadd.f32 %v3531, %v3596
      %v3629 = vadd.f32 %v3532, %v3597
      %v3630 = vadd.f32 %v3533, %v3598
      %v3631 = vadd.f32 %v3534, %v3599
      %v3632 = vadd.f32 %v3535, %v3600
      %v3633 = vadd.f32 %v3536, %v3601
      %v3634 = vadd.f32 %v3537, %v3602
      %v3635 = vadd.f32 %v3538, %v3603
      %v3636 = vadd.f32 %v3539, %v3604
      %v3637 = vadd.f32 %v3540, %v3605
      %v3638 = vadd.f32 %v3541, %v3606
      %v3639 = vadd.f32 %v3542, %v3607
      %v3640 = vadd.f32 %v3543, %v3608
      %v3641 = vadd.f32 %v3544, %v3609
      %v3642 = vadd.f32 %v3545, %v3610
      %v3643 = vadd.f32 %v3546, %v3611
      %v3644 = vadd.f32 %v3547, %v3612
      %v3645 = vadd.f32 %v3548, %v3613
      %v3646 = vadd.f32 %v3549, %v3614
      %v3647 = vadd.f32 %v3550, %v3615
      %v3648 = vadd.f32 %v3551, %v3616
      %v3649 = vadd.f32 %v3552, %v3617
      %v3650 = vadd.f32 %v3553, %v3618
      %s3651 = scalar_lea.vmem %s234, 120
      %v3652 = vld [vmem:[%s3651] sm:$0xff]
      %v3653 = vld [vmem:[%s3651 + $0x8] sm:$0xff]
      %v3654 = vld [vmem:[%s3651 + $0x18] sm:$0xff]
      %v3655 = vld [vmem:[%s3651 + $0x20] sm:$0xff]
      %v3656 = vld [vmem:[%s3651 + $0x30] sm:$0xff]
      %v3657 = vld [vmem:[%s3651 + $0x38] sm:$0xff]
      %v3658 = vld [vmem:[%s3651 + $0x48] sm:$0xff]
      %v3659 = vld [vmem:[%s3651 + $0x50] sm:$0xff]
      %v3660 = vld [vmem:[%s3651 + $0x60] sm:$0xff]
      %v3661 = vld [vmem:[%s3651 + $0x68] sm:$0xff]
      %v3662 = vld [vmem:[%s3651 + $0x78] sm:$0xff]
      %v3663 = vld [vmem:[%s3651 + $0x80] sm:$0xff]
      %v3664 = vld [vmem:[%s3651 + $0x90] sm:$0xff]
      %v3665 = vld [vmem:[%s3651 + $0x98] sm:$0xff]
      %v3666 = vld [vmem:[%s3651 + $0xa8] sm:$0xff]
      %v3667 = vld [vmem:[%s3651 + $0xb0] sm:$0xff]
      %v3668 = vld [vmem:[%s3651 + $0xc0] sm:$0xff]
      %v3669 = vld [vmem:[%s3651 + $0xc8] sm:$0xff]
      %v3670 = vld [vmem:[%s3651 + $0xd8] sm:$0xff]
      %v3671 = vld [vmem:[%s3651 + $0xe0] sm:$0xff]
      %v3672 = vld [vmem:[%s3651 + $0xf0] sm:$0xff]
      %v3673 = vld [vmem:[%s3651 + $0xf8] sm:$0xff]
      %v3674 = vld [vmem:[%s3651 + $0x108] sm:$0xff]
      %v3675 = vld [vmem:[%s3651 + $0x110] sm:$0xff]
      %v3676 = vld [vmem:[%s3651 + $0x120] sm:$0xff]
      %v3677 = vld [vmem:[%s3651 + $0x128] sm:$0xff]
      %v3678 = vld [vmem:[%s3651 + $0x138] sm:$0xff]
      %v3679 = vld [vmem:[%s3651 + $0x140] sm:$0xff]
      %v3680 = vld [vmem:[%s3651 + $0x150] sm:$0xff]
      %v3681 = vld [vmem:[%s3651 + $0x158] sm:$0xff]
      %v3682 = vld [vmem:[%s3651 + $0x168] sm:$0xff]
      %v3683 = vld [vmem:[%s3651 + $0x170] sm:$0xff]
      %v3684 = vperm.slane %v281, 3
      %v3685 = vmul.f32 %v3652, %v3684
      %v3686 = vmul.f32 %v3653, %v3684
      %v3687 = vmul.f32 %v3654, %v3684
      %v3688 = vmul.f32 %v3655, %v3684
      %v3689 = vmul.f32 %v3656, %v3684
      %v3690 = vmul.f32 %v3657, %v3684
      %v3691 = vmul.f32 %v3658, %v3684
      %v3692 = vmul.f32 %v3659, %v3684
      %v3693 = vmul.f32 %v3660, %v3684
      %v3694 = vmul.f32 %v3661, %v3684
      %v3695 = vmul.f32 %v3662, %v3684
      %v3696 = vmul.f32 %v3663, %v3684
      %v3697 = vmul.f32 %v3664, %v3684
      %v3698 = vmul.f32 %v3665, %v3684
      %v3699 = vmul.f32 %v3666, %v3684
      %v3700 = vmul.f32 %v3667, %v3684
      %v3701 = vmul.f32 %v3668, %v3684
      %v3702 = vmul.f32 %v3669, %v3684
      %v3703 = vmul.f32 %v3670, %v3684
      %v3704 = vmul.f32 %v3671, %v3684
      %v3705 = vmul.f32 %v3672, %v3684
      %v3706 = vmul.f32 %v3673, %v3684
      %v3707 = vmul.f32 %v3674, %v3684
      %v3708 = vmul.f32 %v3675, %v3684
      %v3709 = vmul.f32 %v3676, %v3684
      %v3710 = vmul.f32 %v3677, %v3684
      %v3711 = vmul.f32 %v3678, %v3684
      %v3712 = vmul.f32 %v3679, %v3684
      %v3713 = vmul.f32 %v3680, %v3684
      %v3714 = vmul.f32 %v3681, %v3684
      %v3715 = vmul.f32 %v3682, %v3684
      %v3716 = vmul.f32 %v3683, %v3684
      %v3717 = vadd.f32 %v3619, %v3685
      %v3718 = vadd.f32 %v3620, %v3686
      %v3719 = vadd.f32 %v3621, %v3687
      %v3720 = vadd.f32 %v3622, %v3688
      %v3721 = vadd.f32 %v3623, %v3689
      %v3722 = vadd.f32 %v3624, %v3690
      %v3723 = vadd.f32 %v3625, %v3691
      %v3724 = vadd.f32 %v3626, %v3692
      %v3725 = vadd.f32 %v3627, %v3693
      %v3726 = vadd.f32 %v3628, %v3694
      %v3727 = vadd.f32 %v3629, %v3695
      %v3728 = vadd.f32 %v3630, %v3696
      %v3729 = vadd.f32 %v3631, %v3697
      %v3730 = vadd.f32 %v3632, %v3698
      %v3731 = vadd.f32 %v3633, %v3699
      %v3732 = vadd.f32 %v3634, %v3700
      %v3733 = vadd.f32 %v3635, %v3701
      %v3734 = vadd.f32 %v3636, %v3702
      %v3735 = vadd.f32 %v3637, %v3703
      %v3736 = vadd.f32 %v3638, %v3704
      %v3737 = vadd.f32 %v3639, %v3705
      %v3738 = vadd.f32 %v3640, %v3706
      %v3739 = vadd.f32 %v3641, %v3707
      %v3740 = vadd.f32 %v3642, %v3708
      %v3741 = vadd.f32 %v3643, %v3709
      %v3742 = vadd.f32 %v3644, %v3710
      %v3743 = vadd.f32 %v3645, %v3711
      %v3744 = vadd.f32 %v3646, %v3712
      %v3745 = vadd.f32 %v3647, %v3713
      %v3746 = vadd.f32 %v3648, %v3714
      %v3747 = vadd.f32 %v3649, %v3715
      %v3748 = vadd.f32 %v3650, %v3716
      %v3749 = vld [vmem:[%s3651 + $0x1] sm:$0xff]
      %v3750 = vld [vmem:[%s3651 + $0x9] sm:$0xff]
      %v3751 = vld [vmem:[%s3651 + $0x19] sm:$0xff]
      %v3752 = vld [vmem:[%s3651 + $0x21] sm:$0xff]
      %v3753 = vld [vmem:[%s3651 + $0x31] sm:$0xff]
      %v3754 = vld [vmem:[%s3651 + $0x39] sm:$0xff]
      %v3755 = vld [vmem:[%s3651 + $0x49] sm:$0xff]
      %v3756 = vld [vmem:[%s3651 + $0x51] sm:$0xff]
      %v3757 = vld [vmem:[%s3651 + $0x61] sm:$0xff]
      %v3758 = vld [vmem:[%s3651 + $0x69] sm:$0xff]
      %v3759 = vld [vmem:[%s3651 + $0x79] sm:$0xff]
      %v3760 = vld [vmem:[%s3651 + $0x81] sm:$0xff]
      %v3761 = vld [vmem:[%s3651 + $0x91] sm:$0xff]
      %v3762 = vld [vmem:[%s3651 + $0x99] sm:$0xff]
      %v3763 = vld [vmem:[%s3651 + $0xa9] sm:$0xff]
      %v3764 = vld [vmem:[%s3651 + $0xb1] sm:$0xff]
      %v3765 = vld [vmem:[%s3651 + $0xc1] sm:$0xff]
      %v3766 = vld [vmem:[%s3651 + $0xc9] sm:$0xff]
      %v3767 = vld [vmem:[%s3651 + $0xd9] sm:$0xff]
      %v3768 = vld [vmem:[%s3651 + $0xe1] sm:$0xff]
      %v3769 = vld [vmem:[%s3651 + $0xf1] sm:$0xff]
      %v3770 = vld [vmem:[%s3651 + $0xf9] sm:$0xff]
      %v3771 = vld [vmem:[%s3651 + $0x109] sm:$0xff]
      %v3772 = vld [vmem:[%s3651 + $0x111] sm:$0xff]
      %v3773 = vld [vmem:[%s3651 + $0x121] sm:$0xff]
      %v3774 = vld [vmem:[%s3651 + $0x129] sm:$0xff]
      %v3775 = vld [vmem:[%s3651 + $0x139] sm:$0xff]
      %v3776 = vld [vmem:[%s3651 + $0x141] sm:$0xff]
      %v3777 = vld [vmem:[%s3651 + $0x151] sm:$0xff]
      %v3778 = vld [vmem:[%s3651 + $0x159] sm:$0xff]
      %v3779 = vld [vmem:[%s3651 + $0x169] sm:$0xff]
      %v3780 = vld [vmem:[%s3651 + $0x171] sm:$0xff]
      %v3781 = vperm.slane %v281, 4
      %v3782 = vmul.f32 %v3749, %v3781
      %v3783 = vmul.f32 %v3750, %v3781
      %v3784 = vmul.f32 %v3751, %v3781
      %v3785 = vmul.f32 %v3752, %v3781
      %v3786 = vmul.f32 %v3753, %v3781
      %v3787 = vmul.f32 %v3754, %v3781
      %v3788 = vmul.f32 %v3755, %v3781
      %v3789 = vmul.f32 %v3756, %v3781
      %v3790 = vmul.f32 %v3757, %v3781
      %v3791 = vmul.f32 %v3758, %v3781
      %v3792 = vmul.f32 %v3759, %v3781
      %v3793 = vmul.f32 %v3760, %v3781
      %v3794 = vmul.f32 %v3761, %v3781
      %v3795 = vmul.f32 %v3762, %v3781
      %v3796 = vmul.f32 %v3763, %v3781
      %v3797 = vmul.f32 %v3764, %v3781
      %v3798 = vmul.f32 %v3765, %v3781
      %v3799 = vmul.f32 %v3766, %v3781
      %v3800 = vmul.f32 %v3767, %v3781
      %v3801 = vmul.f32 %v3768, %v3781
      %v3802 = vmul.f32 %v3769, %v3781
      %v3803 = vmul.f32 %v3770, %v3781
      %v3804 = vmul.f32 %v3771, %v3781
      %v3805 = vmul.f32 %v3772, %v3781
      %v3806 = vmul.f32 %v3773, %v3781
      %v3807 = vmul.f32 %v3774, %v3781
      %v3808 = vmul.f32 %v3775, %v3781
      %v3809 = vmul.f32 %v3776, %v3781
      %v3810 = vmul.f32 %v3777, %v3781
      %v3811 = vmul.f32 %v3778, %v3781
      %v3812 = vmul.f32 %v3779, %v3781
      %v3813 = vmul.f32 %v3780, %v3781
      %v3814 = vadd.f32 %v3717, %v3782
      %v3815 = vadd.f32 %v3718, %v3783
      %v3816 = vadd.f32 %v3719, %v3784
      %v3817 = vadd.f32 %v3720, %v3785
      %v3818 = vadd.f32 %v3721, %v3786
      %v3819 = vadd.f32 %v3722, %v3787
      %v3820 = vadd.f32 %v3723, %v3788
      %v3821 = vadd.f32 %v3724, %v3789
      %v3822 = vadd.f32 %v3725, %v3790
      %v3823 = vadd.f32 %v3726, %v3791
      %v3824 = vadd.f32 %v3727, %v3792
      %v3825 = vadd.f32 %v3728, %v3793
      %v3826 = vadd.f32 %v3729, %v3794
      %v3827 = vadd.f32 %v3730, %v3795
      %v3828 = vadd.f32 %v3731, %v3796
      %v3829 = vadd.f32 %v3732, %v3797
      %v3830 = vadd.f32 %v3733, %v3798
      %v3831 = vadd.f32 %v3734, %v3799
      %v3832 = vadd.f32 %v3735, %v3800
      %v3833 = vadd.f32 %v3736, %v3801
      %v3834 = vadd.f32 %v3737, %v3802
      %v3835 = vadd.f32 %v3738, %v3803
      %v3836 = vadd.f32 %v3739, %v3804
      %v3837 = vadd.f32 %v3740, %v3805
      %v3838 = vadd.f32 %v3741, %v3806
      %v3839 = vadd.f32 %v3742, %v3807
      %v3840 = vadd.f32 %v3743, %v3808
      %v3841 = vadd.f32 %v3744, %v3809
      %v3842 = vadd.f32 %v3745, %v3810
      %v3843 = vadd.f32 %v3746, %v3811
      %v3844 = vadd.f32 %v3747, %v3812
      %v3845 = vadd.f32 %v3748, %v3813
      %v3846 = vld [vmem:[%s3651 + $0x2] sm:$0xff]
      %v3847 = vld [vmem:[%s3651 + $0xa] sm:$0xff]
      %v3848 = vld [vmem:[%s3651 + $0x1a] sm:$0xff]
      %v3849 = vld [vmem:[%s3651 + $0x22] sm:$0xff]
      %v3850 = vld [vmem:[%s3651 + $0x32] sm:$0xff]
      %v3851 = vld [vmem:[%s3651 + $0x3a] sm:$0xff]
      %v3852 = vld [vmem:[%s3651 + $0x4a] sm:$0xff]
      %v3853 = vld [vmem:[%s3651 + $0x52] sm:$0xff]
      %v3854 = vld [vmem:[%s3651 + $0x62] sm:$0xff]
      %v3855 = vld [vmem:[%s3651 + $0x6a] sm:$0xff]
      %v3856 = vld [vmem:[%s3651 + $0x7a] sm:$0xff]
      %v3857 = vld [vmem:[%s3651 + $0x82] sm:$0xff]
      %v3858 = vld [vmem:[%s3651 + $0x92] sm:$0xff]
      %v3859 = vld [vmem:[%s3651 + $0x9a] sm:$0xff]
      %v3860 = vld [vmem:[%s3651 + $0xaa] sm:$0xff]
      %v3861 = vld [vmem:[%s3651 + $0xb2] sm:$0xff]
      %v3862 = vld [vmem:[%s3651 + $0xc2] sm:$0xff]
      %v3863 = vld [vmem:[%s3651 + $0xca] sm:$0xff]
      %v3864 = vld [vmem:[%s3651 + $0xda] sm:$0xff]
      %v3865 = vld [vmem:[%s3651 + $0xe2] sm:$0xff]
      %v3866 = vld [vmem:[%s3651 + $0xf2] sm:$0xff]
      %v3867 = vld [vmem:[%s3651 + $0xfa] sm:$0xff]
      %v3868 = vld [vmem:[%s3651 + $0x10a] sm:$0xff]
      %v3869 = vld [vmem:[%s3651 + $0x112] sm:$0xff]
      %v3870 = vld [vmem:[%s3651 + $0x122] sm:$0xff]
      %v3871 = vld [vmem:[%s3651 + $0x12a] sm:$0xff]
      %v3872 = vld [vmem:[%s3651 + $0x13a] sm:$0xff]
      %v3873 = vld [vmem:[%s3651 + $0x142] sm:$0xff]
      %v3874 = vld [vmem:[%s3651 + $0x152] sm:$0xff]
      %v3875 = vld [vmem:[%s3651 + $0x15a] sm:$0xff]
      %v3876 = vld [vmem:[%s3651 + $0x16a] sm:$0xff]
      %v3877 = vld [vmem:[%s3651 + $0x172] sm:$0xff]
      %v3878 = vperm.slane %v281, 5
      %v3879 = vmul.f32 %v3846, %v3878
      %v3880 = vmul.f32 %v3847, %v3878
      %v3881 = vmul.f32 %v3848, %v3878
      %v3882 = vmul.f32 %v3849, %v3878
      %v3883 = vmul.f32 %v3850, %v3878
      %v3884 = vmul.f32 %v3851, %v3878
      %v3885 = vmul.f32 %v3852, %v3878
      %v3886 = vmul.f32 %v3853, %v3878
      %v3887 = vmul.f32 %v3854, %v3878
      %v3888 = vmul.f32 %v3855, %v3878
      %v3889 = vmul.f32 %v3856, %v3878
      %v3890 = vmul.f32 %v3857, %v3878
      %v3891 = vmul.f32 %v3858, %v3878
      %v3892 = vmul.f32 %v3859, %v3878
      %v3893 = vmul.f32 %v3860, %v3878
      %v3894 = vmul.f32 %v3861, %v3878
      %v3895 = vmul.f32 %v3862, %v3878
      %v3896 = vmul.f32 %v3863, %v3878
      %v3897 = vmul.f32 %v3864, %v3878
      %v3898 = vmul.f32 %v3865, %v3878
      %v3899 = vmul.f32 %v3866, %v3878
      %v3900 = vmul.f32 %v3867, %v3878
      %v3901 = vmul.f32 %v3868, %v3878
      %v3902 = vmul.f32 %v3869, %v3878
      %v3903 = vmul.f32 %v3870, %v3878
      %v3904 = vmul.f32 %v3871, %v3878
      %v3905 = vmul.f32 %v3872, %v3878
      %v3906 = vmul.f32 %v3873, %v3878
      %v3907 = vmul.f32 %v3874, %v3878
      %v3908 = vmul.f32 %v3875, %v3878
      %v3909 = vmul.f32 %v3876, %v3878
      %v3910 = vmul.f32 %v3877, %v3878
      %v3911 = vadd.f32 %v3814, %v3879
      %v3912 = vadd.f32 %v3815, %v3880
      %v3913 = vadd.f32 %v3816, %v3881
      %v3914 = vadd.f32 %v3817, %v3882
      %v3915 = vadd.f32 %v3818, %v3883
      %v3916 = vadd.f32 %v3819, %v3884
      %v3917 = vadd.f32 %v3820, %v3885
      %v3918 = vadd.f32 %v3821, %v3886
      %v3919 = vadd.f32 %v3822, %v3887
      %v3920 = vadd.f32 %v3823, %v3888
      %v3921 = vadd.f32 %v3824, %v3889
      %v3922 = vadd.f32 %v3825, %v3890
      %v3923 = vadd.f32 %v3826, %v3891
      %v3924 = vadd.f32 %v3827, %v3892
      %v3925 = vadd.f32 %v3828, %v3893
      %v3926 = vadd.f32 %v3829, %v3894
      %v3927 = vadd.f32 %v3830, %v3895
      %v3928 = vadd.f32 %v3831, %v3896
      %v3929 = vadd.f32 %v3832, %v3897
      %v3930 = vadd.f32 %v3833, %v3898
      %v3931 = vadd.f32 %v3834, %v3899
      %v3932 = vadd.f32 %v3835, %v3900
      %v3933 = vadd.f32 %v3836, %v3901
      %v3934 = vadd.f32 %v3837, %v3902
      %v3935 = vadd.f32 %v3838, %v3903
      %v3936 = vadd.f32 %v3839, %v3904
      %v3937 = vadd.f32 %v3840, %v3905
      %v3938 = vadd.f32 %v3841, %v3906
      %v3939 = vadd.f32 %v3842, %v3907
      %v3940 = vadd.f32 %v3843, %v3908
      %v3941 = vadd.f32 %v3844, %v3909
      %v3942 = vadd.f32 %v3845, %v3910
      %v3943 = vld [vmem:[%s3651 + $0x3] sm:$0xff]
      %v3944 = vld [vmem:[%s3651 + $0xb] sm:$0xff]
      %v3945 = vld [vmem:[%s3651 + $0x1b] sm:$0xff]
      %v3946 = vld [vmem:[%s3651 + $0x23] sm:$0xff]
      %v3947 = vld [vmem:[%s3651 + $0x33] sm:$0xff]
      %v3948 = vld [vmem:[%s3651 + $0x3b] sm:$0xff]
      %v3949 = vld [vmem:[%s3651 + $0x4b] sm:$0xff]
      %v3950 = vld [vmem:[%s3651 + $0x53] sm:$0xff]
      %v3951 = vld [vmem:[%s3651 + $0x63] sm:$0xff]
      %v3952 = vld [vmem:[%s3651 + $0x6b] sm:$0xff]
      %v3953 = vld [vmem:[%s3651 + $0x7b] sm:$0xff]
      %v3954 = vld [vmem:[%s3651 + $0x83] sm:$0xff]
      %v3955 = vld [vmem:[%s3651 + $0x93] sm:$0xff]
      %v3956 = vld [vmem:[%s3651 + $0x9b] sm:$0xff]
      %v3957 = vld [vmem:[%s3651 + $0xab] sm:$0xff]
      %v3958 = vld [vmem:[%s3651 + $0xb3] sm:$0xff]
      %v3959 = vld [vmem:[%s3651 + $0xc3] sm:$0xff]
      %v3960 = vld [vmem:[%s3651 + $0xcb] sm:$0xff]
      %v3961 = vld [vmem:[%s3651 + $0xdb] sm:$0xff]
      %v3962 = vld [vmem:[%s3651 + $0xe3] sm:$0xff]
      %v3963 = vld [vmem:[%s3651 + $0xf3] sm:$0xff]
      %v3964 = vld [vmem:[%s3651 + $0xfb] sm:$0xff]
      %v3965 = vld [vmem:[%s3651 + $0x10b] sm:$0xff]
      %v3966 = vld [vmem:[%s3651 + $0x113] sm:$0xff]
      %v3967 = vld [vmem:[%s3651 + $0x123] sm:$0xff]
      %v3968 = vld [vmem:[%s3651 + $0x12b] sm:$0xff]
      %v3969 = vld [vmem:[%s3651 + $0x13b] sm:$0xff]
      %v3970 = vld [vmem:[%s3651 + $0x143] sm:$0xff]
      %v3971 = vld [vmem:[%s3651 + $0x153] sm:$0xff]
      %v3972 = vld [vmem:[%s3651 + $0x15b] sm:$0xff]
      %v3973 = vld [vmem:[%s3651 + $0x16b] sm:$0xff]
      %v3974 = vld [vmem:[%s3651 + $0x173] sm:$0xff]
      %v3975 = vperm.slane %v281, 6
      %v3976 = vmul.f32 %v3943, %v3975
      %v3977 = vmul.f32 %v3944, %v3975
      %v3978 = vmul.f32 %v3945, %v3975
      %v3979 = vmul.f32 %v3946, %v3975
      %v3980 = vmul.f32 %v3947, %v3975
      %v3981 = vmul.f32 %v3948, %v3975
      %v3982 = vmul.f32 %v3949, %v3975
      %v3983 = vmul.f32 %v3950, %v3975
      %v3984 = vmul.f32 %v3951, %v3975
      %v3985 = vmul.f32 %v3952, %v3975
      %v3986 = vmul.f32 %v3953, %v3975
      %v3987 = vmul.f32 %v3954, %v3975
      %v3988 = vmul.f32 %v3955, %v3975
      %v3989 = vmul.f32 %v3956, %v3975
      %v3990 = vmul.f32 %v3957, %v3975
      %v3991 = vmul.f32 %v3958, %v3975
      %v3992 = vmul.f32 %v3959, %v3975
      %v3993 = vmul.f32 %v3960, %v3975
      %v3994 = vmul.f32 %v3961, %v3975
      %v3995 = vmul.f32 %v3962, %v3975
      %v3996 = vmul.f32 %v3963, %v3975
      %v3997 = vmul.f32 %v3964, %v3975
      %v3998 = vmul.f32 %v3965, %v3975
      %v3999 = vmul.f32 %v3966, %v3975
      %v4000 = vmul.f32 %v3967, %v3975
      %v4001 = vmul.f32 %v3968, %v3975
      %v4002 = vmul.f32 %v3969, %v3975
      %v4003 = vmul.f32 %v3970, %v3975
      %v4004 = vmul.f32 %v3971, %v3975
      %v4005 = vmul.f32 %v3972, %v3975
      %v4006 = vmul.f32 %v3973, %v3975
      %v4007 = vmul.f32 %v3974, %v3975
      %v4008 = vadd.f32 %v3911, %v3976
      %v4009 = vadd.f32 %v3912, %v3977
      %v4010 = vadd.f32 %v3913, %v3978
      %v4011 = vadd.f32 %v3914, %v3979
      %v4012 = vadd.f32 %v3915, %v3980
      %v4013 = vadd.f32 %v3916, %v3981
      %v4014 = vadd.f32 %v3917, %v3982
      %v4015 = vadd.f32 %v3918, %v3983
      %v4016 = vadd.f32 %v3919, %v3984
      %v4017 = vadd.f32 %v3920, %v3985
      %v4018 = vadd.f32 %v3921, %v3986
      %v4019 = vadd.f32 %v3922, %v3987
      %v4020 = vadd.f32 %v3923, %v3988
      %v4021 = vadd.f32 %v3924, %v3989
      %v4022 = vadd.f32 %v3925, %v3990
      %v4023 = vadd.f32 %v3926, %v3991
      %v4024 = vadd.f32 %v3927, %v3992
      %v4025 = vadd.f32 %v3928, %v3993
      %v4026 = vadd.f32 %v3929, %v3994
      %v4027 = vadd.f32 %v3930, %v3995
      %v4028 = vadd.f32 %v3931, %v3996
      %v4029 = vadd.f32 %v3932, %v3997
      %v4030 = vadd.f32 %v3933, %v3998
      %v4031 = vadd.f32 %v3934, %v3999
      %v4032 = vadd.f32 %v3935, %v4000
      %v4033 = vadd.f32 %v3936, %v4001
      %v4034 = vadd.f32 %v3937, %v4002
      %v4035 = vadd.f32 %v3938, %v4003
      %v4036 = vadd.f32 %v3939, %v4004
      %v4037 = vadd.f32 %v3940, %v4005
      %v4038 = vadd.f32 %v3941, %v4006
      %v4039 = vadd.f32 %v3942, %v4007
      %v4040 = vld [vmem:[%s3651 + $0x4] sm:$0xff]
      %v4041 = vld [vmem:[%s3651 + $0xc] sm:$0xff]
      %v4042 = vld [vmem:[%s3651 + $0x1c] sm:$0xff]
      %v4043 = vld [vmem:[%s3651 + $0x24] sm:$0xff]
      %v4044 = vld [vmem:[%s3651 + $0x34] sm:$0xff]
      %v4045 = vld [vmem:[%s3651 + $0x3c] sm:$0xff]
      %v4046 = vld [vmem:[%s3651 + $0x4c] sm:$0xff]
      %v4047 = vld [vmem:[%s3651 + $0x54] sm:$0xff]
      %v4048 = vld [vmem:[%s3651 + $0x64] sm:$0xff]
      %v4049 = vld [vmem:[%s3651 + $0x6c] sm:$0xff]
      %v4050 = vld [vmem:[%s3651 + $0x7c] sm:$0xff]
      %v4051 = vld [vmem:[%s3651 + $0x84] sm:$0xff]
      %v4052 = vld [vmem:[%s3651 + $0x94] sm:$0xff]
      %v4053 = vld [vmem:[%s3651 + $0x9c] sm:$0xff]
      %v4054 = vld [vmem:[%s3651 + $0xac] sm:$0xff]
      %v4055 = vld [vmem:[%s3651 + $0xb4] sm:$0xff]
      %v4056 = vld [vmem:[%s3651 + $0xc4] sm:$0xff]
      %v4057 = vld [vmem:[%s3651 + $0xcc] sm:$0xff]
      %v4058 = vld [vmem:[%s3651 + $0xdc] sm:$0xff]
      %v4059 = vld [vmem:[%s3651 + $0xe4] sm:$0xff]
      %v4060 = vld [vmem:[%s3651 + $0xf4] sm:$0xff]
      %v4061 = vld [vmem:[%s3651 + $0xfc] sm:$0xff]
      %v4062 = vld [vmem:[%s3651 + $0x10c] sm:$0xff]
      %v4063 = vld [vmem:[%s3651 + $0x114] sm:$0xff]
      %v4064 = vld [vmem:[%s3651 + $0x124] sm:$0xff]
      %v4065 = vld [vmem:[%s3651 + $0x12c] sm:$0xff]
      %v4066 = vld [vmem:[%s3651 + $0x13c] sm:$0xff]
      %v4067 = vld [vmem:[%s3651 + $0x144] sm:$0xff]
      %v4068 = vld [vmem:[%s3651 + $0x154] sm:$0xff]
      %v4069 = vld [vmem:[%s3651 + $0x15c] sm:$0xff]
      %v4070 = vld [vmem:[%s3651 + $0x16c] sm:$0xff]
      %v4071 = vld [vmem:[%s3651 + $0x174] sm:$0xff]
      %v4072 = vperm.slane %v281, 7
      %v4073 = vmul.f32 %v4040, %v4072
      %v4074 = vmul.f32 %v4041, %v4072
      %v4075 = vmul.f32 %v4042, %v4072
      %v4076 = vmul.f32 %v4043, %v4072
      %v4077 = vmul.f32 %v4044, %v4072
      %v4078 = vmul.f32 %v4045, %v4072
      %v4079 = vmul.f32 %v4046, %v4072
      %v4080 = vmul.f32 %v4047, %v4072
      %v4081 = vmul.f32 %v4048, %v4072
      %v4082 = vmul.f32 %v4049, %v4072
      %v4083 = vmul.f32 %v4050, %v4072
      %v4084 = vmul.f32 %v4051, %v4072
      %v4085 = vmul.f32 %v4052, %v4072
      %v4086 = vmul.f32 %v4053, %v4072
      %v4087 = vmul.f32 %v4054, %v4072
      %v4088 = vmul.f32 %v4055, %v4072
      %v4089 = vmul.f32 %v4056, %v4072
      %v4090 = vmul.f32 %v4057, %v4072
      %v4091 = vmul.f32 %v4058, %v4072
      %v4092 = vmul.f32 %v4059, %v4072
      %v4093 = vmul.f32 %v4060, %v4072
      %v4094 = vmul.f32 %v4061, %v4072
      %v4095 = vmul.f32 %v4062, %v4072
      %v4096 = vmul.f32 %v4063, %v4072
      %v4097 = vmul.f32 %v4064, %v4072
      %v4098 = vmul.f32 %v4065, %v4072
      %v4099 = vmul.f32 %v4066, %v4072
      %v4100 = vmul.f32 %v4067, %v4072
      %v4101 = vmul.f32 %v4068, %v4072
      %v4102 = vmul.f32 %v4069, %v4072
      %v4103 = vmul.f32 %v4070, %v4072
      %v4104 = vmul.f32 %v4071, %v4072
      %v4105 = vadd.f32 %v4008, %v4073
      %v4106 = vadd.f32 %v4009, %v4074
      %v4107 = vadd.f32 %v4010, %v4075
      %v4108 = vadd.f32 %v4011, %v4076
      %v4109 = vadd.f32 %v4012, %v4077
      %v4110 = vadd.f32 %v4013, %v4078
      %v4111 = vadd.f32 %v4014, %v4079
      %v4112 = vadd.f32 %v4015, %v4080
      %v4113 = vadd.f32 %v4016, %v4081
      %v4114 = vadd.f32 %v4017, %v4082
      %v4115 = vadd.f32 %v4018, %v4083
      %v4116 = vadd.f32 %v4019, %v4084
      %v4117 = vadd.f32 %v4020, %v4085
      %v4118 = vadd.f32 %v4021, %v4086
      %v4119 = vadd.f32 %v4022, %v4087
      %v4120 = vadd.f32 %v4023, %v4088
      %v4121 = vadd.f32 %v4024, %v4089
      %v4122 = vadd.f32 %v4025, %v4090
      %v4123 = vadd.f32 %v4026, %v4091
      %v4124 = vadd.f32 %v4027, %v4092
      %v4125 = vadd.f32 %v4028, %v4093
      %v4126 = vadd.f32 %v4029, %v4094
      %v4127 = vadd.f32 %v4030, %v4095
      %v4128 = vadd.f32 %v4031, %v4096
      %v4129 = vadd.f32 %v4032, %v4097
      %v4130 = vadd.f32 %v4033, %v4098
      %v4131 = vadd.f32 %v4034, %v4099
      %v4132 = vadd.f32 %v4035, %v4100
      %v4133 = vadd.f32 %v4036, %v4101
      %v4134 = vadd.f32 %v4037, %v4102
      %v4135 = vadd.f32 %v4038, %v4103
      %v4136 = vadd.f32 %v4039, %v4104
      %v4137 = vld [vmem:[%s3651 + $0x5] sm:$0xff]
      %v4138 = vld [vmem:[%s3651 + $0xd] sm:$0xff]
      %v4139 = vld [vmem:[%s3651 + $0x1d] sm:$0xff]
      %v4140 = vld [vmem:[%s3651 + $0x25] sm:$0xff]
      %v4141 = vld [vmem:[%s3651 + $0x35] sm:$0xff]
      %v4142 = vld [vmem:[%s3651 + $0x3d] sm:$0xff]
      %v4143 = vld [vmem:[%s3651 + $0x4d] sm:$0xff]
      %v4144 = vld [vmem:[%s3651 + $0x55] sm:$0xff]
      %v4145 = vld [vmem:[%s3651 + $0x65] sm:$0xff]
      %v4146 = vld [vmem:[%s3651 + $0x6d] sm:$0xff]
      %v4147 = vld [vmem:[%s3651 + $0x7d] sm:$0xff]
      %v4148 = vld [vmem:[%s3651 + $0x85] sm:$0xff]
      %v4149 = vld [vmem:[%s3651 + $0x95] sm:$0xff]
      %v4150 = vld [vmem:[%s3651 + $0x9d] sm:$0xff]
      %v4151 = vld [vmem:[%s3651 + $0xad] sm:$0xff]
      %v4152 = vld [vmem:[%s3651 + $0xb5] sm:$0xff]
      %v4153 = vld [vmem:[%s3651 + $0xc5] sm:$0xff]
      %v4154 = vld [vmem:[%s3651 + $0xcd] sm:$0xff]
      %v4155 = vld [vmem:[%s3651 + $0xdd] sm:$0xff]
      %v4156 = vld [vmem:[%s3651 + $0xe5] sm:$0xff]
      %v4157 = vld [vmem:[%s3651 + $0xf5] sm:$0xff]
      %v4158 = vld [vmem:[%s3651 + $0xfd] sm:$0xff]
      %v4159 = vld [vmem:[%s3651 + $0x10d] sm:$0xff]
      %v4160 = vld [vmem:[%s3651 + $0x115] sm:$0xff]
      %v4161 = vld [vmem:[%s3651 + $0x125] sm:$0xff]
      %v4162 = vld [vmem:[%s3651 + $0x12d] sm:$0xff]
      %v4163 = vld [vmem:[%s3651 + $0x13d] sm:$0xff]
      %v4164 = vld [vmem:[%s3651 + $0x145] sm:$0xff]
      %v4165 = vld [vmem:[%s3651 + $0x155] sm:$0xff]
      %v4166 = vld [vmem:[%s3651 + $0x15d] sm:$0xff]
      %v4167 = vld [vmem:[%s3651 + $0x16d] sm:$0xff]
      %v4168 = vld [vmem:[%s3651 + $0x175] sm:$0xff]
      %v4169 = vperm.slane %v282, 0
      %v4170 = vmul.f32 %v4137, %v4169
      %v4171 = vmul.f32 %v4138, %v4169
      %v4172 = vmul.f32 %v4139, %v4169
      %v4173 = vmul.f32 %v4140, %v4169
      %v4174 = vmul.f32 %v4141, %v4169
      %v4175 = vmul.f32 %v4142, %v4169
      %v4176 = vmul.f32 %v4143, %v4169
      %v4177 = vmul.f32 %v4144, %v4169
      %v4178 = vmul.f32 %v4145, %v4169
      %v4179 = vmul.f32 %v4146, %v4169
      %v4180 = vmul.f32 %v4147, %v4169
      %v4181 = vmul.f32 %v4148, %v4169
      %v4182 = vmul.f32 %v4149, %v4169
      %v4183 = vmul.f32 %v4150, %v4169
      %v4184 = vmul.f32 %v4151, %v4169
      %v4185 = vmul.f32 %v4152, %v4169
      %v4186 = vmul.f32 %v4153, %v4169
      %v4187 = vmul.f32 %v4154, %v4169
      %v4188 = vmul.f32 %v4155, %v4169
      %v4189 = vmul.f32 %v4156, %v4169
      %v4190 = vmul.f32 %v4157, %v4169
      %v4191 = vmul.f32 %v4158, %v4169
      %v4192 = vmul.f32 %v4159, %v4169
      %v4193 = vmul.f32 %v4160, %v4169
      %v4194 = vmul.f32 %v4161, %v4169
      %v4195 = vmul.f32 %v4162, %v4169
      %v4196 = vmul.f32 %v4163, %v4169
      %v4197 = vmul.f32 %v4164, %v4169
      %v4198 = vmul.f32 %v4165, %v4169
      %v4199 = vmul.f32 %v4166, %v4169
      %v4200 = vmul.f32 %v4167, %v4169
      %v4201 = vmul.f32 %v4168, %v4169
      %v4202 = vadd.f32 %v4105, %v4170
      %v4203 = vadd.f32 %v4106, %v4171
      %v4204 = vadd.f32 %v4107, %v4172
      %v4205 = vadd.f32 %v4108, %v4173
      %v4206 = vadd.f32 %v4109, %v4174
      %v4207 = vadd.f32 %v4110, %v4175
      %v4208 = vadd.f32 %v4111, %v4176
      %v4209 = vadd.f32 %v4112, %v4177
      %v4210 = vadd.f32 %v4113, %v4178
      %v4211 = vadd.f32 %v4114, %v4179
      %v4212 = vadd.f32 %v4115, %v4180
      %v4213 = vadd.f32 %v4116, %v4181
      %v4214 = vadd.f32 %v4117, %v4182
      %v4215 = vadd.f32 %v4118, %v4183
      %v4216 = vadd.f32 %v4119, %v4184
      %v4217 = vadd.f32 %v4120, %v4185
      %v4218 = vadd.f32 %v4121, %v4186
      %v4219 = vadd.f32 %v4122, %v4187
      %v4220 = vadd.f32 %v4123, %v4188
      %v4221 = vadd.f32 %v4124, %v4189
      %v4222 = vadd.f32 %v4125, %v4190
      %v4223 = vadd.f32 %v4126, %v4191
      %v4224 = vadd.f32 %v4127, %v4192
      %v4225 = vadd.f32 %v4128, %v4193
      %v4226 = vadd.f32 %v4129, %v4194
      %v4227 = vadd.f32 %v4130, %v4195
      %v4228 = vadd.f32 %v4131, %v4196
      %v4229 = vadd.f32 %v4132, %v4197
      %v4230 = vadd.f32 %v4133, %v4198
      %v4231 = vadd.f32 %v4134, %v4199
      %v4232 = vadd.f32 %v4135, %v4200
      %v4233 = vadd.f32 %v4136, %v4201
      %v4234 = vld [vmem:[%s3651 + $0x6] sm:$0xff]
      %v4235 = vld [vmem:[%s3651 + $0xe] sm:$0xff]
      %v4236 = vld [vmem:[%s3651 + $0x1e] sm:$0xff]
      %v4237 = vld [vmem:[%s3651 + $0x26] sm:$0xff]
      %v4238 = vld [vmem:[%s3651 + $0x36] sm:$0xff]
      %v4239 = vld [vmem:[%s3651 + $0x3e] sm:$0xff]
      %v4240 = vld [vmem:[%s3651 + $0x4e] sm:$0xff]
      %v4241 = vld [vmem:[%s3651 + $0x56] sm:$0xff]
      %v4242 = vld [vmem:[%s3651 + $0x66] sm:$0xff]
      %v4243 = vld [vmem:[%s3651 + $0x6e] sm:$0xff]
      %v4244 = vld [vmem:[%s3651 + $0x7e] sm:$0xff]
      %v4245 = vld [vmem:[%s3651 + $0x86] sm:$0xff]
      %v4246 = vld [vmem:[%s3651 + $0x96] sm:$0xff]
      %v4247 = vld [vmem:[%s3651 + $0x9e] sm:$0xff]
      %v4248 = vld [vmem:[%s3651 + $0xae] sm:$0xff]
      %v4249 = vld [vmem:[%s3651 + $0xb6] sm:$0xff]
      %v4250 = vld [vmem:[%s3651 + $0xc6] sm:$0xff]
      %v4251 = vld [vmem:[%s3651 + $0xce] sm:$0xff]
      %v4252 = vld [vmem:[%s3651 + $0xde] sm:$0xff]
      %v4253 = vld [vmem:[%s3651 + $0xe6] sm:$0xff]
      %v4254 = vld [vmem:[%s3651 + $0xf6] sm:$0xff]
      %v4255 = vld [vmem:[%s3651 + $0xfe] sm:$0xff]
      %v4256 = vld [vmem:[%s3651 + $0x10e] sm:$0xff]
      %v4257 = vld [vmem:[%s3651 + $0x116] sm:$0xff]
      %v4258 = vld [vmem:[%s3651 + $0x126] sm:$0xff]
      %v4259 = vld [vmem:[%s3651 + $0x12e] sm:$0xff]
      %v4260 = vld [vmem:[%s3651 + $0x13e] sm:$0xff]
      %v4261 = vld [vmem:[%s3651 + $0x146] sm:$0xff]
      %v4262 = vld [vmem:[%s3651 + $0x156] sm:$0xff]
      %v4263 = vld [vmem:[%s3651 + $0x15e] sm:$0xff]
      %v4264 = vld [vmem:[%s3651 + $0x16e] sm:$0xff]
      %v4265 = vld [vmem:[%s3651 + $0x176] sm:$0xff]
      %v4266 = vperm.slane %v282, 1
      %v4267 = vmul.f32 %v4234, %v4266
      %v4268 = vmul.f32 %v4235, %v4266
      %v4269 = vmul.f32 %v4236, %v4266
      %v4270 = vmul.f32 %v4237, %v4266
      %v4271 = vmul.f32 %v4238, %v4266
      %v4272 = vmul.f32 %v4239, %v4266
      %v4273 = vmul.f32 %v4240, %v4266
      %v4274 = vmul.f32 %v4241, %v4266
      %v4275 = vmul.f32 %v4242, %v4266
      %v4276 = vmul.f32 %v4243, %v4266
      %v4277 = vmul.f32 %v4244, %v4266
      %v4278 = vmul.f32 %v4245, %v4266
      %v4279 = vmul.f32 %v4246, %v4266
      %v4280 = vmul.f32 %v4247, %v4266
      %v4281 = vmul.f32 %v4248, %v4266
      %v4282 = vmul.f32 %v4249, %v4266
      %v4283 = vmul.f32 %v4250, %v4266
      %v4284 = vmul.f32 %v4251, %v4266
      %v4285 = vmul.f32 %v4252, %v4266
      %v4286 = vmul.f32 %v4253, %v4266
      %v4287 = vmul.f32 %v4254, %v4266
      %v4288 = vmul.f32 %v4255, %v4266
      %v4289 = vmul.f32 %v4256, %v4266
      %v4290 = vmul.f32 %v4257, %v4266
      %v4291 = vmul.f32 %v4258, %v4266
      %v4292 = vmul.f32 %v4259, %v4266
      %v4293 = vmul.f32 %v4260, %v4266
      %v4294 = vmul.f32 %v4261, %v4266
      %v4295 = vmul.f32 %v4262, %v4266
      %v4296 = vmul.f32 %v4263, %v4266
      %v4297 = vmul.f32 %v4264, %v4266
      %v4298 = vmul.f32 %v4265, %v4266
      %v4299 = vadd.f32 %v4202, %v4267
      %v4300 = vadd.f32 %v4203, %v4268
      %v4301 = vadd.f32 %v4204, %v4269
      %v4302 = vadd.f32 %v4205, %v4270
      %v4303 = vadd.f32 %v4206, %v4271
      %v4304 = vadd.f32 %v4207, %v4272
      %v4305 = vadd.f32 %v4208, %v4273
      %v4306 = vadd.f32 %v4209, %v4274
      %v4307 = vadd.f32 %v4210, %v4275
      %v4308 = vadd.f32 %v4211, %v4276
      %v4309 = vadd.f32 %v4212, %v4277
      %v4310 = vadd.f32 %v4213, %v4278
      %v4311 = vadd.f32 %v4214, %v4279
      %v4312 = vadd.f32 %v4215, %v4280
      %v4313 = vadd.f32 %v4216, %v4281
      %v4314 = vadd.f32 %v4217, %v4282
      %v4315 = vadd.f32 %v4218, %v4283
      %v4316 = vadd.f32 %v4219, %v4284
      %v4317 = vadd.f32 %v4220, %v4285
      %v4318 = vadd.f32 %v4221, %v4286
      %v4319 = vadd.f32 %v4222, %v4287
      %v4320 = vadd.f32 %v4223, %v4288
      %v4321 = vadd.f32 %v4224, %v4289
      %v4322 = vadd.f32 %v4225, %v4290
      %v4323 = vadd.f32 %v4226, %v4291
      %v4324 = vadd.f32 %v4227, %v4292
      %v4325 = vadd.f32 %v4228, %v4293
      %v4326 = vadd.f32 %v4229, %v4294
      %v4327 = vadd.f32 %v4230, %v4295
      %v4328 = vadd.f32 %v4231, %v4296
      %v4329 = vadd.f32 %v4232, %v4297
      %v4330 = vadd.f32 %v4233, %v4298
      %s4331 = scalar_lea.vmem %s234, 144
      %v4332 = vld [vmem:[%s4331] sm:$0xff]
      %v4333 = vld [vmem:[%s4331 + $0x8] sm:$0xff]
      %v4334 = vld [vmem:[%s4331 + $0x18] sm:$0xff]
      %v4335 = vld [vmem:[%s4331 + $0x20] sm:$0xff]
      %v4336 = vld [vmem:[%s4331 + $0x30] sm:$0xff]
      %v4337 = vld [vmem:[%s4331 + $0x38] sm:$0xff]
      %v4338 = vld [vmem:[%s4331 + $0x48] sm:$0xff]
      %v4339 = vld [vmem:[%s4331 + $0x50] sm:$0xff]
      %v4340 = vld [vmem:[%s4331 + $0x60] sm:$0xff]
      %v4341 = vld [vmem:[%s4331 + $0x68] sm:$0xff]
      %v4342 = vld [vmem:[%s4331 + $0x78] sm:$0xff]
      %v4343 = vld [vmem:[%s4331 + $0x80] sm:$0xff]
      %v4344 = vld [vmem:[%s4331 + $0x90] sm:$0xff]
      %v4345 = vld [vmem:[%s4331 + $0x98] sm:$0xff]
      %v4346 = vld [vmem:[%s4331 + $0xa8] sm:$0xff]
      %v4347 = vld [vmem:[%s4331 + $0xb0] sm:$0xff]
      %v4348 = vld [vmem:[%s4331 + $0xc0] sm:$0xff]
      %v4349 = vld [vmem:[%s4331 + $0xc8] sm:$0xff]
      %v4350 = vld [vmem:[%s4331 + $0xd8] sm:$0xff]
      %v4351 = vld [vmem:[%s4331 + $0xe0] sm:$0xff]
      %v4352 = vld [vmem:[%s4331 + $0xf0] sm:$0xff]
      %v4353 = vld [vmem:[%s4331 + $0xf8] sm:$0xff]
      %v4354 = vld [vmem:[%s4331 + $0x108] sm:$0xff]
      %v4355 = vld [vmem:[%s4331 + $0x110] sm:$0xff]
      %v4356 = vld [vmem:[%s4331 + $0x120] sm:$0xff]
      %v4357 = vld [vmem:[%s4331 + $0x128] sm:$0xff]
      %v4358 = vld [vmem:[%s4331 + $0x138] sm:$0xff]
      %v4359 = vld [vmem:[%s4331 + $0x140] sm:$0xff]
      %v4360 = vld [vmem:[%s4331 + $0x150] sm:$0xff]
      %v4361 = vld [vmem:[%s4331 + $0x158] sm:$0xff]
      %v4362 = vld [vmem:[%s4331 + $0x168] sm:$0xff]
      %v4363 = vld [vmem:[%s4331 + $0x170] sm:$0xff]
      %v4364 = vperm.slane %v282, 2
      %v4365 = vmul.f32 %v4332, %v4364
      %v4366 = vmul.f32 %v4333, %v4364
      %v4367 = vmul.f32 %v4334, %v4364
      %v4368 = vmul.f32 %v4335, %v4364
      %v4369 = vmul.f32 %v4336, %v4364
      %v4370 = vmul.f32 %v4337, %v4364
      %v4371 = vmul.f32 %v4338, %v4364
      %v4372 = vmul.f32 %v4339, %v4364
      %v4373 = vmul.f32 %v4340, %v4364
      %v4374 = vmul.f32 %v4341, %v4364
      %v4375 = vmul.f32 %v4342, %v4364
      %v4376 = vmul.f32 %v4343, %v4364
      %v4377 = vmul.f32 %v4344, %v4364
      %v4378 = vmul.f32 %v4345, %v4364
      %v4379 = vmul.f32 %v4346, %v4364
      %v4380 = vmul.f32 %v4347, %v4364
      %v4381 = vmul.f32 %v4348, %v4364
      %v4382 = vmul.f32 %v4349, %v4364
      %v4383 = vmul.f32 %v4350, %v4364
      %v4384 = vmul.f32 %v4351, %v4364
      %v4385 = vmul.f32 %v4352, %v4364
      %v4386 = vmul.f32 %v4353, %v4364
      %v4387 = vmul.f32 %v4354, %v4364
      %v4388 = vmul.f32 %v4355, %v4364
      %v4389 = vmul.f32 %v4356, %v4364
      %v4390 = vmul.f32 %v4357, %v4364
      %v4391 = vmul.f32 %v4358, %v4364
      %v4392 = vmul.f32 %v4359, %v4364
      %v4393 = vmul.f32 %v4360, %v4364
      %v4394 = vmul.f32 %v4361, %v4364
      %v4395 = vmul.f32 %v4362, %v4364
      %v4396 = vmul.f32 %v4363, %v4364
      %v4397 = vadd.f32 %v4299, %v4365
      %v4398 = vadd.f32 %v4300, %v4366
      %v4399 = vadd.f32 %v4301, %v4367
      %v4400 = vadd.f32 %v4302, %v4368
      %v4401 = vadd.f32 %v4303, %v4369
      %v4402 = vadd.f32 %v4304, %v4370
      %v4403 = vadd.f32 %v4305, %v4371
      %v4404 = vadd.f32 %v4306, %v4372
      %v4405 = vadd.f32 %v4307, %v4373
      %v4406 = vadd.f32 %v4308, %v4374
      %v4407 = vadd.f32 %v4309, %v4375
      %v4408 = vadd.f32 %v4310, %v4376
      %v4409 = vadd.f32 %v4311, %v4377
      %v4410 = vadd.f32 %v4312, %v4378
      %v4411 = vadd.f32 %v4313, %v4379
      %v4412 = vadd.f32 %v4314, %v4380
      %v4413 = vadd.f32 %v4315, %v4381
      %v4414 = vadd.f32 %v4316, %v4382
      %v4415 = vadd.f32 %v4317, %v4383
      %v4416 = vadd.f32 %v4318, %v4384
      %v4417 = vadd.f32 %v4319, %v4385
      %v4418 = vadd.f32 %v4320, %v4386
      %v4419 = vadd.f32 %v4321, %v4387
      %v4420 = vadd.f32 %v4322, %v4388
      %v4421 = vadd.f32 %v4323, %v4389
      %v4422 = vadd.f32 %v4324, %v4390
      %v4423 = vadd.f32 %v4325, %v4391
      %v4424 = vadd.f32 %v4326, %v4392
      %v4425 = vadd.f32 %v4327, %v4393
      %v4426 = vadd.f32 %v4328, %v4394
      %v4427 = vadd.f32 %v4329, %v4395
      %v4428 = vadd.f32 %v4330, %v4396
      %v4429 = vld [vmem:[%s4331 + $0x1] sm:$0xff]
      %v4430 = vld [vmem:[%s4331 + $0x9] sm:$0xff]
      %v4431 = vld [vmem:[%s4331 + $0x19] sm:$0xff]
      %v4432 = vld [vmem:[%s4331 + $0x21] sm:$0xff]
      %v4433 = vld [vmem:[%s4331 + $0x31] sm:$0xff]
      %v4434 = vld [vmem:[%s4331 + $0x39] sm:$0xff]
      %v4435 = vld [vmem:[%s4331 + $0x49] sm:$0xff]
      %v4436 = vld [vmem:[%s4331 + $0x51] sm:$0xff]
      %v4437 = vld [vmem:[%s4331 + $0x61] sm:$0xff]
      %v4438 = vld [vmem:[%s4331 + $0x69] sm:$0xff]
      %v4439 = vld [vmem:[%s4331 + $0x79] sm:$0xff]
      %v4440 = vld [vmem:[%s4331 + $0x81] sm:$0xff]
      %v4441 = vld [vmem:[%s4331 + $0x91] sm:$0xff]
      %v4442 = vld [vmem:[%s4331 + $0x99] sm:$0xff]
      %v4443 = vld [vmem:[%s4331 + $0xa9] sm:$0xff]
      %v4444 = vld [vmem:[%s4331 + $0xb1] sm:$0xff]
      %v4445 = vld [vmem:[%s4331 + $0xc1] sm:$0xff]
      %v4446 = vld [vmem:[%s4331 + $0xc9] sm:$0xff]
      %v4447 = vld [vmem:[%s4331 + $0xd9] sm:$0xff]
      %v4448 = vld [vmem:[%s4331 + $0xe1] sm:$0xff]
      %v4449 = vld [vmem:[%s4331 + $0xf1] sm:$0xff]
      %v4450 = vld [vmem:[%s4331 + $0xf9] sm:$0xff]
      %v4451 = vld [vmem:[%s4331 + $0x109] sm:$0xff]
      %v4452 = vld [vmem:[%s4331 + $0x111] sm:$0xff]
      %v4453 = vld [vmem:[%s4331 + $0x121] sm:$0xff]
      %v4454 = vld [vmem:[%s4331 + $0x129] sm:$0xff]
      %v4455 = vld [vmem:[%s4331 + $0x139] sm:$0xff]
      %v4456 = vld [vmem:[%s4331 + $0x141] sm:$0xff]
      %v4457 = vld [vmem:[%s4331 + $0x151] sm:$0xff]
      %v4458 = vld [vmem:[%s4331 + $0x159] sm:$0xff]
      %v4459 = vld [vmem:[%s4331 + $0x169] sm:$0xff]
      %v4460 = vld [vmem:[%s4331 + $0x171] sm:$0xff]
      %v4461 = vperm.slane %v282, 3
      %v4462 = vmul.f32 %v4429, %v4461
      %v4463 = vmul.f32 %v4430, %v4461
      %v4464 = vmul.f32 %v4431, %v4461
      %v4465 = vmul.f32 %v4432, %v4461
      %v4466 = vmul.f32 %v4433, %v4461
      %v4467 = vmul.f32 %v4434, %v4461
      %v4468 = vmul.f32 %v4435, %v4461
      %v4469 = vmul.f32 %v4436, %v4461
      %v4470 = vmul.f32 %v4437, %v4461
      %v4471 = vmul.f32 %v4438, %v4461
      %v4472 = vmul.f32 %v4439, %v4461
      %v4473 = vmul.f32 %v4440, %v4461
      %v4474 = vmul.f32 %v4441, %v4461
      %v4475 = vmul.f32 %v4442, %v4461
      %v4476 = vmul.f32 %v4443, %v4461
      %v4477 = vmul.f32 %v4444, %v4461
      %v4478 = vmul.f32 %v4445, %v4461
      %v4479 = vmul.f32 %v4446, %v4461
      %v4480 = vmul.f32 %v4447, %v4461
      %v4481 = vmul.f32 %v4448, %v4461
      %v4482 = vmul.f32 %v4449, %v4461
      %v4483 = vmul.f32 %v4450, %v4461
      %v4484 = vmul.f32 %v4451, %v4461
      %v4485 = vmul.f32 %v4452, %v4461
      %v4486 = vmul.f32 %v4453, %v4461
      %v4487 = vmul.f32 %v4454, %v4461
      %v4488 = vmul.f32 %v4455, %v4461
      %v4489 = vmul.f32 %v4456, %v4461
      %v4490 = vmul.f32 %v4457, %v4461
      %v4491 = vmul.f32 %v4458, %v4461
      %v4492 = vmul.f32 %v4459, %v4461
      %v4493 = vmul.f32 %v4460, %v4461
      %v4494 = vadd.f32 %v4397, %v4462
      %v4495 = vadd.f32 %v4398, %v4463
      %v4496 = vadd.f32 %v4399, %v4464
      %v4497 = vadd.f32 %v4400, %v4465
      %v4498 = vadd.f32 %v4401, %v4466
      %v4499 = vadd.f32 %v4402, %v4467
      %v4500 = vadd.f32 %v4403, %v4468
      %v4501 = vadd.f32 %v4404, %v4469
      %v4502 = vadd.f32 %v4405, %v4470
      %v4503 = vadd.f32 %v4406, %v4471
      %v4504 = vadd.f32 %v4407, %v4472
      %v4505 = vadd.f32 %v4408, %v4473
      %v4506 = vadd.f32 %v4409, %v4474
      %v4507 = vadd.f32 %v4410, %v4475
      %v4508 = vadd.f32 %v4411, %v4476
      %v4509 = vadd.f32 %v4412, %v4477
      %v4510 = vadd.f32 %v4413, %v4478
      %v4511 = vadd.f32 %v4414, %v4479
      %v4512 = vadd.f32 %v4415, %v4480
      %v4513 = vadd.f32 %v4416, %v4481
      %v4514 = vadd.f32 %v4417, %v4482
      %v4515 = vadd.f32 %v4418, %v4483
      %v4516 = vadd.f32 %v4419, %v4484
      %v4517 = vadd.f32 %v4420, %v4485
      %v4518 = vadd.f32 %v4421, %v4486
      %v4519 = vadd.f32 %v4422, %v4487
      %v4520 = vadd.f32 %v4423, %v4488
      %v4521 = vadd.f32 %v4424, %v4489
      %v4522 = vadd.f32 %v4425, %v4490
      %v4523 = vadd.f32 %v4426, %v4491
      %v4524 = vadd.f32 %v4427, %v4492
      %v4525 = vadd.f32 %v4428, %v4493
      %v4526 = vld [vmem:[%s4331 + $0x2] sm:$0xff]
      %v4527 = vld [vmem:[%s4331 + $0xa] sm:$0xff]
      %v4528 = vld [vmem:[%s4331 + $0x1a] sm:$0xff]
      %v4529 = vld [vmem:[%s4331 + $0x22] sm:$0xff]
      %v4530 = vld [vmem:[%s4331 + $0x32] sm:$0xff]
      %v4531 = vld [vmem:[%s4331 + $0x3a] sm:$0xff]
      %v4532 = vld [vmem:[%s4331 + $0x4a] sm:$0xff]
      %v4533 = vld [vmem:[%s4331 + $0x52] sm:$0xff]
      %v4534 = vld [vmem:[%s4331 + $0x62] sm:$0xff]
      %v4535 = vld [vmem:[%s4331 + $0x6a] sm:$0xff]
      %v4536 = vld [vmem:[%s4331 + $0x7a] sm:$0xff]
      %v4537 = vld [vmem:[%s4331 + $0x82] sm:$0xff]
      %v4538 = vld [vmem:[%s4331 + $0x92] sm:$0xff]
      %v4539 = vld [vmem:[%s4331 + $0x9a] sm:$0xff]
      %v4540 = vld [vmem:[%s4331 + $0xaa] sm:$0xff]
      %v4541 = vld [vmem:[%s4331 + $0xb2] sm:$0xff]
      %v4542 = vld [vmem:[%s4331 + $0xc2] sm:$0xff]
      %v4543 = vld [vmem:[%s4331 + $0xca] sm:$0xff]
      %v4544 = vld [vmem:[%s4331 + $0xda] sm:$0xff]
      %v4545 = vld [vmem:[%s4331 + $0xe2] sm:$0xff]
      %v4546 = vld [vmem:[%s4331 + $0xf2] sm:$0xff]
      %v4547 = vld [vmem:[%s4331 + $0xfa] sm:$0xff]
      %v4548 = vld [vmem:[%s4331 + $0x10a] sm:$0xff]
      %v4549 = vld [vmem:[%s4331 + $0x112] sm:$0xff]
      %v4550 = vld [vmem:[%s4331 + $0x122] sm:$0xff]
      %v4551 = vld [vmem:[%s4331 + $0x12a] sm:$0xff]
      %v4552 = vld [vmem:[%s4331 + $0x13a] sm:$0xff]
      %v4553 = vld [vmem:[%s4331 + $0x142] sm:$0xff]
      %v4554 = vld [vmem:[%s4331 + $0x152] sm:$0xff]
      %v4555 = vld [vmem:[%s4331 + $0x15a] sm:$0xff]
      %v4556 = vld [vmem:[%s4331 + $0x16a] sm:$0xff]
      %v4557 = vld [vmem:[%s4331 + $0x172] sm:$0xff]
      %v4558 = vperm.slane %v282, 4
      %v4559 = vmul.f32 %v4526, %v4558
      %v4560 = vmul.f32 %v4527, %v4558
      %v4561 = vmul.f32 %v4528, %v4558
      %v4562 = vmul.f32 %v4529, %v4558
      %v4563 = vmul.f32 %v4530, %v4558
      %v4564 = vmul.f32 %v4531, %v4558
      %v4565 = vmul.f32 %v4532, %v4558
      %v4566 = vmul.f32 %v4533, %v4558
      %v4567 = vmul.f32 %v4534, %v4558
      %v4568 = vmul.f32 %v4535, %v4558
      %v4569 = vmul.f32 %v4536, %v4558
      %v4570 = vmul.f32 %v4537, %v4558
      %v4571 = vmul.f32 %v4538, %v4558
      %v4572 = vmul.f32 %v4539, %v4558
      %v4573 = vmul.f32 %v4540, %v4558
      %v4574 = vmul.f32 %v4541, %v4558
      %v4575 = vmul.f32 %v4542, %v4558
      %v4576 = vmul.f32 %v4543, %v4558
      %v4577 = vmul.f32 %v4544, %v4558
      %v4578 = vmul.f32 %v4545, %v4558
      %v4579 = vmul.f32 %v4546, %v4558
      %v4580 = vmul.f32 %v4547, %v4558
      %v4581 = vmul.f32 %v4548, %v4558
      %v4582 = vmul.f32 %v4549, %v4558
      %v4583 = vmul.f32 %v4550, %v4558
      %v4584 = vmul.f32 %v4551, %v4558
      %v4585 = vmul.f32 %v4552, %v4558
      %v4586 = vmul.f32 %v4553, %v4558
      %v4587 = vmul.f32 %v4554, %v4558
      %v4588 = vmul.f32 %v4555, %v4558
      %v4589 = vmul.f32 %v4556, %v4558
      %v4590 = vmul.f32 %v4557, %v4558
      %v4591 = vadd.f32 %v4494, %v4559
      %v4592 = vadd.f32 %v4495, %v4560
      %v4593 = vadd.f32 %v4496, %v4561
      %v4594 = vadd.f32 %v4497, %v4562
      %v4595 = vadd.f32 %v4498, %v4563
      %v4596 = vadd.f32 %v4499, %v4564
      %v4597 = vadd.f32 %v4500, %v4565
      %v4598 = vadd.f32 %v4501, %v4566
      %v4599 = vadd.f32 %v4502, %v4567
      %v4600 = vadd.f32 %v4503, %v4568
      %v4601 = vadd.f32 %v4504, %v4569
      %v4602 = vadd.f32 %v4505, %v4570
      %v4603 = vadd.f32 %v4506, %v4571
      %v4604 = vadd.f32 %v4507, %v4572
      %v4605 = vadd.f32 %v4508, %v4573
      %v4606 = vadd.f32 %v4509, %v4574
      %v4607 = vadd.f32 %v4510, %v4575
      %v4608 = vadd.f32 %v4511, %v4576
      %v4609 = vadd.f32 %v4512, %v4577
      %v4610 = vadd.f32 %v4513, %v4578
      %v4611 = vadd.f32 %v4514, %v4579
      %v4612 = vadd.f32 %v4515, %v4580
      %v4613 = vadd.f32 %v4516, %v4581
      %v4614 = vadd.f32 %v4517, %v4582
      %v4615 = vadd.f32 %v4518, %v4583
      %v4616 = vadd.f32 %v4519, %v4584
      %v4617 = vadd.f32 %v4520, %v4585
      %v4618 = vadd.f32 %v4521, %v4586
      %v4619 = vadd.f32 %v4522, %v4587
      %v4620 = vadd.f32 %v4523, %v4588
      %v4621 = vadd.f32 %v4524, %v4589
      %v4622 = vadd.f32 %v4525, %v4590
      %v4623 = vld [vmem:[%s4331 + $0x3] sm:$0xff]
      %v4624 = vld [vmem:[%s4331 + $0xb] sm:$0xff]
      %v4625 = vld [vmem:[%s4331 + $0x1b] sm:$0xff]
      %v4626 = vld [vmem:[%s4331 + $0x23] sm:$0xff]
      %v4627 = vld [vmem:[%s4331 + $0x33] sm:$0xff]
      %v4628 = vld [vmem:[%s4331 + $0x3b] sm:$0xff]
      %v4629 = vld [vmem:[%s4331 + $0x4b] sm:$0xff]
      %v4630 = vld [vmem:[%s4331 + $0x53] sm:$0xff]
      %v4631 = vld [vmem:[%s4331 + $0x63] sm:$0xff]
      %v4632 = vld [vmem:[%s4331 + $0x6b] sm:$0xff]
      %v4633 = vld [vmem:[%s4331 + $0x7b] sm:$0xff]
      %v4634 = vld [vmem:[%s4331 + $0x83] sm:$0xff]
      %v4635 = vld [vmem:[%s4331 + $0x93] sm:$0xff]
      %v4636 = vld [vmem:[%s4331 + $0x9b] sm:$0xff]
      %v4637 = vld [vmem:[%s4331 + $0xab] sm:$0xff]
      %v4638 = vld [vmem:[%s4331 + $0xb3] sm:$0xff]
      %v4639 = vld [vmem:[%s4331 + $0xc3] sm:$0xff]
      %v4640 = vld [vmem:[%s4331 + $0xcb] sm:$0xff]
      %v4641 = vld [vmem:[%s4331 + $0xdb] sm:$0xff]
      %v4642 = vld [vmem:[%s4331 + $0xe3] sm:$0xff]
      %v4643 = vld [vmem:[%s4331 + $0xf3] sm:$0xff]
      %v4644 = vld [vmem:[%s4331 + $0xfb] sm:$0xff]
      %v4645 = vld [vmem:[%s4331 + $0x10b] sm:$0xff]
      %v4646 = vld [vmem:[%s4331 + $0x113] sm:$0xff]
      %v4647 = vld [vmem:[%s4331 + $0x123] sm:$0xff]
      %v4648 = vld [vmem:[%s4331 + $0x12b] sm:$0xff]
      %v4649 = vld [vmem:[%s4331 + $0x13b] sm:$0xff]
      %v4650 = vld [vmem:[%s4331 + $0x143] sm:$0xff]
      %v4651 = vld [vmem:[%s4331 + $0x153] sm:$0xff]
      %v4652 = vld [vmem:[%s4331 + $0x15b] sm:$0xff]
      %v4653 = vld [vmem:[%s4331 + $0x16b] sm:$0xff]
      %v4654 = vld [vmem:[%s4331 + $0x173] sm:$0xff]
      %v4655 = vperm.slane %v282, 5
      %v4656 = vmul.f32 %v4623, %v4655
      %v4657 = vmul.f32 %v4624, %v4655
      %v4658 = vmul.f32 %v4625, %v4655
      %v4659 = vmul.f32 %v4626, %v4655
      %v4660 = vmul.f32 %v4627, %v4655
      %v4661 = vmul.f32 %v4628, %v4655
      %v4662 = vmul.f32 %v4629, %v4655
      %v4663 = vmul.f32 %v4630, %v4655
      %v4664 = vmul.f32 %v4631, %v4655
      %v4665 = vmul.f32 %v4632, %v4655
      %v4666 = vmul.f32 %v4633, %v4655
      %v4667 = vmul.f32 %v4634, %v4655
      %v4668 = vmul.f32 %v4635, %v4655
      %v4669 = vmul.f32 %v4636, %v4655
      %v4670 = vmul.f32 %v4637, %v4655
      %v4671 = vmul.f32 %v4638, %v4655
      %v4672 = vmul.f32 %v4639, %v4655
      %v4673 = vmul.f32 %v4640, %v4655
      %v4674 = vmul.f32 %v4641, %v4655
      %v4675 = vmul.f32 %v4642, %v4655
      %v4676 = vmul.f32 %v4643, %v4655
      %v4677 = vmul.f32 %v4644, %v4655
      %v4678 = vmul.f32 %v4645, %v4655
      %v4679 = vmul.f32 %v4646, %v4655
      %v4680 = vmul.f32 %v4647, %v4655
      %v4681 = vmul.f32 %v4648, %v4655
      %v4682 = vmul.f32 %v4649, %v4655
      %v4683 = vmul.f32 %v4650, %v4655
      %v4684 = vmul.f32 %v4651, %v4655
      %v4685 = vmul.f32 %v4652, %v4655
      %v4686 = vmul.f32 %v4653, %v4655
      %v4687 = vmul.f32 %v4654, %v4655
      %v4688 = vadd.f32 %v4591, %v4656
      %v4689 = vadd.f32 %v4592, %v4657
      %v4690 = vadd.f32 %v4593, %v4658
      %v4691 = vadd.f32 %v4594, %v4659
      %v4692 = vadd.f32 %v4595, %v4660
      %v4693 = vadd.f32 %v4596, %v4661
      %v4694 = vadd.f32 %v4597, %v4662
      %v4695 = vadd.f32 %v4598, %v4663
      %v4696 = vadd.f32 %v4599, %v4664
      %v4697 = vadd.f32 %v4600, %v4665
      %v4698 = vadd.f32 %v4601, %v4666
      %v4699 = vadd.f32 %v4602, %v4667
      %v4700 = vadd.f32 %v4603, %v4668
      %v4701 = vadd.f32 %v4604, %v4669
      %v4702 = vadd.f32 %v4605, %v4670
      %v4703 = vadd.f32 %v4606, %v4671
      %v4704 = vadd.f32 %v4607, %v4672
      %v4705 = vadd.f32 %v4608, %v4673
      %v4706 = vadd.f32 %v4609, %v4674
      %v4707 = vadd.f32 %v4610, %v4675
      %v4708 = vadd.f32 %v4611, %v4676
      %v4709 = vadd.f32 %v4612, %v4677
      %v4710 = vadd.f32 %v4613, %v4678
      %v4711 = vadd.f32 %v4614, %v4679
      %v4712 = vadd.f32 %v4615, %v4680
      %v4713 = vadd.f32 %v4616, %v4681
      %v4714 = vadd.f32 %v4617, %v4682
      %v4715 = vadd.f32 %v4618, %v4683
      %v4716 = vadd.f32 %v4619, %v4684
      %v4717 = vadd.f32 %v4620, %v4685
      %v4718 = vadd.f32 %v4621, %v4686
      %v4719 = vadd.f32 %v4622, %v4687
      %v4720 = vld [vmem:[%s4331 + $0x4] sm:$0xff]
      %v4721 = vld [vmem:[%s4331 + $0xc] sm:$0xff]
      %v4722 = vld [vmem:[%s4331 + $0x1c] sm:$0xff]
      %v4723 = vld [vmem:[%s4331 + $0x24] sm:$0xff]
      %v4724 = vld [vmem:[%s4331 + $0x34] sm:$0xff]
      %v4725 = vld [vmem:[%s4331 + $0x3c] sm:$0xff]
      %v4726 = vld [vmem:[%s4331 + $0x4c] sm:$0xff]
      %v4727 = vld [vmem:[%s4331 + $0x54] sm:$0xff]
      %v4728 = vld [vmem:[%s4331 + $0x64] sm:$0xff]
      %v4729 = vld [vmem:[%s4331 + $0x6c] sm:$0xff]
      %v4730 = vld [vmem:[%s4331 + $0x7c] sm:$0xff]
      %v4731 = vld [vmem:[%s4331 + $0x84] sm:$0xff]
      %v4732 = vld [vmem:[%s4331 + $0x94] sm:$0xff]
      %v4733 = vld [vmem:[%s4331 + $0x9c] sm:$0xff]
      %v4734 = vld [vmem:[%s4331 + $0xac] sm:$0xff]
      %v4735 = vld [vmem:[%s4331 + $0xb4] sm:$0xff]
      %v4736 = vld [vmem:[%s4331 + $0xc4] sm:$0xff]
      %v4737 = vld [vmem:[%s4331 + $0xcc] sm:$0xff]
      %v4738 = vld [vmem:[%s4331 + $0xdc] sm:$0xff]
      %v4739 = vld [vmem:[%s4331 + $0xe4] sm:$0xff]
      %v4740 = vld [vmem:[%s4331 + $0xf4] sm:$0xff]
      %v4741 = vld [vmem:[%s4331 + $0xfc] sm:$0xff]
      %v4742 = vld [vmem:[%s4331 + $0x10c] sm:$0xff]
      %v4743 = vld [vmem:[%s4331 + $0x114] sm:$0xff]
      %v4744 = vld [vmem:[%s4331 + $0x124] sm:$0xff]
      %v4745 = vld [vmem:[%s4331 + $0x12c] sm:$0xff]
      %v4746 = vld [vmem:[%s4331 + $0x13c] sm:$0xff]
      %v4747 = vld [vmem:[%s4331 + $0x144] sm:$0xff]
      %v4748 = vld [vmem:[%s4331 + $0x154] sm:$0xff]
      %v4749 = vld [vmem:[%s4331 + $0x15c] sm:$0xff]
      %v4750 = vld [vmem:[%s4331 + $0x16c] sm:$0xff]
      %v4751 = vld [vmem:[%s4331 + $0x174] sm:$0xff]
      %v4752 = vperm.slane %v282, 6
      %v4753 = vmul.f32 %v4720, %v4752
      %v4754 = vmul.f32 %v4721, %v4752
      %v4755 = vmul.f32 %v4722, %v4752
      %v4756 = vmul.f32 %v4723, %v4752
      %v4757 = vmul.f32 %v4724, %v4752
      %v4758 = vmul.f32 %v4725, %v4752
      %v4759 = vmul.f32 %v4726, %v4752
      %v4760 = vmul.f32 %v4727, %v4752
      %v4761 = vmul.f32 %v4728, %v4752
      %v4762 = vmul.f32 %v4729, %v4752
      %v4763 = vmul.f32 %v4730, %v4752
      %v4764 = vmul.f32 %v4731, %v4752
      %v4765 = vmul.f32 %v4732, %v4752
      %v4766 = vmul.f32 %v4733, %v4752
      %v4767 = vmul.f32 %v4734, %v4752
      %v4768 = vmul.f32 %v4735, %v4752
      %v4769 = vmul.f32 %v4736, %v4752
      %v4770 = vmul.f32 %v4737, %v4752
      %v4771 = vmul.f32 %v4738, %v4752
      %v4772 = vmul.f32 %v4739, %v4752
      %v4773 = vmul.f32 %v4740, %v4752
      %v4774 = vmul.f32 %v4741, %v4752
      %v4775 = vmul.f32 %v4742, %v4752
      %v4776 = vmul.f32 %v4743, %v4752
      %v4777 = vmul.f32 %v4744, %v4752
      %v4778 = vmul.f32 %v4745, %v4752
      %v4779 = vmul.f32 %v4746, %v4752
      %v4780 = vmul.f32 %v4747, %v4752
      %v4781 = vmul.f32 %v4748, %v4752
      %v4782 = vmul.f32 %v4749, %v4752
      %v4783 = vmul.f32 %v4750, %v4752
      %v4784 = vmul.f32 %v4751, %v4752
      %v4785 = vadd.f32 %v4688, %v4753
      %v4786 = vadd.f32 %v4689, %v4754
      %v4787 = vadd.f32 %v4690, %v4755
      %v4788 = vadd.f32 %v4691, %v4756
      %v4789 = vadd.f32 %v4692, %v4757
      %v4790 = vadd.f32 %v4693, %v4758
      %v4791 = vadd.f32 %v4694, %v4759
      %v4792 = vadd.f32 %v4695, %v4760
      %v4793 = vadd.f32 %v4696, %v4761
      %v4794 = vadd.f32 %v4697, %v4762
      %v4795 = vadd.f32 %v4698, %v4763
      %v4796 = vadd.f32 %v4699, %v4764
      %v4797 = vadd.f32 %v4700, %v4765
      %v4798 = vadd.f32 %v4701, %v4766
      %v4799 = vadd.f32 %v4702, %v4767
      %v4800 = vadd.f32 %v4703, %v4768
      %v4801 = vadd.f32 %v4704, %v4769
      %v4802 = vadd.f32 %v4705, %v4770
      %v4803 = vadd.f32 %v4706, %v4771
      %v4804 = vadd.f32 %v4707, %v4772
      %v4805 = vadd.f32 %v4708, %v4773
      %v4806 = vadd.f32 %v4709, %v4774
      %v4807 = vadd.f32 %v4710, %v4775
      %v4808 = vadd.f32 %v4711, %v4776
      %v4809 = vadd.f32 %v4712, %v4777
      %v4810 = vadd.f32 %v4713, %v4778
      %v4811 = vadd.f32 %v4714, %v4779
      %v4812 = vadd.f32 %v4715, %v4780
      %v4813 = vadd.f32 %v4716, %v4781
      %v4814 = vadd.f32 %v4717, %v4782
      %v4815 = vadd.f32 %v4718, %v4783
      %v4816 = vadd.f32 %v4719, %v4784
      %v4817 = vld [vmem:[%s4331 + $0x5] sm:$0xff]
      %v4818 = vld [vmem:[%s4331 + $0xd] sm:$0xff]
      %v4819 = vld [vmem:[%s4331 + $0x1d] sm:$0xff]
      %v4820 = vld [vmem:[%s4331 + $0x25] sm:$0xff]
      %v4821 = vld [vmem:[%s4331 + $0x35] sm:$0xff]
      %v4822 = vld [vmem:[%s4331 + $0x3d] sm:$0xff]
      %v4823 = vld [vmem:[%s4331 + $0x4d] sm:$0xff]
      %v4824 = vld [vmem:[%s4331 + $0x55] sm:$0xff]
      %v4825 = vld [vmem:[%s4331 + $0x65] sm:$0xff]
      %v4826 = vld [vmem:[%s4331 + $0x6d] sm:$0xff]
      %v4827 = vld [vmem:[%s4331 + $0x7d] sm:$0xff]
      %v4828 = vld [vmem:[%s4331 + $0x85] sm:$0xff]
      %v4829 = vld [vmem:[%s4331 + $0x95] sm:$0xff]
      %v4830 = vld [vmem:[%s4331 + $0x9d] sm:$0xff]
      %v4831 = vld [vmem:[%s4331 + $0xad] sm:$0xff]
      %v4832 = vld [vmem:[%s4331 + $0xb5] sm:$0xff]
      %v4833 = vld [vmem:[%s4331 + $0xc5] sm:$0xff]
      %v4834 = vld [vmem:[%s4331 + $0xcd] sm:$0xff]
      %v4835 = vld [vmem:[%s4331 + $0xdd] sm:$0xff]
      %v4836 = vld [vmem:[%s4331 + $0xe5] sm:$0xff]
      %v4837 = vld [vmem:[%s4331 + $0xf5] sm:$0xff]
      %v4838 = vld [vmem:[%s4331 + $0xfd] sm:$0xff]
      %v4839 = vld [vmem:[%s4331 + $0x10d] sm:$0xff]
      %v4840 = vld [vmem:[%s4331 + $0x115] sm:$0xff]
      %v4841 = vld [vmem:[%s4331 + $0x125] sm:$0xff]
      %v4842 = vld [vmem:[%s4331 + $0x12d] sm:$0xff]
      %v4843 = vld [vmem:[%s4331 + $0x13d] sm:$0xff]
      %v4844 = vld [vmem:[%s4331 + $0x145] sm:$0xff]
      %v4845 = vld [vmem:[%s4331 + $0x155] sm:$0xff]
      %v4846 = vld [vmem:[%s4331 + $0x15d] sm:$0xff]
      %v4847 = vld [vmem:[%s4331 + $0x16d] sm:$0xff]
      %v4848 = vld [vmem:[%s4331 + $0x175] sm:$0xff]
      %v4849 = vperm.slane %v282, 7
      %v4850 = vmul.f32 %v4817, %v4849
      %v4851 = vmul.f32 %v4818, %v4849
      %v4852 = vmul.f32 %v4819, %v4849
      %v4853 = vmul.f32 %v4820, %v4849
      %v4854 = vmul.f32 %v4821, %v4849
      %v4855 = vmul.f32 %v4822, %v4849
      %v4856 = vmul.f32 %v4823, %v4849
      %v4857 = vmul.f32 %v4824, %v4849
      %v4858 = vmul.f32 %v4825, %v4849
      %v4859 = vmul.f32 %v4826, %v4849
      %v4860 = vmul.f32 %v4827, %v4849
      %v4861 = vmul.f32 %v4828, %v4849
      %v4862 = vmul.f32 %v4829, %v4849
      %v4863 = vmul.f32 %v4830, %v4849
      %v4864 = vmul.f32 %v4831, %v4849
      %v4865 = vmul.f32 %v4832, %v4849
      %v4866 = vmul.f32 %v4833, %v4849
      %v4867 = vmul.f32 %v4834, %v4849
      %v4868 = vmul.f32 %v4835, %v4849
      %v4869 = vmul.f32 %v4836, %v4849
      %v4870 = vmul.f32 %v4837, %v4849
      %v4871 = vmul.f32 %v4838, %v4849
      %v4872 = vmul.f32 %v4839, %v4849
      %v4873 = vmul.f32 %v4840, %v4849
      %v4874 = vmul.f32 %v4841, %v4849
      %v4875 = vmul.f32 %v4842, %v4849
      %v4876 = vmul.f32 %v4843, %v4849
      %v4877 = vmul.f32 %v4844, %v4849
      %v4878 = vmul.f32 %v4845, %v4849
      %v4879 = vmul.f32 %v4846, %v4849
      %v4880 = vmul.f32 %v4847, %v4849
      %v4881 = vmul.f32 %v4848, %v4849
      %v4882 = vadd.f32 %v4785, %v4850
      %v4883 = vadd.f32 %v4786, %v4851
      %v4884 = vadd.f32 %v4787, %v4852
      %v4885 = vadd.f32 %v4788, %v4853
      %v4886 = vadd.f32 %v4789, %v4854
      %v4887 = vadd.f32 %v4790, %v4855
      %v4888 = vadd.f32 %v4791, %v4856
      %v4889 = vadd.f32 %v4792, %v4857
      %v4890 = vadd.f32 %v4793, %v4858
      %v4891 = vadd.f32 %v4794, %v4859
      %v4892 = vadd.f32 %v4795, %v4860
      %v4893 = vadd.f32 %v4796, %v4861
      %v4894 = vadd.f32 %v4797, %v4862
      %v4895 = vadd.f32 %v4798, %v4863
      %v4896 = vadd.f32 %v4799, %v4864
      %v4897 = vadd.f32 %v4800, %v4865
      %v4898 = vadd.f32 %v4801, %v4866
      %v4899 = vadd.f32 %v4802, %v4867
      %v4900 = vadd.f32 %v4803, %v4868
      %v4901 = vadd.f32 %v4804, %v4869
      %v4902 = vadd.f32 %v4805, %v4870
      %v4903 = vadd.f32 %v4806, %v4871
      %v4904 = vadd.f32 %v4807, %v4872
      %v4905 = vadd.f32 %v4808, %v4873
      %v4906 = vadd.f32 %v4809, %v4874
      %v4907 = vadd.f32 %v4810, %v4875
      %v4908 = vadd.f32 %v4811, %v4876
      %v4909 = vadd.f32 %v4812, %v4877
      %v4910 = vadd.f32 %v4813, %v4878
      %v4911 = vadd.f32 %v4814, %v4879
      %v4912 = vadd.f32 %v4815, %v4880
      %v4913 = vadd.f32 %v4816, %v4881
      %v4914 = vld [vmem:[%s4331 + $0x6] sm:$0xff]
      %v4915 = vld [vmem:[%s4331 + $0xe] sm:$0xff]
      %v4916 = vld [vmem:[%s4331 + $0x1e] sm:$0xff]
      %v4917 = vld [vmem:[%s4331 + $0x26] sm:$0xff]
      %v4918 = vld [vmem:[%s4331 + $0x36] sm:$0xff]
      %v4919 = vld [vmem:[%s4331 + $0x3e] sm:$0xff]
      %v4920 = vld [vmem:[%s4331 + $0x4e] sm:$0xff]
      %v4921 = vld [vmem:[%s4331 + $0x56] sm:$0xff]
      %v4922 = vld [vmem:[%s4331 + $0x66] sm:$0xff]
      %v4923 = vld [vmem:[%s4331 + $0x6e] sm:$0xff]
      %v4924 = vld [vmem:[%s4331 + $0x7e] sm:$0xff]
      %v4925 = vld [vmem:[%s4331 + $0x86] sm:$0xff]
      %v4926 = vld [vmem:[%s4331 + $0x96] sm:$0xff]
      %v4927 = vld [vmem:[%s4331 + $0x9e] sm:$0xff]
      %v4928 = vld [vmem:[%s4331 + $0xae] sm:$0xff]
      %v4929 = vld [vmem:[%s4331 + $0xb6] sm:$0xff]
      %v4930 = vld [vmem:[%s4331 + $0xc6] sm:$0xff]
      %v4931 = vld [vmem:[%s4331 + $0xce] sm:$0xff]
      %v4932 = vld [vmem:[%s4331 + $0xde] sm:$0xff]
      %v4933 = vld [vmem:[%s4331 + $0xe6] sm:$0xff]
      %v4934 = vld [vmem:[%s4331 + $0xf6] sm:$0xff]
      %v4935 = vld [vmem:[%s4331 + $0xfe] sm:$0xff]
      %v4936 = vld [vmem:[%s4331 + $0x10e] sm:$0xff]
      %v4937 = vld [vmem:[%s4331 + $0x116] sm:$0xff]
      %v4938 = vld [vmem:[%s4331 + $0x126] sm:$0xff]
      %v4939 = vld [vmem:[%s4331 + $0x12e] sm:$0xff]
      %v4940 = vld [vmem:[%s4331 + $0x13e] sm:$0xff]
      %v4941 = vld [vmem:[%s4331 + $0x146] sm:$0xff]
      %v4942 = vld [vmem:[%s4331 + $0x156] sm:$0xff]
      %v4943 = vld [vmem:[%s4331 + $0x15e] sm:$0xff]
      %v4944 = vld [vmem:[%s4331 + $0x16e] sm:$0xff]
      %v4945 = vld [vmem:[%s4331 + $0x176] sm:$0xff]
      %v4946 = vperm.slane %v283, 0
      %v4947 = vmul.f32 %v4914, %v4946
      %v4948 = vmul.f32 %v4915, %v4946
      %v4949 = vmul.f32 %v4916, %v4946
      %v4950 = vmul.f32 %v4917, %v4946
      %v4951 = vmul.f32 %v4918, %v4946
      %v4952 = vmul.f32 %v4919, %v4946
      %v4953 = vmul.f32 %v4920, %v4946
      %v4954 = vmul.f32 %v4921, %v4946
      %v4955 = vmul.f32 %v4922, %v4946
      %v4956 = vmul.f32 %v4923, %v4946
      %v4957 = vmul.f32 %v4924, %v4946
      %v4958 = vmul.f32 %v4925, %v4946
      %v4959 = vmul.f32 %v4926, %v4946
      %v4960 = vmul.f32 %v4927, %v4946
      %v4961 = vmul.f32 %v4928, %v4946
      %v4962 = vmul.f32 %v4929, %v4946
      %v4963 = vmul.f32 %v4930, %v4946
      %v4964 = vmul.f32 %v4931, %v4946
      %v4965 = vmul.f32 %v4932, %v4946
      %v4966 = vmul.f32 %v4933, %v4946
      %v4967 = vmul.f32 %v4934, %v4946
      %v4968 = vmul.f32 %v4935, %v4946
      %v4969 = vmul.f32 %v4936, %v4946
      %v4970 = vmul.f32 %v4937, %v4946
      %v4971 = vmul.f32 %v4938, %v4946
      %v4972 = vmul.f32 %v4939, %v4946
      %v4973 = vmul.f32 %v4940, %v4946
      %v4974 = vmul.f32 %v4941, %v4946
      %v4975 = vmul.f32 %v4942, %v4946
      %v4976 = vmul.f32 %v4943, %v4946
      %v4977 = vmul.f32 %v4944, %v4946
      %v4978 = vmul.f32 %v4945, %v4946
      %v4979 = vadd.f32 %v4882, %v4947
      %v4980 = vadd.f32 %v4883, %v4948
      %v4981 = vadd.f32 %v4884, %v4949
      %v4982 = vadd.f32 %v4885, %v4950
      %v4983 = vadd.f32 %v4886, %v4951
      %v4984 = vadd.f32 %v4887, %v4952
      %v4985 = vadd.f32 %v4888, %v4953
      %v4986 = vadd.f32 %v4889, %v4954
      %v4987 = vadd.f32 %v4890, %v4955
      %v4988 = vadd.f32 %v4891, %v4956
      %v4989 = vadd.f32 %v4892, %v4957
      %v4990 = vadd.f32 %v4893, %v4958
      %v4991 = vadd.f32 %v4894, %v4959
      %v4992 = vadd.f32 %v4895, %v4960
      %v4993 = vadd.f32 %v4896, %v4961
      %v4994 = vadd.f32 %v4897, %v4962
      %v4995 = vadd.f32 %v4898, %v4963
      %v4996 = vadd.f32 %v4899, %v4964
      %v4997 = vadd.f32 %v4900, %v4965
      %v4998 = vadd.f32 %v4901, %v4966
      %v4999 = vadd.f32 %v4902, %v4967
      %v5000 = vadd.f32 %v4903, %v4968
      %v5001 = vadd.f32 %v4904, %v4969
      %v5002 = vadd.f32 %v4905, %v4970
      %v5003 = vadd.f32 %v4906, %v4971
      %v5004 = vadd.f32 %v4907, %v4972
      %v5005 = vadd.f32 %v4908, %v4973
      %v5006 = vadd.f32 %v4909, %v4974
      %v5007 = vadd.f32 %v4910, %v4975
      %v5008 = vadd.f32 %v4911, %v4976
      %v5009 = vadd.f32 %v4912, %v4977
      %v5010 = vadd.f32 %v4913, %v4978
      %v5011 = vmul.f32 %v2000, -1.0
      %v5012 = vmul.f32 %v2001, -1.0
      %v5013 = vmul.f32 %v2002, -1.0
      %v5014 = vmul.f32 %v2003, -1.0
      %v5015 = vmul.f32 %v2004, -1.0
      %v5016 = vmul.f32 %v2005, -1.0
      %v5017 = vmul.f32 %v2006, -1.0
      %v5018 = vmul.f32 %v2007, -1.0
      %v5019 = vmul.f32 %v2008, -1.0
      %v5020 = vmul.f32 %v2009, -1.0
      %v5021 = vmul.f32 %v2010, -1.0
      %v5022 = vmul.f32 %v2011, -1.0
      %v5023 = vmul.f32 %v2012, -1.0
      %v5024 = vmul.f32 %v2013, -1.0
      %v5025 = vmul.f32 %v2014, -1.0
      %v5026 = vmul.f32 %v2015, -1.0
      %v5027 = vmul.f32 %v2016, -1.0
      %v5028 = vmul.f32 %v2017, -1.0
      %v5029 = vmul.f32 %v2018, -1.0
      %v5030 = vmul.f32 %v2019, -1.0
      %v5031 = vmul.f32 %v2020, -1.0
      %v5032 = vmul.f32 %v2021, -1.0
      %v5033 = vmul.f32 %v2022, -1.0
      %v5034 = vmul.f32 %v2023, -1.0
      %v5035 = vmul.f32 %v2024, -1.0
      %v5036 = vmul.f32 %v2025, -1.0
      %v5037 = vmul.f32 %v2026, -1.0
      %v5038 = vmul.f32 %v2027, -1.0
      %v5039 = vmul.f32 %v2028, -1.0
      %v5040 = vmul.f32 %v2029, -1.0
      %v5041 = vmul.f32 %v2030, -1.0
      %v5042 = vmul.f32 %v2031, -1.0
      %v5043 = vadd.f32 %v1806, %v5011
      %v5044 = vadd.f32 %v1807, %v5012
      %v5045 = vadd.f32 %v1808, %v5013
      %v5046 = vadd.f32 %v1809, %v5014
      %v5047 = vadd.f32 %v1810, %v5015
      %v5048 = vadd.f32 %v1811, %v5016
      %v5049 = vadd.f32 %v1812, %v5017
      %v5050 = vadd.f32 %v1813, %v5018
      %v5051 = vadd.f32 %v1814, %v5019
      %v5052 = vadd.f32 %v1815, %v5020
      %v5053 = vadd.f32 %v1816, %v5021
      %v5054 = vadd.f32 %v1817, %v5022
      %v5055 = vadd.f32 %v1818, %v5023
      %v5056 = vadd.f32 %v1819, %v5024
      %v5057 = vadd.f32 %v1820, %v5025
      %v5058 = vadd.f32 %v1821, %v5026
      %v5059 = vadd.f32 %v1822, %v5027
      %v5060 = vadd.f32 %v1823, %v5028
      %v5061 = vadd.f32 %v1824, %v5029
      %v5062 = vadd.f32 %v1825, %v5030
      %v5063 = vadd.f32 %v1826, %v5031
      %v5064 = vadd.f32 %v1827, %v5032
      %v5065 = vadd.f32 %v1828, %v5033
      %v5066 = vadd.f32 %v1829, %v5034
      %v5067 = vadd.f32 %v1830, %v5035
      %v5068 = vadd.f32 %v1831, %v5036
      %v5069 = vadd.f32 %v1832, %v5037
      %v5070 = vadd.f32 %v1833, %v5038
      %v5071 = vadd.f32 %v1834, %v5039
      %v5072 = vadd.f32 %v1835, %v5040
      %v5073 = vadd.f32 %v1836, %v5041
      %v5074 = vadd.f32 %v1837, %v5042
      %v5075 = vmul.f32 %v2486, 2.0
      %v5076 = vmul.f32 %v2487, 2.0
      %v5077 = vmul.f32 %v2488, 2.0
      %v5078 = vmul.f32 %v2489, 2.0
      %v5079 = vmul.f32 %v2490, 2.0
      %v5080 = vmul.f32 %v2491, 2.0
      %v5081 = vmul.f32 %v2492, 2.0
      %v5082 = vmul.f32 %v2493, 2.0
      %v5083 = vmul.f32 %v2494, 2.0
      %v5084 = vmul.f32 %v2495, 2.0
      %v5085 = vmul.f32 %v2496, 2.0
      %v5086 = vmul.f32 %v2497, 2.0
      %v5087 = vmul.f32 %v2498, 2.0
      %v5088 = vmul.f32 %v2499, 2.0
      %v5089 = vmul.f32 %v2500, 2.0
      %v5090 = vmul.f32 %v2501, 2.0
      %v5091 = vmul.f32 %v2502, 2.0
      %v5092 = vmul.f32 %v2503, 2.0
      %v5093 = vmul.f32 %v2504, 2.0
      %v5094 = vmul.f32 %v2505, 2.0
      %v5095 = vmul.f32 %v2506, 2.0
      %v5096 = vmul.f32 %v2507, 2.0
      %v5097 = vmul.f32 %v2508, 2.0
      %v5098 = vmul.f32 %v2509, 2.0
      %v5099 = vmul.f32 %v2510, 2.0
      %v5100 = vmul.f32 %v2511, 2.0
      %v5101 = vmul.f32 %v2512, 2.0
      %v5102 = vmul.f32 %v2513, 2.0
      %v5103 = vmul.f32 %v2514, 2.0
      %v5104 = vmul.f32 %v2515, 2.0
      %v5105 = vmul.f32 %v2516, 2.0
      %v5106 = vmul.f32 %v2517, 2.0
      %v5107 = vadd.f32 %v5043, %v5075
      %v5108 = vadd.f32 %v5044, %v5076
      %v5109 = vadd.f32 %v5045, %v5077
      %v5110 = vadd.f32 %v5046, %v5078
      %v5111 = vadd.f32 %v5047, %v5079
      %v5112 = vadd.f32 %v5048, %v5080
      %v5113 = vadd.f32 %v5049, %v5081
      %v5114 = vadd.f32 %v5050, %v5082
      %v5115 = vadd.f32 %v5051, %v5083
      %v5116 = vadd.f32 %v5052, %v5084
      %v5117 = vadd.f32 %v5053, %v5085
      %v5118 = vadd.f32 %v5054, %v5086
      %v5119 = vadd.f32 %v5055, %v5087
      %v5120 = vadd.f32 %v5056, %v5088
      %v5121 = vadd.f32 %v5057, %v5089
      %v5122 = vadd.f32 %v5058, %v5090
      %v5123 = vadd.f32 %v5059, %v5091
      %v5124 = vadd.f32 %v5060, %v5092
      %v5125 = vadd.f32 %v5061, %v5093
      %v5126 = vadd.f32 %v5062, %v5094
      %v5127 = vadd.f32 %v5063, %v5095
      %v5128 = vadd.f32 %v5064, %v5096
      %v5129 = vadd.f32 %v5065, %v5097
      %v5130 = vadd.f32 %v5066, %v5098
      %v5131 = vadd.f32 %v5067, %v5099
      %v5132 = vadd.f32 %v5068, %v5100
      %v5133 = vadd.f32 %v5069, %v5101
      %v5134 = vadd.f32 %v5070, %v5102
      %v5135 = vadd.f32 %v5071, %v5103
      %v5136 = vadd.f32 %v5072, %v5104
      %v5137 = vadd.f32 %v5073, %v5105
      %v5138 = vadd.f32 %v5074, %v5106
      %v5139 = vmul.f32 %v2680, -2.0
      %v5140 = vmul.f32 %v2681, -2.0
      %v5141 = vmul.f32 %v2682, -2.0
      %v5142 = vmul.f32 %v2683, -2.0
      %v5143 = vmul.f32 %v2684, -2.0
      %v5144 = vmul.f32 %v2685, -2.0
      %v5145 = vmul.f32 %v2686, -2.0
      %v5146 = vmul.f32 %v2687, -2.0
      %v5147 = vmul.f32 %v2688, -2.0
      %v5148 = vmul.f32 %v2689, -2.0
      %v5149 = vmul.f32 %v2690, -2.0
      %v5150 = vmul.f32 %v2691, -2.0
      %v5151 = vmul.f32 %v2692, -2.0
      %v5152 = vmul.f32 %v2693, -2.0
      %v5153 = vmul.f32 %v2694, -2.0
      %v5154 = vmul.f32 %v2695, -2.0
      %v5155 = vmul.f32 %v2696, -2.0
      %v5156 = vmul.f32 %v2697, -2.0
      %v5157 = vmul.f32 %v2698, -2.0
      %v5158 = vmul.f32 %v2699, -2.0
      %v5159 = vmul.f32 %v2700, -2.0
      %v5160 = vmul.f32 %v2701, -2.0
      %v5161 = vmul.f32 %v2702, -2.0
      %v5162 = vmul.f32 %v2703, -2.0
      %v5163 = vmul.f32 %v2704, -2.0
      %v5164 = vmul.f32 %v2705, -2.0
      %v5165 = vmul.f32 %v2706, -2.0
      %v5166 = vmul.f32 %v2707, -2.0
      %v5167 = vmul.f32 %v2708, -2.0
      %v5168 = vmul.f32 %v2709, -2.0
      %v5169 = vmul.f32 %v2710, -2.0
      %v5170 = vmul.f32 %v2711, -2.0
      %v5171 = vadd.f32 %v5107, %v5139
      %v5172 = vadd.f32 %v5108, %v5140
      %v5173 = vadd.f32 %v5109, %v5141
      %v5174 = vadd.f32 %v5110, %v5142
      %v5175 = vadd.f32 %v5111, %v5143
      %v5176 = vadd.f32 %v5112, %v5144
      %v5177 = vadd.f32 %v5113, %v5145
      %v5178 = vadd.f32 %v5114, %v5146
      %v5179 = vadd.f32 %v5115, %v5147
      %v5180 = vadd.f32 %v5116, %v5148
      %v5181 = vadd.f32 %v5117, %v5149
      %v5182 = vadd.f32 %v5118, %v5150
      %v5183 = vadd.f32 %v5119, %v5151
      %v5184 = vadd.f32 %v5120, %v5152
      %v5185 = vadd.f32 %v5121, %v5153
      %v5186 = vadd.f32 %v5122, %v5154
      %v5187 = vadd.f32 %v5123, %v5155
      %v5188 = vadd.f32 %v5124, %v5156
      %v5189 = vadd.f32 %v5125, %v5157
      %v5190 = vadd.f32 %v5126, %v5158
      %v5191 = vadd.f32 %v5127, %v5159
      %v5192 = vadd.f32 %v5128, %v5160
      %v5193 = vadd.f32 %v5129, %v5161
      %v5194 = vadd.f32 %v5130, %v5162
      %v5195 = vadd.f32 %v5131, %v5163
      %v5196 = vadd.f32 %v5132, %v5164
      %v5197 = vadd.f32 %v5133, %v5165
      %v5198 = vadd.f32 %v5134, %v5166
      %v5199 = vadd.f32 %v5135, %v5167
      %v5200 = vadd.f32 %v5136, %v5168
      %v5201 = vadd.f32 %v5137, %v5169
      %v5202 = vadd.f32 %v5138, %v5170
      %v5203 = vadd.f32 %v5171, %v3166
      %v5204 = vadd.f32 %v5172, %v3167
      %v5205 = vadd.f32 %v5173, %v3168
      %v5206 = vadd.f32 %v5174, %v3169
      %v5207 = vadd.f32 %v5175, %v3170
      %v5208 = vadd.f32 %v5176, %v3171
      %v5209 = vadd.f32 %v5177, %v3172
      %v5210 = vadd.f32 %v5178, %v3173
      %v5211 = vadd.f32 %v5179, %v3174
      %v5212 = vadd.f32 %v5180, %v3175
      %v5213 = vadd.f32 %v5181, %v3176
      %v5214 = vadd.f32 %v5182, %v3177
      %v5215 = vadd.f32 %v5183, %v3178
      %v5216 = vadd.f32 %v5184, %v3179
      %v5217 = vadd.f32 %v5185, %v3180
      %v5218 = vadd.f32 %v5186, %v3181
      %v5219 = vadd.f32 %v5187, %v3182
      %v5220 = vadd.f32 %v5188, %v3183
      %v5221 = vadd.f32 %v5189, %v3184
      %v5222 = vadd.f32 %v5190, %v3185
      %v5223 = vadd.f32 %v5191, %v3186
      %v5224 = vadd.f32 %v5192, %v3187
      %v5225 = vadd.f32 %v5193, %v3188
      %v5226 = vadd.f32 %v5194, %v3189
      %v5227 = vadd.f32 %v5195, %v3190
      %v5228 = vadd.f32 %v5196, %v3191
      %v5229 = vadd.f32 %v5197, %v3192
      %v5230 = vadd.f32 %v5198, %v3193
      %v5231 = vadd.f32 %v5199, %v3194
      %v5232 = vadd.f32 %v5200, %v3195
      %v5233 = vadd.f32 %v5201, %v3196
      %v5234 = vadd.f32 %v5202, %v3197
      %v5235 = vmul.f32 %v3360, -1.0
      %v5236 = vmul.f32 %v3361, -1.0
      %v5237 = vmul.f32 %v3362, -1.0
      %v5238 = vmul.f32 %v3363, -1.0
      %v5239 = vmul.f32 %v3364, -1.0
      %v5240 = vmul.f32 %v3365, -1.0
      %v5241 = vmul.f32 %v3366, -1.0
      %v5242 = vmul.f32 %v3367, -1.0
      %v5243 = vmul.f32 %v3368, -1.0
      %v5244 = vmul.f32 %v3369, -1.0
      %v5245 = vmul.f32 %v3370, -1.0
      %v5246 = vmul.f32 %v3371, -1.0
      %v5247 = vmul.f32 %v3372, -1.0
      %v5248 = vmul.f32 %v3373, -1.0
      %v5249 = vmul.f32 %v3374, -1.0
      %v5250 = vmul.f32 %v3375, -1.0
      %v5251 = vmul.f32 %v3376, -1.0
      %v5252 = vmul.f32 %v3377, -1.0
      %v5253 = vmul.f32 %v3378, -1.0
      %v5254 = vmul.f32 %v3379, -1.0
      %v5255 = vmul.f32 %v3380, -1.0
      %v5256 = vmul.f32 %v3381, -1.0
      %v5257 = vmul.f32 %v3382, -1.0
      %v5258 = vmul.f32 %v3383, -1.0
      %v5259 = vmul.f32 %v3384, -1.0
      %v5260 = vmul.f32 %v3385, -1.0
      %v5261 = vmul.f32 %v3386, -1.0
      %v5262 = vmul.f32 %v3387, -1.0
      %v5263 = vmul.f32 %v3388, -1.0
      %v5264 = vmul.f32 %v3389, -1.0
      %v5265 = vmul.f32 %v3390, -1.0
      %v5266 = vmul.f32 %v3391, -1.0
      %v5267 = vadd.f32 %v5203, %v5235
      %v5268 = vadd.f32 %v5204, %v5236
      %v5269 = vadd.f32 %v5205, %v5237
      %v5270 = vadd.f32 %v5206, %v5238
      %v5271 = vadd.f32 %v5207, %v5239
      %v5272 = vadd.f32 %v5208, %v5240
      %v5273 = vadd.f32 %v5209, %v5241
      %v5274 = vadd.f32 %v5210, %v5242
      %v5275 = vadd.f32 %v5211, %v5243
      %v5276 = vadd.f32 %v5212, %v5244
      %v5277 = vadd.f32 %v5213, %v5245
      %v5278 = vadd.f32 %v5214, %v5246
      %v5279 = vadd.f32 %v5215, %v5247
      %v5280 = vadd.f32 %v5216, %v5248
      %v5281 = vadd.f32 %v5217, %v5249
      %v5282 = vadd.f32 %v5218, %v5250
      %v5283 = vadd.f32 %v5219, %v5251
      %v5284 = vadd.f32 %v5220, %v5252
      %v5285 = vadd.f32 %v5221, %v5253
      %v5286 = vadd.f32 %v5222, %v5254
      %v5287 = vadd.f32 %v5223, %v5255
      %v5288 = vadd.f32 %v5224, %v5256
      %v5289 = vadd.f32 %v5225, %v5257
      %v5290 = vadd.f32 %v5226, %v5258
      %v5291 = vadd.f32 %v5227, %v5259
      %v5292 = vadd.f32 %v5228, %v5260
      %v5293 = vadd.f32 %v5229, %v5261
      %v5294 = vadd.f32 %v5230, %v5262
      %v5295 = vadd.f32 %v5231, %v5263
      %v5296 = vadd.f32 %v5232, %v5264
      %v5297 = vadd.f32 %v5233, %v5265
      %v5298 = vadd.f32 %v5234, %v5266
      %v5299 = vand.u32 2147483647, %v5267
      %v5300 = vand.u32 2147483647, %v5268
      %v5301 = vand.u32 2147483647, %v5269
      %v5302 = vand.u32 2147483647, %v5270
      %v5303 = vand.u32 2147483647, %v5271
      %v5304 = vand.u32 2147483647, %v5272
      %v5305 = vand.u32 2147483647, %v5273
      %v5306 = vand.u32 2147483647, %v5274
      %v5307 = vand.u32 2147483647, %v5275
      %v5308 = vand.u32 2147483647, %v5276
      %v5309 = vand.u32 2147483647, %v5277
      %v5310 = vand.u32 2147483647, %v5278
      %v5311 = vand.u32 2147483647, %v5279
      %v5312 = vand.u32 2147483647, %v5280
      %v5313 = vand.u32 2147483647, %v5281
      %v5314 = vand.u32 2147483647, %v5282
      %v5315 = vand.u32 2147483647, %v5283
      %v5316 = vand.u32 2147483647, %v5284
      %v5317 = vand.u32 2147483647, %v5285
      %v5318 = vand.u32 2147483647, %v5286
      %v5319 = vand.u32 2147483647, %v5287
      %v5320 = vand.u32 2147483647, %v5288
      %v5321 = vand.u32 2147483647, %v5289
      %v5322 = vand.u32 2147483647, %v5290
      %v5323 = vand.u32 2147483647, %v5291
      %v5324 = vand.u32 2147483647, %v5292
      %v5325 = vand.u32 2147483647, %v5293
      %v5326 = vand.u32 2147483647, %v5294
      %v5327 = vand.u32 2147483647, %v5295
      %v5328 = vand.u32 2147483647, %v5296
      %v5329 = vand.u32 2147483647, %v5297
      %v5330 = vand.u32 2147483647, %v5298
      %v5331 = vmul.f32 %v1903, 2.0
      %v5332 = vmul.f32 %v1904, 2.0
      %v5333 = vmul.f32 %v1905, 2.0
      %v5334 = vmul.f32 %v1906, 2.0
      %v5335 = vmul.f32 %v1907, 2.0
      %v5336 = vmul.f32 %v1908, 2.0
      %v5337 = vmul.f32 %v1909, 2.0
      %v5338 = vmul.f32 %v1910, 2.0
      %v5339 = vmul.f32 %v1911, 2.0
      %v5340 = vmul.f32 %v1912, 2.0
      %v5341 = vmul.f32 %v1913, 2.0
      %v5342 = vmul.f32 %v1914, 2.0
      %v5343 = vmul.f32 %v1915, 2.0
      %v5344 = vmul.f32 %v1916, 2.0
      %v5345 = vmul.f32 %v1917, 2.0
      %v5346 = vmul.f32 %v1918, 2.0
      %v5347 = vmul.f32 %v1919, 2.0
      %v5348 = vmul.f32 %v1920, 2.0
      %v5349 = vmul.f32 %v1921, 2.0
      %v5350 = vmul.f32 %v1922, 2.0
      %v5351 = vmul.f32 %v1923, 2.0
      %v5352 = vmul.f32 %v1924, 2.0
      %v5353 = vmul.f32 %v1925, 2.0
      %v5354 = vmul.f32 %v1926, 2.0
      %v5355 = vmul.f32 %v1927, 2.0
      %v5356 = vmul.f32 %v1928, 2.0
      %v5357 = vmul.f32 %v1929, 2.0
      %v5358 = vmul.f32 %v1930, 2.0
      %v5359 = vmul.f32 %v1931, 2.0
      %v5360 = vmul.f32 %v1932, 2.0
      %v5361 = vmul.f32 %v1933, 2.0
      %v5362 = vmul.f32 %v1934, 2.0
      %v5363 = vadd.f32 %v1806, %v5331
      %v5364 = vadd.f32 %v1807, %v5332
      %v5365 = vadd.f32 %v1808, %v5333
      %v5366 = vadd.f32 %v1809, %v5334
      %v5367 = vadd.f32 %v1810, %v5335
      %v5368 = vadd.f32 %v1811, %v5336
      %v5369 = vadd.f32 %v1812, %v5337
      %v5370 = vadd.f32 %v1813, %v5338
      %v5371 = vadd.f32 %v1814, %v5339
      %v5372 = vadd.f32 %v1815, %v5340
      %v5373 = vadd.f32 %v1816, %v5341
      %v5374 = vadd.f32 %v1817, %v5342
      %v5375 = vadd.f32 %v1818, %v5343
      %v5376 = vadd.f32 %v1819, %v5344
      %v5377 = vadd.f32 %v1820, %v5345
      %v5378 = vadd.f32 %v1821, %v5346
      %v5379 = vadd.f32 %v1822, %v5347
      %v5380 = vadd.f32 %v1823, %v5348
      %v5381 = vadd.f32 %v1824, %v5349
      %v5382 = vadd.f32 %v1825, %v5350
      %v5383 = vadd.f32 %v1826, %v5351
      %v5384 = vadd.f32 %v1827, %v5352
      %v5385 = vadd.f32 %v1828, %v5353
      %v5386 = vadd.f32 %v1829, %v5354
      %v5387 = vadd.f32 %v1830, %v5355
      %v5388 = vadd.f32 %v1831, %v5356
      %v5389 = vadd.f32 %v1832, %v5357
      %v5390 = vadd.f32 %v1833, %v5358
      %v5391 = vadd.f32 %v1834, %v5359
      %v5392 = vadd.f32 %v1835, %v5360
      %v5393 = vadd.f32 %v1836, %v5361
      %v5394 = vadd.f32 %v1837, %v5362
      %v5395 = vadd.f32 %v5363, %v2000
      %v5396 = vadd.f32 %v5364, %v2001
      %v5397 = vadd.f32 %v5365, %v2002
      %v5398 = vadd.f32 %v5366, %v2003
      %v5399 = vadd.f32 %v5367, %v2004
      %v5400 = vadd.f32 %v5368, %v2005
      %v5401 = vadd.f32 %v5369, %v2006
      %v5402 = vadd.f32 %v5370, %v2007
      %v5403 = vadd.f32 %v5371, %v2008
      %v5404 = vadd.f32 %v5372, %v2009
      %v5405 = vadd.f32 %v5373, %v2010
      %v5406 = vadd.f32 %v5374, %v2011
      %v5407 = vadd.f32 %v5375, %v2012
      %v5408 = vadd.f32 %v5376, %v2013
      %v5409 = vadd.f32 %v5377, %v2014
      %v5410 = vadd.f32 %v5378, %v2015
      %v5411 = vadd.f32 %v5379, %v2016
      %v5412 = vadd.f32 %v5380, %v2017
      %v5413 = vadd.f32 %v5381, %v2018
      %v5414 = vadd.f32 %v5382, %v2019
      %v5415 = vadd.f32 %v5383, %v2020
      %v5416 = vadd.f32 %v5384, %v2021
      %v5417 = vadd.f32 %v5385, %v2022
      %v5418 = vadd.f32 %v5386, %v2023
      %v5419 = vadd.f32 %v5387, %v2024
      %v5420 = vadd.f32 %v5388, %v2025
      %v5421 = vadd.f32 %v5389, %v2026
      %v5422 = vadd.f32 %v5390, %v2027
      %v5423 = vadd.f32 %v5391, %v2028
      %v5424 = vadd.f32 %v5392, %v2029
      %v5425 = vadd.f32 %v5393, %v2030
      %v5426 = vadd.f32 %v5394, %v2031
      %v5427 = vmul.f32 %v3166, -1.0
      %v5428 = vmul.f32 %v3167, -1.0
      %v5429 = vmul.f32 %v3168, -1.0
      %v5430 = vmul.f32 %v3169, -1.0
      %v5431 = vmul.f32 %v3170, -1.0
      %v5432 = vmul.f32 %v3171, -1.0
      %v5433 = vmul.f32 %v3172, -1.0
      %v5434 = vmul.f32 %v3173, -1.0
      %v5435 = vmul.f32 %v3174, -1.0
      %v5436 = vmul.f32 %v3175, -1.0
      %v5437 = vmul.f32 %v3176, -1.0
      %v5438 = vmul.f32 %v3177, -1.0
      %v5439 = vmul.f32 %v3178, -1.0
      %v5440 = vmul.f32 %v3179, -1.0
      %v5441 = vmul.f32 %v3180, -1.0
      %v5442 = vmul.f32 %v3181, -1.0
      %v5443 = vmul.f32 %v3182, -1.0
      %v5444 = vmul.f32 %v3183, -1.0
      %v5445 = vmul.f32 %v3184, -1.0
      %v5446 = vmul.f32 %v3185, -1.0
      %v5447 = vmul.f32 %v3186, -1.0
      %v5448 = vmul.f32 %v3187, -1.0
      %v5449 = vmul.f32 %v3188, -1.0
      %v5450 = vmul.f32 %v3189, -1.0
      %v5451 = vmul.f32 %v3190, -1.0
      %v5452 = vmul.f32 %v3191, -1.0
      %v5453 = vmul.f32 %v3192, -1.0
      %v5454 = vmul.f32 %v3193, -1.0
      %v5455 = vmul.f32 %v3194, -1.0
      %v5456 = vmul.f32 %v3195, -1.0
      %v5457 = vmul.f32 %v3196, -1.0
      %v5458 = vmul.f32 %v3197, -1.0
      %v5459 = vadd.f32 %v5395, %v5427
      %v5460 = vadd.f32 %v5396, %v5428
      %v5461 = vadd.f32 %v5397, %v5429
      %v5462 = vadd.f32 %v5398, %v5430
      %v5463 = vadd.f32 %v5399, %v5431
      %v5464 = vadd.f32 %v5400, %v5432
      %v5465 = vadd.f32 %v5401, %v5433
      %v5466 = vadd.f32 %v5402, %v5434
      %v5467 = vadd.f32 %v5403, %v5435
      %v5468 = vadd.f32 %v5404, %v5436
      %v5469 = vadd.f32 %v5405, %v5437
      %v5470 = vadd.f32 %v5406, %v5438
      %v5471 = vadd.f32 %v5407, %v5439
      %v5472 = vadd.f32 %v5408, %v5440
      %v5473 = vadd.f32 %v5409, %v5441
      %v5474 = vadd.f32 %v5410, %v5442
      %v5475 = vadd.f32 %v5411, %v5443
      %v5476 = vadd.f32 %v5412, %v5444
      %v5477 = vadd.f32 %v5413, %v5445
      %v5478 = vadd.f32 %v5414, %v5446
      %v5479 = vadd.f32 %v5415, %v5447
      %v5480 = vadd.f32 %v5416, %v5448
      %v5481 = vadd.f32 %v5417, %v5449
      %v5482 = vadd.f32 %v5418, %v5450
      %v5483 = vadd.f32 %v5419, %v5451
      %v5484 = vadd.f32 %v5420, %v5452
      %v5485 = vadd.f32 %v5421, %v5453
      %v5486 = vadd.f32 %v5422, %v5454
      %v5487 = vadd.f32 %v5423, %v5455
      %v5488 = vadd.f32 %v5424, %v5456
      %v5489 = vadd.f32 %v5425, %v5457
      %v5490 = vadd.f32 %v5426, %v5458
      %v5491 = vmul.f32 %v3263, -2.0
      %v5492 = vmul.f32 %v3264, -2.0
      %v5493 = vmul.f32 %v3265, -2.0
      %v5494 = vmul.f32 %v3266, -2.0
      %v5495 = vmul.f32 %v3267, -2.0
      %v5496 = vmul.f32 %v3268, -2.0
      %v5497 = vmul.f32 %v3269, -2.0
      %v5498 = vmul.f32 %v3270, -2.0
      %v5499 = vmul.f32 %v3271, -2.0
      %v5500 = vmul.f32 %v3272, -2.0
      %v5501 = vmul.f32 %v3273, -2.0
      %v5502 = vmul.f32 %v3274, -2.0
      %v5503 = vmul.f32 %v3275, -2.0
      %v5504 = vmul.f32 %v3276, -2.0
      %v5505 = vmul.f32 %v3277, -2.0
      %v5506 = vmul.f32 %v3278, -2.0
      %v5507 = vmul.f32 %v3279, -2.0
      %v5508 = vmul.f32 %v3280, -2.0
      %v5509 = vmul.f32 %v3281, -2.0
      %v5510 = vmul.f32 %v3282, -2.0
      %v5511 = vmul.f32 %v3283, -2.0
      %v5512 = vmul.f32 %v3284, -2.0
      %v5513 = vmul.f32 %v3285, -2.0
      %v5514 = vmul.f32 %v3286, -2.0
      %v5515 = vmul.f32 %v3287, -2.0
      %v5516 = vmul.f32 %v3288, -2.0
      %v5517 = vmul.f32 %v3289, -2.0
      %v5518 = vmul.f32 %v3290, -2.0
      %v5519 = vmul.f32 %v3291, -2.0
      %v5520 = vmul.f32 %v3292, -2.0
      %v5521 = vmul.f32 %v3293, -2.0
      %v5522 = vmul.f32 %v3294, -2.0
      %v5523 = vadd.f32 %v5459, %v5491
      %v5524 = vadd.f32 %v5460, %v5492
      %v5525 = vadd.f32 %v5461, %v5493
      %v5526 = vadd.f32 %v5462, %v5494
      %v5527 = vadd.f32 %v5463, %v5495
      %v5528 = vadd.f32 %v5464, %v5496
      %v5529 = vadd.f32 %v5465, %v5497
      %v5530 = vadd.f32 %v5466, %v5498
      %v5531 = vadd.f32 %v5467, %v5499
      %v5532 = vadd.f32 %v5468, %v5500
      %v5533 = vadd.f32 %v5469, %v5501
      %v5534 = vadd.f32 %v5470, %v5502
      %v5535 = vadd.f32 %v5471, %v5503
      %v5536 = vadd.f32 %v5472, %v5504
      %v5537 = vadd.f32 %v5473, %v5505
      %v5538 = vadd.f32 %v5474, %v5506
      %v5539 = vadd.f32 %v5475, %v5507
      %v5540 = vadd.f32 %v5476, %v5508
      %v5541 = vadd.f32 %v5477, %v5509
      %v5542 = vadd.f32 %v5478, %v5510
      %v5543 = vadd.f32 %v5479, %v5511
      %v5544 = vadd.f32 %v5480, %v5512
      %v5545 = vadd.f32 %v5481, %v5513
      %v5546 = vadd.f32 %v5482, %v5514
      %v5547 = vadd.f32 %v5483, %v5515
      %v5548 = vadd.f32 %v5484, %v5516
      %v5549 = vadd.f32 %v5485, %v5517
      %v5550 = vadd.f32 %v5486, %v5518
      %v5551 = vadd.f32 %v5487, %v5519
      %v5552 = vadd.f32 %v5488, %v5520
      %v5553 = vadd.f32 %v5489, %v5521
      %v5554 = vadd.f32 %v5490, %v5522
      %v5555 = vadd.f32 %v5523, %v5235
      %v5556 = vadd.f32 %v5524, %v5236
      %v5557 = vadd.f32 %v5525, %v5237
      %v5558 = vadd.f32 %v5526, %v5238
      %v5559 = vadd.f32 %v5527, %v5239
      %v5560 = vadd.f32 %v5528, %v5240
      %v5561 = vadd.f32 %v5529, %v5241
      %v5562 = vadd.f32 %v5530, %v5242
      %v5563 = vadd.f32 %v5531, %v5243
      %v5564 = vadd.f32 %v5532, %v5244
      %v5565 = vadd.f32 %v5533, %v5245
      %v5566 = vadd.f32 %v5534, %v5246
      %v5567 = vadd.f32 %v5535, %v5247
      %v5568 = vadd.f32 %v5536, %v5248
      %v5569 = vadd.f32 %v5537, %v5249
      %v5570 = vadd.f32 %v5538, %v5250
      %v5571 = vadd.f32 %v5539, %v5251
      %v5572 = vadd.f32 %v5540, %v5252
      %v5573 = vadd.f32 %v5541, %v5253
      %v5574 = vadd.f32 %v5542, %v5254
      %v5575 = vadd.f32 %v5543, %v5255
      %v5576 = vadd.f32 %v5544, %v5256
      %v5577 = vadd.f32 %v5545, %v5257
      %v5578 = vadd.f32 %v5546, %v5258
      %v5579 = vadd.f32 %v5547, %v5259
      %v5580 = vadd.f32 %v5548, %v5260
      %v5581 = vadd.f32 %v5549, %v5261
      %v5582 = vadd.f32 %v5550, %v5262
      %v5583 = vadd.f32 %v5551, %v5263
      %v5584 = vadd.f32 %v5552, %v5264
      %v5585 = vadd.f32 %v5553, %v5265
      %v5586 = vadd.f32 %v5554, %v5266
      %v5587 = vand.u32 2147483647, %v5555
      %v5588 = vand.u32 2147483647, %v5556
      %v5589 = vand.u32 2147483647, %v5557
      %v5590 = vand.u32 2147483647, %v5558
      %v5591 = vand.u32 2147483647, %v5559
      %v5592 = vand.u32 2147483647, %v5560
      %v5593 = vand.u32 2147483647, %v5561
      %v5594 = vand.u32 2147483647, %v5562
      %v5595 = vand.u32 2147483647, %v5563
      %v5596 = vand.u32 2147483647, %v5564
      %v5597 = vand.u32 2147483647, %v5565
      %v5598 = vand.u32 2147483647, %v5566
      %v5599 = vand.u32 2147483647, %v5567
      %v5600 = vand.u32 2147483647, %v5568
      %v5601 = vand.u32 2147483647, %v5569
      %v5602 = vand.u32 2147483647, %v5570
      %v5603 = vand.u32 2147483647, %v5571
      %v5604 = vand.u32 2147483647, %v5572
      %v5605 = vand.u32 2147483647, %v5573
      %v5606 = vand.u32 2147483647, %v5574
      %v5607 = vand.u32 2147483647, %v5575
      %v5608 = vand.u32 2147483647, %v5576
      %v5609 = vand.u32 2147483647, %v5577
      %v5610 = vand.u32 2147483647, %v5578
      %v5611 = vand.u32 2147483647, %v5579
      %v5612 = vand.u32 2147483647, %v5580
      %v5613 = vand.u32 2147483647, %v5581
      %v5614 = vand.u32 2147483647, %v5582
      %v5615 = vand.u32 2147483647, %v5583
      %v5616 = vand.u32 2147483647, %v5584
      %v5617 = vand.u32 2147483647, %v5585
      %v5618 = vand.u32 2147483647, %v5586
      %v5619 = vadd.f32 %v5299, %v5587
      %v5620 = vadd.f32 %v5300, %v5588
      %v5621 = vadd.f32 %v5301, %v5589
      %v5622 = vadd.f32 %v5302, %v5590
      %v5623 = vadd.f32 %v5303, %v5591
      %v5624 = vadd.f32 %v5304, %v5592
      %v5625 = vadd.f32 %v5305, %v5593
      %v5626 = vadd.f32 %v5306, %v5594
      %v5627 = vadd.f32 %v5307, %v5595
      %v5628 = vadd.f32 %v5308, %v5596
      %v5629 = vadd.f32 %v5309, %v5597
      %v5630 = vadd.f32 %v5310, %v5598
      %v5631 = vadd.f32 %v5311, %v5599
      %v5632 = vadd.f32 %v5312, %v5600
      %v5633 = vadd.f32 %v5313, %v5601
      %v5634 = vadd.f32 %v5314, %v5602
      %v5635 = vadd.f32 %v5315, %v5603
      %v5636 = vadd.f32 %v5316, %v5604
      %v5637 = vadd.f32 %v5317, %v5605
      %v5638 = vadd.f32 %v5318, %v5606
      %v5639 = vadd.f32 %v5319, %v5607
      %v5640 = vadd.f32 %v5320, %v5608
      %v5641 = vadd.f32 %v5321, %v5609
      %v5642 = vadd.f32 %v5322, %v5610
      %v5643 = vadd.f32 %v5323, %v5611
      %v5644 = vadd.f32 %v5324, %v5612
      %v5645 = vadd.f32 %v5325, %v5613
      %v5646 = vadd.f32 %v5326, %v5614
      %v5647 = vadd.f32 %v5327, %v5615
      %v5648 = vadd.f32 %v5328, %v5616
      %v5649 = vadd.f32 %v5329, %v5617
      %v5650 = vadd.f32 %v5330, %v5618
      %v5651 = vadd.f32 %v1903, %v2486
      %v5652 = vadd.f32 %v1904, %v2487
      %v5653 = vadd.f32 %v1905, %v2488
      %v5654 = vadd.f32 %v1906, %v2489
      %v5655 = vadd.f32 %v1907, %v2490
      %v5656 = vadd.f32 %v1908, %v2491
      %v5657 = vadd.f32 %v1909, %v2492
      %v5658 = vadd.f32 %v1910, %v2493
      %v5659 = vadd.f32 %v1911, %v2494
      %v5660 = vadd.f32 %v1912, %v2495
      %v5661 = vadd.f32 %v1913, %v2496
      %v5662 = vadd.f32 %v1914, %v2497
      %v5663 = vadd.f32 %v1915, %v2498
      %v5664 = vadd.f32 %v1916, %v2499
      %v5665 = vadd.f32 %v1917, %v2500
      %v5666 = vadd.f32 %v1918, %v2501
      %v5667 = vadd.f32 %v1919, %v2502
      %v5668 = vadd.f32 %v1920, %v2503
      %v5669 = vadd.f32 %v1921, %v2504
      %v5670 = vadd.f32 %v1922, %v2505
      %v5671 = vadd.f32 %v1923, %v2506
      %v5672 = vadd.f32 %v1924, %v2507
      %v5673 = vadd.f32 %v1925, %v2508
      %v5674 = vadd.f32 %v1926, %v2509
      %v5675 = vadd.f32 %v1927, %v2510
      %v5676 = vadd.f32 %v1928, %v2511
      %v5677 = vadd.f32 %v1929, %v2512
      %v5678 = vadd.f32 %v1930, %v2513
      %v5679 = vadd.f32 %v1931, %v2514
      %v5680 = vadd.f32 %v1932, %v2515
      %v5681 = vadd.f32 %v1933, %v2516
      %v5682 = vadd.f32 %v1934, %v2517
      %v5683 = vmul.f32 %v2583, -4.0
      %v5684 = vmul.f32 %v2584, -4.0
      %v5685 = vmul.f32 %v2585, -4.0
      %v5686 = vmul.f32 %v2586, -4.0
      %v5687 = vmul.f32 %v2587, -4.0
      %v5688 = vmul.f32 %v2588, -4.0
      %v5689 = vmul.f32 %v2589, -4.0
      %v5690 = vmul.f32 %v2590, -4.0
      %v5691 = vmul.f32 %v2591, -4.0
      %v5692 = vmul.f32 %v2592, -4.0
      %v5693 = vmul.f32 %v2593, -4.0
      %v5694 = vmul.f32 %v2594, -4.0
      %v5695 = vmul.f32 %v2595, -4.0
      %v5696 = vmul.f32 %v2596, -4.0
      %v5697 = vmul.f32 %v2597, -4.0
      %v5698 = vmul.f32 %v2598, -4.0
      %v5699 = vmul.f32 %v2599, -4.0
      %v5700 = vmul.f32 %v2600, -4.0
      %v5701 = vmul.f32 %v2601, -4.0
      %v5702 = vmul.f32 %v2602, -4.0
      %v5703 = vmul.f32 %v2603, -4.0
      %v5704 = vmul.f32 %v2604, -4.0
      %v5705 = vmul.f32 %v2605, -4.0
      %v5706 = vmul.f32 %v2606, -4.0
      %v5707 = vmul.f32 %v2607, -4.0
      %v5708 = vmul.f32 %v2608, -4.0
      %v5709 = vmul.f32 %v2609, -4.0
      %v5710 = vmul.f32 %v2610, -4.0
      %v5711 = vmul.f32 %v2611, -4.0
      %v5712 = vmul.f32 %v2612, -4.0
      %v5713 = vmul.f32 %v2613, -4.0
      %v5714 = vmul.f32 %v2614, -4.0
      %v5715 = vadd.f32 %v5651, %v5683
      %v5716 = vadd.f32 %v5652, %v5684
      %v5717 = vadd.f32 %v5653, %v5685
      %v5718 = vadd.f32 %v5654, %v5686
      %v5719 = vadd.f32 %v5655, %v5687
      %v5720 = vadd.f32 %v5656, %v5688
      %v5721 = vadd.f32 %v5657, %v5689
      %v5722 = vadd.f32 %v5658, %v5690
      %v5723 = vadd.f32 %v5659, %v5691
      %v5724 = vadd.f32 %v5660, %v5692
      %v5725 = vadd.f32 %v5661, %v5693
      %v5726 = vadd.f32 %v5662, %v5694
      %v5727 = vadd.f32 %v5663, %v5695
      %v5728 = vadd.f32 %v5664, %v5696
      %v5729 = vadd.f32 %v5665, %v5697
      %v5730 = vadd.f32 %v5666, %v5698
      %v5731 = vadd.f32 %v5667, %v5699
      %v5732 = vadd.f32 %v5668, %v5700
      %v5733 = vadd.f32 %v5669, %v5701
      %v5734 = vadd.f32 %v5670, %v5702
      %v5735 = vadd.f32 %v5671, %v5703
      %v5736 = vadd.f32 %v5672, %v5704
      %v5737 = vadd.f32 %v5673, %v5705
      %v5738 = vadd.f32 %v5674, %v5706
      %v5739 = vadd.f32 %v5675, %v5707
      %v5740 = vadd.f32 %v5676, %v5708
      %v5741 = vadd.f32 %v5677, %v5709
      %v5742 = vadd.f32 %v5678, %v5710
      %v5743 = vadd.f32 %v5679, %v5711
      %v5744 = vadd.f32 %v5680, %v5712
      %v5745 = vadd.f32 %v5681, %v5713
      %v5746 = vadd.f32 %v5682, %v5714
      %v5747 = vadd.f32 %v5715, %v2680
      %v5748 = vadd.f32 %v5716, %v2681
      %v5749 = vadd.f32 %v5717, %v2682
      %v5750 = vadd.f32 %v5718, %v2683
      %v5751 = vadd.f32 %v5719, %v2684
      %v5752 = vadd.f32 %v5720, %v2685
      %v5753 = vadd.f32 %v5721, %v2686
      %v5754 = vadd.f32 %v5722, %v2687
      %v5755 = vadd.f32 %v5723, %v2688
      %v5756 = vadd.f32 %v5724, %v2689
      %v5757 = vadd.f32 %v5725, %v2690
      %v5758 = vadd.f32 %v5726, %v2691
      %v5759 = vadd.f32 %v5727, %v2692
      %v5760 = vadd.f32 %v5728, %v2693
      %v5761 = vadd.f32 %v5729, %v2694
      %v5762 = vadd.f32 %v5730, %v2695
      %v5763 = vadd.f32 %v5731, %v2696
      %v5764 = vadd.f32 %v5732, %v2697
      %v5765 = vadd.f32 %v5733, %v2698
      %v5766 = vadd.f32 %v5734, %v2699
      %v5767 = vadd.f32 %v5735, %v2700
      %v5768 = vadd.f32 %v5736, %v2701
      %v5769 = vadd.f32 %v5737, %v2702
      %v5770 = vadd.f32 %v5738, %v2703
      %v5771 = vadd.f32 %v5739, %v2704
      %v5772 = vadd.f32 %v5740, %v2705
      %v5773 = vadd.f32 %v5741, %v2706
      %v5774 = vadd.f32 %v5742, %v2707
      %v5775 = vadd.f32 %v5743, %v2708
      %v5776 = vadd.f32 %v5744, %v2709
      %v5777 = vadd.f32 %v5745, %v2710
      %v5778 = vadd.f32 %v5746, %v2711
      %v5779 = vadd.f32 %v5747, %v3263
      %v5780 = vadd.f32 %v5748, %v3264
      %v5781 = vadd.f32 %v5749, %v3265
      %v5782 = vadd.f32 %v5750, %v3266
      %v5783 = vadd.f32 %v5751, %v3267
      %v5784 = vadd.f32 %v5752, %v3268
      %v5785 = vadd.f32 %v5753, %v3269
      %v5786 = vadd.f32 %v5754, %v3270
      %v5787 = vadd.f32 %v5755, %v3271
      %v5788 = vadd.f32 %v5756, %v3272
      %v5789 = vadd.f32 %v5757, %v3273
      %v5790 = vadd.f32 %v5758, %v3274
      %v5791 = vadd.f32 %v5759, %v3275
      %v5792 = vadd.f32 %v5760, %v3276
      %v5793 = vadd.f32 %v5761, %v3277
      %v5794 = vadd.f32 %v5762, %v3278
      %v5795 = vadd.f32 %v5763, %v3279
      %v5796 = vadd.f32 %v5764, %v3280
      %v5797 = vadd.f32 %v5765, %v3281
      %v5798 = vadd.f32 %v5766, %v3282
      %v5799 = vadd.f32 %v5767, %v3283
      %v5800 = vadd.f32 %v5768, %v3284
      %v5801 = vadd.f32 %v5769, %v3285
      %v5802 = vadd.f32 %v5770, %v3286
      %v5803 = vadd.f32 %v5771, %v3287
      %v5804 = vadd.f32 %v5772, %v3288
      %v5805 = vadd.f32 %v5773, %v3289
      %v5806 = vadd.f32 %v5774, %v3290
      %v5807 = vadd.f32 %v5775, %v3291
      %v5808 = vadd.f32 %v5776, %v3292
      %v5809 = vadd.f32 %v5777, %v3293
      %v5810 = vadd.f32 %v5778, %v3294
      %v5811 = vand.u32 2147483647, %v5779
      %v5812 = vand.u32 2147483647, %v5780
      %v5813 = vand.u32 2147483647, %v5781
      %v5814 = vand.u32 2147483647, %v5782
      %v5815 = vand.u32 2147483647, %v5783
      %v5816 = vand.u32 2147483647, %v5784
      %v5817 = vand.u32 2147483647, %v5785
      %v5818 = vand.u32 2147483647, %v5786
      %v5819 = vand.u32 2147483647, %v5787
      %v5820 = vand.u32 2147483647, %v5788
      %v5821 = vand.u32 2147483647, %v5789
      %v5822 = vand.u32 2147483647, %v5790
      %v5823 = vand.u32 2147483647, %v5791
      %v5824 = vand.u32 2147483647, %v5792
      %v5825 = vand.u32 2147483647, %v5793
      %v5826 = vand.u32 2147483647, %v5794
      %v5827 = vand.u32 2147483647, %v5795
      %v5828 = vand.u32 2147483647, %v5796
      %v5829 = vand.u32 2147483647, %v5797
      %v5830 = vand.u32 2147483647, %v5798
      %v5831 = vand.u32 2147483647, %v5799
      %v5832 = vand.u32 2147483647, %v5800
      %v5833 = vand.u32 2147483647, %v5801
      %v5834 = vand.u32 2147483647, %v5802
      %v5835 = vand.u32 2147483647, %v5803
      %v5836 = vand.u32 2147483647, %v5804
      %v5837 = vand.u32 2147483647, %v5805
      %v5838 = vand.u32 2147483647, %v5806
      %v5839 = vand.u32 2147483647, %v5807
      %v5840 = vand.u32 2147483647, %v5808
      %v5841 = vand.u32 2147483647, %v5809
      %v5842 = vand.u32 2147483647, %v5810
      %v5843 = vmul.f32 %v5811, 2.0
      %v5844 = vmul.f32 %v5812, 2.0
      %v5845 = vmul.f32 %v5813, 2.0
      %v5846 = vmul.f32 %v5814, 2.0
      %v5847 = vmul.f32 %v5815, 2.0
      %v5848 = vmul.f32 %v5816, 2.0
      %v5849 = vmul.f32 %v5817, 2.0
      %v5850 = vmul.f32 %v5818, 2.0
      %v5851 = vmul.f32 %v5819, 2.0
      %v5852 = vmul.f32 %v5820, 2.0
      %v5853 = vmul.f32 %v5821, 2.0
      %v5854 = vmul.f32 %v5822, 2.0
      %v5855 = vmul.f32 %v5823, 2.0
      %v5856 = vmul.f32 %v5824, 2.0
      %v5857 = vmul.f32 %v5825, 2.0
      %v5858 = vmul.f32 %v5826, 2.0
      %v5859 = vmul.f32 %v5827, 2.0
      %v5860 = vmul.f32 %v5828, 2.0
      %v5861 = vmul.f32 %v5829, 2.0
      %v5862 = vmul.f32 %v5830, 2.0
      %v5863 = vmul.f32 %v5831, 2.0
      %v5864 = vmul.f32 %v5832, 2.0
      %v5865 = vmul.f32 %v5833, 2.0
      %v5866 = vmul.f32 %v5834, 2.0
      %v5867 = vmul.f32 %v5835, 2.0
      %v5868 = vmul.f32 %v5836, 2.0
      %v5869 = vmul.f32 %v5837, 2.0
      %v5870 = vmul.f32 %v5838, 2.0
      %v5871 = vmul.f32 %v5839, 2.0
      %v5872 = vmul.f32 %v5840, 2.0
      %v5873 = vmul.f32 %v5841, 2.0
      %v5874 = vmul.f32 %v5842, 2.0
      %v5875 = vadd.f32 %v5619, %v5843
      %v5876 = vadd.f32 %v5620, %v5844
      %v5877 = vadd.f32 %v5621, %v5845
      %v5878 = vadd.f32 %v5622, %v5846
      %v5879 = vadd.f32 %v5623, %v5847
      %v5880 = vadd.f32 %v5624, %v5848
      %v5881 = vadd.f32 %v5625, %v5849
      %v5882 = vadd.f32 %v5626, %v5850
      %v5883 = vadd.f32 %v5627, %v5851
      %v5884 = vadd.f32 %v5628, %v5852
      %v5885 = vadd.f32 %v5629, %v5853
      %v5886 = vadd.f32 %v5630, %v5854
      %v5887 = vadd.f32 %v5631, %v5855
      %v5888 = vadd.f32 %v5632, %v5856
      %v5889 = vadd.f32 %v5633, %v5857
      %v5890 = vadd.f32 %v5634, %v5858
      %v5891 = vadd.f32 %v5635, %v5859
      %v5892 = vadd.f32 %v5636, %v5860
      %v5893 = vadd.f32 %v5637, %v5861
      %v5894 = vadd.f32 %v5638, %v5862
      %v5895 = vadd.f32 %v5639, %v5863
      %v5896 = vadd.f32 %v5640, %v5864
      %v5897 = vadd.f32 %v5641, %v5865
      %v5898 = vadd.f32 %v5642, %v5866
      %v5899 = vadd.f32 %v5643, %v5867
      %v5900 = vadd.f32 %v5644, %v5868
      %v5901 = vadd.f32 %v5645, %v5869
      %v5902 = vadd.f32 %v5646, %v5870
      %v5903 = vadd.f32 %v5647, %v5871
      %v5904 = vadd.f32 %v5648, %v5872
      %v5905 = vadd.f32 %v5649, %v5873
      %v5906 = vadd.f32 %v5650, %v5874
      %v5907 = vadd.f32 %v4979, %v5875
      %v5908 = vadd.f32 %v4980, %v5876
      %v5909 = vadd.f32 %v4981, %v5877
      %v5910 = vadd.f32 %v4982, %v5878
      %v5911 = vadd.f32 %v4983, %v5879
      %v5912 = vadd.f32 %v4984, %v5880
      %v5913 = vadd.f32 %v4985, %v5881
      %v5914 = vadd.f32 %v4986, %v5882
      %v5915 = vadd.f32 %v4987, %v5883
      %v5916 = vadd.f32 %v4988, %v5884
      %v5917 = vadd.f32 %v4989, %v5885
      %v5918 = vadd.f32 %v4990, %v5886
      %v5919 = vadd.f32 %v4991, %v5887
      %v5920 = vadd.f32 %v4992, %v5888
      %v5921 = vadd.f32 %v4993, %v5889
      %v5922 = vadd.f32 %v4994, %v5890
      %v5923 = vadd.f32 %v4995, %v5891
      %v5924 = vadd.f32 %v4996, %v5892
      %v5925 = vadd.f32 %v4997, %v5893
      %v5926 = vadd.f32 %v4998, %v5894
      %v5927 = vadd.f32 %v4999, %v5895
      %v5928 = vadd.f32 %v5000, %v5896
      %v5929 = vadd.f32 %v5001, %v5897
      %v5930 = vadd.f32 %v5002, %v5898
      %v5931 = vadd.f32 %v5003, %v5899
      %v5932 = vadd.f32 %v5004, %v5900
      %v5933 = vadd.f32 %v5005, %v5901
      %v5934 = vadd.f32 %v5006, %v5902
      %v5935 = vadd.f32 %v5007, %v5903
      %v5936 = vadd.f32 %v5008, %v5904
      %v5937 = vadd.f32 %v5009, %v5905
      %v5938 = vadd.f32 %v5010, %v5906
      %v5939 = vld [vmem:[%s4] sm:$0x1]
      %v5941 = vperm.slane %v5939, 0
      %v5943 = vadd.f32 %v5907, %v5941
      %v5944 = vadd.f32 %v5908, %v5941
      %v5945 = vadd.f32 %v5909, %v5941
      %v5946 = vadd.f32 %v5910, %v5941
      %v5947 = vadd.f32 %v5911, %v5941
      %v5948 = vadd.f32 %v5912, %v5941
      %v5949 = vadd.f32 %v5913, %v5941
      %v5950 = vadd.f32 %v5914, %v5941
      %v5951 = vadd.f32 %v5915, %v5941
      %v5952 = vadd.f32 %v5916, %v5941
      %v5953 = vadd.f32 %v5917, %v5941
      %v5954 = vadd.f32 %v5918, %v5941
      %v5955 = vadd.f32 %v5919, %v5941
      %v5956 = vadd.f32 %v5920, %v5941
      %v5957 = vadd.f32 %v5921, %v5941
      %v5958 = vadd.f32 %v5922, %v5941
      %v5959 = vadd.f32 %v5923, %v5941
      %v5960 = vadd.f32 %v5924, %v5941
      %v5961 = vadd.f32 %v5925, %v5941
      %v5962 = vadd.f32 %v5926, %v5941
      %v5963 = vadd.f32 %v5927, %v5941
      %v5964 = vadd.f32 %v5928, %v5941
      %v5965 = vadd.f32 %v5929, %v5941
      %v5966 = vadd.f32 %v5930, %v5941
      %v5967 = vadd.f32 %v5931, %v5941
      %v5968 = vadd.f32 %v5932, %v5941
      %v5969 = vadd.f32 %v5933, %v5941
      %v5970 = vadd.f32 %v5934, %v5941
      %v5971 = vadd.f32 %v5935, %v5941
      %v5972 = vadd.f32 %v5936, %v5941
      %v5973 = vadd.f32 %v5937, %v5941
      %v5974 = vadd.f32 %v5938, %v5941
      %vm5975 = vcmp.ge.f32.partialorder %v5943, 0.0
      %vm5976 = vcmp.ge.f32.partialorder %v5944, 0.0
      %vm5977 = vcmp.ge.f32.partialorder %v5945, 0.0
      %vm5978 = vcmp.ge.f32.partialorder %v5946, 0.0
      %vm5979 = vcmp.ge.f32.partialorder %v5947, 0.0
      %vm5980 = vcmp.ge.f32.partialorder %v5948, 0.0
      %vm5981 = vcmp.ge.f32.partialorder %v5949, 0.0
      %vm5982 = vcmp.ge.f32.partialorder %v5950, 0.0
      %vm5983 = vcmp.ge.f32.partialorder %v5951, 0.0
      %vm5984 = vcmp.ge.f32.partialorder %v5952, 0.0
      %vm5985 = vcmp.ge.f32.partialorder %v5953, 0.0
      %vm5986 = vcmp.ge.f32.partialorder %v5954, 0.0
      %vm5987 = vcmp.ge.f32.partialorder %v5955, 0.0
      %vm5988 = vcmp.ge.f32.partialorder %v5956, 0.0
      %vm5989 = vcmp.ge.f32.partialorder %v5957, 0.0
      %vm5990 = vcmp.ge.f32.partialorder %v5958, 0.0
      %vm5991 = vcmp.ge.f32.partialorder %v5959, 0.0
      %vm5992 = vcmp.ge.f32.partialorder %v5960, 0.0
      %vm5993 = vcmp.ge.f32.partialorder %v5961, 0.0
      %vm5994 = vcmp.ge.f32.partialorder %v5962, 0.0
      %vm5995 = vcmp.ge.f32.partialorder %v5963, 0.0
      %vm5996 = vcmp.ge.f32.partialorder %v5964, 0.0
      %vm5997 = vcmp.ge.f32.partialorder %v5965, 0.0
      %vm5998 = vcmp.ge.f32.partialorder %v5966, 0.0
      %vm5999 = vcmp.ge.f32.partialorder %v5967, 0.0
      %vm6000 = vcmp.ge.f32.partialorder %v5968, 0.0
      %vm6001 = vcmp.ge.f32.partialorder %v5969, 0.0
      %vm6002 = vcmp.ge.f32.partialorder %v5970, 0.0
      %vm6003 = vcmp.ge.f32.partialorder %v5971, 0.0
      %vm6004 = vcmp.ge.f32.partialorder %v5972, 0.0
      %vm6005 = vcmp.ge.f32.partialorder %v5973, 0.0
      %vm6006 = vcmp.ge.f32.partialorder %v5974, 0.0
      %v6007 = vmul.f32 %v5943, 0.01
      %v6008 = vmul.f32 %v5944, 0.01
      %v6009 = vmul.f32 %v5945, 0.01
      %v6010 = vmul.f32 %v5946, 0.01
      %v6011 = vmul.f32 %v5947, 0.01
      %v6012 = vmul.f32 %v5948, 0.01
      %v6013 = vmul.f32 %v5949, 0.01
      %v6014 = vmul.f32 %v5950, 0.01
      %v6015 = vmul.f32 %v5951, 0.01
      %v6016 = vmul.f32 %v5952, 0.01
      %v6017 = vmul.f32 %v5953, 0.01
      %v6018 = vmul.f32 %v5954, 0.01
      %v6019 = vmul.f32 %v5955, 0.01
      %v6020 = vmul.f32 %v5956, 0.01
      %v6021 = vmul.f32 %v5957, 0.01
      %v6022 = vmul.f32 %v5958, 0.01
      %v6023 = vmul.f32 %v5959, 0.01
      %v6024 = vmul.f32 %v5960, 0.01
      %v6025 = vmul.f32 %v5961, 0.01
      %v6026 = vmul.f32 %v5962, 0.01
      %v6027 = vmul.f32 %v5963, 0.01
      %v6028 = vmul.f32 %v5964, 0.01
      %v6029 = vmul.f32 %v5965, 0.01
      %v6030 = vmul.f32 %v5966, 0.01
      %v6031 = vmul.f32 %v5967, 0.01
      %v6032 = vmul.f32 %v5968, 0.01
      %v6033 = vmul.f32 %v5969, 0.01
      %v6034 = vmul.f32 %v5970, 0.01
      %v6035 = vmul.f32 %v5971, 0.01
      %v6036 = vmul.f32 %v5972, 0.01
      %v6037 = vmul.f32 %v5973, 0.01
      %v6038 = vmul.f32 %v5974, 0.01
      %v6039 = vsel %vm5975, %v5943, %v6007
      %v6040 = vsel %vm5976, %v5944, %v6008
      %v6041 = vsel %vm5977, %v5945, %v6009
      %v6042 = vsel %vm5978, %v5946, %v6010
      %v6043 = vsel %vm5979, %v5947, %v6011
      %v6044 = vsel %vm5980, %v5948, %v6012
      %v6045 = vsel %vm5981, %v5949, %v6013
      %v6046 = vsel %vm5982, %v5950, %v6014
      %v6047 = vsel %vm5983, %v5951, %v6015
      %v6048 = vsel %vm5984, %v5952, %v6016
      %v6049 = vsel %vm5985, %v5953, %v6017
      %v6050 = vsel %vm5986, %v5954, %v6018
      %v6051 = vsel %vm5987, %v5955, %v6019
      %v6052 = vsel %vm5988, %v5956, %v6020
      %v6053 = vsel %vm5989, %v5957, %v6021
      %v6054 = vsel %vm5990, %v5958, %v6022
      %v6055 = vsel %vm5991, %v5959, %v6023
      %v6056 = vsel %vm5992, %v5960, %v6024
      %v6057 = vsel %vm5993, %v5961, %v6025
      %v6058 = vsel %vm5994, %v5962, %v6026
      %v6059 = vsel %vm5995, %v5963, %v6027
      %v6060 = vsel %vm5996, %v5964, %v6028
      %v6061 = vsel %vm5997, %v5965, %v6029
      %v6062 = vsel %vm5998, %v5966, %v6030
      %v6063 = vsel %vm5999, %v5967, %v6031
      %v6064 = vsel %vm6000, %v5968, %v6032
      %v6065 = vsel %vm6001, %v5969, %v6033
      %v6066 = vsel %vm6002, %v5970, %v6034
      %v6067 = vsel %vm6003, %v5971, %v6035
      %v6068 = vsel %vm6004, %v5972, %v6036
      %v6069 = vsel %vm6005, %v5973, %v6037
      %v6070 = vsel %vm6006, %v5974, %v6038
      %v6071 = vadd.f32 %v6039, %v2583
      %v6072 = vadd.f32 %v6040, %v2584
      %v6073 = vadd.f32 %v6041, %v2585
      %v6074 = vadd.f32 %v6042, %v2586
      %v6075 = vadd.f32 %v6043, %v2587
      %v6076 = vadd.f32 %v6044, %v2588
      %v6077 = vadd.f32 %v6045, %v2589
      %v6078 = vadd.f32 %v6046, %v2590
      %v6079 = vadd.f32 %v6047, %v2591
      %v6080 = vadd.f32 %v6048, %v2592
      %v6081 = vadd.f32 %v6049, %v2593
      %v6082 = vadd.f32 %v6050, %v2594
      %v6083 = vadd.f32 %v6051, %v2595
      %v6084 = vadd.f32 %v6052, %v2596
      %v6085 = vadd.f32 %v6053, %v2597
      %v6086 = vadd.f32 %v6054, %v2598
      %v6087 = vadd.f32 %v6055, %v2599
      %v6088 = vadd.f32 %v6056, %v2600
      %v6089 = vadd.f32 %v6057, %v2601
      %v6090 = vadd.f32 %v6058, %v2602
      %v6091 = vadd.f32 %v6059, %v2603
      %v6092 = vadd.f32 %v6060, %v2604
      %v6093 = vadd.f32 %v6061, %v2605
      %v6094 = vadd.f32 %v6062, %v2606
      %v6095 = vadd.f32 %v6063, %v2607
      %v6096 = vadd.f32 %v6064, %v2608
      %v6097 = vadd.f32 %v6065, %v2609
      %v6098 = vadd.f32 %v6066, %v2610
      %v6099 = vadd.f32 %v6067, %v2611
      %v6100 = vadd.f32 %v6068, %v2612
      %v6101 = vadd.f32 %v6069, %v2613
      %v6102 = vadd.f32 %v6070, %v2614
      %vm6103 = vcmask 15360
      %v6104 = vsel %vm6103, %v6071, 0.0
      %v6105 = vsel %vm6103, %v6073, 0.0
      %v6106 = vadd.f32 %v6104, %v6105
      %v6107 = vsel %vm6103, %v6075, 0.0
      %v6108 = vadd.f32 %v6106, %v6107
      %v6109 = vsel %vm6103, %v6077, 0.0
      %v6110 = vadd.f32 %v6108, %v6109
      %v6111 = vsel %vm6103, %v6079, 0.0
      %v6112 = vadd.f32 %v6110, %v6111
      %v6113 = vsel %vm6103, %v6081, 0.0
      %v6114 = vadd.f32 %v6112, %v6113
      %v6115 = vsel %vm6103, %v6083, 0.0
      %v6116 = vadd.f32 %v6114, %v6115
      %v6117 = vsel %vm6103, %v6085, 0.0
      %v6118 = vadd.f32 %v6116, %v6117
      %v6119 = vsel %vm6103, %v6087, 0.0
      %v6120 = vadd.f32 %v6118, %v6119
      %v6121 = vsel %vm6103, %v6089, 0.0
      %v6122 = vadd.f32 %v6120, %v6121
      %v6123 = vsel %vm6103, %v6091, 0.0
      %v6124 = vadd.f32 %v6122, %v6123
      %v6125 = vsel %vm6103, %v6093, 0.0
      %v6126 = vadd.f32 %v6124, %v6125
      %v6127 = vsel %vm6103, %v6095, 0.0
      %v6128 = vadd.f32 %v6126, %v6127
      %v6129 = vsel %vm6103, %v6097, 0.0
      %v6130 = vadd.f32 %v6128, %v6129
      %v6131 = vsel %vm6103, %v6099, 0.0
      %v6132 = vadd.f32 %v6130, %v6131
      %v6133 = vsel %vm6103, %v6101, 0.0
      %v6134 = vadd.f32 %v6132, %v6133
      %v6135 = vsel %vm6103, %v6072, 0.0
      %v6136 = vsel %vm6103, %v6074, 0.0
      %v6137 = vadd.f32 %v6135, %v6136
      %v6138 = vsel %vm6103, %v6076, 0.0
      %v6139 = vadd.f32 %v6137, %v6138
      %v6140 = vsel %vm6103, %v6078, 0.0
      %v6141 = vadd.f32 %v6139, %v6140
      %v6142 = vsel %vm6103, %v6080, 0.0
      %v6143 = vadd.f32 %v6141, %v6142
      %v6144 = vsel %vm6103, %v6082, 0.0
      %v6145 = vadd.f32 %v6143, %v6144
      %v6146 = vsel %vm6103, %v6084, 0.0
      %v6147 = vadd.f32 %v6145, %v6146
      %v6148 = vsel %vm6103, %v6086, 0.0
      %v6149 = vadd.f32 %v6147, %v6148
      %v6150 = vsel %vm6103, %v6088, 0.0
      %v6151 = vadd.f32 %v6149, %v6150
      %v6152 = vsel %vm6103, %v6090, 0.0
      %v6153 = vadd.f32 %v6151, %v6152
      %v6154 = vsel %vm6103, %v6092, 0.0
      %v6155 = vadd.f32 %v6153, %v6154
      %v6156 = vsel %vm6103, %v6094, 0.0
      %v6157 = vadd.f32 %v6155, %v6156
      %v6158 = vsel %vm6103, %v6096, 0.0
      %v6159 = vadd.f32 %v6157, %v6158
      %v6160 = vsel %vm6103, %v6098, 0.0
      %v6161 = vadd.f32 %v6159, %v6160
      %v6162 = vsel %vm6103, %v6100, 0.0
      %v6163 = vadd.f32 %v6161, %v6162
      %v6164 = vsel %vm6103, %v6102, 0.0
      %v6165 = vadd.f32 %v6163, %v6164
      %v6166 = vrcp.pop 16.0
      %v6167 = vmul.f32 16.0, %v6166
      %v6168 = vsub.f32 1.0, %v6167
      %v6169 = vmul.f32 %v6166, %v6168
      %v6170 = vadd.f32 %v6166, %v6169
      %vm6171 = vweird.f32 %v6166
      %v6172 = vsel %vm6171, %v6166, %v6170
      %v6173 = vmul.f32 %v6134, %v6172
      %v6174 = vmul.f32 %v6165, %v6172
      %v6175 = vsel %vm6103, %v6173, 0.0
      %v6176 = vsel %vm6103, %v6174, 0.0
      %v6177 = vadd.f32 %v6175, %v6176
      %v6178 = vrot.slane %v6177, 4
      %v6179 = vadd.f32 %v6177, %v6178
      %v6180 = vrot.slane %v6179, 2
      %v6181 = vadd.f32 %v6179, %v6180
      %v6182 = vrot.slane %v6181, 1
      %v6183 = vadd.f32 %v6181, %v6182
      %v6184 = vmul.f32 %v6183, %v6172
      %v6185 = vmul.f32 %v245, 8.0
      %v6186 = vmul.f32 %v246, 8.0
      %v6187 = vmul.f32 %v247, 8.0
      %v6188 = vmul.f32 %v248, 8.0
      %v6189 = vmul.f32 %v249, 8.0
      %v6190 = vmul.f32 %v250, 8.0
      %v6191 = vmul.f32 %v251, 8.0
      %v6192 = vmul.f32 %v252, 8.0
      %v6193 = vmul.f32 %v253, 8.0
      %v6194 = vmul.f32 %v254, 8.0
      %v6195 = vmul.f32 %v255, 8.0
      %v6196 = vmul.f32 %v256, 8.0
      %v6197 = vmul.f32 %v257, 8.0
      %v6198 = vmul.f32 %v258, 8.0
      %v6199 = vmul.f32 %v259, 8.0
      %v6200 = vmul.f32 %v260, 8.0
      %v6201 = vmul.f32 %v261, 8.0
      %v6202 = vmul.f32 %v262, 8.0
      %v6203 = vmul.f32 %v263, 8.0
      %v6204 = vmul.f32 %v264, 8.0
      %v6205 = vmul.f32 %v265, 8.0
      %v6206 = vmul.f32 %v266, 8.0
      %v6207 = vmul.f32 %v267, 8.0
      %v6208 = vmul.f32 %v268, 8.0
      %v6209 = vmul.f32 %v269, 8.0
      %v6210 = vmul.f32 %v270, 8.0
      %v6211 = vmul.f32 %v271, 8.0
      %v6212 = vmul.f32 %v272, 8.0
      %v6213 = vmul.f32 %v273, 8.0
      %v6214 = vmul.f32 %v274, 8.0
      %v6215 = vmul.f32 %v275, 8.0
      %v6216 = vmul.f32 %v276, 8.0
      %vm6217 = vcmp.ge.f32.partialorder %v6185, 0.0
      %vm6218 = vcmp.ge.f32.partialorder %v6186, 0.0
      %vm6219 = vcmp.ge.f32.partialorder %v6187, 0.0
      %vm6220 = vcmp.ge.f32.partialorder %v6188, 0.0
      %vm6221 = vcmp.ge.f32.partialorder %v6189, 0.0
      %vm6222 = vcmp.ge.f32.partialorder %v6190, 0.0
      %vm6223 = vcmp.ge.f32.partialorder %v6191, 0.0
      %vm6224 = vcmp.ge.f32.partialorder %v6192, 0.0
      %vm6225 = vcmp.ge.f32.partialorder %v6193, 0.0
      %vm6226 = vcmp.ge.f32.partialorder %v6194, 0.0
      %vm6227 = vcmp.ge.f32.partialorder %v6195, 0.0
      %vm6228 = vcmp.ge.f32.partialorder %v6196, 0.0
      %vm6229 = vcmp.ge.f32.partialorder %v6197, 0.0
      %vm6230 = vcmp.ge.f32.partialorder %v6198, 0.0
      %vm6231 = vcmp.ge.f32.partialorder %v6199, 0.0
      %vm6232 = vcmp.ge.f32.partialorder %v6200, 0.0
      %vm6233 = vcmp.ge.f32.partialorder %v6201, 0.0
      %vm6234 = vcmp.ge.f32.partialorder %v6202, 0.0
      %vm6235 = vcmp.ge.f32.partialorder %v6203, 0.0
      %vm6236 = vcmp.ge.f32.partialorder %v6204, 0.0
      %vm6237 = vcmp.ge.f32.partialorder %v6205, 0.0
      %vm6238 = vcmp.ge.f32.partialorder %v6206, 0.0
      %vm6239 = vcmp.ge.f32.partialorder %v6207, 0.0
      %vm6240 = vcmp.ge.f32.partialorder %v6208, 0.0
      %vm6241 = vcmp.ge.f32.partialorder %v6209, 0.0
      %vm6242 = vcmp.ge.f32.partialorder %v6210, 0.0
      %vm6243 = vcmp.ge.f32.partialorder %v6211, 0.0
      %vm6244 = vcmp.ge.f32.partialorder %v6212, 0.0
      %vm6245 = vcmp.ge.f32.partialorder %v6213, 0.0
      %vm6246 = vcmp.ge.f32.partialorder %v6214, 0.0
      %vm6247 = vcmp.ge.f32.partialorder %v6215, 0.0
      %vm6248 = vcmp.ge.f32.partialorder %v6216, 0.0
      %v6249 = vmul.f32 %v6185, 0.01
      %v6250 = vmul.f32 %v6186, 0.01
      %v6251 = vmul.f32 %v6187, 0.01
      %v6252 = vmul.f32 %v6188, 0.01
      %v6253 = vmul.f32 %v6189, 0.01
      %v6254 = vmul.f32 %v6190, 0.01
      %v6255 = vmul.f32 %v6191, 0.01
      %v6256 = vmul.f32 %v6192, 0.01
      %v6257 = vmul.f32 %v6193, 0.01
      %v6258 = vmul.f32 %v6194, 0.01
      %v6259 = vmul.f32 %v6195, 0.01
      %v6260 = vmul.f32 %v6196, 0.01
      %v6261 = vmul.f32 %v6197, 0.01
      %v6262 = vmul.f32 %v6198, 0.01
      %v6263 = vmul.f32 %v6199, 0.01
      %v6264 = vmul.f32 %v6200, 0.01
      %v6265 = vmul.f32 %v6201, 0.01
      %v6266 = vmul.f32 %v6202, 0.01
      %v6267 = vmul.f32 %v6203, 0.01
      %v6268 = vmul.f32 %v6204, 0.01
      %v6269 = vmul.f32 %v6205, 0.01
      %v6270 = vmul.f32 %v6206, 0.01
      %v6271 = vmul.f32 %v6207, 0.01
      %v6272 = vmul.f32 %v6208, 0.01
      %v6273 = vmul.f32 %v6209, 0.01
      %v6274 = vmul.f32 %v6210, 0.01
      %v6275 = vmul.f32 %v6211, 0.01
      %v6276 = vmul.f32 %v6212, 0.01
      %v6277 = vmul.f32 %v6213, 0.01
      %v6278 = vmul.f32 %v6214, 0.01
      %v6279 = vmul.f32 %v6215, 0.01
      %v6280 = vmul.f32 %v6216, 0.01
      %v6281 = vsel %vm6217, %v6185, %v6249
      %v6282 = vsel %vm6218, %v6186, %v6250
      %v6283 = vsel %vm6219, %v6187, %v6251
      %v6284 = vsel %vm6220, %v6188, %v6252
      %v6285 = vsel %vm6221, %v6189, %v6253
      %v6286 = vsel %vm6222, %v6190, %v6254
      %v6287 = vsel %vm6223, %v6191, %v6255
      %v6288 = vsel %vm6224, %v6192, %v6256
      %v6289 = vsel %vm6225, %v6193, %v6257
      %v6290 = vsel %vm6226, %v6194, %v6258
      %v6291 = vsel %vm6227, %v6195, %v6259
      %v6292 = vsel %vm6228, %v6196, %v6260
      %v6293 = vsel %vm6229, %v6197, %v6261
      %v6294 = vsel %vm6230, %v6198, %v6262
      %v6295 = vsel %vm6231, %v6199, %v6263
      %v6296 = vsel %vm6232, %v6200, %v6264
      %v6297 = vsel %vm6233, %v6201, %v6265
      %v6298 = vsel %vm6234, %v6202, %v6266
      %v6299 = vsel %vm6235, %v6203, %v6267
      %v6300 = vsel %vm6236, %v6204, %v6268
      %v6301 = vsel %vm6237, %v6205, %v6269
      %v6302 = vsel %vm6238, %v6206, %v6270
      %v6303 = vsel %vm6239, %v6207, %v6271
      %v6304 = vsel %vm6240, %v6208, %v6272
      %v6305 = vsel %vm6241, %v6209, %v6273
      %v6306 = vsel %vm6242, %v6210, %v6274
      %v6307 = vsel %vm6243, %v6211, %v6275
      %v6308 = vsel %vm6244, %v6212, %v6276
      %v6309 = vsel %vm6245, %v6213, %v6277
      %v6310 = vsel %vm6246, %v6214, %v6278
      %v6311 = vsel %vm6247, %v6215, %v6279
      %v6312 = vsel %vm6248, %v6216, %v6280
      %v6313 = vadd.f32 %v6281, %v245
      %v6314 = vadd.f32 %v6282, %v246
      %v6315 = vadd.f32 %v6283, %v247
      %v6316 = vadd.f32 %v6284, %v248
      %v6317 = vadd.f32 %v6285, %v249
      %v6318 = vadd.f32 %v6286, %v250
      %v6319 = vadd.f32 %v6287, %v251
      %v6320 = vadd.f32 %v6288, %v252
      %v6321 = vadd.f32 %v6289, %v253
      %v6322 = vadd.f32 %v6290, %v254
      %v6323 = vadd.f32 %v6291, %v255
      %v6324 = vadd.f32 %v6292, %v256
      %v6325 = vadd.f32 %v6293, %v257
      %v6326 = vadd.f32 %v6294, %v258
      %v6327 = vadd.f32 %v6295, %v259
      %v6328 = vadd.f32 %v6296, %v260
      %v6329 = vadd.f32 %v6297, %v261
      %v6330 = vadd.f32 %v6298, %v262
      %v6331 = vadd.f32 %v6299, %v263
      %v6332 = vadd.f32 %v6300, %v264
      %v6333 = vadd.f32 %v6301, %v265
      %v6334 = vadd.f32 %v6302, %v266
      %v6335 = vadd.f32 %v6303, %v267
      %v6336 = vadd.f32 %v6304, %v268
      %v6337 = vadd.f32 %v6305, %v269
      %v6338 = vadd.f32 %v6306, %v270
      %v6339 = vadd.f32 %v6307, %v271
      %v6340 = vadd.f32 %v6308, %v272
      %v6341 = vadd.f32 %v6309, %v273
      %v6342 = vadd.f32 %v6310, %v274
      %v6343 = vadd.f32 %v6311, %v275
      %v6344 = vadd.f32 %v6312, %v276
      %vm6345 = vcmask 64512
      %v6346 = vsel %vm6345, %v6313, 0.0
      %v6347 = vsel %vm6345, %v6315, 0.0
      %v6348 = vadd.f32 %v6346, %v6347
      %v6349 = vsel %vm6345, %v6317, 0.0
      %v6350 = vadd.f32 %v6348, %v6349
      %v6351 = vsel %vm6345, %v6319, 0.0
      %v6352 = vadd.f32 %v6350, %v6351
      %v6353 = vsel %vm6345, %v6321, 0.0
      %v6354 = vadd.f32 %v6352, %v6353
      %v6355 = vsel %vm6345, %v6323, 0.0
      %v6356 = vadd.f32 %v6354, %v6355
      %v6357 = vsel %vm6345, %v6325, 0.0
      %v6358 = vadd.f32 %v6356, %v6357
      %v6359 = vsel %vm6345, %v6327, 0.0
      %v6360 = vadd.f32 %v6358, %v6359
      %v6361 = vsel %vm6345, %v6329, 0.0
      %v6362 = vadd.f32 %v6360, %v6361
      %v6363 = vsel %vm6345, %v6331, 0.0
      %v6364 = vadd.f32 %v6362, %v6363
      %v6365 = vsel %vm6345, %v6333, 0.0
      %v6366 = vadd.f32 %v6364, %v6365
      %v6367 = vsel %vm6345, %v6335, 0.0
      %v6368 = vadd.f32 %v6366, %v6367
      %v6369 = vsel %vm6345, %v6337, 0.0
      %v6370 = vadd.f32 %v6368, %v6369
      %v6371 = vsel %vm6345, %v6339, 0.0
      %v6372 = vadd.f32 %v6370, %v6371
      %v6373 = vsel %vm6345, %v6341, 0.0
      %v6374 = vadd.f32 %v6372, %v6373
      %v6375 = vsel %vm6345, %v6343, 0.0
      %v6376 = vadd.f32 %v6374, %v6375
      %v6377 = vsel %vm6345, %v6314, 0.0
      %v6378 = vsel %vm6345, %v6316, 0.0
      %v6379 = vadd.f32 %v6377, %v6378
      %v6380 = vsel %vm6345, %v6318, 0.0
      %v6381 = vadd.f32 %v6379, %v6380
      %v6382 = vsel %vm6345, %v6320, 0.0
      %v6383 = vadd.f32 %v6381, %v6382
      %v6384 = vsel %vm6345, %v6322, 0.0
      %v6385 = vadd.f32 %v6383, %v6384
      %v6386 = vsel %vm6345, %v6324, 0.0
      %v6387 = vadd.f32 %v6385, %v6386
      %v6388 = vsel %vm6345, %v6326, 0.0
      %v6389 = vadd.f32 %v6387, %v6388
      %v6390 = vsel %vm6345, %v6328, 0.0
      %v6391 = vadd.f32 %v6389, %v6390
      %v6392 = vsel %vm6345, %v6330, 0.0
      %v6393 = vadd.f32 %v6391, %v6392
      %v6394 = vsel %vm6345, %v6332, 0.0
      %v6395 = vadd.f32 %v6393, %v6394
      %v6396 = vsel %vm6345, %v6334, 0.0
      %v6397 = vadd.f32 %v6395, %v6396
      %v6398 = vsel %vm6345, %v6336, 0.0
      %v6399 = vadd.f32 %v6397, %v6398
      %v6400 = vsel %vm6345, %v6338, 0.0
      %v6401 = vadd.f32 %v6399, %v6400
      %v6402 = vsel %vm6345, %v6340, 0.0
      %v6403 = vadd.f32 %v6401, %v6402
      %v6404 = vsel %vm6345, %v6342, 0.0
      %v6405 = vadd.f32 %v6403, %v6404
      %v6406 = vsel %vm6345, %v6344, 0.0
      %v6407 = vadd.f32 %v6405, %v6406
      %v6408 = vmul.f32 %v6376, %v6172
      %v6409 = vmul.f32 %v6407, %v6172
      %v6410 = vsel %vm6345, %v6408, 0.0
      %v6411 = vsel %vm6345, %v6409, 0.0
      %v6412 = vadd.f32 %v6410, %v6411
      %v6413 = vrot.slane %v6412, 4
      %v6414 = vadd.f32 %v6412, %v6413
      %v6415 = vrot.slane %v6414, 2
      %v6416 = vadd.f32 %v6414, %v6415
      %v6417 = vrot.slane %v6416, 1
      %v6418 = vadd.f32 %v6416, %v6417
      %v6419 = vmul.f32 %v6418, %v6172
      %vm6420 = vcmask 73728
      %6421 = vst.msk [vmem:[#allocation2] sm:$0x1] %vm6420, 0.0
      %6423 = vrot.lane.b32.xlu0 %v6419, 1
      %v6424 = vpop.permute.xlu0 %6423
      %vm6426 = vcmask 65544
      %6427 = vst.msk [vmem:[#allocation2] sm:$0x1] %vm6426, %v6424
      %6429 = vrot.lane.b32.xlu0 %v6184, 1
      %v6430 = vpop.permute.xlu0 %6429
      %vm6432 = vcmask 16392
      %6433 = vst.msk [vmem:[#allocation2] sm:$0x1] %vm6432, %v6430
      %v6434 = vld [vmem:[%s0] sm:$0x1]
      %v6435 = vld [vmem:[#allocation2] sm:$0x1]
      %6437 = vset.pattern.permute.xlu0 0
      %6438 = vperm.xlu0 %6437, %v6434
      %v6439 = vpop.permute.xlu0 %6438
      %v6441 = vperm.slane %v6439, 0
      %v6442 = vmul.f32 %v6441, %v6435
      %6443 = vset.pattern.permute.xlu0 1
      %6444 = vperm.xlu0 %6443, %v6434
      %v6445 = vpop.permute.xlu0 %6444
      %v6447 = vperm.slane %v6445, 0
      %v6448 = vmul.f32 %v6447, %v6435
      %6450 = vrot.lane.b32.xlu0 %v6448, 127
      %v6451 = vpop.permute.xlu0 %6450
      %v6453 = vadd.f32 %v6442, %v6451
      %6454 = vset.pattern.permute.xlu0 2
      %6455 = vperm.xlu0 %6454, %v6434
      %v6456 = vpop.permute.xlu0 %6455
      %v6458 = vperm.slane %v6456, 0
      %v6459 = vmul.f32 %v6458, %v6435
      %6461 = vrot.lane.b32.xlu0 %v6459, 126
      %v6462 = vpop.permute.xlu0 %6461
      %v6464 = vadd.f32 %v6453, %v6462
      %v6465 = vxor.u32 %v6464, 2147483648
      %v6466 = vmul.f32 %v6465, 1.442695
      %v6467 = vpow.pop %v6466
      %v6468 = vadd.f32 %v6467, 1.0
      %v6469 = vrcp.pop %v6468
      %v6470 = vmul.f32 %v6468, %v6469
      %v6471 = vsub.f32 1.0, %v6470
      %v6472 = vmul.f32 %v6469, %v6471
      %v6473 = vadd.f32 %v6469, %v6472
      %vm6474 = vweird.f32 %v6468
      %vm6475 = vweird.f32 %v6469
      %vm6476 = vmor %vm6474, %vm6475
      %v6477 = vsel %vm6476, %v6469, %v6473
      %v6478 = vand.u32 2147483647, %v6468
      %vm6479 = vcmp.eq.f32.partialorder %v6478, 8.507059e+37
      %v6480 = vand.u32 %v6468, 2147483648
      %v6481 = vor.u32 1.1754944e-38, %v6480
      %v6482 = vsel %vm6479, %v6481, %v6477
      %v6483 = vmul.f32 1.0, %v6482
      %v6485 = vperm.slane %v6483, 0
      %v6487 = vmul.f32 %v245, %v6485
      %v6488 = vmul.f32 %v246, %v6485
      %v6489 = vmul.f32 %v247, %v6485
      %v6490 = vmul.f32 %v248, %v6485
      %v6491 = vmul.f32 %v249, %v6485
      %v6492 = vmul.f32 %v250, %v6485
      %v6493 = vmul.f32 %v251, %v6485
      %v6494 = vmul.f32 %v252, %v6485
      %v6495 = vmul.f32 %v253, %v6485
      %v6496 = vmul.f32 %v254, %v6485
      %v6497 = vmul.f32 %v255, %v6485
      %v6498 = vmul.f32 %v256, %v6485
      %v6499 = vmul.f32 %v257, %v6485
      %v6500 = vmul.f32 %v258, %v6485
      %v6501 = vmul.f32 %v259, %v6485
      %v6502 = vmul.f32 %v260, %v6485
      %v6503 = vmul.f32 %v261, %v6485
      %v6504 = vmul.f32 %v262, %v6485
      %v6505 = vmul.f32 %v263, %v6485
      %v6506 = vmul.f32 %v264, %v6485
      %v6507 = vmul.f32 %v265, %v6485
      %v6508 = vmul.f32 %v266, %v6485
      %v6509 = vmul.f32 %v267, %v6485
      %v6510 = vmul.f32 %v268, %v6485
      %v6511 = vmul.f32 %v269, %v6485
      %v6512 = vmul.f32 %v270, %v6485
      %v6513 = vmul.f32 %v271, %v6485
      %v6514 = vmul.f32 %v272, %v6485
      %v6515 = vmul.f32 %v273, %v6485
      %v6516 = vmul.f32 %v274, %v6485
      %v6517 = vmul.f32 %v275, %v6485
      %v6518 = vmul.f32 %v276, %v6485
      %6519 = vst.msk [vmem:[%s244] sm:$0xff] %vm6345, %v6487
      %6520 = vst.msk [vmem:[%s244 + $0x8] sm:$0xff] %vm6345, %v6488
      %6521 = vst.msk [vmem:[%s244 + $0x10] sm:$0xff] %vm6345, %v6489
      %6522 = vst.msk [vmem:[%s244 + $0x18] sm:$0xff] %vm6345, %v6490
      %6523 = vst.msk [vmem:[%s244 + $0x20] sm:$0xff] %vm6345, %v6491
      %6524 = vst.msk [vmem:[%s244 + $0x28] sm:$0xff] %vm6345, %v6492
      %6525 = vst.msk [vmem:[%s244 + $0x30] sm:$0xff] %vm6345, %v6493
      %6526 = vst.msk [vmem:[%s244 + $0x38] sm:$0xff] %vm6345, %v6494
      %6527 = vst.msk [vmem:[%s244 + $0x40] sm:$0xff] %vm6345, %v6495
      %6528 = vst.msk [vmem:[%s244 + $0x48] sm:$0xff] %vm6345, %v6496
      %6529 = vst.msk [vmem:[%s244 + $0x50] sm:$0xff] %vm6345, %v6497
      %6530 = vst.msk [vmem:[%s244 + $0x58] sm:$0xff] %vm6345, %v6498
      %6531 = vst.msk [vmem:[%s244 + $0x60] sm:$0xff] %vm6345, %v6499
      %6532 = vst.msk [vmem:[%s244 + $0x68] sm:$0xff] %vm6345, %v6500
      %6533 = vst.msk [vmem:[%s244 + $0x70] sm:$0xff] %vm6345, %v6501
      %6534 = vst.msk [vmem:[%s244 + $0x78] sm:$0xff] %vm6345, %v6502
      %6535 = vst.msk [vmem:[%s244 + $0x80] sm:$0xff] %vm6345, %v6503
      %6536 = vst.msk [vmem:[%s244 + $0x88] sm:$0xff] %vm6345, %v6504
      %6537 = vst.msk [vmem:[%s244 + $0x90] sm:$0xff] %vm6345, %v6505
      %6538 = vst.msk [vmem:[%s244 + $0x98] sm:$0xff] %vm6345, %v6506
      %6539 = vst.msk [vmem:[%s244 + $0xa0] sm:$0xff] %vm6345, %v6507
      %6540 = vst.msk [vmem:[%s244 + $0xa8] sm:$0xff] %vm6345, %v6508
      %6541 = vst.msk [vmem:[%s244 + $0xb0] sm:$0xff] %vm6345, %v6509
      %6542 = vst.msk [vmem:[%s244 + $0xb8] sm:$0xff] %vm6345, %v6510
      %6543 = vst.msk [vmem:[%s244 + $0xc0] sm:$0xff] %vm6345, %v6511
      %6544 = vst.msk [vmem:[%s244 + $0xc8] sm:$0xff] %vm6345, %v6512
      %6545 = vst.msk [vmem:[%s244 + $0xd0] sm:$0xff] %vm6345, %v6513
      %6546 = vst.msk [vmem:[%s244 + $0xd8] sm:$0xff] %vm6345, %v6514
      %6547 = vst.msk [vmem:[%s244 + $0xe0] sm:$0xff] %vm6345, %v6515
      %6548 = vst.msk [vmem:[%s244 + $0xe8] sm:$0xff] %vm6345, %v6516
      %6549 = vst.msk [vmem:[%s244 + $0xf0] sm:$0xff] %vm6345, %v6517
      %6550 = vst.msk [vmem:[%s244 + $0xf8] sm:$0xff] %vm6345, %v6518
      %p6551 = scmp.lt.s32.totalorder %s16, 1
      %s6552 = scalar_select %p6551, %s16, 1
      %s6553 = smul.addr %s6552, 32
      %s6554 = smul.addr %s6553, 8
      %s6555 = scalar_lea.vmem %s5, %s6554
      // Predicated region
      $region41: #{fast_conv_attention.1} parent=39 // pred_check
        %p6556 = pneg %p149
      $region42: #{fast_conv_attention.1} parent=39 // pred_check_branch
        %6558 = sbr.rel (%p6556) target = $region44
      $region43: #{fast_conv_attention.1} parent=39 // pred_region
        _
      $region44: #{fast_conv_attention.1} parent=39 // pred_fallthru
        _
    $region40: #{fast_conv_attention.1} parent=5 // pred_fallthru
      _
    %p6559 = scmp.le.s32.totalorder 2, %s11
    // Predicated region
    $region45: #{fast_conv_attention.1} parent=5 // pred_check
      %p6560 = pneg %p6559
    $region46: #{fast_conv_attention.1} parent=5 // pred_check_branch
      %6562 = sbr.rel (%p6560) target = $region48
    $region47: #{fast_conv_attention.1} parent=5 // pred_region
      %s6563 = ssub.s32 %s11, 2
      // Predicated region
      $region49: #{fast_conv_attention.1} parent=47 // pred_check
        %p6564 = pneg %p155
      $region50: #{fast_conv_attention.1} parent=47 // pred_check_branch
        %6566 = sbr.rel (%p6564) target = $region52
      $region51: #{fast_conv_attention.1} parent=47 // pred_region
        %p6567 = scmp.lt.s32.totalorder %s17, 1
        %s6568 = scalar_select %p6567, %s17, 1
        %s6569 = smul.addr %s6568, 32
        %s6570 = smul.addr %s6569, 8
        %s6571 = scalar_lea.vmem %s5, %s6570
      $region52: #{fast_conv_attention.1} parent=47 // pred_fallthru
        _
    $region48: #{fast_conv_attention.1} parent=5 // pred_fallthru
      _
  $region6: #{fast_conv_attention.1} parent=0 // loop_footer
    %s15 = sadd.s32 1, %s11
  $region7: #{fast_conv_attention.1} parent=0 // loop_footer_branch
    %10 = sbr.rel target = $region3
  $region8: #{fast_conv_attention.1} parent=0 // loop_exit
    _

</llo_original>
